<compile_context>
chip_gen: v5e
topology: v5e:2x2
jax: 0.10.0
libtpu: 0.0.40
codegen_flags: <defaults>
</compile_context>

<pallas_src>
import jax
import jax.numpy as jnp
from jax.experimental import pallas as pl
from jax.experimental.pallas import tpu as pltpu

CH = 256            # channel_dim
GDIM = 1024         # x_g feature dim
HW = 14             # spatial size (14 x 14 = 196, hard-coded by the module)
NPIX = HW * HW      # 196
PAD = 16            # flat top pad rows before the 196 spatial positions (>= 15)
PADDED = 240        # padded flat rows (multiple of 16 for bf16 sublane tiling)
BOT = PADDED - PAD - NPIX   # 28 bottom pad rows (>= 15)


def scb_kernel(h_ref, k_ref, wcc_ref, bcc_ref, wff_ref, bff_ref,
               scale_ref, shift_ref, mnr_ref, mnl_ref,
               out_ref, pad_ref, acc_ref):
    # h_ref: (1, 196, 256) bf16;  k_ref: (1, 1, 256) f32 (precomputed k_g)
    h = h_ref[0]                                                      # (196, 256) bf16

    # channel_conv (1x1 conv) as bf16 MXU matmul + bias, then LeakyReLU(0.2).
    v = jnp.dot(h, wcc_ref[...], preferred_element_type=jnp.float32) + bcc_ref[...]
    v = jnp.where(v > 0, v, 0.2 * v)                                  # q_g == v_g (f32)

    # spatial mean of q_g -> (1, 256); gate with precomputed k_g.
    q_mean = jnp.sum(v, axis=0, keepdims=True) * (1.0 / NPIX)
    z = q_mean * k_ref[0]                                             # (1, 256)
    r = 1.0 / (1.0 + jnp.exp(-z))                                     # sigmoid
    c = r * v                                                         # (196, 256) f32

    # Build three row-padded bf16 slabs of c for the 3x3 conv taps:
    #   slab 0 (dx = -1 taps): source rightmost column zeroed
    #   slab 1 (dx =  0 taps): unmasked
    #   slab 2 (dx = +1 taps): source leftmost column zeroed
    # Only the pad margins are zeroed (the 196 data rows are overwritten).
    for s in range(3):
        pad_ref[s, pl.ds(0, PAD), :] = jnp.zeros((PAD, CH), jnp.bfloat16)
        pad_ref[s, pl.ds(PAD + NPIX, BOT), :] = jnp.zeros((BOT, CH), jnp.bfloat16)
    pad_ref[0, pl.ds(PAD, NPIX), :] = (c * mnr_ref[...]).astype(jnp.bfloat16)
    pad_ref[1, pl.ds(PAD, NPIX), :] = c.astype(jnp.bfloat16)
    pad_ref[2, pl.ds(PAD, NPIX), :] = (c * mnl_ref[...]).astype(jnp.bfloat16)

    # gcff 3x3 conv (padding=1): 9 shifted bf16 matmuls accumulated into a
    # VMEM f32 scratch (streamed, no register-file spill of the accumulator).
    for dy in range(3):
        for dx in range(3):
            off = (dy - 1) * HW + (dx - 1)
            lhs = pad_ref[dx, pl.ds(PAD + off, NPIX), :]              # (196, 256) bf16
            contrib = jnp.dot(lhs, wff_ref[dy * 3 + dx],
                              preferred_element_type=jnp.float32)
            if dy == 0 and dx == 0:
                acc_ref[...] = contrib
            else:
                acc_ref[...] += contrib

    conv = acc_ref[...] + bff_ref[...]
    conv = jnp.maximum(conv, 0.0)                                     # ReLU
    conv = conv * scale_ref[...] + shift_ref[...]                     # BatchNorm (eval)

    # e_g = c_g + gcff(c_g); re-read c from slab 1 (keeps c dead over the tap loop).
    c_back = pad_ref[1, pl.ds(PAD, NPIX), :].astype(jnp.float32)
    out_ref[0] = (c_back + conv).astype(out_ref.dtype)


def init_params(key):
    """Deterministic synthetic parameters, PyTorch shapes -> kernel layouts (f32)."""
    k1, k2, k3, k4, k5, k6 = jax.random.split(key, 6)
    # PyTorch shapes
    w_cc = jax.random.normal(k1, (CH, CH, 1, 1), jnp.float32) * 0.02   # channel_conv.weight
    b_cc = jax.random.normal(k2, (CH,), jnp.float32) * 0.02
    w_g = jax.random.normal(k3, (CH, GDIM, 1, 1), jnp.float32) * 0.02  # w_g.weight
    b_g = jax.random.normal(k4, (CH,), jnp.float32) * 0.02
    w_ff = jax.random.normal(k5, (CH, CH, 3, 3), jnp.float32) * 0.02   # gcff.body.weight
    b_ff = jax.random.normal(k6, (CH,), jnp.float32) * 0.02
    # BatchNorm2d(256, eps=1e-3) freshly initialized, eval mode
    gamma = jnp.ones((CH,), jnp.float32)
    beta = jnp.zeros((CH,), jnp.float32)
    run_mean = jnp.zeros((CH,), jnp.float32)
    run_var = jnp.ones((CH,), jnp.float32)
    eps = 1e-3
    scale = gamma / jnp.sqrt(run_var + eps)
    shift = beta - run_mean * scale

    # kernel layouts: (Cin, Cout) for right-matmuls; 3x3 weight as (9, Cin, Cout)
    wcc = jnp.transpose(w_cc[:, :, 0, 0])                       # (256, 256)
    wg = jnp.transpose(w_g[:, :, 0, 0])                         # (1024, 256)
    wff = jnp.transpose(w_ff, (2, 3, 1, 0)).reshape(9, CH, CH)  # tap = dy*3 + dx
    return (wcc, b_cc.reshape(1, CH), wg, b_g.reshape(1, CH),
            wff, b_ff.reshape(1, CH), scale.reshape(1, CH), shift.reshape(1, CH))


def scb_forward(h_r, x_g, params):
    """h_r: (B, 256, 14, 14) NCHW, x_g: (B, 1024) -> e_g: (B, 256, 14, 14)."""
    B = h_r.shape[0]
    wcc, bcc, wg, bg, wff, bff, scale, shift = params

    # layout: (B, H*W, C) slabs for the kernel (channels on lanes), bf16 operands.
    h_flat = jnp.transpose(h_r, (0, 2, 3, 1)).reshape(B, NPIX, CH).astype(jnp.bfloat16)

    # k_g = w_g(x_g): hoisted out of the kernel (M=1 matmul is MXU-hostile);
    # a single batched XLA matmul instead.
    k = (x_g @ wg + bg).reshape(B, 1, CH).astype(jnp.float32)

    wcc_bf = wcc.astype(jnp.bfloat16)
    wff_bf = wff.astype(jnp.bfloat16)

    # full-lane-width source-column masks for the dx = -1 / +1 conv taps
    col = jnp.arange(NPIX, dtype=jnp.int32) % HW
    mask_nr = jnp.broadcast_to((col <= HW - 2)[:, None], (NPIX, CH)).astype(jnp.float32)
    mask_nl = jnp.broadcast_to((col >= 1)[:, None], (NPIX, CH)).astype(jnp.float32)

    out = pl.pallas_call(
        scb_kernel,
        out_shape=jax.ShapeDtypeStruct((B, NPIX, CH), jnp.float32),
        grid_spec=pltpu.PrefetchScalarGridSpec(
            num_scalar_prefetch=0,
            grid=(B,),
            in_specs=[
                pl.BlockSpec((1, NPIX, CH), lambda b: (b, 0, 0)),   # h_r slab (bf16)
                pl.BlockSpec((1, 1, CH), lambda b: (b, 0, 0)),      # precomputed k_g
                pl.BlockSpec((CH, CH), lambda b: (0, 0)),           # channel_conv W (bf16)
                pl.BlockSpec((1, CH), lambda b: (0, 0)),            # channel_conv b
                pl.BlockSpec((9, CH, CH), lambda b: (0, 0, 0)),     # gcff 3x3 W (bf16)
                pl.BlockSpec((1, CH), lambda b: (0, 0)),            # gcff b
                pl.BlockSpec((1, CH), lambda b: (0, 0)),            # BN scale
                pl.BlockSpec((1, CH), lambda b: (0, 0)),            # BN shift
                pl.BlockSpec((NPIX, CH), lambda b: (0, 0)),         # right-col-invalid mask
                pl.BlockSpec((NPIX, CH), lambda b: (0, 0)),         # left-col-invalid mask
            ],
            out_specs=pl.BlockSpec((1, NPIX, CH), lambda b: (b, 0, 0)),
            scratch_shapes=[
                pltpu.VMEM((3, PADDED, CH), jnp.bfloat16),   # 3 masked/padded slabs of c
                pltpu.VMEM((NPIX, CH), jnp.float32),         # 3x3-conv accumulator
            ],
        ),
        compiler_params=pltpu.CompilerParams(
            dimension_semantics=("parallel",)),
    )(h_flat, k, wcc_bf, bcc, wff_bf, bff, scale, shift, mask_nr, mask_nl)

    # back to PyTorch NCHW
    return jnp.transpose(out.reshape(B, HW, HW, CH), (0, 3, 1, 2))


def scb_reference(h_r, x_g, params):
    """Pure-JAX f32 reference of the same eval-mode forward pass."""
    wcc, bcc, wg, bg, wff, bff, scale, shift = params
    B = h_r.shape[0]
    h = jnp.transpose(h_r, (0, 2, 3, 1)).reshape(B, NPIX, CH)
    v = jnp.einsum('bnc,cd->bnd', h, wcc) + bcc
    v = jnp.where(v > 0, v, 0.2 * v)
    q_mean = v.mean(axis=1)                      # (B, 256)
    k = x_g @ wg + bg                            # (B, 256)
    r = jax.nn.sigmoid(q_mean * k)
    c = r[:, None, :] * v                        # (B, 196, 256)
    cimg = c.reshape(B, HW, HW, CH)
    cpad = jnp.pad(cimg, ((0, 0), (1, 1), (1, 1), (0, 0)))
    conv = jnp.zeros_like(cimg)
    for dy in range(3):
        for dx in range(3):
            conv = conv + jnp.einsum('bhwc,cd->bhwd',
                                     cpad[:, dy:dy + HW, dx:dx + HW, :],
                                     wff[dy * 3 + dx])
    conv = conv + bff
    conv = jnp.maximum(conv, 0.0)
    conv = conv * scale + shift
    e = cimg + conv
    return jnp.transpose(e, (0, 3, 1, 2))


if __name__ == "__main__":
    key = jax.random.PRNGKey(0)
    kp, kh, kx = jax.random.split(key, 3)
    params = init_params(kp)

    B = 2
    h_r = jax.random.normal(kh, (B, CH, HW, HW), jnp.float32)   # (2, 256, 14, 14)
    x_g = jax.random.normal(kx, (B, GDIM), jnp.float32)         # (2, 1024)

    out = scb_forward(h_r, x_g, params)
    out = jax.block_until_ready(out)
    assert out.shape == (B, CH, HW, HW)

    ref = scb_reference(h_r, x_g, params)
    err = jnp.max(jnp.abs(out - ref))
    if not bool(jnp.allclose(out, ref, atol=2e-2, rtol=2e-2)):
        raise AssertionError(f"kernel/reference mismatch, max abs err = {err}")

    print("KERNEL_OK")
</pallas_src>

<mosaic_0001>
module attributes {stable_mosaic.version = 11 : i64} {
  func.func @scb_kernel(%arg0: i32, %arg1: memref<1x196x256xbf16, #tpu.memory_space<vmem>>, %arg2: memref<1x1x256xf32, #tpu.memory_space<vmem>>, %arg3: memref<256x256xbf16, #tpu.memory_space<vmem>>, %arg4: memref<1x256xf32, #tpu.memory_space<vmem>>, %arg5: memref<9x256x256xbf16, #tpu.memory_space<vmem>>, %arg6: memref<1x256xf32, #tpu.memory_space<vmem>>, %arg7: memref<1x256xf32, #tpu.memory_space<vmem>>, %arg8: memref<1x256xf32, #tpu.memory_space<vmem>>, %arg9: memref<196x256xf32, #tpu.memory_space<vmem>>, %arg10: memref<196x256xf32, #tpu.memory_space<vmem>>, %arg11: memref<1x196x256xf32, #tpu.memory_space<vmem>>, %arg12: memref<3x240x256xbf16, #tpu.memory_space<vmem>>, %arg13: memref<196x256xf32, #tpu.memory_space<vmem>>) attributes {dimension_semantics = [#tpu.dimension_semantics<parallel>], iteration_bounds = array<i64: 2>, scalar_prefetch = 0 : i64, scratch_operands = 2 : i64, tpu.core_type = #tpu.core_type<tc>, window_params = [{transform_indices = @transform_0, window_bounds = array<i64: 1, 196, 256>}, {transform_indices = @transform_1, window_bounds = array<i64: 1, 1, 256>}, {pipeline_mode = #tpu.pipeline_mode<synchronous>, transform_indices = @transform_2, window_bounds = array<i64: 256, 256>}, {pipeline_mode = #tpu.pipeline_mode<synchronous>, transform_indices = @transform_3, window_bounds = array<i64: 1, 256>}, {pipeline_mode = #tpu.pipeline_mode<synchronous>, transform_indices = @transform_4, window_bounds = array<i64: 9, 256, 256>}, {pipeline_mode = #tpu.pipeline_mode<synchronous>, transform_indices = @transform_5, window_bounds = array<i64: 1, 256>}, {pipeline_mode = #tpu.pipeline_mode<synchronous>, transform_indices = @transform_6, window_bounds = array<i64: 1, 256>}, {pipeline_mode = #tpu.pipeline_mode<synchronous>, transform_indices = @transform_7, window_bounds = array<i64: 1, 256>}, {pipeline_mode = #tpu.pipeline_mode<synchronous>, transform_indices = @transform_8, window_bounds = array<i64: 196, 256>}, {pipeline_mode = #tpu.pipeline_mode<synchronous>, transform_indices = @transform_9, window_bounds = array<i64: 196, 256>}, {transform_indices = @transform_10, window_bounds = array<i64: 1, 196, 256>}]} {
    %c0 = arith.constant 0 : index
    %c0_0 = arith.constant 0 : index
    %c0_1 = arith.constant 0 : index
    %0 = vector.load %arg1[%c0, %c0_0, %c0_1] : memref<1x196x256xbf16, #tpu.memory_space<vmem>>, vector<1x196x256xbf16>
    %1 = vector.shape_cast %0 : vector<1x196x256xbf16> to vector<196x256xbf16>
    %c0_2 = arith.constant 0 : index
    %c0_3 = arith.constant 0 : index
    %2 = vector.load %arg3[%c0_2, %c0_3] : memref<256x256xbf16, #tpu.memory_space<vmem>>, vector<256x256xbf16>
    %cst = arith.constant dense<0.000000e+00> : vector<196x256xf32>
    %3 = tpu.matmul %1, %2, %cst {dimension_numbers = #tpu.dot_dimension_numbers<[1], [0], [0], [1], [0, 0, 1, 1], [], []>} : vector<196x256xbf16>, vector<256x256xbf16>, vector<196x256xf32> -> vector<196x256xf32>
    %c0_4 = arith.constant 0 : index
    %c0_5 = arith.constant 0 : index
    %4 = vector.load %arg4[%c0_4, %c0_5] : memref<1x256xf32, #tpu.memory_space<vmem>>, vector<1x256xf32>
    %5 = vector.broadcast %4 : vector<1x256xf32> to vector<196x256xf32>
    %6 = arith.addf %3, %5 : vector<196x256xf32>
    %cst_6 = arith.constant 0.000000e+00 : f32
    %7 = vector.broadcast %cst_6 : f32 to vector<196x256xf32>
    %8 = arith.cmpf ogt, %6, %7 : vector<196x256xf32>
    %cst_7 = arith.constant 2.000000e-01 : f32
    %9 = vector.broadcast %cst_7 : f32 to vector<196x256xf32>
    %10 = arith.mulf %9, %6 : vector<196x256xf32>
    %11 = arith.select %8, %6, %10 : vector<196x256xi1>, vector<196x256xf32>
    %cst_8 = arith.constant dense<0.000000e+00> : vector<256xf32>
    %12 = vector.multi_reduction <add>, %11, %cst_8 [0] : vector<196x256xf32> to vector<256xf32>
    %13 = vector.shape_cast %12 : vector<256xf32> to vector<1x256xf32>
    %cst_9 = arith.constant 0.00510204071 : f32
    %14 = vector.broadcast %cst_9 : f32 to vector<1x256xf32>
    %15 = arith.mulf %13, %14 : vector<1x256xf32>
    %c0_10 = arith.constant 0 : index
    %c0_11 = arith.constant 0 : index
    %c0_12 = arith.constant 0 : index
    %16 = vector.load %arg2[%c0_10, %c0_11, %c0_12] : memref<1x1x256xf32, #tpu.memory_space<vmem>>, vector<1x1x256xf32>
    %17 = vector.shape_cast %16 : vector<1x1x256xf32> to vector<1x256xf32>
    %18 = arith.mulf %15, %17 : vector<1x256xf32>
    %cst_13 = arith.constant 0.000000e+00 : f32
    %19 = vector.broadcast %cst_13 : f32 to vector<1x256xf32>
    %20 = arith.subf %19, %18 : vector<1x256xf32>
    %21 = math.exp %20 : vector<1x256xf32>
    %cst_14 = arith.constant 1.000000e+00 : f32
    %22 = vector.broadcast %cst_14 : f32 to vector<1x256xf32>
    %23 = arith.addf %22, %21 : vector<1x256xf32>
    %cst_15 = arith.constant 1.000000e+00 : f32
    %24 = vector.broadcast %cst_15 : f32 to vector<1x256xf32>
    %25 = arith.divf %24, %23 : vector<1x256xf32>
    %26 = vector.broadcast %25 : vector<1x256xf32> to vector<196x256xf32>
    %27 = arith.mulf %26, %11 : vector<196x256xf32>
    %cst_16 = arith.constant 0.000000e+00 : bf16
    %28 = vector.broadcast %cst_16 : bf16 to vector<16x256xbf16>
    %c0_17 = arith.constant 0 : index
    %c0_18 = arith.constant 0 : index
    %c0_19 = arith.constant 0 : index
    %29 = vector.load %arg12[%c0_17, %c0_18, %c0_19] : memref<3x240x256xbf16, #tpu.memory_space<vmem>>, vector<1x16x256xbf16>
    %30 = vector.shape_cast %29 : vector<1x16x256xbf16> to vector<16x256xbf16>
    %31 = vector.shape_cast %28 : vector<16x256xbf16> to vector<1x16x256xbf16>
    tpu.vector_store %arg12[%c0_17, %c0_18, %c0_19], %31 {strides = array<i32>} : memref<3x240x256xbf16, #tpu.memory_space<vmem>>, vector<1x16x256xbf16>,
    %cst_20 = arith.constant 0.000000e+00 : bf16
    %32 = vector.broadcast %cst_20 : bf16 to vector<28x256xbf16>
    %c0_21 = arith.constant 0 : index
    %c212 = arith.constant 212 : index
    %c0_22 = arith.constant 0 : index
    %33 = vector.load %arg12[%c0_21, %c212, %c0_22] : memref<3x240x256xbf16, #tpu.memory_space<vmem>>, vector<1x28x256xbf16>
    %34 = vector.shape_cast %33 : vector<1x28x256xbf16> to vector<28x256xbf16>
    %35 = vector.shape_cast %32 : vector<28x256xbf16> to vector<1x28x256xbf16>
    tpu.vector_store %arg12[%c0_21, %c212, %c0_22], %35 {strides = array<i32>} : memref<3x240x256xbf16, #tpu.memory_space<vmem>>, vector<1x28x256xbf16>,
    %cst_23 = arith.constant 0.000000e+00 : bf16
    %36 = vector.broadcast %cst_23 : bf16 to vector<16x256xbf16>
    %c1 = arith.constant 1 : index
    %c0_24 = arith.constant 0 : index
    %c0_25 = arith.constant 0 : index
    %37 = vector.load %arg12[%c1, %c0_24, %c0_25] : memref<3x240x256xbf16, #tpu.memory_space<vmem>>, vector<1x16x256xbf16>
    %38 = vector.shape_cast %37 : vector<1x16x256xbf16> to vector<16x256xbf16>
    %39 = vector.shape_cast %36 : vector<16x256xbf16> to vector<1x16x256xbf16>
    tpu.vector_store %arg12[%c1, %c0_24, %c0_25], %39 {strides = array<i32>} : memref<3x240x256xbf16, #tpu.memory_space<vmem>>, vector<1x16x256xbf16>,
    %cst_26 = arith.constant 0.000000e+00 : bf16
    %40 = vector.broadcast %cst_26 : bf16 to vector<28x256xbf16>
    %c1_27 = arith.constant 1 : index
    %c212_28 = arith.constant 212 : index
    %c0_29 = arith.constant 0 : index
    %41 = vector.load %arg12[%c1_27, %c212_28, %c0_29] : memref<3x240x256xbf16, #tpu.memory_space<vmem>>, vector<1x28x256xbf16>
    %42 = vector.shape_cast %41 : vector<1x28x256xbf16> to vector<28x256xbf16>
    %43 = vector.shape_cast %40 : vector<28x256xbf16> to vector<1x28x256xbf16>
    tpu.vector_store %arg12[%c1_27, %c212_28, %c0_29], %43 {strides = array<i32>} : memref<3x240x256xbf16, #tpu.memory_space<vmem>>, vector<1x28x256xbf16>,
    %cst_30 = arith.constant 0.000000e+00 : bf16
    %44 = vector.broadcast %cst_30 : bf16 to vector<16x256xbf16>
    %c2 = arith.constant 2 : index
    %c0_31 = arith.constant 0 : index
    %c0_32 = arith.constant 0 : index
    %45 = vector.load %arg12[%c2, %c0_31, %c0_32] : memref<3x240x256xbf16, #tpu.memory_space<vmem>>, vector<1x16x256xbf16>
    %46 = vector.shape_cast %45 : vector<1x16x256xbf16> to vector<16x256xbf16>
    %47 = vector.shape_cast %44 : vector<16x256xbf16> to vector<1x16x256xbf16>
    tpu.vector_store %arg12[%c2, %c0_31, %c0_32], %47 {strides = array<i32>} : memref<3x240x256xbf16, #tpu.memory_space<vmem>>, vector<1x16x256xbf16>,
    %cst_33 = arith.constant 0.000000e+00 : bf16
    %48 = vector.broadcast %cst_33 : bf16 to vector<28x256xbf16>
    %c2_34 = arith.constant 2 : index
    %c212_35 = arith.constant 212 : index
    %c0_36 = arith.constant 0 : index
    %49 = vector.load %arg12[%c2_34, %c212_35, %c0_36] : memref<3x240x256xbf16, #tpu.memory_space<vmem>>, vector<1x28x256xbf16>
    %50 = vector.shape_cast %49 : vector<1x28x256xbf16> to vector<28x256xbf16>
    %51 = vector.shape_cast %48 : vector<28x256xbf16> to vector<1x28x256xbf16>
    tpu.vector_store %arg12[%c2_34, %c212_35, %c0_36], %51 {strides = array<i32>} : memref<3x240x256xbf16, #tpu.memory_space<vmem>>, vector<1x28x256xbf16>,
    %c0_37 = arith.constant 0 : index
    %c0_38 = arith.constant 0 : index
    %52 = vector.load %arg9[%c0_37, %c0_38] : memref<196x256xf32, #tpu.memory_space<vmem>>, vector<196x256xf32>
    %53 = arith.mulf %27, %52 : vector<196x256xf32>
    %54 = arith.truncf %53 : vector<196x256xf32> to vector<196x256xbf16>
    %c0_39 = arith.constant 0 : index
    %c16 = arith.constant 16 : index
    %c0_40 = arith.constant 0 : index
    %55 = vector.load %arg12[%c0_39, %c16, %c0_40] : memref<3x240x256xbf16, #tpu.memory_space<vmem>>, vector<1x196x256xbf16>
    %56 = vector.shape_cast %55 : vector<1x196x256xbf16> to vector<196x256xbf16>
    %57 = vector.shape_cast %54 : vector<196x256xbf16> to vector<1x196x256xbf16>
    tpu.vector_store %arg12[%c0_39, %c16, %c0_40], %57 {strides = array<i32>} : memref<3x240x256xbf16, #tpu.memory_space<vmem>>, vector<1x196x256xbf16>,
    %58 = arith.truncf %27 : vector<196x256xf32> to vector<196x256xbf16>
    %c1_41 = arith.constant 1 : index
    %c16_42 = arith.constant 16 : index
    %c0_43 = arith.constant 0 : index
    %59 = vector.load %arg12[%c1_41, %c16_42, %c0_43] : memref<3x240x256xbf16, #tpu.memory_space<vmem>>, vector<1x196x256xbf16>
    %60 = vector.shape_cast %59 : vector<1x196x256xbf16> to vector<196x256xbf16>
    %61 = vector.shape_cast %58 : vector<196x256xbf16> to vector<1x196x256xbf16>
    tpu.vector_store %arg12[%c1_41, %c16_42, %c0_43], %61 {strides = array<i32>} : memref<3x240x256xbf16, #tpu.memory_space<vmem>>, vector<1x196x256xbf16>,
    %c0_44 = arith.constant 0 : index
    %c0_45 = arith.constant 0 : index
    %62 = vector.load %arg10[%c0_44, %c0_45] : memref<196x256xf32, #tpu.memory_space<vmem>>, vector<196x256xf32>
    %63 = arith.mulf %27, %62 : vector<196x256xf32>
    %64 = arith.truncf %63 : vector<196x256xf32> to vector<196x256xbf16>
    %c2_46 = arith.constant 2 : index
    %c16_47 = arith.constant 16 : index
    %c0_48 = arith.constant 0 : index
    %65 = vector.load %arg12[%c2_46, %c16_47, %c0_48] : memref<3x240x256xbf16, #tpu.memory_space<vmem>>, vector<1x196x256xbf16>
    %66 = vector.shape_cast %65 : vector<1x196x256xbf16> to vector<196x256xbf16>
    %67 = vector.shape_cast %64 : vector<196x256xbf16> to vector<1x196x256xbf16>
    tpu.vector_store %arg12[%c2_46, %c16_47, %c0_48], %67 {strides = array<i32>} : memref<3x240x256xbf16, #tpu.memory_space<vmem>>, vector<1x196x256xbf16>,
    %c0_49 = arith.constant 0 : index
    %c1_50 = arith.constant 1 : index
    %c0_51 = arith.constant 0 : index
    %68 = vector.load %arg12[%c0_49, %c1_50, %c0_51] : memref<3x240x256xbf16, #tpu.memory_space<vmem>>, vector<1x196x256xbf16>
    %69 = vector.shape_cast %68 : vector<1x196x256xbf16> to vector<196x256xbf16>
    %c0_52 = arith.constant 0 : index
    %c0_53 = arith.constant 0 : index
    %c0_54 = arith.constant 0 : index
    %70 = vector.load %arg5[%c0_52, %c0_53, %c0_54] : memref<9x256x256xbf16, #tpu.memory_space<vmem>>, vector<1x256x256xbf16>
    %71 = vector.shape_cast %70 : vector<1x256x256xbf16> to vector<256x256xbf16>
    %cst_55 = arith.constant dense<0.000000e+00> : vector<196x256xf32>
    %72 = tpu.matmul %69, %71, %cst_55 {dimension_numbers = #tpu.dot_dimension_numbers<[1], [0], [0], [1], [0, 0, 1, 1], [], []>} : vector<196x256xbf16>, vector<256x256xbf16>, vector<196x256xf32> -> vector<196x256xf32>
    %c0_56 = arith.constant 0 : index
    %c0_57 = arith.constant 0 : index
    %73 = vector.load %arg13[%c0_56, %c0_57] : memref<196x256xf32, #tpu.memory_space<vmem>>, vector<196x256xf32>
    tpu.vector_store %arg13[%c0_56, %c0_57], %72 {strides = array<i32>} : memref<196x256xf32, #tpu.memory_space<vmem>>, vector<196x256xf32>,
    %c1_58 = arith.constant 1 : index
    %c2_59 = arith.constant 2 : index
    %c0_60 = arith.constant 0 : index
    %74 = vector.load %arg12[%c1_58, %c2_59, %c0_60] : memref<3x240x256xbf16, #tpu.memory_space<vmem>>, vector<1x196x256xbf16>
    %75 = vector.shape_cast %74 : vector<1x196x256xbf16> to vector<196x256xbf16>
    %c1_61 = arith.constant 1 : index
    %c0_62 = arith.constant 0 : index
    %c0_63 = arith.constant 0 : index
    %76 = vector.load %arg5[%c1_61, %c0_62, %c0_63] : memref<9x256x256xbf16, #tpu.memory_space<vmem>>, vector<1x256x256xbf16>
    %77 = vector.shape_cast %76 : vector<1x256x256xbf16> to vector<256x256xbf16>
    %cst_64 = arith.constant dense<0.000000e+00> : vector<196x256xf32>
    %78 = tpu.matmul %75, %77, %cst_64 {dimension_numbers = #tpu.dot_dimension_numbers<[1], [0], [0], [1], [0, 0, 1, 1], [], []>} : vector<196x256xbf16>, vector<256x256xbf16>, vector<196x256xf32> -> vector<196x256xf32>
    %c0_65 = arith.constant 0 : index
    %c0_66 = arith.constant 0 : index
    %79 = vector.load %arg13[%c0_65, %c0_66] : memref<196x256xf32, #tpu.memory_space<vmem>>, vector<196x256xf32>
    %80 = arith.addf %79, %78 : vector<196x256xf32>
    %c0_67 = arith.constant 0 : index
    %c0_68 = arith.constant 0 : index
    %81 = vector.load %arg13[%c0_67, %c0_68] : memref<196x256xf32, #tpu.memory_space<vmem>>, vector<196x256xf32>
    tpu.vector_store %arg13[%c0_67, %c0_68], %80 {strides = array<i32>} : memref<196x256xf32, #tpu.memory_space<vmem>>, vector<196x256xf32>,
    %c2_69 = arith.constant 2 : index
    %c3 = arith.constant 3 : index
    %c0_70 = arith.constant 0 : index
    %82 = vector.load %arg12[%c2_69, %c3, %c0_70] : memref<3x240x256xbf16, #tpu.memory_space<vmem>>, vector<1x196x256xbf16>
    %83 = vector.shape_cast %82 : vector<1x196x256xbf16> to vector<196x256xbf16>
    %c2_71 = arith.constant 2 : index
    %c0_72 = arith.constant 0 : index
    %c0_73 = arith.constant 0 : index
    %84 = vector.load %arg5[%c2_71, %c0_72, %c0_73] : memref<9x256x256xbf16, #tpu.memory_space<vmem>>, vector<1x256x256xbf16>
    %85 = vector.shape_cast %84 : vector<1x256x256xbf16> to vector<256x256xbf16>
    %cst_74 = arith.constant dense<0.000000e+00> : vector<196x256xf32>
    %86 = tpu.matmul %83, %85, %cst_74 {dimension_numbers = #tpu.dot_dimension_numbers<[1], [0], [0], [1], [0, 0, 1, 1], [], []>} : vector<196x256xbf16>, vector<256x256xbf16>, vector<196x256xf32> -> vector<196x256xf32>
    %c0_75 = arith.constant 0 : index
    %c0_76 = arith.constant 0 : index
    %87 = vector.load %arg13[%c0_75, %c0_76] : memref<196x256xf32, #tpu.memory_space<vmem>>, vector<196x256xf32>
    %88 = arith.addf %87, %86 : vector<196x256xf32>
    %c0_77 = arith.constant 0 : index
    %c0_78 = arith.constant 0 : index
    %89 = vector.load %arg13[%c0_77, %c0_78] : memref<196x256xf32, #tpu.memory_space<vmem>>, vector<196x256xf32>
    tpu.vector_store %arg13[%c0_77, %c0_78], %88 {strides = array<i32>} : memref<196x256xf32, #tpu.memory_space<vmem>>, vector<196x256xf32>,
    %c0_79 = arith.constant 0 : index
    %c15 = arith.constant 15 : index
    %c0_80 = arith.constant 0 : index
    %90 = vector.load %arg12[%c0_79, %c15, %c0_80] : memref<3x240x256xbf16, #tpu.memory_space<vmem>>, vector<1x196x256xbf16>
    %91 = vector.shape_cast %90 : vector<1x196x256xbf16> to vector<196x256xbf16>
    %c3_81 = arith.constant 3 : index
    %c0_82 = arith.constant 0 : index
    %c0_83 = arith.constant 0 : index
    %92 = vector.load %arg5[%c3_81, %c0_82, %c0_83] : memref<9x256x256xbf16, #tpu.memory_space<vmem>>, vector<1x256x256xbf16>
    %93 = vector.shape_cast %92 : vector<1x256x256xbf16> to vector<256x256xbf16>
    %cst_84 = arith.constant dense<0.000000e+00> : vector<196x256xf32>
    %94 = tpu.matmul %91, %93, %cst_84 {dimension_numbers = #tpu.dot_dimension_numbers<[1], [0], [0], [1], [0, 0, 1, 1], [], []>} : vector<196x256xbf16>, vector<256x256xbf16>, vector<196x256xf32> -> vector<196x256xf32>
    %c0_85 = arith.constant 0 : index
    %c0_86 = arith.constant 0 : index
    %95 = vector.load %arg13[%c0_85, %c0_86] : memref<196x256xf32, #tpu.memory_space<vmem>>, vector<196x256xf32>
    %96 = arith.addf %95, %94 : vector<196x256xf32>
    %c0_87 = arith.constant 0 : index
    %c0_88 = arith.constant 0 : index
    %97 = vector.load %arg13[%c0_87, %c0_88] : memref<196x256xf32, #tpu.memory_space<vmem>>, vector<196x256xf32>
    tpu.vector_store %arg13[%c0_87, %c0_88], %96 {strides = array<i32>} : memref<196x256xf32, #tpu.memory_space<vmem>>, vector<196x256xf32>,
    %c1_89 = arith.constant 1 : index
    %c16_90 = arith.constant 16 : index
    %c0_91 = arith.constant 0 : index
    %98 = vector.load %arg12[%c1_89, %c16_90, %c0_91] : memref<3x240x256xbf16, #tpu.memory_space<vmem>>, vector<1x196x256xbf16>
    %99 = vector.shape_cast %98 : vector<1x196x256xbf16> to vector<196x256xbf16>
    %c4 = arith.constant 4 : index
    %c0_92 = arith.constant 0 : index
    %c0_93 = arith.constant 0 : index
    %100 = vector.load %arg5[%c4, %c0_92, %c0_93] : memref<9x256x256xbf16, #tpu.memory_space<vmem>>, vector<1x256x256xbf16>
    %101 = vector.shape_cast %100 : vector<1x256x256xbf16> to vector<256x256xbf16>
    %cst_94 = arith.constant dense<0.000000e+00> : vector<196x256xf32>
    %102 = tpu.matmul %99, %101, %cst_94 {dimension_numbers = #tpu.dot_dimension_numbers<[1], [0], [0], [1], [0, 0, 1, 1], [], []>} : vector<196x256xbf16>, vector<256x256xbf16>, vector<196x256xf32> -> vector<196x256xf32>
    %c0_95 = arith.constant 0 : index
    %c0_96 = arith.constant 0 : index
    %103 = vector.load %arg13[%c0_95, %c0_96] : memref<196x256xf32, #tpu.memory_space<vmem>>, vector<196x256xf32>
    %104 = arith.addf %103, %102 : vector<196x256xf32>
    %c0_97 = arith.constant 0 : index
    %c0_98 = arith.constant 0 : index
    %105 = vector.load %arg13[%c0_97, %c0_98] : memref<196x256xf32, #tpu.memory_space<vmem>>, vector<196x256xf32>
    tpu.vector_store %arg13[%c0_97, %c0_98], %104 {strides = array<i32>} : memref<196x256xf32, #tpu.memory_space<vmem>>, vector<196x256xf32>,
    %c2_99 = arith.constant 2 : index
    %c17 = arith.constant 17 : index
    %c0_100 = arith.constant 0 : index
    %106 = vector.load %arg12[%c2_99, %c17, %c0_100] : memref<3x240x256xbf16, #tpu.memory_space<vmem>>, vector<1x196x256xbf16>
    %107 = vector.shape_cast %106 : vector<1x196x256xbf16> to vector<196x256xbf16>
    %c5 = arith.constant 5 : index
    %c0_101 = arith.constant 0 : index
    %c0_102 = arith.constant 0 : index
    %108 = vector.load %arg5[%c5, %c0_101, %c0_102] : memref<9x256x256xbf16, #tpu.memory_space<vmem>>, vector<1x256x256xbf16>
    %109 = vector.shape_cast %108 : vector<1x256x256xbf16> to vector<256x256xbf16>
    %cst_103 = arith.constant dense<0.000000e+00> : vector<196x256xf32>
    %110 = tpu.matmul %107, %109, %cst_103 {dimension_numbers = #tpu.dot_dimension_numbers<[1], [0], [0], [1], [0, 0, 1, 1], [], []>} : vector<196x256xbf16>, vector<256x256xbf16>, vector<196x256xf32> -> vector<196x256xf32>
    %c0_104 = arith.constant 0 : index
    %c0_105 = arith.constant 0 : index
    %111 = vector.load %arg13[%c0_104, %c0_105] : memref<196x256xf32, #tpu.memory_space<vmem>>, vector<196x256xf32>
    %112 = arith.addf %111, %110 : vector<196x256xf32>
    %c0_106 = arith.constant 0 : index
    %c0_107 = arith.constant 0 : index
    %113 = vector.load %arg13[%c0_106, %c0_107] : memref<196x256xf32, #tpu.memory_space<vmem>>, vector<196x256xf32>
    tpu.vector_store %arg13[%c0_106, %c0_107], %112 {strides = array<i32>} : memref<196x256xf32, #tpu.memory_space<vmem>>, vector<196x256xf32>,
    %c0_108 = arith.constant 0 : index
    %c29 = arith.constant 29 : index
    %c0_109 = arith.constant 0 : index
    %114 = vector.load %arg12[%c0_108, %c29, %c0_109] : memref<3x240x256xbf16, #tpu.memory_space<vmem>>, vector<1x196x256xbf16>
    %115 = vector.shape_cast %114 : vector<1x196x256xbf16> to vector<196x256xbf16>
    %c6 = arith.constant 6 : index
    %c0_110 = arith.constant 0 : index
    %c0_111 = arith.constant 0 : index
    %116 = vector.load %arg5[%c6, %c0_110, %c0_111] : memref<9x256x256xbf16, #tpu.memory_space<vmem>>, vector<1x256x256xbf16>
    %117 = vector.shape_cast %116 : vector<1x256x256xbf16> to vector<256x256xbf16>
    %cst_112 = arith.constant dense<0.000000e+00> : vector<196x256xf32>
    %118 = tpu.matmul %115, %117, %cst_112 {dimension_numbers = #tpu.dot_dimension_numbers<[1], [0], [0], [1], [0, 0, 1, 1], [], []>} : vector<196x256xbf16>, vector<256x256xbf16>, vector<196x256xf32> -> vector<196x256xf32>
    %c0_113 = arith.constant 0 : index
    %c0_114 = arith.constant 0 : index
    %119 = vector.load %arg13[%c0_113, %c0_114] : memref<196x256xf32, #tpu.memory_space<vmem>>, vector<196x256xf32>
    %120 = arith.addf %119, %118 : vector<196x256xf32>
    %c0_115 = arith.constant 0 : index
    %c0_116 = arith.constant 0 : index
    %121 = vector.load %arg13[%c0_115, %c0_116] : memref<196x256xf32, #tpu.memory_space<vmem>>, vector<196x256xf32>
    tpu.vector_store %arg13[%c0_115, %c0_116], %120 {strides = array<i32>} : memref<196x256xf32, #tpu.memory_space<vmem>>, vector<196x256xf32>,
    %c1_117 = arith.constant 1 : index
    %c30 = arith.constant 30 : index
    %c0_118 = arith.constant 0 : index
    %122 = vector.load %arg12[%c1_117, %c30, %c0_118] : memref<3x240x256xbf16, #tpu.memory_space<vmem>>, vector<1x196x256xbf16>
    %123 = vector.shape_cast %122 : vector<1x196x256xbf16> to vector<196x256xbf16>
    %c7 = arith.constant 7 : index
    %c0_119 = arith.constant 0 : index
    %c0_120 = arith.constant 0 : index
    %124 = vector.load %arg5[%c7, %c0_119, %c0_120] : memref<9x256x256xbf16, #tpu.memory_space<vmem>>, vector<1x256x256xbf16>
    %125 = vector.shape_cast %124 : vector<1x256x256xbf16> to vector<256x256xbf16>
    %cst_121 = arith.constant dense<0.000000e+00> : vector<196x256xf32>
    %126 = tpu.matmul %123, %125, %cst_121 {dimension_numbers = #tpu.dot_dimension_numbers<[1], [0], [0], [1], [0, 0, 1, 1], [], []>} : vector<196x256xbf16>, vector<256x256xbf16>, vector<196x256xf32> -> vector<196x256xf32>
    %c0_122 = arith.constant 0 : index
    %c0_123 = arith.constant 0 : index
    %127 = vector.load %arg13[%c0_122, %c0_123] : memref<196x256xf32, #tpu.memory_space<vmem>>, vector<196x256xf32>
    %128 = arith.addf %127, %126 : vector<196x256xf32>
    %c0_124 = arith.constant 0 : index
    %c0_125 = arith.constant 0 : index
    %129 = vector.load %arg13[%c0_124, %c0_125] : memref<196x256xf32, #tpu.memory_space<vmem>>, vector<196x256xf32>
    tpu.vector_store %arg13[%c0_124, %c0_125], %128 {strides = array<i32>} : memref<196x256xf32, #tpu.memory_space<vmem>>, vector<196x256xf32>,
    %c2_126 = arith.constant 2 : index
    %c31 = arith.constant 31 : index
    %c0_127 = arith.constant 0 : index
    %130 = vector.load %arg12[%c2_126, %c31, %c0_127] : memref<3x240x256xbf16, #tpu.memory_space<vmem>>, vector<1x196x256xbf16>
    %131 = vector.shape_cast %130 : vector<1x196x256xbf16> to vector<196x256xbf16>
    %c8 = arith.constant 8 : index
    %c0_128 = arith.constant 0 : index
    %c0_129 = arith.constant 0 : index
    %132 = vector.load %arg5[%c8, %c0_128, %c0_129] : memref<9x256x256xbf16, #tpu.memory_space<vmem>>, vector<1x256x256xbf16>
    %133 = vector.shape_cast %132 : vector<1x256x256xbf16> to vector<256x256xbf16>
    %cst_130 = arith.constant dense<0.000000e+00> : vector<196x256xf32>
    %134 = tpu.matmul %131, %133, %cst_130 {dimension_numbers = #tpu.dot_dimension_numbers<[1], [0], [0], [1], [0, 0, 1, 1], [], []>} : vector<196x256xbf16>, vector<256x256xbf16>, vector<196x256xf32> -> vector<196x256xf32>
    %c0_131 = arith.constant 0 : index
    %c0_132 = arith.constant 0 : index
    %135 = vector.load %arg13[%c0_131, %c0_132] : memref<196x256xf32, #tpu.memory_space<vmem>>, vector<196x256xf32>
    %136 = arith.addf %135, %134 : vector<196x256xf32>
    %c0_133 = arith.constant 0 : index
    %c0_134 = arith.constant 0 : index
    %137 = vector.load %arg13[%c0_133, %c0_134] : memref<196x256xf32, #tpu.memory_space<vmem>>, vector<196x256xf32>
    tpu.vector_store %arg13[%c0_133, %c0_134], %136 {strides = array<i32>} : memref<196x256xf32, #tpu.memory_space<vmem>>, vector<196x256xf32>,
    %c0_135 = arith.constant 0 : index
    %c0_136 = arith.constant 0 : index
    %138 = vector.load %arg13[%c0_135, %c0_136] : memref<196x256xf32, #tpu.memory_space<vmem>>, vector<196x256xf32>
    %c0_137 = arith.constant 0 : index
    %c0_138 = arith.constant 0 : index
    %139 = vector.load %arg6[%c0_137, %c0_138] : memref<1x256xf32, #tpu.memory_space<vmem>>, vector<1x256xf32>
    %140 = vector.broadcast %139 : vector<1x256xf32> to vector<196x256xf32>
    %141 = arith.addf %138, %140 : vector<196x256xf32>
    %cst_139 = arith.constant 0.000000e+00 : f32
    %142 = vector.broadcast %cst_139 : f32 to vector<196x256xf32>
    %143 = arith.maximumf %141, %142 : vector<196x256xf32>
    %c0_140 = arith.constant 0 : index
    %c0_141 = arith.constant 0 : index
    %144 = vector.load %arg7[%c0_140, %c0_141] : memref<1x256xf32, #tpu.memory_space<vmem>>, vector<1x256xf32>
    %145 = vector.broadcast %144 : vector<1x256xf32> to vector<196x256xf32>
    %146 = arith.mulf %143, %145 : vector<196x256xf32>
    %c0_142 = arith.constant 0 : index
    %c0_143 = arith.constant 0 : index
    %147 = vector.load %arg8[%c0_142, %c0_143] : memref<1x256xf32, #tpu.memory_space<vmem>>, vector<1x256xf32>
    %148 = vector.broadcast %147 : vector<1x256xf32> to vector<196x256xf32>
    %149 = arith.addf %146, %148 : vector<196x256xf32>
    %c1_144 = arith.constant 1 : index
    %c16_145 = arith.constant 16 : index
    %c0_146 = arith.constant 0 : index
    %150 = vector.load %arg12[%c1_144, %c16_145, %c0_146] : memref<3x240x256xbf16, #tpu.memory_space<vmem>>, vector<1x196x256xbf16>
    %151 = vector.shape_cast %150 : vector<1x196x256xbf16> to vector<196x256xbf16>
    %152 = arith.extf %151 : vector<196x256xbf16> to vector<196x256xf32>
    %153 = arith.addf %152, %149 : vector<196x256xf32>
    %c0_147 = arith.constant 0 : index
    %c0_148 = arith.constant 0 : index
    %c0_149 = arith.constant 0 : index
    %154 = vector.load %arg11[%c0_147, %c0_148, %c0_149] : memref<1x196x256xf32, #tpu.memory_space<vmem>>, vector<1x196x256xf32>
    %155 = vector.shape_cast %154 : vector<1x196x256xf32> to vector<196x256xf32>
    %156 = vector.shape_cast %153 : vector<196x256xf32> to vector<1x196x256xf32>
    tpu.vector_store %arg11[%c0_147, %c0_148, %c0_149], %156 {strides = array<i32>} : memref<1x196x256xf32, #tpu.memory_space<vmem>>, vector<1x196x256xf32>,
    return
  }
  func.func @transform_0(%arg0: i32) -> (i32, i32, i32) {
    %c0_i32 = arith.constant 0 : i32
    %c0_i32_0 = arith.constant 0 : i32
    %c0_i32_1 = arith.constant 0 : i32
    return %arg0, %c0_i32, %c0_i32_0 : i32, i32, i32
  }
  func.func @transform_1(%arg0: i32) -> (i32, i32, i32) {
    %c0_i32 = arith.constant 0 : i32
    %c0_i32_0 = arith.constant 0 : i32
    %c0_i32_1 = arith.constant 0 : i32
    return %arg0, %c0_i32, %c0_i32_0 : i32, i32, i32
  }
  func.func @transform_2(%arg0: i32) -> (i32, i32) {
    %c0_i32 = arith.constant 0 : i32
    %c0_i32_0 = arith.constant 0 : i32
    %c0_i32_1 = arith.constant 0 : i32
    return %c0_i32, %c0_i32_0 : i32, i32
  }
  func.func @transform_3(%arg0: i32) -> (i32, i32) {
    %c0_i32 = arith.constant 0 : i32
    %c0_i32_0 = arith.constant 0 : i32
    %c0_i32_1 = arith.constant 0 : i32
    return %c0_i32, %c0_i32_0 : i32, i32
  }
  func.func @transform_4(%arg0: i32) -> (i32, i32, i32) {
    %c0_i32 = arith.constant 0 : i32
    %c0_i32_0 = arith.constant 0 : i32
    %c0_i32_1 = arith.constant 0 : i32
    %c0_i32_2 = arith.constant 0 : i32
    return %c0_i32, %c0_i32_0, %c0_i32_1 : i32, i32, i32
  }
  func.func @transform_5(%arg0: i32) -> (i32, i32) {
    %c0_i32 = arith.constant 0 : i32
    %c0_i32_0 = arith.constant 0 : i32
    %c0_i32_1 = arith.constant 0 : i32
    return %c0_i32, %c0_i32_0 : i32, i32
  }
  func.func @transform_6(%arg0: i32) -> (i32, i32) {
    %c0_i32 = arith.constant 0 : i32
    %c0_i32_0 = arith.constant 0 : i32
    %c0_i32_1 = arith.constant 0 : i32
    return %c0_i32, %c0_i32_0 : i32, i32
  }
  func.func @transform_7(%arg0: i32) -> (i32, i32) {
    %c0_i32 = arith.constant 0 : i32
    %c0_i32_0 = arith.constant 0 : i32
    %c0_i32_1 = arith.constant 0 : i32
    return %c0_i32, %c0_i32_0 : i32, i32
  }
  func.func @transform_8(%arg0: i32) -> (i32, i32) {
    %c0_i32 = arith.constant 0 : i32
    %c0_i32_0 = arith.constant 0 : i32
    %c0_i32_1 = arith.constant 0 : i32
    return %c0_i32, %c0_i32_0 : i32, i32
  }
  func.func @transform_9(%arg0: i32) -> (i32, i32) {
    %c0_i32 = arith.constant 0 : i32
    %c0_i32_0 = arith.constant 0 : i32
    %c0_i32_1 = arith.constant 0 : i32
    return %c0_i32, %c0_i32_0 : i32, i32
  }
  func.func @transform_10(%arg0: i32) -> (i32, i32, i32) {
    %c0_i32 = arith.constant 0 : i32
    %c0_i32_0 = arith.constant 0 : i32
    %c0_i32_1 = arith.constant 0 : i32
    return %arg0, %c0_i32, %c0_i32_0 : i32, i32, i32
  }
}

</mosaic_0001>

<llo_original>
// kernel: tpu_custom_call.1
$region0: #{tpu_custom_call.1}
  #allocation0 [shape = 'u32[]', space=smem, size = 0x4, offset = 0x4, fixed_abs, tag = 'smem constant byte address 0x4 - core index']
  #allocation1 [shape = 'u32[72,128]{1,0:T(1,128)}', space=vmem, size = 0x9000, scoped, tag = 'internal scratch']
  #allocation2 [shape = 'bf16[3,240,256]{2,1,0:T(8,128)(2,1)}', space=vmem, size = 0x5a000, scoped, tag = 'scratch operand']
  #allocation3 [shape = 'f32[196,256]{1,0:T(8,128)}', space=vmem, size = 0x32000, scoped, tag = 'scratch operand']
  %s0 = inlined_call_operand.vmem [shape: bf16[2,196,256], index: 0, kind: input, shape index: {}]
  %s1 = inlined_call_operand.hbm [shape: f32[2,1,256], index: 1, kind: input, shape index: {}]
  %s2 = inlined_call_operand.hbm [shape: bf16[256,256], index: 2, kind: input, shape index: {}]
  %s3 = inlined_call_operand.hbm [shape: f32[1,256], index: 3, kind: input, shape index: {}]
  %s4 = inlined_call_operand.hbm [shape: bf16[9,256,256], index: 4, kind: input, shape index: {}]
  %s5 = inlined_call_operand.hbm [shape: f32[1,256], index: 5, kind: input, shape index: {}]
  %s6 = inlined_call_operand.hbm [shape: f32[1,256], index: 6, kind: input, shape index: {}]
  %s7 = inlined_call_operand.hbm [shape: f32[1,256], index: 7, kind: input, shape index: {}]
  %s8 = inlined_call_operand.hbm [shape: f32[196,256], index: 8, kind: input, shape index: {}]
  %s9 = inlined_call_operand.hbm [shape: f32[196,256], index: 9, kind: input, shape index: {}]
  %s10 = inlined_call_operand.vmem [shape: f32[2,196,256], index: 10, kind: output, shape index: {}]
  %s11 = sld [smem:[#allocation0]]
  $region109: #{tpu_custom_call.1} parent=0
    _
  %s13 = ssub.s32 1, %s11
  %s14 = scalar_select 0, %s13, %s11
  $region1: #{tpu_custom_call.1} parent=0
    #allocation4 [shape = 'u8[2048]{0}', space=vmem, size = 0x800, scoped, tag = 'input window, operand 1']
    #allocation5 [shape = 's32[2]{0}', space=sflag, size = 0x8, scoped, tag = 'scoped memory for tpu_custom_call.1']
    #allocation6 [shape = 'u8[131072]{0}', space=vmem, size = 0x20000, scoped, tag = 'input window, operand 2, single buffered']
    #allocation7 [shape = 's32[1]{0}', space=sflag, size = 0x4, scoped, tag = 'scoped memory for tpu_custom_call.1']
    #allocation8 [shape = 'u8[1024]{0}', space=vmem, size = 0x400, scoped, tag = 'input window, operand 3, single buffered']
    #allocation9 [shape = 'u8[1179648]{0}', space=vmem, size = 0x120000, scoped, tag = 'input window, operand 4, single buffered']
    #allocation10 [shape = 's32[1]{0}', space=sflag, size = 0x4, scoped, tag = 'scoped memory for tpu_custom_call.1']
    #allocation11 [shape = 'u8[1024]{0}', space=vmem, size = 0x400, scoped, tag = 'input window, operand 5, single buffered']
    #allocation12 [shape = 'u8[1024]{0}', space=vmem, size = 0x400, scoped, tag = 'input window, operand 6, single buffered']
    #allocation13 [shape = 's32[1]{0}', space=sflag, size = 0x4, scoped, tag = 'scoped memory for tpu_custom_call.1']
    #allocation14 [shape = 'u8[1024]{0}', space=vmem, size = 0x400, scoped, tag = 'input window, operand 7, single buffered']
    #allocation15 [shape = 'u8[204800]{0}', space=vmem, size = 0x32000, scoped, tag = 'input window, operand 8, single buffered']
    #allocation16 [shape = 's32[1]{0}', space=sflag, size = 0x4, scoped, tag = 'scoped memory for tpu_custom_call.1']
    #allocation17 [shape = 'u8[204800]{0}', space=vmem, size = 0x32000, scoped, tag = 'input window, operand 9, single buffered']
    %15 = vsyncpa [#allocation5], 0
    %s16 = scalar_lea.sflag [#allocation5], 1
    %17 = vsyncpa %s16, 0
    %18 = vsyncpa [#allocation7], 0
    %19 = vsyncpa [#allocation10], 0
    %20 = vsyncpa [#allocation13], 0
    %21 = vsyncpa [#allocation16], 0
    loop: start=0, step=1, limit=4
    $region2: #{tpu_custom_call.1} parent=1 // loop_pre_header
      _
    $region3: #{tpu_custom_call.1} parent=1 // loop_header
      %s23 = sphi 0, %s27
      %p24 = scmp.ge.s32.totalorder %s23, 4
      %s33 = sphi 0, %s35
      %s36 = sphi 0, %s33
      %s37 = sphi 0, %s36
      %s53 = sphi 0, %s37
      %s59 = sphi 0, %s61
      %s62 = sphi 0, %s59
      %s63 = sphi 0, %s62
      %s79 = sphi 0, %s63
      %s83 = sphi 0, %s83
      %s85 = sphi 0, %s83
      %s86 = sphi 0, %s85
      %s100 = sphi 0, %s86
      %s104 = sphi 0, %s104
      %s106 = sphi 0, %s104
      %s107 = sphi 0, %s106
      %s121 = sphi 0, %s107
      %s125 = sphi 0, %s125
      %s127 = sphi 0, %s125
      %s128 = sphi 0, %s127
      %s142 = sphi 0, %s128
      %s146 = sphi 0, %s146
      %s148 = sphi 0, %s146
      %s149 = sphi 0, %s148
      %s163 = sphi 0, %s149
      %s167 = sphi 0, %s167
      %s169 = sphi 0, %s167
      %s170 = sphi 0, %s169
      %s184 = sphi 0, %s170
      %s188 = sphi 0, %s188
      %s190 = sphi 0, %s188
      %s191 = sphi 0, %s190
      %s205 = sphi 0, %s191
      %s209 = sphi 0, %s209
      %s211 = sphi 0, %s209
      %s212 = sphi 0, %s211
      %s226 = sphi 0, %s212
      %s230 = sphi 0, %s230
      %s232 = sphi 0, %s230
      %s233 = sphi 0, %s232
      %s247 = sphi 0, %s233
      %s253 = sphi 0, %s255
      %s256 = sphi 0, %s253
      %s257 = sphi 0, %s256
      %s273 = sphi 0, %s257
    $region4: #{tpu_custom_call.1} parent=1 // loop_header_branch
      %26 = sbr.rel (%p24) target = $region8
    $region5: #{tpu_custom_call.1} parent=1 // loop_body
      %s28 = ssub.s32 %s23, 1
      %s29 = ssub.s32 %s23, 2
      %s30 = sadd.s32 %s23, 1
      %s31 = ssub.s32 %s23, %s30
      %p32 = scmp.eq.s32.totalorder %s31, 0
      %s34 = sadd.s32 %s33, 1
      %s35 = scalar_select %p32, %s33, %s34
      %p38 = pneg %p32
      %p39 = scmp.eq.s32.totalorder %s23, 1
      %p40 = por %p38, %p39
      %p41 = scmp.ne.s32.totalorder %s33, %s36
      %p42 = scmp.eq.s32.totalorder %s23, 0
      %p43 = por %p41, %p42
      %p44 = scmp.ne.s32.totalorder %s33, %s36
      %p45 = scmp.eq.s32.totalorder %s28, 1
      %p46 = por %p44, %p45
      %p47 = scmp.ne.s32.totalorder %s36, %s37
      %p48 = scmp.eq.s32.totalorder %s28, 0
      %p49 = por %p47, %p48
      %p50 = scmp.ne.s32.totalorder %s36, %s37
      %p51 = scmp.eq.s32.totalorder %s29, 1
      %p52 = por %p50, %p51
      %p54 = scmp.ne.s32.totalorder %s37, %s53
      %p55 = scmp.eq.s32.totalorder %s29, 0
      %p56 = por %p54, %p55
      %s57 = ssub.s32 %s23, %s30
      %p58 = scmp.eq.s32.totalorder %s57, 0
      %s60 = sadd.s32 %s59, 1
      %s61 = scalar_select %p58, %s59, %s60
      %p64 = pneg %p58
      %p65 = scmp.eq.s32.totalorder %s23, 1
      %p66 = por %p64, %p65
      %p67 = scmp.ne.s32.totalorder %s59, %s62
      %p68 = scmp.eq.s32.totalorder %s23, 0
      %p69 = por %p67, %p68
      %p70 = scmp.ne.s32.totalorder %s59, %s62
      %p71 = scmp.eq.s32.totalorder %s28, 1
      %p72 = por %p70, %p71
      %p73 = scmp.ne.s32.totalorder %s62, %s63
      %p74 = scmp.eq.s32.totalorder %s28, 0
      %p75 = por %p73, %p74
      %p76 = scmp.ne.s32.totalorder %s62, %s63
      %p77 = scmp.eq.s32.totalorder %s29, 1
      %p78 = por %p76, %p77
      %p80 = scmp.ne.s32.totalorder %s63, %s79
      %p81 = scmp.eq.s32.totalorder %s29, 0
      %p82 = por %p80, %p81
      %s84 = sadd.s32 %s83, 1
      %p87 = scmp.eq.s32.totalorder %s23, 1
      %p88 = scmp.ne.s32.totalorder %s83, %s85
      %p89 = scmp.eq.s32.totalorder %s23, 0
      %p90 = por %p88, %p89
      %p91 = scmp.ne.s32.totalorder %s83, %s85
      %p92 = scmp.eq.s32.totalorder %s28, 1
      %p93 = por %p91, %p92
      %p94 = scmp.ne.s32.totalorder %s85, %s86
      %p95 = scmp.eq.s32.totalorder %s28, 0
      %p96 = por %p94, %p95
      %p97 = scmp.ne.s32.totalorder %s85, %s86
      %p98 = scmp.eq.s32.totalorder %s29, 1
      %p99 = por %p97, %p98
      %p101 = scmp.ne.s32.totalorder %s86, %s100
      %p102 = scmp.eq.s32.totalorder %s29, 0
      %p103 = por %p101, %p102
      %s105 = sadd.s32 %s104, 1
      %p108 = scmp.eq.s32.totalorder %s23, 1
      %p109 = scmp.ne.s32.totalorder %s104, %s106
      %p110 = scmp.eq.s32.totalorder %s23, 0
      %p111 = por %p109, %p110
      %p112 = scmp.ne.s32.totalorder %s104, %s106
      %p113 = scmp.eq.s32.totalorder %s28, 1
      %p114 = por %p112, %p113
      %p115 = scmp.ne.s32.totalorder %s106, %s107
      %p116 = scmp.eq.s32.totalorder %s28, 0
      %p117 = por %p115, %p116
      %p118 = scmp.ne.s32.totalorder %s106, %s107
      %p119 = scmp.eq.s32.totalorder %s29, 1
      %p120 = por %p118, %p119
      %p122 = scmp.ne.s32.totalorder %s107, %s121
      %p123 = scmp.eq.s32.totalorder %s29, 0
      %p124 = por %p122, %p123
      %s126 = sadd.s32 %s125, 1
      %p129 = scmp.eq.s32.totalorder %s23, 1
      %p130 = scmp.ne.s32.totalorder %s125, %s127
      %p131 = scmp.eq.s32.totalorder %s23, 0
      %p132 = por %p130, %p131
      %p133 = scmp.ne.s32.totalorder %s125, %s127
      %p134 = scmp.eq.s32.totalorder %s28, 1
      %p135 = por %p133, %p134
      %p136 = scmp.ne.s32.totalorder %s127, %s128
      %p137 = scmp.eq.s32.totalorder %s28, 0
      %p138 = por %p136, %p137
      %p139 = scmp.ne.s32.totalorder %s127, %s128
      %p140 = scmp.eq.s32.totalorder %s29, 1
      %p141 = por %p139, %p140
      %p143 = scmp.ne.s32.totalorder %s128, %s142
      %p144 = scmp.eq.s32.totalorder %s29, 0
      %p145 = por %p143, %p144
      %s147 = sadd.s32 %s146, 1
      %p150 = scmp.eq.s32.totalorder %s23, 1
      %p151 = scmp.ne.s32.totalorder %s146, %s148
      %p152 = scmp.eq.s32.totalorder %s23, 0
      %p153 = por %p151, %p152
      %p154 = scmp.ne.s32.totalorder %s146, %s148
      %p155 = scmp.eq.s32.totalorder %s28, 1
      %p156 = por %p154, %p155
      %p157 = scmp.ne.s32.totalorder %s148, %s149
      %p158 = scmp.eq.s32.totalorder %s28, 0
      %p159 = por %p157, %p158
      %p160 = scmp.ne.s32.totalorder %s148, %s149
      %p161 = scmp.eq.s32.totalorder %s29, 1
      %p162 = por %p160, %p161
      %p164 = scmp.ne.s32.totalorder %s149, %s163
      %p165 = scmp.eq.s32.totalorder %s29, 0
      %p166 = por %p164, %p165
      %s168 = sadd.s32 %s167, 1
      %p171 = scmp.eq.s32.totalorder %s23, 1
      %p172 = scmp.ne.s32.totalorder %s167, %s169
      %p173 = scmp.eq.s32.totalorder %s23, 0
      %p174 = por %p172, %p173
      %p175 = scmp.ne.s32.totalorder %s167, %s169
      %p176 = scmp.eq.s32.totalorder %s28, 1
      %p177 = por %p175, %p176
      %p178 = scmp.ne.s32.totalorder %s169, %s170
      %p179 = scmp.eq.s32.totalorder %s28, 0
      %p180 = por %p178, %p179
      %p181 = scmp.ne.s32.totalorder %s169, %s170
      %p182 = scmp.eq.s32.totalorder %s29, 1
      %p183 = por %p181, %p182
      %p185 = scmp.ne.s32.totalorder %s170, %s184
      %p186 = scmp.eq.s32.totalorder %s29, 0
      %p187 = por %p185, %p186
      %s189 = sadd.s32 %s188, 1
      %p192 = scmp.eq.s32.totalorder %s23, 1
      %p193 = scmp.ne.s32.totalorder %s188, %s190
      %p194 = scmp.eq.s32.totalorder %s23, 0
      %p195 = por %p193, %p194
      %p196 = scmp.ne.s32.totalorder %s188, %s190
      %p197 = scmp.eq.s32.totalorder %s28, 1
      %p198 = por %p196, %p197
      %p199 = scmp.ne.s32.totalorder %s190, %s191
      %p200 = scmp.eq.s32.totalorder %s28, 0
      %p201 = por %p199, %p200
      %p202 = scmp.ne.s32.totalorder %s190, %s191
      %p203 = scmp.eq.s32.totalorder %s29, 1
      %p204 = por %p202, %p203
      %p206 = scmp.ne.s32.totalorder %s191, %s205
      %p207 = scmp.eq.s32.totalorder %s29, 0
      %p208 = por %p206, %p207
      %s210 = sadd.s32 %s209, 1
      %p213 = scmp.eq.s32.totalorder %s23, 1
      %p214 = scmp.ne.s32.totalorder %s209, %s211
      %p215 = scmp.eq.s32.totalorder %s23, 0
      %p216 = por %p214, %p215
      %p217 = scmp.ne.s32.totalorder %s209, %s211
      %p218 = scmp.eq.s32.totalorder %s28, 1
      %p219 = por %p217, %p218
      %p220 = scmp.ne.s32.totalorder %s211, %s212
      %p221 = scmp.eq.s32.totalorder %s28, 0
      %p222 = por %p220, %p221
      %p223 = scmp.ne.s32.totalorder %s211, %s212
      %p224 = scmp.eq.s32.totalorder %s29, 1
      %p225 = por %p223, %p224
      %p227 = scmp.ne.s32.totalorder %s212, %s226
      %p228 = scmp.eq.s32.totalorder %s29, 0
      %p229 = por %p227, %p228
      %s231 = sadd.s32 %s230, 1
      %p234 = scmp.eq.s32.totalorder %s23, 1
      %p235 = scmp.ne.s32.totalorder %s230, %s232
      %p236 = scmp.eq.s32.totalorder %s23, 0
      %p237 = por %p235, %p236
      %p238 = scmp.ne.s32.totalorder %s230, %s232
      %p239 = scmp.eq.s32.totalorder %s28, 1
      %p240 = por %p238, %p239
      %p241 = scmp.ne.s32.totalorder %s232, %s233
      %p242 = scmp.eq.s32.totalorder %s28, 0
      %p243 = por %p241, %p242
      %p244 = scmp.ne.s32.totalorder %s232, %s233
      %p245 = scmp.eq.s32.totalorder %s29, 1
      %p246 = por %p244, %p245
      %p248 = scmp.ne.s32.totalorder %s233, %s247
      %p249 = scmp.eq.s32.totalorder %s29, 0
      %p250 = por %p248, %p249
      %s251 = ssub.s32 %s23, %s30
      %p252 = scmp.eq.s32.totalorder %s251, 0
      %s254 = sadd.s32 %s253, 1
      %s255 = scalar_select %p252, %s253, %s254
      %p258 = pneg %p252
      %p259 = scmp.eq.s32.totalorder %s23, 1
      %p260 = por %p258, %p259
      %p261 = scmp.ne.s32.totalorder %s253, %s256
      %p262 = scmp.eq.s32.totalorder %s23, 0
      %p263 = por %p261, %p262
      %p264 = scmp.ne.s32.totalorder %s253, %s256
      %p265 = scmp.eq.s32.totalorder %s28, 1
      %p266 = por %p264, %p265
      %p267 = scmp.ne.s32.totalorder %s256, %s257
      %p268 = scmp.eq.s32.totalorder %s28, 0
      %p269 = por %p267, %p268
      %p270 = scmp.ne.s32.totalorder %s256, %s257
      %p271 = scmp.eq.s32.totalorder %s29, 1
      %p272 = por %p270, %p271
      %p274 = scmp.ne.s32.totalorder %s257, %s273
      %p275 = scmp.eq.s32.totalorder %s29, 0
      %p276 = por %p274, %p275
      %p277 = scmp.le.s32.totalorder 1, %s23
      %p278 = scmp.lt.s32.totalorder %s23, 3
      %p279 = pnand %p277, %p278
      %p280 = pneg %p279
      // Predicated region
      $region9: #{tpu_custom_call.1} parent=5 // pred_check
        _
      $region10: #{tpu_custom_call.1} parent=5 // pred_check_branch
        %282 = sbr.rel (%p279) target = $region12
      $region11: #{tpu_custom_call.1} parent=5 // pred_region
        %s283 = ssub.s32 %s23, 1
        // Predicated region
        $region13: #{tpu_custom_call.1} parent=11 // pred_check
          %p284 = pneg %p96
        $region14: #{tpu_custom_call.1} parent=11 // pred_check_branch
          %286 = sbr.rel (%p284) target = $region16
        $region15: #{tpu_custom_call.1} parent=11 // pred_region
          %288 = vsyncadd [#allocation7], 0
          %s289 = sshll.u32 %s2, 4
          %s290 = int_to_ptr.hbm [resolvable:$true] %s289
          %s291 = sshll.u32 [#allocation6], 4
          %s292 = int_to_ptr.vmem [resolvable:$true] %s291
          %297 = dma.hbm_to_vmem [thread:$0]  %s290, 4096, %s292, [#allocation7], 128, 128, 8
        $region16: #{tpu_custom_call.1} parent=11 // pred_fallthru
          _
        // Predicated region
        $region17: #{tpu_custom_call.1} parent=11 // pred_check
          %p298 = pneg %p117
        $region18: #{tpu_custom_call.1} parent=11 // pred_check_branch
          %300 = sbr.rel (%p298) target = $region20
        $region19: #{tpu_custom_call.1} parent=11 // pred_region
          %302 = vsyncadd [#allocation7], 0
          %s304 = sshll.u32 %s3, 4
          %s305 = int_to_ptr.hbm [resolvable:$true] %s304
          %s306 = sshll.u32 [#allocation8], 4
          %s307 = int_to_ptr.vmem [resolvable:$true] %s306
          %309 = dma.hbm_to_vmem [thread:$0]  %s305, 32, %s307, [#allocation7]
        $region20: #{tpu_custom_call.1} parent=11 // pred_fallthru
          _
        // Predicated region
        $region21: #{tpu_custom_call.1} parent=11 // pred_check
          %p310 = pneg %p138
        $region22: #{tpu_custom_call.1} parent=11 // pred_check_branch
          %312 = sbr.rel (%p310) target = $region24
        $region23: #{tpu_custom_call.1} parent=11 // pred_region
          %314 = vsyncadd [#allocation10], 0
          %s315 = sshll.u32 %s4, 4
          %s316 = int_to_ptr.hbm [resolvable:$true] %s315
          %s317 = sshll.u32 [#allocation9], 4
          %s318 = int_to_ptr.vmem [resolvable:$true] %s317
          %323 = dma.hbm_to_vmem [thread:$0]  %s316, 36864, %s318, [#allocation10], 128, 128, 8
        $region24: #{tpu_custom_call.1} parent=11 // pred_fallthru
          _
        // Predicated region
        $region25: #{tpu_custom_call.1} parent=11 // pred_check
          %p324 = pneg %p159
        $region26: #{tpu_custom_call.1} parent=11 // pred_check_branch
          %326 = sbr.rel (%p324) target = $region28
        $region27: #{tpu_custom_call.1} parent=11 // pred_region
          %328 = vsyncadd [#allocation10], 0
          %s330 = sshll.u32 %s5, 4
          %s331 = int_to_ptr.hbm [resolvable:$true] %s330
          %s332 = sshll.u32 [#allocation11], 4
          %s333 = int_to_ptr.vmem [resolvable:$true] %s332
          %335 = dma.hbm_to_vmem [thread:$0]  %s331, 32, %s333, [#allocation10]
        $region28: #{tpu_custom_call.1} parent=11 // pred_fallthru
          _
        // Predicated region
        $region29: #{tpu_custom_call.1} parent=11 // pred_check
          %p336 = pneg %p180
        $region30: #{tpu_custom_call.1} parent=11 // pred_check_branch
          %338 = sbr.rel (%p336) target = $region32
        $region31: #{tpu_custom_call.1} parent=11 // pred_region
          %340 = vsyncadd [#allocation13], 0
          %s342 = sshll.u32 %s6, 4
          %s343 = int_to_ptr.hbm [resolvable:$true] %s342
          %s344 = sshll.u32 [#allocation12], 4
          %s345 = int_to_ptr.vmem [resolvable:$true] %s344
          %347 = dma.hbm_to_vmem [thread:$0]  %s343, 32, %s345, [#allocation13]
        $region32: #{tpu_custom_call.1} parent=11 // pred_fallthru
          _
        // Predicated region
        $region33: #{tpu_custom_call.1} parent=11 // pred_check
          %p348 = pneg %p201
        $region34: #{tpu_custom_call.1} parent=11 // pred_check_branch
          %350 = sbr.rel (%p348) target = $region36
        $region35: #{tpu_custom_call.1} parent=11 // pred_region
          %352 = vsyncadd [#allocation13], 0
          %s354 = sshll.u32 %s7, 4
          %s355 = int_to_ptr.hbm [resolvable:$true] %s354
          %s356 = sshll.u32 [#allocation14], 4
          %s357 = int_to_ptr.vmem [resolvable:$true] %s356
          %359 = dma.hbm_to_vmem [thread:$0]  %s355, 32, %s357, [#allocation13]
        $region36: #{tpu_custom_call.1} parent=11 // pred_fallthru
          _
        // Predicated region
        $region37: #{tpu_custom_call.1} parent=11 // pred_check
          %p360 = pneg %p222
        $region38: #{tpu_custom_call.1} parent=11 // pred_check_branch
          %362 = sbr.rel (%p360) target = $region40
        $region39: #{tpu_custom_call.1} parent=11 // pred_region
          %364 = vsyncadd [#allocation16], 0
          %s365 = sshll.u32 %s8, 4
          %s366 = int_to_ptr.hbm [resolvable:$true] %s365
          %s367 = sshll.u32 [#allocation15], 4
          %s368 = int_to_ptr.vmem [resolvable:$true] %s367
          %373 = dma.hbm_to_vmem [thread:$0]  %s366, 6400, %s368, [#allocation16], 256, 256, 16
        $region40: #{tpu_custom_call.1} parent=11 // pred_fallthru
          _
        // Predicated region
        $region41: #{tpu_custom_call.1} parent=11 // pred_check
          %p374 = pneg %p243
        $region42: #{tpu_custom_call.1} parent=11 // pred_check_branch
          %376 = sbr.rel (%p374) target = $region44
        $region43: #{tpu_custom_call.1} parent=11 // pred_region
          %378 = vsyncadd [#allocation16], 0
          %s379 = sshll.u32 %s9, 4
          %s380 = int_to_ptr.hbm [resolvable:$true] %s379
          %s381 = sshll.u32 [#allocation17], 4
          %s382 = int_to_ptr.vmem [resolvable:$true] %s381
          %387 = dma.hbm_to_vmem [thread:$0]  %s380, 6400, %s382, [#allocation16], 256, 256, 16
        $region44: #{tpu_custom_call.1} parent=11 // pred_fallthru
          _
      $region12: #{tpu_custom_call.1} parent=5 // pred_fallthru
        _
      %p388 = scmp.lt.s32.totalorder %s23, 2
      // Predicated region
      $region45: #{tpu_custom_call.1} parent=5 // pred_check
        %p389 = pneg %p388
      $region46: #{tpu_custom_call.1} parent=5 // pred_check_branch
        %391 = sbr.rel (%p389) target = $region48
      $region47: #{tpu_custom_call.1} parent=5 // pred_region
        // Predicated region
        $region49: #{tpu_custom_call.1} parent=47 // pred_check
          %p392 = pneg %p43
        $region50: #{tpu_custom_call.1} parent=47 // pred_check_branch
          %394 = sbr.rel (%p392) target = $region52
        $region51: #{tpu_custom_call.1} parent=47 // pred_region
          %p395 = scmp.lt.s32.totalorder %s23, 1
          %s396 = scalar_select %p395, %s23, 1
          %s397 = smul.addr %s396, 50
          %s398 = smul.addr %s397, 4
          %s399 = scalar_lea.vmem %s0, %s398
        $region52: #{tpu_custom_call.1} parent=47 // pred_fallthru
          _
        // Predicated region
        $region53: #{tpu_custom_call.1} parent=47 // pred_check
          %p400 = pneg %p69
        $region54: #{tpu_custom_call.1} parent=47 // pred_check_branch
          %402 = sbr.rel (%p400) target = $region56
        $region55: #{tpu_custom_call.1} parent=47 // pred_region
          %s403 = sand.u32 %s59, 1
          %s404 = scalar_lea.sflag [#allocation5], %s403
          %s405 = sand.u32 %s59, 1
          %s406 = smul.addr %s405, 2
          %s407 = scalar_lea.vmem [#allocation4], %s406
          %409 = vsyncadd %s404, 0
          %s410 = smul.addr %s23, 2
          %s411 = scalar_lea.hbm %s1, %s410
          %s413 = sshll.u32 %s411, 4
          %s414 = int_to_ptr.hbm [resolvable:$true] %s413
          %s415 = sshll.u32 %s407, 4
          %s416 = int_to_ptr.vmem [resolvable:$true] %s415
          %418 = dma.hbm_to_vmem [thread:$0]  %s414, 32, %s416, %s404
        $region56: #{tpu_custom_call.1} parent=47 // pred_fallthru
          _
      $region48: #{tpu_custom_call.1} parent=5 // pred_fallthru
        _
      %p419 = scmp.le.s32.totalorder 1, %s23
      %p420 = scmp.lt.s32.totalorder %s23, 3
      %p421 = pnand %p419, %p420
      %p422 = pneg %p421
      // Predicated region
      $region57: #{tpu_custom_call.1} parent=5 // pred_check
        _
      $region58: #{tpu_custom_call.1} parent=5 // pred_check_branch
        %424 = sbr.rel (%p421) target = $region60
      $region59: #{tpu_custom_call.1} parent=5 // pred_region
        %s425 = ssub.s32 %s23, 1
        %s426 = sand.u32 %s62, 1
        %s427 = scalar_lea.sflag [#allocation5], %s426
        %s428 = sand.u32 %s62, 1
        %s429 = smul.addr %s428, 2
        %s430 = scalar_lea.vmem [#allocation4], %s429
        // Predicated region
        $region61: #{tpu_custom_call.1} parent=59 // pred_check
          %p431 = pneg %p75
        $region62: #{tpu_custom_call.1} parent=59 // pred_check_branch
          %433 = sbr.rel (%p431) target = $region64
        $region63: #{tpu_custom_call.1} parent=59 // pred_region
          %435 = dma.done %s427, 32
        $region64: #{tpu_custom_call.1} parent=59 // pred_fallthru
          _
        // Predicated region
        $region65: #{tpu_custom_call.1} parent=59 // pred_check
          %p436 = pneg %p96
        $region66: #{tpu_custom_call.1} parent=59 // pred_check_branch
          %438 = sbr.rel (%p436) target = $region68
        $region67: #{tpu_custom_call.1} parent=59 // pred_region
          %440 = dma.done [#allocation7], 4096
        $region68: #{tpu_custom_call.1} parent=59 // pred_fallthru
          _
        // Predicated region
        $region69: #{tpu_custom_call.1} parent=59 // pred_check
          %p441 = pneg %p117
        $region70: #{tpu_custom_call.1} parent=59 // pred_check_branch
          %443 = sbr.rel (%p441) target = $region72
        $region71: #{tpu_custom_call.1} parent=59 // pred_region
          %445 = dma.done [#allocation7], 32
        $region72: #{tpu_custom_call.1} parent=59 // pred_fallthru
          _
        // Predicated region
        $region73: #{tpu_custom_call.1} parent=59 // pred_check
          %p446 = pneg %p138
        $region74: #{tpu_custom_call.1} parent=59 // pred_check_branch
          %448 = sbr.rel (%p446) target = $region76
        $region75: #{tpu_custom_call.1} parent=59 // pred_region
          %450 = dma.done [#allocation10], 36864
        $region76: #{tpu_custom_call.1} parent=59 // pred_fallthru
          _
        // Predicated region
        $region77: #{tpu_custom_call.1} parent=59 // pred_check
          %p451 = pneg %p159
        $region78: #{tpu_custom_call.1} parent=59 // pred_check_branch
          %453 = sbr.rel (%p451) target = $region80
        $region79: #{tpu_custom_call.1} parent=59 // pred_region
          %455 = dma.done [#allocation10], 32
        $region80: #{tpu_custom_call.1} parent=59 // pred_fallthru
          _
        // Predicated region
        $region81: #{tpu_custom_call.1} parent=59 // pred_check
          %p456 = pneg %p180
        $region82: #{tpu_custom_call.1} parent=59 // pred_check_branch
          %458 = sbr.rel (%p456) target = $region84
        $region83: #{tpu_custom_call.1} parent=59 // pred_region
          %460 = dma.done [#allocation13], 32
        $region84: #{tpu_custom_call.1} parent=59 // pred_fallthru
          _
        // Predicated region
        $region85: #{tpu_custom_call.1} parent=59 // pred_check
          %p461 = pneg %p201
        $region86: #{tpu_custom_call.1} parent=59 // pred_check_branch
          %463 = sbr.rel (%p461) target = $region88
        $region87: #{tpu_custom_call.1} parent=59 // pred_region
          %465 = dma.done [#allocation13], 32
        $region88: #{tpu_custom_call.1} parent=59 // pred_fallthru
          _
        // Predicated region
        $region89: #{tpu_custom_call.1} parent=59 // pred_check
          %p466 = pneg %p222
        $region90: #{tpu_custom_call.1} parent=59 // pred_check_branch
          %468 = sbr.rel (%p466) target = $region92
        $region91: #{tpu_custom_call.1} parent=59 // pred_region
          %470 = dma.done [#allocation16], 6400
        $region92: #{tpu_custom_call.1} parent=59 // pred_fallthru
          _
        // Predicated region
        $region93: #{tpu_custom_call.1} parent=59 // pred_check
          %p471 = pneg %p243
        $region94: #{tpu_custom_call.1} parent=59 // pred_check_branch
          %473 = sbr.rel (%p471) target = $region96
        $region95: #{tpu_custom_call.1} parent=59 // pred_region
          %475 = dma.done [#allocation16], 6400
        $region96: #{tpu_custom_call.1} parent=59 // pred_fallthru
          _
        %p476 = scmp.lt.s32.totalorder %s28, 1
        %s477 = scalar_select %p476, %s28, 1
        %s478 = smul.addr %s477, 50
        %s479 = smul.addr %s478, 4
        %s480 = scalar_lea.vmem %s0, %s479
        %p481 = pneg %p49
        %p482 = pneg %p46
        %s483 = sand.u32 %s62, 1
        %s484 = scalar_lea.sflag [#allocation5], %s483
        %s485 = sand.u32 %s62, 1
        %s486 = smul.addr %s485, 2
        %s487 = scalar_lea.vmem [#allocation4], %s486
        %p488 = pneg %p75
        %p489 = pneg %p72
        %p490 = pneg %p96
        %p491 = pneg %p93
        %p492 = pneg %p117
        %p493 = pneg %p114
        %p494 = pneg %p138
        %p495 = pneg %p135
        %p496 = pneg %p159
        %p497 = pneg %p156
        %p498 = pneg %p180
        %p499 = pneg %p177
        %p500 = pneg %p201
        %p501 = pneg %p198
        %p502 = pneg %p222
        %p503 = pneg %p219
        %p504 = pneg %p243
        %p505 = pneg %p240
        %p506 = pneg %p269
        %p507 = pneg %p266
        %p508 = scmp.lt.s32.totalorder %s28, 1
        %s509 = scalar_select %p508, %s28, 1
        %s510 = smul.addr %s509, 50
        %s511 = smul.addr %s510, 8
        %s512 = scalar_lea.vmem %s10, %s511
        %p513 = scmp.lt.s32.totalorder %s28, 1
        %s514 = scalar_select %p513, %s28, 1
        %s515 = smul.addr %s514, 50
        %s516 = smul.addr %s515, 4
        %s517 = scalar_lea.vmem %s0, %s516
        %p518 = scmp.lt.s32.totalorder %s28, 1
        %s519 = scalar_select %p518, %s28, 1
        %s520 = smul.addr %s519, 50
        %s521 = smul.addr %s520, 8
        %s522 = scalar_lea.vmem %s10, %s521
        %v524 = vld [vmem:[%s517] sm:$0xff]
        %v525 = vld [vmem:[%s517 + $0x8] sm:$0xff]
        %v526 = vld [vmem:[%s517 + $0x10] sm:$0xff]
        %v527 = vld [vmem:[%s517 + $0x18] sm:$0xff]
        %v528 = vld [vmem:[%s517 + $0x20] sm:$0xff]
        %v529 = vld [vmem:[%s517 + $0x28] sm:$0xff]
        %v530 = vld [vmem:[%s517 + $0x30] sm:$0xff]
        %v531 = vld [vmem:[%s517 + $0x38] sm:$0xff]
        %v532 = vld [vmem:[%s517 + $0x40] sm:$0xff]
        %v533 = vld [vmem:[%s517 + $0x48] sm:$0xff]
        %v534 = vld [vmem:[%s517 + $0x50] sm:$0xff]
        %v535 = vld [vmem:[%s517 + $0x58] sm:$0xff]
        %v536 = vld [vmem:[%s517 + $0x60] sm:$0xff]
        %v537 = vld [vmem:[%s517 + $0x68] sm:$0xff]
        %v538 = vld [vmem:[%s517 + $0x70] sm:$0xff]
        %v539 = vld [vmem:[%s517 + $0x78] sm:$0xff]
        %v540 = vld [vmem:[%s517 + $0x80] sm:$0xff]
        %v541 = vld [vmem:[%s517 + $0x88] sm:$0xff]
        %v542 = vld [vmem:[%s517 + $0x90] sm:$0xff]
        %v543 = vld [vmem:[%s517 + $0x98] sm:$0xff]
        %v544 = vld [vmem:[%s517 + $0xa0] sm:$0xff]
        %v545 = vld [vmem:[%s517 + $0xa8] sm:$0xff]
        %v546 = vld [vmem:[%s517 + $0xb0] sm:$0xff]
        %v547 = vld [vmem:[%s517 + $0xb8] sm:$0xff]
        %v548 = vld [vmem:[%s517 + $0xc0] sm:$0x33]
        %v549 = vld [vmem:[#allocation6] sm:$0xff]
        %v550 = vld [vmem:[#allocation6 + $0x8] sm:$0xff]
        %v551 = vld [vmem:[#allocation6 + $0x10] sm:$0xff]
        %v552 = vld [vmem:[#allocation6 + $0x18] sm:$0xff]
        %v553 = vld [vmem:[#allocation6 + $0x20] sm:$0xff]
        %v554 = vld [vmem:[#allocation6 + $0x28] sm:$0xff]
        %v555 = vld [vmem:[#allocation6 + $0x30] sm:$0xff]
        %v556 = vld [vmem:[#allocation6 + $0x38] sm:$0xff]
        %v557 = vld [vmem:[#allocation6 + $0x40] sm:$0xff]
        %v558 = vld [vmem:[#allocation6 + $0x48] sm:$0xff]
        %v559 = vld [vmem:[#allocation6 + $0x50] sm:$0xff]
        %v560 = vld [vmem:[#allocation6 + $0x58] sm:$0xff]
        %v561 = vld [vmem:[#allocation6 + $0x60] sm:$0xff]
        %v562 = vld [vmem:[#allocation6 + $0x68] sm:$0xff]
        %v563 = vld [vmem:[#allocation6 + $0x70] sm:$0xff]
        %v564 = vld [vmem:[#allocation6 + $0x78] sm:$0xff]
        %v565 = vld [vmem:[#allocation6 + $0x80] sm:$0xff]
        %v566 = vld [vmem:[#allocation6 + $0x88] sm:$0xff]
        %v567 = vld [vmem:[#allocation6 + $0x90] sm:$0xff]
        %v568 = vld [vmem:[#allocation6 + $0x98] sm:$0xff]
        %v569 = vld [vmem:[#allocation6 + $0xa0] sm:$0xff]
        %v570 = vld [vmem:[#allocation6 + $0xa8] sm:$0xff]
        %v571 = vld [vmem:[#allocation6 + $0xb0] sm:$0xff]
        %v572 = vld [vmem:[#allocation6 + $0xb8] sm:$0xff]
        %v573 = vld [vmem:[#allocation6 + $0xc0] sm:$0xff]
        %v574 = vld [vmem:[#allocation6 + $0xc8] sm:$0xff]
        %v575 = vld [vmem:[#allocation6 + $0xd0] sm:$0xff]
        %v576 = vld [vmem:[#allocation6 + $0xd8] sm:$0xff]
        %v577 = vld [vmem:[#allocation6 + $0xe0] sm:$0xff]
        %v578 = vld [vmem:[#allocation6 + $0xe8] sm:$0xff]
        %v579 = vld [vmem:[#allocation6 + $0xf0] sm:$0xff]
        %v580 = vld [vmem:[#allocation6 + $0xf8] sm:$0xff]
        %v581 = vld [vmem:[#allocation8] sm:$0x3]
        %v583 = vperm.slane %v581, 0
        %v584 = vperm.slane %v581, 1
        %v612 = vunpack.c.l.b16 %v524
        %v613 = vunpack.c.h.b16 %v524
        %v614 = vunpack.c.l.b16 %v525
        %v615 = vunpack.c.h.b16 %v525
        %v616 = vunpack.c.l.b16 %v526
        %v617 = vunpack.c.h.b16 %v526
        %v618 = vunpack.c.l.b16 %v527
        %v619 = vunpack.c.h.b16 %v527
        %v620 = vunpack.c.l.b16 %v528
        %v621 = vunpack.c.h.b16 %v528
        %v622 = vunpack.c.l.b16 %v529
        %v623 = vunpack.c.h.b16 %v529
        %v624 = vunpack.c.l.b16 %v530
        %v625 = vunpack.c.h.b16 %v530
        %v626 = vunpack.c.l.b16 %v531
        %v627 = vunpack.c.h.b16 %v531
        %v628 = vunpack.c.l.b16 %v532
        %v629 = vunpack.c.h.b16 %v532
        %v630 = vunpack.c.l.b16 %v533
        %v631 = vunpack.c.h.b16 %v533
        %v632 = vunpack.c.l.b16 %v534
        %v633 = vunpack.c.h.b16 %v534
        %v634 = vunpack.c.l.b16 %v535
        %v635 = vunpack.c.h.b16 %v535
        %v636 = vunpack.c.l.b16 %v536
        %v637 = vunpack.c.h.b16 %v536
        %v638 = vunpack.c.l.b16 %v537
        %v639 = vunpack.c.h.b16 %v537
        %v640 = vunpack.c.l.b16 %v538
        %v641 = vunpack.c.h.b16 %v538
        %v642 = vunpack.c.l.b16 %v539
        %v643 = vunpack.c.h.b16 %v539
        %v644 = vunpack.c.l.b16 %v540
        %v645 = vunpack.c.h.b16 %v540
        %v646 = vunpack.c.l.b16 %v541
        %v647 = vunpack.c.h.b16 %v541
        %v648 = vunpack.c.l.b16 %v542
        %v649 = vunpack.c.h.b16 %v542
        %v650 = vunpack.c.l.b16 %v543
        %v651 = vunpack.c.h.b16 %v543
        %v652 = vunpack.c.l.b16 %v544
        %v653 = vunpack.c.h.b16 %v544
        %v654 = vunpack.c.l.b16 %v545
        %v655 = vunpack.c.h.b16 %v545
        %v656 = vunpack.c.l.b16 %v546
        %v657 = vunpack.c.h.b16 %v546
        %v658 = vunpack.c.l.b16 %v547
        %v659 = vunpack.c.h.b16 %v547
        %v660 = vunpack.c.l.b16 %v548
        %v661 = vunpack.c.h.b16 %v548
        %v662 = vpack.c.b16 %v614, %v612
        %v663 = vpack.c.b16 %v615, %v613
        %v664 = vpack.c.b16 %v618, %v616
        %v665 = vpack.c.b16 %v619, %v617
        %v666 = vpack.c.b16 %v622, %v620
        %v667 = vpack.c.b16 %v623, %v621
        %v668 = vpack.c.b16 %v626, %v624
        %v669 = vpack.c.b16 %v627, %v625
        %v670 = vpack.c.b16 %v630, %v628
        %v671 = vpack.c.b16 %v631, %v629
        %v672 = vpack.c.b16 %v634, %v632
        %v673 = vpack.c.b16 %v635, %v633
        %v674 = vpack.c.b16 %v638, %v636
        %v675 = vpack.c.b16 %v639, %v637
        %v676 = vpack.c.b16 %v642, %v640
        %v677 = vpack.c.b16 %v643, %v641
        %v678 = vpack.c.b16 %v646, %v644
        %v679 = vpack.c.b16 %v647, %v645
        %v680 = vpack.c.b16 %v650, %v648
        %v681 = vpack.c.b16 %v651, %v649
        %v682 = vpack.c.b16 %v654, %v652
        %v683 = vpack.c.b16 %v655, %v653
        %v684 = vpack.c.b16 %v658, %v656
        %v685 = vpack.c.b16 %v659, %v657
        %v686 = vpack.c.b16 %v660, %v660
        %v687 = vpack.c.b16 %v661, %v661
        %v746 = vunpack.c.l.b16 %v549
        %v747 = vunpack.c.h.b16 %v549
        %v748 = vunpack.c.l.b16 %v550
        %v749 = vunpack.c.h.b16 %v550
        %v750 = vunpack.c.l.b16 %v551
        %v751 = vunpack.c.h.b16 %v551
        %v752 = vunpack.c.l.b16 %v552
        %v753 = vunpack.c.h.b16 %v552
        %v754 = vunpack.c.l.b16 %v553
        %v755 = vunpack.c.h.b16 %v553
        %v756 = vunpack.c.l.b16 %v554
        %v757 = vunpack.c.h.b16 %v554
        %v758 = vunpack.c.l.b16 %v555
        %v759 = vunpack.c.h.b16 %v555
        %v760 = vunpack.c.l.b16 %v556
        %v761 = vunpack.c.h.b16 %v556
        %v762 = vunpack.c.l.b16 %v557
        %v763 = vunpack.c.h.b16 %v557
        %v764 = vunpack.c.l.b16 %v558
        %v765 = vunpack.c.h.b16 %v558
        %v766 = vunpack.c.l.b16 %v559
        %v767 = vunpack.c.h.b16 %v559
        %v768 = vunpack.c.l.b16 %v560
        %v769 = vunpack.c.h.b16 %v560
        %v770 = vunpack.c.l.b16 %v561
        %v771 = vunpack.c.h.b16 %v561
        %v772 = vunpack.c.l.b16 %v562
        %v773 = vunpack.c.h.b16 %v562
        %v774 = vunpack.c.l.b16 %v563
        %v775 = vunpack.c.h.b16 %v563
        %v776 = vunpack.c.l.b16 %v564
        %v777 = vunpack.c.h.b16 %v564
        %v778 = vunpack.c.l.b16 %v565
        %v779 = vunpack.c.h.b16 %v565
        %v780 = vunpack.c.l.b16 %v566
        %v781 = vunpack.c.h.b16 %v566
        %v782 = vunpack.c.l.b16 %v567
        %v783 = vunpack.c.h.b16 %v567
        %v784 = vunpack.c.l.b16 %v568
        %v785 = vunpack.c.h.b16 %v568
        %v786 = vunpack.c.l.b16 %v569
        %v787 = vunpack.c.h.b16 %v569
        %v788 = vunpack.c.l.b16 %v570
        %v789 = vunpack.c.h.b16 %v570
        %v790 = vunpack.c.l.b16 %v571
        %v791 = vunpack.c.h.b16 %v571
        %v792 = vunpack.c.l.b16 %v572
        %v793 = vunpack.c.h.b16 %v572
        %v794 = vunpack.c.l.b16 %v573
        %v795 = vunpack.c.h.b16 %v573
        %v796 = vunpack.c.l.b16 %v574
        %v797 = vunpack.c.h.b16 %v574
        %v798 = vunpack.c.l.b16 %v575
        %v799 = vunpack.c.h.b16 %v575
        %v800 = vunpack.c.l.b16 %v576
        %v801 = vunpack.c.h.b16 %v576
        %v802 = vunpack.c.l.b16 %v577
        %v803 = vunpack.c.h.b16 %v577
        %v804 = vunpack.c.l.b16 %v578
        %v805 = vunpack.c.h.b16 %v578
        %v806 = vunpack.c.l.b16 %v579
        %v807 = vunpack.c.h.b16 %v579
        %v808 = vunpack.c.l.b16 %v580
        %v809 = vunpack.c.h.b16 %v580
        %v810 = vpack.c.b16 %v748, %v746
        %v811 = vpack.c.b16 %v749, %v747
        %v812 = vpack.c.b16 %v752, %v750
        %v813 = vpack.c.b16 %v753, %v751
        %v814 = vpack.c.b16 %v756, %v754
        %v815 = vpack.c.b16 %v757, %v755
        %v816 = vpack.c.b16 %v760, %v758
        %v817 = vpack.c.b16 %v761, %v759
        %v818 = vpack.c.b16 %v764, %v762
        %v819 = vpack.c.b16 %v765, %v763
        %v820 = vpack.c.b16 %v768, %v766
        %v821 = vpack.c.b16 %v769, %v767
        %v822 = vpack.c.b16 %v772, %v770
        %v823 = vpack.c.b16 %v773, %v771
        %v824 = vpack.c.b16 %v776, %v774
        %v825 = vpack.c.b16 %v777, %v775
        %v826 = vpack.c.b16 %v780, %v778
        %v827 = vpack.c.b16 %v781, %v779
        %v828 = vpack.c.b16 %v784, %v782
        %v829 = vpack.c.b16 %v785, %v783
        %v830 = vpack.c.b16 %v788, %v786
        %v831 = vpack.c.b16 %v789, %v787
        %v832 = vpack.c.b16 %v792, %v790
        %v833 = vpack.c.b16 %v793, %v791
        %v834 = vpack.c.b16 %v796, %v794
        %v835 = vpack.c.b16 %v797, %v795
        %v836 = vpack.c.b16 %v800, %v798
        %v837 = vpack.c.b16 %v801, %v799
        %v838 = vpack.c.b16 %v804, %v802
        %v839 = vpack.c.b16 %v805, %v803
        %v840 = vpack.c.b16 %v808, %v806
        %v841 = vpack.c.b16 %v809, %v807
        %874 = vmatpush.bf16.msra.mxu0 %v824
        %875 = vmatpush.bf16.msra.mxu0 %v822
        %876 = vmatpush.bf16.msra.mxu0 %v820
        %877 = vmatpush.bf16.msra.mxu0 %v818
        %878 = vmatpush.bf16.msra.mxu0 %v816
        %879 = vmatpush.bf16.msra.mxu0 %v814
        %880 = vmatpush.bf16.msra.mxu0 %v812
        %881 = vmatpush.bf16.msra.mxu0 %v810
        %882 = vmatmul.bf16.gmra.mxu0 %v662
        %v883 = vpop.f32.mrf.mxu0
        %v884 = vadd.f32 %v583, %v883
        %v885 = vpop.f32.mrf.mxu0
        %v886 = vadd.f32 %v583, %v885
        %887 = vmatmul.bf16.gmra.mxu0 %v664
        %v888 = vpop.f32.mrf.mxu0
        %v889 = vadd.f32 %v583, %v888
        %v890 = vpop.f32.mrf.mxu0
        %v891 = vadd.f32 %v583, %v890
        %892 = vmatmul.bf16.gmra.mxu0 %v666
        %v893 = vpop.f32.mrf.mxu0
        %v894 = vadd.f32 %v583, %v893
        %v895 = vpop.f32.mrf.mxu0
        %v896 = vadd.f32 %v583, %v895
        %897 = vmatmul.bf16.gmra.mxu0 %v668
        %v898 = vpop.f32.mrf.mxu0
        %v899 = vadd.f32 %v583, %v898
        %v900 = vpop.f32.mrf.mxu0
        %v901 = vadd.f32 %v583, %v900
        %902 = vmatmul.bf16.gmra.mxu0 %v670
        %v903 = vpop.f32.mrf.mxu0
        %v904 = vadd.f32 %v583, %v903
        %v905 = vpop.f32.mrf.mxu0
        %v906 = vadd.f32 %v583, %v905
        %907 = vmatmul.bf16.gmra.mxu0 %v672
        %v908 = vpop.f32.mrf.mxu0
        %v909 = vadd.f32 %v583, %v908
        %v910 = vpop.f32.mrf.mxu0
        %v911 = vadd.f32 %v583, %v910
        %912 = vmatmul.bf16.gmra.mxu0 %v674
        %v913 = vpop.f32.mrf.mxu0
        %v914 = vadd.f32 %v583, %v913
        %v915 = vpop.f32.mrf.mxu0
        %v916 = vadd.f32 %v583, %v915
        %917 = vmatmul.bf16.gmra.mxu0 %v676
        %v918 = vpop.f32.mrf.mxu0
        %v919 = vadd.f32 %v583, %v918
        %v920 = vpop.f32.mrf.mxu0
        %v921 = vadd.f32 %v583, %v920
        %922 = vmatmul.bf16.gmra.mxu0 %v678
        %v923 = vpop.f32.mrf.mxu0
        %v924 = vadd.f32 %v583, %v923
        %v925 = vpop.f32.mrf.mxu0
        %v926 = vadd.f32 %v583, %v925
        %927 = vmatmul.bf16.gmra.mxu0 %v680
        %v928 = vpop.f32.mrf.mxu0
        %v929 = vadd.f32 %v583, %v928
        %v930 = vpop.f32.mrf.mxu0
        %v931 = vadd.f32 %v583, %v930
        %932 = vmatmul.bf16.gmra.mxu0 %v682
        %v933 = vpop.f32.mrf.mxu0
        %v934 = vadd.f32 %v583, %v933
        %v935 = vpop.f32.mrf.mxu0
        %v936 = vadd.f32 %v583, %v935
        %937 = vmatmul.bf16.gmra.mxu0 %v684
        %v938 = vpop.f32.mrf.mxu0
        %v939 = vadd.f32 %v583, %v938
        %v940 = vpop.f32.mrf.mxu0
        %v941 = vadd.f32 %v583, %v940
        %942 = vmatmul.bf16.gmra.mxu0 %v686
        %v943 = vpop.f32.mrf.mxu0
        %v944 = vadd.f32 %v583, %v943
        %v945 = vpop.f32.mrf.mxu0
        %946 = vdwg.mxu0
        %947 = vmatpush.bf16.msra.mxu0 %v840
        %948 = vmatpush.bf16.msra.mxu0 %v838
        %949 = vmatpush.bf16.msra.mxu0 %v836
        %950 = vmatpush.bf16.msra.mxu0 %v834
        %951 = vmatpush.bf16.msra.mxu0 %v832
        %952 = vmatpush.bf16.msra.mxu0 %v830
        %953 = vmatpush.bf16.msra.mxu0 %v828
        %954 = vmatpush.bf16.msra.mxu0 %v826
        %955 = vmatmul.bf16.gmra.mxu0 %v663
        %v956 = vpop.f32.mrf.mxu0
        %v957 = vadd.f32 %v884, %v956
        %v958 = vpop.f32.mrf.mxu0
        %v959 = vadd.f32 %v886, %v958
        %960 = vmatmul.bf16.gmra.mxu0 %v665
        %v961 = vpop.f32.mrf.mxu0
        %v962 = vadd.f32 %v889, %v961
        %v963 = vpop.f32.mrf.mxu0
        %v964 = vadd.f32 %v891, %v963
        %965 = vmatmul.bf16.gmra.mxu0 %v667
        %v966 = vpop.f32.mrf.mxu0
        %v967 = vadd.f32 %v894, %v966
        %v968 = vpop.f32.mrf.mxu0
        %v969 = vadd.f32 %v896, %v968
        %970 = vmatmul.bf16.gmra.mxu0 %v669
        %v971 = vpop.f32.mrf.mxu0
        %v972 = vadd.f32 %v899, %v971
        %v973 = vpop.f32.mrf.mxu0
        %v974 = vadd.f32 %v901, %v973
        %975 = vmatmul.bf16.gmra.mxu0 %v671
        %v976 = vpop.f32.mrf.mxu0
        %v977 = vadd.f32 %v904, %v976
        %v978 = vpop.f32.mrf.mxu0
        %v979 = vadd.f32 %v906, %v978
        %980 = vmatmul.bf16.gmra.mxu0 %v673
        %v981 = vpop.f32.mrf.mxu0
        %v982 = vadd.f32 %v909, %v981
        %v983 = vpop.f32.mrf.mxu0
        %v984 = vadd.f32 %v911, %v983
        %985 = vmatmul.bf16.gmra.mxu0 %v675
        %v986 = vpop.f32.mrf.mxu0
        %v987 = vadd.f32 %v914, %v986
        %v988 = vpop.f32.mrf.mxu0
        %v989 = vadd.f32 %v916, %v988
        %990 = vmatmul.bf16.gmra.mxu0 %v677
        %v991 = vpop.f32.mrf.mxu0
        %v992 = vadd.f32 %v919, %v991
        %v993 = vpop.f32.mrf.mxu0
        %v994 = vadd.f32 %v921, %v993
        %995 = vmatmul.bf16.gmra.mxu0 %v679
        %v996 = vpop.f32.mrf.mxu0
        %v997 = vadd.f32 %v924, %v996
        %v998 = vpop.f32.mrf.mxu0
        %v999 = vadd.f32 %v926, %v998
        %1000 = vmatmul.bf16.gmra.mxu0 %v681
        %v1001 = vpop.f32.mrf.mxu0
        %v1002 = vadd.f32 %v929, %v1001
        %v1003 = vpop.f32.mrf.mxu0
        %v1004 = vadd.f32 %v931, %v1003
        %1005 = vmatmul.bf16.gmra.mxu0 %v683
        %v1006 = vpop.f32.mrf.mxu0
        %v1007 = vadd.f32 %v934, %v1006
        %v1008 = vpop.f32.mrf.mxu0
        %v1009 = vadd.f32 %v936, %v1008
        %1010 = vmatmul.bf16.gmra.mxu0 %v685
        %v1011 = vpop.f32.mrf.mxu0
        %v1012 = vadd.f32 %v939, %v1011
        %v1013 = vpop.f32.mrf.mxu0
        %v1014 = vadd.f32 %v941, %v1013
        %1015 = vmatmul.bf16.gmra.mxu0 %v687
        %v1016 = vpop.f32.mrf.mxu0
        %v1017 = vadd.f32 %v944, %v1016
        %v1018 = vpop.f32.mrf.mxu0
        %1019 = vdwg.mxu0
        %1020 = vmatpush.bf16.msra.mxu0 %v825
        %1021 = vmatpush.bf16.msra.mxu0 %v823
        %1022 = vmatpush.bf16.msra.mxu0 %v821
        %1023 = vmatpush.bf16.msra.mxu0 %v819
        %1024 = vmatpush.bf16.msra.mxu0 %v817
        %1025 = vmatpush.bf16.msra.mxu0 %v815
        %1026 = vmatpush.bf16.msra.mxu0 %v813
        %1027 = vmatpush.bf16.msra.mxu0 %v811
        %1028 = vmatmul.bf16.gmra.mxu0 %v662
        %v1029 = vpop.f32.mrf.mxu0
        %v1030 = vadd.f32 %v584, %v1029
        %v1031 = vpop.f32.mrf.mxu0
        %v1032 = vadd.f32 %v584, %v1031
        %1033 = vmatmul.bf16.gmra.mxu0 %v664
        %v1034 = vpop.f32.mrf.mxu0
        %v1035 = vadd.f32 %v584, %v1034
        %v1036 = vpop.f32.mrf.mxu0
        %v1037 = vadd.f32 %v584, %v1036
        %1038 = vmatmul.bf16.gmra.mxu0 %v666
        %v1039 = vpop.f32.mrf.mxu0
        %v1040 = vadd.f32 %v584, %v1039
        %v1041 = vpop.f32.mrf.mxu0
        %v1042 = vadd.f32 %v584, %v1041
        %1043 = vmatmul.bf16.gmra.mxu0 %v668
        %v1044 = vpop.f32.mrf.mxu0
        %v1045 = vadd.f32 %v584, %v1044
        %v1046 = vpop.f32.mrf.mxu0
        %v1047 = vadd.f32 %v584, %v1046
        %1048 = vmatmul.bf16.gmra.mxu0 %v670
        %v1049 = vpop.f32.mrf.mxu0
        %v1050 = vadd.f32 %v584, %v1049
        %v1051 = vpop.f32.mrf.mxu0
        %v1052 = vadd.f32 %v584, %v1051
        %1053 = vmatmul.bf16.gmra.mxu0 %v672
        %v1054 = vpop.f32.mrf.mxu0
        %v1055 = vadd.f32 %v584, %v1054
        %v1056 = vpop.f32.mrf.mxu0
        %v1057 = vadd.f32 %v584, %v1056
        %1058 = vmatmul.bf16.gmra.mxu0 %v674
        %v1059 = vpop.f32.mrf.mxu0
        %v1060 = vadd.f32 %v584, %v1059
        %v1061 = vpop.f32.mrf.mxu0
        %v1062 = vadd.f32 %v584, %v1061
        %1063 = vmatmul.bf16.gmra.mxu0 %v676
        %v1064 = vpop.f32.mrf.mxu0
        %v1065 = vadd.f32 %v584, %v1064
        %v1066 = vpop.f32.mrf.mxu0
        %v1067 = vadd.f32 %v584, %v1066
        %1068 = vmatmul.bf16.gmra.mxu0 %v678
        %v1069 = vpop.f32.mrf.mxu0
        %v1070 = vadd.f32 %v584, %v1069
        %v1071 = vpop.f32.mrf.mxu0
        %v1072 = vadd.f32 %v584, %v1071
        %1073 = vmatmul.bf16.gmra.mxu0 %v680
        %v1074 = vpop.f32.mrf.mxu0
        %v1075 = vadd.f32 %v584, %v1074
        %v1076 = vpop.f32.mrf.mxu0
        %v1077 = vadd.f32 %v584, %v1076
        %1078 = vmatmul.bf16.gmra.mxu0 %v682
        %v1079 = vpop.f32.mrf.mxu0
        %v1080 = vadd.f32 %v584, %v1079
        %v1081 = vpop.f32.mrf.mxu0
        %v1082 = vadd.f32 %v584, %v1081
        %1083 = vmatmul.bf16.gmra.mxu0 %v684
        %v1084 = vpop.f32.mrf.mxu0
        %v1085 = vadd.f32 %v584, %v1084
        %v1086 = vpop.f32.mrf.mxu0
        %v1087 = vadd.f32 %v584, %v1086
        %1088 = vmatmul.bf16.gmra.mxu0 %v686
        %v1089 = vpop.f32.mrf.mxu0
        %v1090 = vadd.f32 %v584, %v1089
        %v1091 = vpop.f32.mrf.mxu0
        %1092 = vdwg.mxu0
        %1093 = vmatpush.bf16.msra.mxu0 %v841
        %1094 = vmatpush.bf16.msra.mxu0 %v839
        %1095 = vmatpush.bf16.msra.mxu0 %v837
        %1096 = vmatpush.bf16.msra.mxu0 %v835
        %1097 = vmatpush.bf16.msra.mxu0 %v833
        %1098 = vmatpush.bf16.msra.mxu0 %v831
        %1099 = vmatpush.bf16.msra.mxu0 %v829
        %1100 = vmatpush.bf16.msra.mxu0 %v827
        %1101 = vmatmul.bf16.gmra.mxu0 %v663
        %v1102 = vpop.f32.mrf.mxu0
        %v1103 = vadd.f32 %v1030, %v1102
        %v1104 = vpop.f32.mrf.mxu0
        %v1105 = vadd.f32 %v1032, %v1104
        %1106 = vmatmul.bf16.gmra.mxu0 %v665
        %v1107 = vpop.f32.mrf.mxu0
        %v1108 = vadd.f32 %v1035, %v1107
        %v1109 = vpop.f32.mrf.mxu0
        %v1110 = vadd.f32 %v1037, %v1109
        %1111 = vmatmul.bf16.gmra.mxu0 %v667
        %v1112 = vpop.f32.mrf.mxu0
        %v1113 = vadd.f32 %v1040, %v1112
        %v1114 = vpop.f32.mrf.mxu0
        %v1115 = vadd.f32 %v1042, %v1114
        %1116 = vmatmul.bf16.gmra.mxu0 %v669
        %v1117 = vpop.f32.mrf.mxu0
        %v1118 = vadd.f32 %v1045, %v1117
        %v1119 = vpop.f32.mrf.mxu0
        %v1120 = vadd.f32 %v1047, %v1119
        %1121 = vmatmul.bf16.gmra.mxu0 %v671
        %v1122 = vpop.f32.mrf.mxu0
        %v1123 = vadd.f32 %v1050, %v1122
        %v1124 = vpop.f32.mrf.mxu0
        %v1125 = vadd.f32 %v1052, %v1124
        %1126 = vmatmul.bf16.gmra.mxu0 %v673
        %v1127 = vpop.f32.mrf.mxu0
        %v1128 = vadd.f32 %v1055, %v1127
        %v1129 = vpop.f32.mrf.mxu0
        %v1130 = vadd.f32 %v1057, %v1129
        %1131 = vmatmul.bf16.gmra.mxu0 %v675
        %v1132 = vpop.f32.mrf.mxu0
        %v1133 = vadd.f32 %v1060, %v1132
        %v1134 = vpop.f32.mrf.mxu0
        %v1135 = vadd.f32 %v1062, %v1134
        %1136 = vmatmul.bf16.gmra.mxu0 %v677
        %v1137 = vpop.f32.mrf.mxu0
        %v1138 = vadd.f32 %v1065, %v1137
        %v1139 = vpop.f32.mrf.mxu0
        %v1140 = vadd.f32 %v1067, %v1139
        %1141 = vmatmul.bf16.gmra.mxu0 %v679
        %v1142 = vpop.f32.mrf.mxu0
        %v1143 = vadd.f32 %v1070, %v1142
        %v1144 = vpop.f32.mrf.mxu0
        %v1145 = vadd.f32 %v1072, %v1144
        %1146 = vmatmul.bf16.gmra.mxu0 %v681
        %v1147 = vpop.f32.mrf.mxu0
        %v1148 = vadd.f32 %v1075, %v1147
        %v1149 = vpop.f32.mrf.mxu0
        %v1150 = vadd.f32 %v1077, %v1149
        %1151 = vmatmul.bf16.gmra.mxu0 %v683
        %v1152 = vpop.f32.mrf.mxu0
        %v1153 = vadd.f32 %v1080, %v1152
        %v1154 = vpop.f32.mrf.mxu0
        %v1155 = vadd.f32 %v1082, %v1154
        %1156 = vmatmul.bf16.gmra.mxu0 %v685
        %v1157 = vpop.f32.mrf.mxu0
        %v1158 = vadd.f32 %v1085, %v1157
        %v1159 = vpop.f32.mrf.mxu0
        %v1160 = vadd.f32 %v1087, %v1159
        %1161 = vmatmul.bf16.gmra.mxu0 %v687
        %v1162 = vpop.f32.mrf.mxu0
        %v1163 = vadd.f32 %v1090, %v1162
        %v1164 = vpop.f32.mrf.mxu0
        %1165 = vdwg.mxu0
        %vm1166 = vcmp.gt.f32.partialorder %v957, 0.0
        %vm1167 = vcmp.gt.f32.partialorder %v1103, 0.0
        %vm1168 = vcmp.gt.f32.partialorder %v959, 0.0
        %vm1169 = vcmp.gt.f32.partialorder %v1105, 0.0
        %vm1170 = vcmp.gt.f32.partialorder %v962, 0.0
        %vm1171 = vcmp.gt.f32.partialorder %v1108, 0.0
        %vm1172 = vcmp.gt.f32.partialorder %v964, 0.0
        %vm1173 = vcmp.gt.f32.partialorder %v1110, 0.0
        %vm1174 = vcmp.gt.f32.partialorder %v967, 0.0
        %vm1175 = vcmp.gt.f32.partialorder %v1113, 0.0
        %vm1176 = vcmp.gt.f32.partialorder %v969, 0.0
        %vm1177 = vcmp.gt.f32.partialorder %v1115, 0.0
        %vm1178 = vcmp.gt.f32.partialorder %v972, 0.0
        %vm1179 = vcmp.gt.f32.partialorder %v1118, 0.0
        %vm1180 = vcmp.gt.f32.partialorder %v974, 0.0
        %vm1181 = vcmp.gt.f32.partialorder %v1120, 0.0
        %vm1182 = vcmp.gt.f32.partialorder %v977, 0.0
        %vm1183 = vcmp.gt.f32.partialorder %v1123, 0.0
        %vm1184 = vcmp.gt.f32.partialorder %v979, 0.0
        %vm1185 = vcmp.gt.f32.partialorder %v1125, 0.0
        %vm1186 = vcmp.gt.f32.partialorder %v982, 0.0
        %vm1187 = vcmp.gt.f32.partialorder %v1128, 0.0
        %vm1188 = vcmp.gt.f32.partialorder %v984, 0.0
        %vm1189 = vcmp.gt.f32.partialorder %v1130, 0.0
        %vm1190 = vcmp.gt.f32.partialorder %v987, 0.0
        %vm1191 = vcmp.gt.f32.partialorder %v1133, 0.0
        %vm1192 = vcmp.gt.f32.partialorder %v989, 0.0
        %vm1193 = vcmp.gt.f32.partialorder %v1135, 0.0
        %vm1194 = vcmp.gt.f32.partialorder %v992, 0.0
        %vm1195 = vcmp.gt.f32.partialorder %v1138, 0.0
        %vm1196 = vcmp.gt.f32.partialorder %v994, 0.0
        %vm1197 = vcmp.gt.f32.partialorder %v1140, 0.0
        %vm1198 = vcmp.gt.f32.partialorder %v997, 0.0
        %vm1199 = vcmp.gt.f32.partialorder %v1143, 0.0
        %vm1200 = vcmp.gt.f32.partialorder %v999, 0.0
        %vm1201 = vcmp.gt.f32.partialorder %v1145, 0.0
        %vm1202 = vcmp.gt.f32.partialorder %v1002, 0.0
        %vm1203 = vcmp.gt.f32.partialorder %v1148, 0.0
        %vm1204 = vcmp.gt.f32.partialorder %v1004, 0.0
        %vm1205 = vcmp.gt.f32.partialorder %v1150, 0.0
        %vm1206 = vcmp.gt.f32.partialorder %v1007, 0.0
        %vm1207 = vcmp.gt.f32.partialorder %v1153, 0.0
        %vm1208 = vcmp.gt.f32.partialorder %v1009, 0.0
        %vm1209 = vcmp.gt.f32.partialorder %v1155, 0.0
        %vm1210 = vcmp.gt.f32.partialorder %v1012, 0.0
        %vm1211 = vcmp.gt.f32.partialorder %v1158, 0.0
        %vm1212 = vcmp.gt.f32.partialorder %v1014, 0.0
        %vm1213 = vcmp.gt.f32.partialorder %v1160, 0.0
        %vm1214 = vcmp.gt.f32.partialorder %v1017, 0.0
        %vm1215 = vcmp.gt.f32.partialorder %v1163, 0.0
        %v1216 = vmul.f32 %v957, 0.2
        %v1217 = vmul.f32 %v1103, 0.2
        %v1218 = vmul.f32 %v959, 0.2
        %v1219 = vmul.f32 %v1105, 0.2
        %v1220 = vmul.f32 %v962, 0.2
        %v1221 = vmul.f32 %v1108, 0.2
        %v1222 = vmul.f32 %v964, 0.2
        %v1223 = vmul.f32 %v1110, 0.2
        %v1224 = vmul.f32 %v967, 0.2
        %v1225 = vmul.f32 %v1113, 0.2
        %v1226 = vmul.f32 %v969, 0.2
        %v1227 = vmul.f32 %v1115, 0.2
        %v1228 = vmul.f32 %v972, 0.2
        %v1229 = vmul.f32 %v1118, 0.2
        %v1230 = vmul.f32 %v974, 0.2
        %v1231 = vmul.f32 %v1120, 0.2
        %v1232 = vmul.f32 %v977, 0.2
        %v1233 = vmul.f32 %v1123, 0.2
        %v1234 = vmul.f32 %v979, 0.2
        %v1235 = vmul.f32 %v1125, 0.2
        %v1236 = vmul.f32 %v982, 0.2
        %v1237 = vmul.f32 %v1128, 0.2
        %v1238 = vmul.f32 %v984, 0.2
        %v1239 = vmul.f32 %v1130, 0.2
        %v1240 = vmul.f32 %v987, 0.2
        %v1241 = vmul.f32 %v1133, 0.2
        %v1242 = vmul.f32 %v989, 0.2
        %v1243 = vmul.f32 %v1135, 0.2
        %v1244 = vmul.f32 %v992, 0.2
        %v1245 = vmul.f32 %v1138, 0.2
        %v1246 = vmul.f32 %v994, 0.2
        %v1247 = vmul.f32 %v1140, 0.2
        %v1248 = vmul.f32 %v997, 0.2
        %v1249 = vmul.f32 %v1143, 0.2
        %v1250 = vmul.f32 %v999, 0.2
        %v1251 = vmul.f32 %v1145, 0.2
        %v1252 = vmul.f32 %v1002, 0.2
        %v1253 = vmul.f32 %v1148, 0.2
        %v1254 = vmul.f32 %v1004, 0.2
        %v1255 = vmul.f32 %v1150, 0.2
        %v1256 = vmul.f32 %v1007, 0.2
        %v1257 = vmul.f32 %v1153, 0.2
        %v1258 = vmul.f32 %v1009, 0.2
        %v1259 = vmul.f32 %v1155, 0.2
        %v1260 = vmul.f32 %v1012, 0.2
        %v1261 = vmul.f32 %v1158, 0.2
        %v1262 = vmul.f32 %v1014, 0.2
        %v1263 = vmul.f32 %v1160, 0.2
        %v1264 = vmul.f32 %v1017, 0.2
        %v1265 = vmul.f32 %v1163, 0.2
        %v1266 = vsel %vm1166, %v957, %v1216
        %v1267 = vsel %vm1167, %v1103, %v1217
        %v1268 = vsel %vm1168, %v959, %v1218
        %v1269 = vsel %vm1169, %v1105, %v1219
        %v1270 = vsel %vm1170, %v962, %v1220
        %v1271 = vsel %vm1171, %v1108, %v1221
        %v1272 = vsel %vm1172, %v964, %v1222
        %v1273 = vsel %vm1173, %v1110, %v1223
        %v1274 = vsel %vm1174, %v967, %v1224
        %v1275 = vsel %vm1175, %v1113, %v1225
        %v1276 = vsel %vm1176, %v969, %v1226
        %v1277 = vsel %vm1177, %v1115, %v1227
        %v1278 = vsel %vm1178, %v972, %v1228
        %v1279 = vsel %vm1179, %v1118, %v1229
        %v1280 = vsel %vm1180, %v974, %v1230
        %v1281 = vsel %vm1181, %v1120, %v1231
        %v1282 = vsel %vm1182, %v977, %v1232
        %v1283 = vsel %vm1183, %v1123, %v1233
        %v1284 = vsel %vm1184, %v979, %v1234
        %v1285 = vsel %vm1185, %v1125, %v1235
        %v1286 = vsel %vm1186, %v982, %v1236
        %v1287 = vsel %vm1187, %v1128, %v1237
        %v1288 = vsel %vm1188, %v984, %v1238
        %v1289 = vsel %vm1189, %v1130, %v1239
        %v1290 = vsel %vm1190, %v987, %v1240
        %v1291 = vsel %vm1191, %v1133, %v1241
        %v1292 = vsel %vm1192, %v989, %v1242
        %v1293 = vsel %vm1193, %v1135, %v1243
        %v1294 = vsel %vm1194, %v992, %v1244
        %v1295 = vsel %vm1195, %v1138, %v1245
        %v1296 = vsel %vm1196, %v994, %v1246
        %v1297 = vsel %vm1197, %v1140, %v1247
        %v1298 = vsel %vm1198, %v997, %v1248
        %v1299 = vsel %vm1199, %v1143, %v1249
        %v1300 = vsel %vm1200, %v999, %v1250
        %v1301 = vsel %vm1201, %v1145, %v1251
        %v1302 = vsel %vm1202, %v1002, %v1252
        %v1303 = vsel %vm1203, %v1148, %v1253
        %v1304 = vsel %vm1204, %v1004, %v1254
        %v1305 = vsel %vm1205, %v1150, %v1255
        %v1306 = vsel %vm1206, %v1007, %v1256
        %v1307 = vsel %vm1207, %v1153, %v1257
        %v1308 = vsel %vm1208, %v1009, %v1258
        %v1309 = vsel %vm1209, %v1155, %v1259
        %v1310 = vsel %vm1210, %v1012, %v1260
        %v1311 = vsel %vm1211, %v1158, %v1261
        %v1312 = vsel %vm1212, %v1014, %v1262
        %v1313 = vsel %vm1213, %v1160, %v1263
        %v1314 = vsel %vm1214, %v1017, %v1264
        %v1315 = vsel %vm1215, %v1163, %v1265
        %v1316 = vadd.f32 %v1266, %v1268
        %v1317 = vadd.f32 %v1316, %v1270
        %v1318 = vadd.f32 %v1317, %v1272
        %v1319 = vadd.f32 %v1318, %v1274
        %v1320 = vadd.f32 %v1319, %v1276
        %v1321 = vadd.f32 %v1320, %v1278
        %v1322 = vadd.f32 %v1321, %v1280
        %v1323 = vadd.f32 %v1322, %v1282
        %v1324 = vadd.f32 %v1323, %v1284
        %v1325 = vadd.f32 %v1324, %v1286
        %v1326 = vadd.f32 %v1325, %v1288
        %v1327 = vadd.f32 %v1326, %v1290
        %v1328 = vadd.f32 %v1327, %v1292
        %v1329 = vadd.f32 %v1328, %v1294
        %v1330 = vadd.f32 %v1329, %v1296
        %v1331 = vadd.f32 %v1330, %v1298
        %v1332 = vadd.f32 %v1331, %v1300
        %v1333 = vadd.f32 %v1332, %v1302
        %v1334 = vadd.f32 %v1333, %v1304
        %v1335 = vadd.f32 %v1334, %v1306
        %v1336 = vadd.f32 %v1335, %v1308
        %v1337 = vadd.f32 %v1336, %v1310
        %v1338 = vadd.f32 %v1337, %v1312
        %vm1339 = vcmask 1043456
        %v1340 = vsel %vm1339, %v1314, 0.0
        %v1341 = vadd.f32 %v1338, %v1340
        %v1342 = vrot.slane %v1341, 4
        %v1343 = vadd.f32 %v1341, %v1342
        %v1344 = vrot.slane %v1343, 2
        %v1345 = vadd.f32 %v1343, %v1344
        %v1346 = vrot.slane %v1345, 1
        %v1347 = vadd.f32 %v1345, %v1346
        %v1348 = vadd.f32 %v1267, %v1269
        %v1349 = vadd.f32 %v1348, %v1271
        %v1350 = vadd.f32 %v1349, %v1273
        %v1351 = vadd.f32 %v1350, %v1275
        %v1352 = vadd.f32 %v1351, %v1277
        %v1353 = vadd.f32 %v1352, %v1279
        %v1354 = vadd.f32 %v1353, %v1281
        %v1355 = vadd.f32 %v1354, %v1283
        %v1356 = vadd.f32 %v1355, %v1285
        %v1357 = vadd.f32 %v1356, %v1287
        %v1358 = vadd.f32 %v1357, %v1289
        %v1359 = vadd.f32 %v1358, %v1291
        %v1360 = vadd.f32 %v1359, %v1293
        %v1361 = vadd.f32 %v1360, %v1295
        %v1362 = vadd.f32 %v1361, %v1297
        %v1363 = vadd.f32 %v1362, %v1299
        %v1364 = vadd.f32 %v1363, %v1301
        %v1365 = vadd.f32 %v1364, %v1303
        %v1366 = vadd.f32 %v1365, %v1305
        %v1367 = vadd.f32 %v1366, %v1307
        %v1368 = vadd.f32 %v1367, %v1309
        %v1369 = vadd.f32 %v1368, %v1311
        %v1370 = vadd.f32 %v1369, %v1313
        %v1371 = vsel %vm1339, %v1315, 0.0
        %v1372 = vadd.f32 %v1370, %v1371
        %v1373 = vrot.slane %v1372, 4
        %v1374 = vadd.f32 %v1372, %v1373
        %v1375 = vrot.slane %v1374, 2
        %v1376 = vadd.f32 %v1374, %v1375
        %v1377 = vrot.slane %v1376, 1
        %v1378 = vadd.f32 %v1376, %v1377
        %v1379 = vmul.f32 %v1347, 0.0051020407
        %v1380 = vmul.f32 %v1378, 0.0051020407
        %v1381 = vld [vmem:[%s430] sm:$0x3]
        %v1383 = vperm.slane %v1381, 0
        %v1384 = vperm.slane %v1381, 1
        %v1387 = vmul.f32 %v1379, %v1383
        %v1388 = vmul.f32 %v1380, %v1384
        %v1389 = vsub.f32 0.0, %v1387
        %v1390 = vsub.f32 0.0, %v1388
        %v1391 = vmul.f32 %v1389, 1.442695
        %v1392 = vpow.pop %v1391
        %v1393 = vmul.f32 %v1390, 1.442695
        %v1394 = vpow.pop %v1393
        %v1395 = vadd.f32 %v1392, 1.0
        %v1396 = vadd.f32 %v1394, 1.0
        %v1397 = vrcp.pop %v1395
        %v1398 = vmul.f32 %v1395, %v1397
        %v1399 = vsub.f32 1.0, %v1398
        %v1400 = vmul.f32 %v1397, %v1399
        %v1401 = vadd.f32 %v1397, %v1400
        %vm1402 = vweird.f32 %v1395
        %vm1403 = vweird.f32 %v1397
        %vm1404 = vmor %vm1402, %vm1403
        %v1405 = vsel %vm1404, %v1397, %v1401
        %v1406 = vand.u32 2147483647, %v1395
        %vm1407 = vcmp.eq.f32.partialorder %v1406, 8.507059e+37
        %v1408 = vand.u32 %v1395, 2147483648
        %v1409 = vor.u32 1.1754944e-38, %v1408
        %v1410 = vsel %vm1407, %v1409, %v1405
        %v1411 = vmul.f32 1.0, %v1410
        %v1412 = vrcp.pop %v1396
        %v1413 = vmul.f32 %v1396, %v1412
        %v1414 = vsub.f32 1.0, %v1413
        %v1415 = vmul.f32 %v1412, %v1414
        %v1416 = vadd.f32 %v1412, %v1415
        %vm1417 = vweird.f32 %v1396
        %vm1418 = vweird.f32 %v1412
        %vm1419 = vmor %vm1417, %vm1418
        %v1420 = vsel %vm1419, %v1412, %v1416
        %v1421 = vand.u32 2147483647, %v1396
        %vm1422 = vcmp.eq.f32.partialorder %v1421, 8.507059e+37
        %v1423 = vand.u32 %v1396, 2147483648
        %v1424 = vor.u32 1.1754944e-38, %v1423
        %v1425 = vsel %vm1422, %v1424, %v1420
        %v1426 = vmul.f32 1.0, %v1425
        %v1427 = vperm.slane %v1411, 0
        %v1428 = vperm.slane %v1426, 0
        %v1429 = vmul.f32 %v1427, %v1266
        %v1430 = vmul.f32 %v1428, %v1267
        %v1431 = vmul.f32 %v1427, %v1268
        %v1432 = vmul.f32 %v1428, %v1269
        %v1433 = vmul.f32 %v1427, %v1270
        %v1434 = vmul.f32 %v1428, %v1271
        %v1435 = vmul.f32 %v1427, %v1272
        %v1436 = vmul.f32 %v1428, %v1273
        %v1437 = vmul.f32 %v1427, %v1274
        %v1438 = vmul.f32 %v1428, %v1275
        %v1439 = vmul.f32 %v1427, %v1276
        %v1440 = vmul.f32 %v1428, %v1277
        %v1441 = vmul.f32 %v1427, %v1278
        %v1442 = vmul.f32 %v1428, %v1279
        %v1443 = vmul.f32 %v1427, %v1280
        %v1444 = vmul.f32 %v1428, %v1281
        %v1445 = vmul.f32 %v1427, %v1282
        %v1446 = vmul.f32 %v1428, %v1283
        %v1447 = vmul.f32 %v1427, %v1284
        %v1448 = vmul.f32 %v1428, %v1285
        %v1449 = vmul.f32 %v1427, %v1286
        %v1450 = vmul.f32 %v1428, %v1287
        %v1451 = vmul.f32 %v1427, %v1288
        %v1452 = vmul.f32 %v1428, %v1289
        %v1453 = vmul.f32 %v1427, %v1290
        %v1454 = vmul.f32 %v1428, %v1291
        %v1455 = vmul.f32 %v1427, %v1292
        %v1456 = vmul.f32 %v1428, %v1293
        %v1457 = vmul.f32 %v1427, %v1294
        %v1458 = vmul.f32 %v1428, %v1295
        %v1459 = vmul.f32 %v1427, %v1296
        %v1460 = vmul.f32 %v1428, %v1297
        %v1461 = vmul.f32 %v1427, %v1298
        %v1462 = vmul.f32 %v1428, %v1299
        %v1463 = vmul.f32 %v1427, %v1300
        %v1464 = vmul.f32 %v1428, %v1301
        %v1465 = vmul.f32 %v1427, %v1302
        %v1466 = vmul.f32 %v1428, %v1303
        %v1467 = vmul.f32 %v1427, %v1304
        %v1468 = vmul.f32 %v1428, %v1305
        %v1469 = vmul.f32 %v1427, %v1306
        %v1470 = vmul.f32 %v1428, %v1307
        %v1471 = vmul.f32 %v1427, %v1308
        %v1472 = vmul.f32 %v1428, %v1309
        %v1473 = vmul.f32 %v1427, %v1310
        %v1474 = vmul.f32 %v1428, %v1311
        %v1475 = vmul.f32 %v1427, %v1312
        %v1476 = vmul.f32 %v1428, %v1313
        %v1477 = vmul.f32 %v1427, %v1314
        %v1478 = vmul.f32 %v1428, %v1315
        %1479 = vst [vmem:[#allocation2] sm:$0xff] 0
        %1480 = vst [vmem:[#allocation2 + $0x8] sm:$0xff] 0
        %1481 = vst [vmem:[#allocation2 + $0xd0] sm:$0xcc] 0
        %1482 = vst [vmem:[#allocation2 + $0xd8] sm:$0xff] 0
        %1483 = vst [vmem:[#allocation2 + $0xe0] sm:$0xff] 0
        %1484 = vst [vmem:[#allocation2 + $0xe8] sm:$0xff] 0
        %s1485 = scalar_lea.vmem [#allocation2], 240
        %1486 = vst [vmem:[%s1485] sm:$0xff] 0
        %1487 = vst [vmem:[%s1485 + $0x8] sm:$0xff] 0
        %1488 = vst [vmem:[%s1485 + $0xd0] sm:$0xcc] 0
        %1489 = vst [vmem:[%s1485 + $0xd8] sm:$0xff] 0
        %1490 = vst [vmem:[%s1485 + $0xe0] sm:$0xff] 0
        %1491 = vst [vmem:[%s1485 + $0xe8] sm:$0xff] 0
        %s1492 = scalar_lea.vmem [#allocation2], 480
        %1493 = vst [vmem:[%s1492] sm:$0xff] 0
        %1494 = vst [vmem:[%s1492 + $0x8] sm:$0xff] 0
        %1495 = vst [vmem:[%s1492 + $0xd0] sm:$0xcc] 0
        %1496 = vst [vmem:[%s1492 + $0xd8] sm:$0xff] 0
        %1497 = vst [vmem:[%s1492 + $0xe0] sm:$0xff] 0
        %1498 = vst [vmem:[%s1492 + $0xe8] sm:$0xff] 0
        %v1499 = vld [vmem:[#allocation15] sm:$0xff]
        %v1500 = vld [vmem:[#allocation15 + $0x8] sm:$0xff]
        %v1501 = vld [vmem:[#allocation15 + $0x10] sm:$0xff]
        %v1502 = vld [vmem:[#allocation15 + $0x18] sm:$0xff]
        %v1503 = vld [vmem:[#allocation15 + $0x20] sm:$0xff]
        %v1504 = vld [vmem:[#allocation15 + $0x28] sm:$0xff]
        %v1505 = vld [vmem:[#allocation15 + $0x30] sm:$0xff]
        %v1506 = vld [vmem:[#allocation15 + $0x38] sm:$0xff]
        %v1507 = vld [vmem:[#allocation15 + $0x40] sm:$0xff]
        %v1508 = vld [vmem:[#allocation15 + $0x48] sm:$0xff]
        %v1509 = vld [vmem:[#allocation15 + $0x50] sm:$0xff]
        %v1510 = vld [vmem:[#allocation15 + $0x58] sm:$0xff]
        %v1511 = vld [vmem:[#allocation15 + $0x60] sm:$0xff]
        %v1512 = vld [vmem:[#allocation15 + $0x68] sm:$0xff]
        %v1513 = vld [vmem:[#allocation15 + $0x70] sm:$0xff]
        %v1514 = vld [vmem:[#allocation15 + $0x78] sm:$0xff]
        %v1515 = vld [vmem:[#allocation15 + $0x80] sm:$0xff]
        %v1516 = vld [vmem:[#allocation15 + $0x88] sm:$0xff]
        %v1517 = vld [vmem:[#allocation15 + $0x90] sm:$0xff]
        %v1518 = vld [vmem:[#allocation15 + $0x98] sm:$0xff]
        %v1519 = vld [vmem:[#allocation15 + $0xa0] sm:$0xff]
        %v1520 = vld [vmem:[#allocation15 + $0xa8] sm:$0xff]
        %v1521 = vld [vmem:[#allocation15 + $0xb0] sm:$0xff]
        %v1522 = vld [vmem:[#allocation15 + $0xb8] sm:$0xff]
        %v1523 = vld [vmem:[#allocation15 + $0xc0] sm:$0xff]
        %v1524 = vld [vmem:[#allocation15 + $0xc8] sm:$0xff]
        %v1525 = vld [vmem:[#allocation15 + $0xd0] sm:$0xff]
        %v1526 = vld [vmem:[#allocation15 + $0xd8] sm:$0xff]
        %v1527 = vld [vmem:[#allocation15 + $0xe0] sm:$0xff]
        %v1528 = vld [vmem:[#allocation15 + $0xe8] sm:$0xff]
        %v1529 = vld [vmem:[#allocation15 + $0xf0] sm:$0xff]
        %v1530 = vld [vmem:[#allocation15 + $0xf8] sm:$0xff]
        %v1531 = vld [vmem:[#allocation15 + $0x100] sm:$0xff]
        %v1532 = vld [vmem:[#allocation15 + $0x108] sm:$0xff]
        %v1533 = vld [vmem:[#allocation15 + $0x110] sm:$0xff]
        %v1534 = vld [vmem:[#allocation15 + $0x118] sm:$0xff]
        %v1535 = vld [vmem:[#allocation15 + $0x120] sm:$0xff]
        %v1536 = vld [vmem:[#allocation15 + $0x128] sm:$0xff]
        %v1537 = vld [vmem:[#allocation15 + $0x130] sm:$0xff]
        %v1538 = vld [vmem:[#allocation15 + $0x138] sm:$0xff]
        %v1539 = vld [vmem:[#allocation15 + $0x140] sm:$0xff]
        %v1540 = vld [vmem:[#allocation15 + $0x148] sm:$0xff]
        %v1541 = vld [vmem:[#allocation15 + $0x150] sm:$0xff]
        %v1542 = vld [vmem:[#allocation15 + $0x158] sm:$0xff]
        %v1543 = vld [vmem:[#allocation15 + $0x160] sm:$0xff]
        %v1544 = vld [vmem:[#allocation15 + $0x168] sm:$0xff]
        %v1545 = vld [vmem:[#allocation15 + $0x170] sm:$0xff]
        %v1546 = vld [vmem:[#allocation15 + $0x178] sm:$0xff]
        %v1547 = vld [vmem:[#allocation15 + $0x180] sm:$0xf]
        %v1548 = vld [vmem:[#allocation15 + $0x188] sm:$0xf]
        %v1549 = vmul.f32 %v1429, %v1499
        %v1550 = vmul.f32 %v1430, %v1500
        %v1551 = vmul.f32 %v1431, %v1501
        %v1552 = vmul.f32 %v1432, %v1502
        %v1553 = vmul.f32 %v1433, %v1503
        %v1554 = vmul.f32 %v1434, %v1504
        %v1555 = vmul.f32 %v1435, %v1505
        %v1556 = vmul.f32 %v1436, %v1506
        %v1557 = vmul.f32 %v1437, %v1507
        %v1558 = vmul.f32 %v1438, %v1508
        %v1559 = vmul.f32 %v1439, %v1509
        %v1560 = vmul.f32 %v1440, %v1510
        %v1561 = vmul.f32 %v1441, %v1511
        %v1562 = vmul.f32 %v1442, %v1512
        %v1563 = vmul.f32 %v1443, %v1513
        %v1564 = vmul.f32 %v1444, %v1514
        %v1565 = vmul.f32 %v1445, %v1515
        %v1566 = vmul.f32 %v1446, %v1516
        %v1567 = vmul.f32 %v1447, %v1517
        %v1568 = vmul.f32 %v1448, %v1518
        %v1569 = vmul.f32 %v1449, %v1519
        %v1570 = vmul.f32 %v1450, %v1520
        %v1571 = vmul.f32 %v1451, %v1521
        %v1572 = vmul.f32 %v1452, %v1522
        %v1573 = vmul.f32 %v1453, %v1523
        %v1574 = vmul.f32 %v1454, %v1524
        %v1575 = vmul.f32 %v1455, %v1525
        %v1576 = vmul.f32 %v1456, %v1526
        %v1577 = vmul.f32 %v1457, %v1527
        %v1578 = vmul.f32 %v1458, %v1528
        %v1579 = vmul.f32 %v1459, %v1529
        %v1580 = vmul.f32 %v1460, %v1530
        %v1581 = vmul.f32 %v1461, %v1531
        %v1582 = vmul.f32 %v1462, %v1532
        %v1583 = vmul.f32 %v1463, %v1533
        %v1584 = vmul.f32 %v1464, %v1534
        %v1585 = vmul.f32 %v1465, %v1535
        %v1586 = vmul.f32 %v1466, %v1536
        %v1587 = vmul.f32 %v1467, %v1537
        %v1588 = vmul.f32 %v1468, %v1538
        %v1589 = vmul.f32 %v1469, %v1539
        %v1590 = vmul.f32 %v1470, %v1540
        %v1591 = vmul.f32 %v1471, %v1541
        %v1592 = vmul.f32 %v1472, %v1542
        %v1593 = vmul.f32 %v1473, %v1543
        %v1594 = vmul.f32 %v1474, %v1544
        %v1595 = vmul.f32 %v1475, %v1545
        %v1596 = vmul.f32 %v1476, %v1546
        %v1597 = vmul.f32 %v1477, %v1547
        %v1598 = vmul.f32 %v1478, %v1548
        %v1599 = vpack.c.bf16 %v1550, %v1549
        %v1600 = vpack.c.bf16 %v1552, %v1551
        %v1601 = vpack.c.bf16 %v1554, %v1553
        %v1602 = vpack.c.bf16 %v1556, %v1555
        %v1603 = vpack.c.bf16 %v1558, %v1557
        %v1604 = vpack.c.bf16 %v1560, %v1559
        %v1605 = vpack.c.bf16 %v1562, %v1561
        %v1606 = vpack.c.bf16 %v1564, %v1563
        %v1607 = vpack.c.bf16 %v1566, %v1565
        %v1608 = vpack.c.bf16 %v1568, %v1567
        %v1609 = vpack.c.bf16 %v1570, %v1569
        %v1610 = vpack.c.bf16 %v1572, %v1571
        %v1611 = vpack.c.bf16 %v1574, %v1573
        %v1612 = vpack.c.bf16 %v1576, %v1575
        %v1613 = vpack.c.bf16 %v1578, %v1577
        %v1614 = vpack.c.bf16 %v1580, %v1579
        %v1615 = vpack.c.bf16 %v1582, %v1581
        %v1616 = vpack.c.bf16 %v1584, %v1583
        %v1617 = vpack.c.bf16 %v1586, %v1585
        %v1618 = vpack.c.bf16 %v1588, %v1587
        %v1619 = vpack.c.bf16 %v1590, %v1589
        %v1620 = vpack.c.bf16 %v1592, %v1591
        %v1621 = vpack.c.bf16 %v1594, %v1593
        %v1622 = vpack.c.bf16 %v1596, %v1595
        %v1623 = vpack.c.bf16 %v1598, %v1597
        %1624 = vst [vmem:[#allocation2 + $0x10] sm:$0xff] %v1599
        %1625 = vst [vmem:[#allocation2 + $0x18] sm:$0xff] %v1600
        %1626 = vst [vmem:[#allocation2 + $0x20] sm:$0xff] %v1601
        %1627 = vst [vmem:[#allocation2 + $0x28] sm:$0xff] %v1602
        %1628 = vst [vmem:[#allocation2 + $0x30] sm:$0xff] %v1603
        %1629 = vst [vmem:[#allocation2 + $0x38] sm:$0xff] %v1604
        %1630 = vst [vmem:[#allocation2 + $0x40] sm:$0xff] %v1605
        %1631 = vst [vmem:[#allocation2 + $0x48] sm:$0xff] %v1606
        %1632 = vst [vmem:[#allocation2 + $0x50] sm:$0xff] %v1607
        %1633 = vst [vmem:[#allocation2 + $0x58] sm:$0xff] %v1608
        %1634 = vst [vmem:[#allocation2 + $0x60] sm:$0xff] %v1609
        %1635 = vst [vmem:[#allocation2 + $0x68] sm:$0xff] %v1610
        %1636 = vst [vmem:[#allocation2 + $0x70] sm:$0xff] %v1611
        %1637 = vst [vmem:[#allocation2 + $0x78] sm:$0xff] %v1612
        %1638 = vst [vmem:[#allocation2 + $0x80] sm:$0xff] %v1613
        %1639 = vst [vmem:[#allocation2 + $0x88] sm:$0xff] %v1614
        %1640 = vst [vmem:[#allocation2 + $0x90] sm:$0xff] %v1615
        %1641 = vst [vmem:[#allocation2 + $0x98] sm:$0xff] %v1616
        %1642 = vst [vmem:[#allocation2 + $0xa0] sm:$0xff] %v1617
        %1643 = vst [vmem:[#allocation2 + $0xa8] sm:$0xff] %v1618
        %1644 = vst [vmem:[#allocation2 + $0xb0] sm:$0xff] %v1619
        %1645 = vst [vmem:[#allocation2 + $0xb8] sm:$0xff] %v1620
        %1646 = vst [vmem:[#allocation2 + $0xc0] sm:$0xff] %v1621
        %1647 = vst [vmem:[#allocation2 + $0xc8] sm:$0xff] %v1622
        %1648 = vst [vmem:[#allocation2 + $0xd0] sm:$0x33] %v1623
        %v1649 = vpack.c.bf16 %v1430, %v1429
        %v1650 = vpack.c.bf16 %v1432, %v1431
        %v1651 = vpack.c.bf16 %v1434, %v1433
        %v1652 = vpack.c.bf16 %v1436, %v1435
        %v1653 = vpack.c.bf16 %v1438, %v1437
        %v1654 = vpack.c.bf16 %v1440, %v1439
        %v1655 = vpack.c.bf16 %v1442, %v1441
        %v1656 = vpack.c.bf16 %v1444, %v1443
        %v1657 = vpack.c.bf16 %v1446, %v1445
        %v1658 = vpack.c.bf16 %v1448, %v1447
        %v1659 = vpack.c.bf16 %v1450, %v1449
        %v1660 = vpack.c.bf16 %v1452, %v1451
        %v1661 = vpack.c.bf16 %v1454, %v1453
        %v1662 = vpack.c.bf16 %v1456, %v1455
        %v1663 = vpack.c.bf16 %v1458, %v1457
        %v1664 = vpack.c.bf16 %v1460, %v1459
        %v1665 = vpack.c.bf16 %v1462, %v1461
        %v1666 = vpack.c.bf16 %v1464, %v1463
        %v1667 = vpack.c.bf16 %v1466, %v1465
        %v1668 = vpack.c.bf16 %v1468, %v1467
        %v1669 = vpack.c.bf16 %v1470, %v1469
        %v1670 = vpack.c.bf16 %v1472, %v1471
        %v1671 = vpack.c.bf16 %v1474, %v1473
        %v1672 = vpack.c.bf16 %v1476, %v1475
        %v1673 = vpack.c.bf16 %v1478, %v1477
        %1674 = vst [vmem:[%s1485 + $0x10] sm:$0xff] %v1649
        %1675 = vst [vmem:[%s1485 + $0x18] sm:$0xff] %v1650
        %1676 = vst [vmem:[%s1485 + $0x20] sm:$0xff] %v1651
        %1677 = vst [vmem:[%s1485 + $0x28] sm:$0xff] %v1652
        %1678 = vst [vmem:[%s1485 + $0x30] sm:$0xff] %v1653
        %1679 = vst [vmem:[%s1485 + $0x38] sm:$0xff] %v1654
        %1680 = vst [vmem:[%s1485 + $0x40] sm:$0xff] %v1655
        %1681 = vst [vmem:[%s1485 + $0x48] sm:$0xff] %v1656
        %1682 = vst [vmem:[%s1485 + $0x50] sm:$0xff] %v1657
        %1683 = vst [vmem:[%s1485 + $0x58] sm:$0xff] %v1658
        %1684 = vst [vmem:[%s1485 + $0x60] sm:$0xff] %v1659
        %1685 = vst [vmem:[%s1485 + $0x68] sm:$0xff] %v1660
        %1686 = vst [vmem:[%s1485 + $0x70] sm:$0xff] %v1661
        %1687 = vst [vmem:[%s1485 + $0x78] sm:$0xff] %v1662
        %1688 = vst [vmem:[%s1485 + $0x80] sm:$0xff] %v1663
        %1689 = vst [vmem:[%s1485 + $0x88] sm:$0xff] %v1664
        %1690 = vst [vmem:[%s1485 + $0x90] sm:$0xff] %v1665
        %1691 = vst [vmem:[%s1485 + $0x98] sm:$0xff] %v1666
        %1692 = vst [vmem:[%s1485 + $0xa0] sm:$0xff] %v1667
        %1693 = vst [vmem:[%s1485 + $0xa8] sm:$0xff] %v1668
        %1694 = vst [vmem:[%s1485 + $0xb0] sm:$0xff] %v1669
        %1695 = vst [vmem:[%s1485 + $0xb8] sm:$0xff] %v1670
        %1696 = vst [vmem:[%s1485 + $0xc0] sm:$0xff] %v1671
        %1697 = vst [vmem:[%s1485 + $0xc8] sm:$0xff] %v1672
        %1698 = vst [vmem:[%s1485 + $0xd0] sm:$0x33] %v1673
        %v1699 = vld [vmem:[#allocation17] sm:$0xff]
        %v1700 = vld [vmem:[#allocation17 + $0x8] sm:$0xff]
        %v1701 = vld [vmem:[#allocation17 + $0x10] sm:$0xff]
        %v1702 = vld [vmem:[#allocation17 + $0x18] sm:$0xff]
        %v1703 = vld [vmem:[#allocation17 + $0x20] sm:$0xff]
        %v1704 = vld [vmem:[#allocation17 + $0x28] sm:$0xff]
        %v1705 = vld [vmem:[#allocation17 + $0x30] sm:$0xff]
        %v1706 = vld [vmem:[#allocation17 + $0x38] sm:$0xff]
        %v1707 = vld [vmem:[#allocation17 + $0x40] sm:$0xff]
        %v1708 = vld [vmem:[#allocation17 + $0x48] sm:$0xff]
        %v1709 = vld [vmem:[#allocation17 + $0x50] sm:$0xff]
        %v1710 = vld [vmem:[#allocation17 + $0x58] sm:$0xff]
        %v1711 = vld [vmem:[#allocation17 + $0x60] sm:$0xff]
        %v1712 = vld [vmem:[#allocation17 + $0x68] sm:$0xff]
        %v1713 = vld [vmem:[#allocation17 + $0x70] sm:$0xff]
        %v1714 = vld [vmem:[#allocation17 + $0x78] sm:$0xff]
        %v1715 = vld [vmem:[#allocation17 + $0x80] sm:$0xff]
        %v1716 = vld [vmem:[#allocation17 + $0x88] sm:$0xff]
        %v1717 = vld [vmem:[#allocation17 + $0x90] sm:$0xff]
        %v1718 = vld [vmem:[#allocation17 + $0x98] sm:$0xff]
        %v1719 = vld [vmem:[#allocation17 + $0xa0] sm:$0xff]
        %v1720 = vld [vmem:[#allocation17 + $0xa8] sm:$0xff]
        %v1721 = vld [vmem:[#allocation17 + $0xb0] sm:$0xff]
        %v1722 = vld [vmem:[#allocation17 + $0xb8] sm:$0xff]
        %v1723 = vld [vmem:[#allocation17 + $0xc0] sm:$0xff]
        %v1724 = vld [vmem:[#allocation17 + $0xc8] sm:$0xff]
        %v1725 = vld [vmem:[#allocation17 + $0xd0] sm:$0xff]
        %v1726 = vld [vmem:[#allocation17 + $0xd8] sm:$0xff]
        %v1727 = vld [vmem:[#allocation17 + $0xe0] sm:$0xff]
        %v1728 = vld [vmem:[#allocation17 + $0xe8] sm:$0xff]
        %v1729 = vld [vmem:[#allocation17 + $0xf0] sm:$0xff]
        %v1730 = vld [vmem:[#allocation17 + $0xf8] sm:$0xff]
        %v1731 = vld [vmem:[#allocation17 + $0x100] sm:$0xff]
        %v1732 = vld [vmem:[#allocation17 + $0x108] sm:$0xff]
        %v1733 = vld [vmem:[#allocation17 + $0x110] sm:$0xff]
        %v1734 = vld [vmem:[#allocation17 + $0x118] sm:$0xff]
        %v1735 = vld [vmem:[#allocation17 + $0x120] sm:$0xff]
        %v1736 = vld [vmem:[#allocation17 + $0x128] sm:$0xff]
        %v1737 = vld [vmem:[#allocation17 + $0x130] sm:$0xff]
        %v1738 = vld [vmem:[#allocation17 + $0x138] sm:$0xff]
        %v1739 = vld [vmem:[#allocation17 + $0x140] sm:$0xff]
        %v1740 = vld [vmem:[#allocation17 + $0x148] sm:$0xff]
        %v1741 = vld [vmem:[#allocation17 + $0x150] sm:$0xff]
        %v1742 = vld [vmem:[#allocation17 + $0x158] sm:$0xff]
        %v1743 = vld [vmem:[#allocation17 + $0x160] sm:$0xff]
        %v1744 = vld [vmem:[#allocation17 + $0x168] sm:$0xff]
        %v1745 = vld [vmem:[#allocation17 + $0x170] sm:$0xff]
        %v1746 = vld [vmem:[#allocation17 + $0x178] sm:$0xff]
        %v1747 = vld [vmem:[#allocation17 + $0x180] sm:$0xf]
        %v1748 = vld [vmem:[#allocation17 + $0x188] sm:$0xf]
        %v1749 = vmul.f32 %v1429, %v1699
        %v1750 = vmul.f32 %v1430, %v1700
        %v1751 = vmul.f32 %v1431, %v1701
        %v1752 = vmul.f32 %v1432, %v1702
        %v1753 = vmul.f32 %v1433, %v1703
        %v1754 = vmul.f32 %v1434, %v1704
        %v1755 = vmul.f32 %v1435, %v1705
        %v1756 = vmul.f32 %v1436, %v1706
        %v1757 = vmul.f32 %v1437, %v1707
        %v1758 = vmul.f32 %v1438, %v1708
        %v1759 = vmul.f32 %v1439, %v1709
        %v1760 = vmul.f32 %v1440, %v1710
        %v1761 = vmul.f32 %v1441, %v1711
        %v1762 = vmul.f32 %v1442, %v1712
        %v1763 = vmul.f32 %v1443, %v1713
        %v1764 = vmul.f32 %v1444, %v1714
        %v1765 = vmul.f32 %v1445, %v1715
        %v1766 = vmul.f32 %v1446, %v1716
        %v1767 = vmul.f32 %v1447, %v1717
        %v1768 = vmul.f32 %v1448, %v1718
        %v1769 = vmul.f32 %v1449, %v1719
        %v1770 = vmul.f32 %v1450, %v1720
        %v1771 = vmul.f32 %v1451, %v1721
        %v1772 = vmul.f32 %v1452, %v1722
        %v1773 = vmul.f32 %v1453, %v1723
        %v1774 = vmul.f32 %v1454, %v1724
        %v1775 = vmul.f32 %v1455, %v1725
        %v1776 = vmul.f32 %v1456, %v1726
        %v1777 = vmul.f32 %v1457, %v1727
        %v1778 = vmul.f32 %v1458, %v1728
        %v1779 = vmul.f32 %v1459, %v1729
        %v1780 = vmul.f32 %v1460, %v1730
        %v1781 = vmul.f32 %v1461, %v1731
        %v1782 = vmul.f32 %v1462, %v1732
        %v1783 = vmul.f32 %v1463, %v1733
        %v1784 = vmul.f32 %v1464, %v1734
        %v1785 = vmul.f32 %v1465, %v1735
        %v1786 = vmul.f32 %v1466, %v1736
        %v1787 = vmul.f32 %v1467, %v1737
        %v1788 = vmul.f32 %v1468, %v1738
        %v1789 = vmul.f32 %v1469, %v1739
        %v1790 = vmul.f32 %v1470, %v1740
        %v1791 = vmul.f32 %v1471, %v1741
        %v1792 = vmul.f32 %v1472, %v1742
        %v1793 = vmul.f32 %v1473, %v1743
        %v1794 = vmul.f32 %v1474, %v1744
        %v1795 = vmul.f32 %v1475, %v1745
        %v1796 = vmul.f32 %v1476, %v1746
        %v1797 = vmul.f32 %v1477, %v1747
        %v1798 = vmul.f32 %v1478, %v1748
        %v1799 = vpack.c.bf16 %v1750, %v1749
        %v1800 = vpack.c.bf16 %v1752, %v1751
        %v1801 = vpack.c.bf16 %v1754, %v1753
        %v1802 = vpack.c.bf16 %v1756, %v1755
        %v1803 = vpack.c.bf16 %v1758, %v1757
        %v1804 = vpack.c.bf16 %v1760, %v1759
        %v1805 = vpack.c.bf16 %v1762, %v1761
        %v1806 = vpack.c.bf16 %v1764, %v1763
        %v1807 = vpack.c.bf16 %v1766, %v1765
        %v1808 = vpack.c.bf16 %v1768, %v1767
        %v1809 = vpack.c.bf16 %v1770, %v1769
        %v1810 = vpack.c.bf16 %v1772, %v1771
        %v1811 = vpack.c.bf16 %v1774, %v1773
        %v1812 = vpack.c.bf16 %v1776, %v1775
        %v1813 = vpack.c.bf16 %v1778, %v1777
        %v1814 = vpack.c.bf16 %v1780, %v1779
        %v1815 = vpack.c.bf16 %v1782, %v1781
        %v1816 = vpack.c.bf16 %v1784, %v1783
        %v1817 = vpack.c.bf16 %v1786, %v1785
        %v1818 = vpack.c.bf16 %v1788, %v1787
        %v1819 = vpack.c.bf16 %v1790, %v1789
        %v1820 = vpack.c.bf16 %v1792, %v1791
        %v1821 = vpack.c.bf16 %v1794, %v1793
        %v1822 = vpack.c.bf16 %v1796, %v1795
        %v1823 = vpack.c.bf16 %v1798, %v1797
        %1824 = vst [vmem:[%s1492 + $0x10] sm:$0xff] %v1799
        %1825 = vst [vmem:[%s1492 + $0x18] sm:$0xff] %v1800
        %1826 = vst [vmem:[%s1492 + $0x20] sm:$0xff] %v1801
        %1827 = vst [vmem:[%s1492 + $0x28] sm:$0xff] %v1802
        %1828 = vst [vmem:[%s1492 + $0x30] sm:$0xff] %v1803
        %1829 = vst [vmem:[%s1492 + $0x38] sm:$0xff] %v1804
        %1830 = vst [vmem:[%s1492 + $0x40] sm:$0xff] %v1805
        %1831 = vst [vmem:[%s1492 + $0x48] sm:$0xff] %v1806
        %1832 = vst [vmem:[%s1492 + $0x50] sm:$0xff] %v1807
        %1833 = vst [vmem:[%s1492 + $0x58] sm:$0xff] %v1808
        %1834 = vst [vmem:[%s1492 + $0x60] sm:$0xff] %v1809
        %1835 = vst [vmem:[%s1492 + $0x68] sm:$0xff] %v1810
        %1836 = vst [vmem:[%s1492 + $0x70] sm:$0xff] %v1811
        %1837 = vst [vmem:[%s1492 + $0x78] sm:$0xff] %v1812
        %1838 = vst [vmem:[%s1492 + $0x80] sm:$0xff] %v1813
        %1839 = vst [vmem:[%s1492 + $0x88] sm:$0xff] %v1814
        %1840 = vst [vmem:[%s1492 + $0x90] sm:$0xff] %v1815
        %1841 = vst [vmem:[%s1492 + $0x98] sm:$0xff] %v1816
        %1842 = vst [vmem:[%s1492 + $0xa0] sm:$0xff] %v1817
        %1843 = vst [vmem:[%s1492 + $0xa8] sm:$0xff] %v1818
        %1844 = vst [vmem:[%s1492 + $0xb0] sm:$0xff] %v1819
        %1845 = vst [vmem:[%s1492 + $0xb8] sm:$0xff] %v1820
        %1846 = vst [vmem:[%s1492 + $0xc0] sm:$0xff] %v1821
        %1847 = vst [vmem:[%s1492 + $0xc8] sm:$0xff] %v1822
        %1848 = vst [vmem:[%s1492 + $0xd0] sm:$0x33] %v1823
        %v1849 = vld [vmem:[#allocation2] sm:$0xff]
        %v1850 = vld [vmem:[#allocation2 + $0x8] sm:$0xff]
        %v1851 = vld [vmem:[#allocation2 + $0x10] sm:$0xff]
        %v1852 = vld [vmem:[#allocation2 + $0x18] sm:$0xff]
        %v1853 = vld [vmem:[#allocation2 + $0x20] sm:$0xff]
        %v1854 = vld [vmem:[#allocation2 + $0x28] sm:$0xff]
        %v1855 = vld [vmem:[#allocation2 + $0x30] sm:$0xff]
        %v1856 = vld [vmem:[#allocation2 + $0x38] sm:$0xff]
        %v1857 = vld [vmem:[#allocation2 + $0x40] sm:$0xff]
        %v1858 = vld [vmem:[#allocation2 + $0x48] sm:$0xff]
        %v1859 = vld [vmem:[#allocation2 + $0x50] sm:$0xff]
        %v1860 = vld [vmem:[#allocation2 + $0x58] sm:$0xff]
        %v1861 = vld [vmem:[#allocation2 + $0x60] sm:$0xff]
        %v1862 = vld [vmem:[#allocation2 + $0x68] sm:$0xff]
        %v1863 = vld [vmem:[#allocation2 + $0x70] sm:$0xff]
        %v1864 = vld [vmem:[#allocation2 + $0x78] sm:$0xff]
        %v1865 = vld [vmem:[#allocation2 + $0x80] sm:$0xff]
        %v1866 = vld [vmem:[#allocation2 + $0x88] sm:$0xff]
        %v1867 = vld [vmem:[#allocation2 + $0x90] sm:$0xff]
        %v1868 = vld [vmem:[#allocation2 + $0x98] sm:$0xff]
        %v1869 = vld [vmem:[#allocation2 + $0xa0] sm:$0xff]
        %v1870 = vld [vmem:[#allocation2 + $0xa8] sm:$0xff]
        %v1871 = vld [vmem:[#allocation2 + $0xb0] sm:$0xff]
        %v1872 = vld [vmem:[#allocation2 + $0xb8] sm:$0xff]
        %v1873 = vld [vmem:[#allocation2 + $0xc0] sm:$0x77]
        %v1874 = vld [vmem:[#allocation9] sm:$0xff]
        %v1875 = vld [vmem:[#allocation9 + $0x8] sm:$0xff]
        %v1876 = vld [vmem:[#allocation9 + $0x10] sm:$0xff]
        %v1877 = vld [vmem:[#allocation9 + $0x18] sm:$0xff]
        %v1878 = vld [vmem:[#allocation9 + $0x20] sm:$0xff]
        %v1879 = vld [vmem:[#allocation9 + $0x28] sm:$0xff]
        %v1880 = vld [vmem:[#allocation9 + $0x30] sm:$0xff]
        %v1881 = vld [vmem:[#allocation9 + $0x38] sm:$0xff]
        %v1882 = vld [vmem:[#allocation9 + $0x40] sm:$0xff]
        %v1883 = vld [vmem:[#allocation9 + $0x48] sm:$0xff]
        %v1884 = vld [vmem:[#allocation9 + $0x50] sm:$0xff]
        %v1885 = vld [vmem:[#allocation9 + $0x58] sm:$0xff]
        %v1886 = vld [vmem:[#allocation9 + $0x60] sm:$0xff]
        %v1887 = vld [vmem:[#allocation9 + $0x68] sm:$0xff]
        %v1888 = vld [vmem:[#allocation9 + $0x70] sm:$0xff]
        %v1889 = vld [vmem:[#allocation9 + $0x78] sm:$0xff]
        %v1890 = vld [vmem:[#allocation9 + $0x80] sm:$0xff]
        %v1891 = vld [vmem:[#allocation9 + $0x88] sm:$0xff]
        %v1892 = vld [vmem:[#allocation9 + $0x90] sm:$0xff]
        %v1893 = vld [vmem:[#allocation9 + $0x98] sm:$0xff]
        %v1894 = vld [vmem:[#allocation9 + $0xa0] sm:$0xff]
        %v1895 = vld [vmem:[#allocation9 + $0xa8] sm:$0xff]
        %v1896 = vld [vmem:[#allocation9 + $0xb0] sm:$0xff]
        %v1897 = vld [vmem:[#allocation9 + $0xb8] sm:$0xff]
        %v1898 = vld [vmem:[#allocation9 + $0xc0] sm:$0xff]
        %v1899 = vld [vmem:[#allocation9 + $0xc8] sm:$0xff]
        %v1900 = vld [vmem:[#allocation9 + $0xd0] sm:$0xff]
        %v1901 = vld [vmem:[#allocation9 + $0xd8] sm:$0xff]
        %v1902 = vld [vmem:[#allocation9 + $0xe0] sm:$0xff]
        %v1903 = vld [vmem:[#allocation9 + $0xe8] sm:$0xff]
        %v1904 = vld [vmem:[#allocation9 + $0xf0] sm:$0xff]
        %v1905 = vld [vmem:[#allocation9 + $0xf8] sm:$0xff]
        %v1931 = vunpack.c.l.b16 %v1849
        %v1932 = vunpack.c.h.b16 %v1849
        %v1933 = vunpack.c.l.b16 %v1850
        %v1934 = vunpack.c.h.b16 %v1850
        %v1935 = vunpack.c.l.b16 %v1851
        %v1936 = vunpack.c.h.b16 %v1851
        %v1937 = vunpack.c.l.b16 %v1852
        %v1938 = vunpack.c.h.b16 %v1852
        %v1939 = vunpack.c.l.b16 %v1853
        %v1940 = vunpack.c.h.b16 %v1853
        %v1941 = vunpack.c.l.b16 %v1854
        %v1942 = vunpack.c.h.b16 %v1854
        %v1943 = vunpack.c.l.b16 %v1855
        %v1944 = vunpack.c.h.b16 %v1855
        %v1945 = vunpack.c.l.b16 %v1856
        %v1946 = vunpack.c.h.b16 %v1856
        %v1947 = vunpack.c.l.b16 %v1857
        %v1948 = vunpack.c.h.b16 %v1857
        %v1949 = vunpack.c.l.b16 %v1858
        %v1950 = vunpack.c.h.b16 %v1858
        %v1951 = vunpack.c.l.b16 %v1859
        %v1952 = vunpack.c.h.b16 %v1859
        %v1953 = vunpack.c.l.b16 %v1860
        %v1954 = vunpack.c.h.b16 %v1860
        %v1955 = vunpack.c.l.b16 %v1861
        %v1956 = vunpack.c.h.b16 %v1861
        %v1957 = vunpack.c.l.b16 %v1862
        %v1958 = vunpack.c.h.b16 %v1862
        %v1959 = vunpack.c.l.b16 %v1863
        %v1960 = vunpack.c.h.b16 %v1863
        %v1961 = vunpack.c.l.b16 %v1864
        %v1962 = vunpack.c.h.b16 %v1864
        %v1963 = vunpack.c.l.b16 %v1865
        %v1964 = vunpack.c.h.b16 %v1865
        %v1965 = vunpack.c.l.b16 %v1866
        %v1966 = vunpack.c.h.b16 %v1866
        %v1967 = vunpack.c.l.b16 %v1867
        %v1968 = vunpack.c.h.b16 %v1867
        %v1969 = vunpack.c.l.b16 %v1868
        %v1970 = vunpack.c.h.b16 %v1868
        %v1971 = vunpack.c.l.b16 %v1869
        %v1972 = vunpack.c.h.b16 %v1869
        %v1973 = vunpack.c.l.b16 %v1870
        %v1974 = vunpack.c.h.b16 %v1870
        %v1975 = vunpack.c.l.b16 %v1871
        %v1976 = vunpack.c.h.b16 %v1871
        %v1977 = vunpack.c.l.b16 %v1872
        %v1978 = vunpack.c.h.b16 %v1872
        %v1979 = vunpack.c.l.b16 %v1873
        %v1980 = vunpack.c.h.b16 %v1873
        %v1981 = vpack.c.b16 %v1933, %v1931
        %v1982 = vpack.c.b16 %v1934, %v1932
        %v1983 = vpack.c.b16 %v1937, %v1935
        %v1984 = vpack.c.b16 %v1938, %v1936
        %v1985 = vpack.c.b16 %v1941, %v1939
        %v1986 = vpack.c.b16 %v1942, %v1940
        %v1987 = vpack.c.b16 %v1945, %v1943
        %v1988 = vpack.c.b16 %v1946, %v1944
        %v1989 = vpack.c.b16 %v1949, %v1947
        %v1990 = vpack.c.b16 %v1950, %v1948
        %v1991 = vpack.c.b16 %v1953, %v1951
        %v1992 = vpack.c.b16 %v1954, %v1952
        %v1993 = vpack.c.b16 %v1957, %v1955
        %v1994 = vpack.c.b16 %v1958, %v1956
        %v1995 = vpack.c.b16 %v1961, %v1959
        %v1996 = vpack.c.b16 %v1962, %v1960
        %v1997 = vpack.c.b16 %v1965, %v1963
        %v1998 = vpack.c.b16 %v1966, %v1964
        %v1999 = vpack.c.b16 %v1969, %v1967
        %v2000 = vpack.c.b16 %v1970, %v1968
        %v2001 = vpack.c.b16 %v1973, %v1971
        %v2002 = vpack.c.b16 %v1974, %v1972
        %v2003 = vpack.c.b16 %v1977, %v1975
        %v2004 = vpack.c.b16 %v1978, %v1976
        %v2005 = vpack.c.b16 %v1979, %v1979
        %v2006 = vpack.c.b16 %v1980, %v1980
        %vm2007 = vsmask.f32 7424
        %v2009 = vshrl.u32 %v1981, 16
        %v2011 = vshll.u32 %v1981, 16
        %v2013 = vrot.slane %v2011, 1
        %v2014 = vor.u32 %v2009, %v2013
        %v2016 = vshll.u32 %v1983, 16
        %v2018 = vrot.slane %v2016, 1
        %v2019 = vsel %vm2007, %v2014, %v2018
        %v2021 = vshrl.u32 %v1982, 16
        %v2023 = vshll.u32 %v1982, 16
        %v2025 = vrot.slane %v2023, 1
        %v2026 = vor.u32 %v2021, %v2025
        %v2028 = vshll.u32 %v1984, 16
        %v2030 = vrot.slane %v2028, 1
        %v2031 = vsel %vm2007, %v2026, %v2030
        %v2032 = vshrl.u32 %v1983, 16
        %v2034 = vor.u32 %v2032, %v2018
        %v2036 = vshll.u32 %v1985, 16
        %v2038 = vrot.slane %v2036, 1
        %v2039 = vsel %vm2007, %v2034, %v2038
        %v2040 = vshrl.u32 %v1984, 16
        %v2042 = vor.u32 %v2040, %v2030
        %v2044 = vshll.u32 %v1986, 16
        %v2046 = vrot.slane %v2044, 1
        %v2047 = vsel %vm2007, %v2042, %v2046
        %v2048 = vshrl.u32 %v1985, 16
        %v2050 = vor.u32 %v2048, %v2038
        %v2052 = vshll.u32 %v1987, 16
        %v2054 = vrot.slane %v2052, 1
        %v2055 = vsel %vm2007, %v2050, %v2054
        %v2056 = vshrl.u32 %v1986, 16
        %v2058 = vor.u32 %v2056, %v2046
        %v2060 = vshll.u32 %v1988, 16
        %v2062 = vrot.slane %v2060, 1
        %v2063 = vsel %vm2007, %v2058, %v2062
        %v2064 = vshrl.u32 %v1987, 16
        %v2066 = vor.u32 %v2064, %v2054
        %v2068 = vshll.u32 %v1989, 16
        %v2070 = vrot.slane %v2068, 1
        %v2071 = vsel %vm2007, %v2066, %v2070
        %v2072 = vshrl.u32 %v1988, 16
        %v2074 = vor.u32 %v2072, %v2062
        %v2076 = vshll.u32 %v1990, 16
        %v2078 = vrot.slane %v2076, 1
        %v2079 = vsel %vm2007, %v2074, %v2078
        %v2080 = vshrl.u32 %v1989, 16
        %v2082 = vor.u32 %v2080, %v2070
        %v2084 = vshll.u32 %v1991, 16
        %v2086 = vrot.slane %v2084, 1
        %v2087 = vsel %vm2007, %v2082, %v2086
        %v2088 = vshrl.u32 %v1990, 16
        %v2090 = vor.u32 %v2088, %v2078
        %v2092 = vshll.u32 %v1992, 16
        %v2094 = vrot.slane %v2092, 1
        %v2095 = vsel %vm2007, %v2090, %v2094
        %v2096 = vshrl.u32 %v1991, 16
        %v2098 = vor.u32 %v2096, %v2086
        %v2100 = vshll.u32 %v1993, 16
        %v2102 = vrot.slane %v2100, 1
        %v2103 = vsel %vm2007, %v2098, %v2102
        %v2104 = vshrl.u32 %v1992, 16
        %v2106 = vor.u32 %v2104, %v2094
        %v2108 = vshll.u32 %v1994, 16
        %v2110 = vrot.slane %v2108, 1
        %v2111 = vsel %vm2007, %v2106, %v2110
        %v2112 = vshrl.u32 %v1993, 16
        %v2114 = vor.u32 %v2112, %v2102
        %v2116 = vshll.u32 %v1995, 16
        %v2118 = vrot.slane %v2116, 1
        %v2119 = vsel %vm2007, %v2114, %v2118
        %v2120 = vshrl.u32 %v1994, 16
        %v2122 = vor.u32 %v2120, %v2110
        %v2124 = vshll.u32 %v1996, 16
        %v2126 = vrot.slane %v2124, 1
        %v2127 = vsel %vm2007, %v2122, %v2126
        %v2128 = vshrl.u32 %v1995, 16
        %v2130 = vor.u32 %v2128, %v2118
        %v2132 = vshll.u32 %v1997, 16
        %v2134 = vrot.slane %v2132, 1
        %v2135 = vsel %vm2007, %v2130, %v2134
        %v2136 = vshrl.u32 %v1996, 16
        %v2138 = vor.u32 %v2136, %v2126
        %v2140 = vshll.u32 %v1998, 16
        %v2142 = vrot.slane %v2140, 1
        %v2143 = vsel %vm2007, %v2138, %v2142
        %v2144 = vshrl.u32 %v1997, 16
        %v2146 = vor.u32 %v2144, %v2134
        %v2148 = vshll.u32 %v1999, 16
        %v2150 = vrot.slane %v2148, 1
        %v2151 = vsel %vm2007, %v2146, %v2150
        %v2152 = vshrl.u32 %v1998, 16
        %v2154 = vor.u32 %v2152, %v2142
        %v2156 = vshll.u32 %v2000, 16
        %v2158 = vrot.slane %v2156, 1
        %v2159 = vsel %vm2007, %v2154, %v2158
        %v2160 = vshrl.u32 %v1999, 16
        %v2162 = vor.u32 %v2160, %v2150
        %v2164 = vshll.u32 %v2001, 16
        %v2166 = vrot.slane %v2164, 1
        %v2167 = vsel %vm2007, %v2162, %v2166
        %v2168 = vshrl.u32 %v2000, 16
        %v2170 = vor.u32 %v2168, %v2158
        %v2172 = vshll.u32 %v2002, 16
        %v2174 = vrot.slane %v2172, 1
        %v2175 = vsel %vm2007, %v2170, %v2174
        %v2176 = vshrl.u32 %v2001, 16
        %v2178 = vor.u32 %v2176, %v2166
        %v2180 = vshll.u32 %v2003, 16
        %v2182 = vrot.slane %v2180, 1
        %v2183 = vsel %vm2007, %v2178, %v2182
        %v2184 = vshrl.u32 %v2002, 16
        %v2186 = vor.u32 %v2184, %v2174
        %v2188 = vshll.u32 %v2004, 16
        %v2190 = vrot.slane %v2188, 1
        %v2191 = vsel %vm2007, %v2186, %v2190
        %v2192 = vshrl.u32 %v2003, 16
        %v2194 = vor.u32 %v2192, %v2182
        %v2196 = vshll.u32 %v2005, 16
        %v2198 = vrot.slane %v2196, 1
        %v2199 = vsel %vm2007, %v2194, %v2198
        %v2200 = vshrl.u32 %v2004, 16
        %v2202 = vor.u32 %v2200, %v2190
        %v2204 = vshll.u32 %v2006, 16
        %v2206 = vrot.slane %v2204, 1
        %v2207 = vsel %vm2007, %v2202, %v2206
        %v2208 = vshrl.u32 %v2005, 16
        %v2210 = vor.u32 %v2208, %v2198
        %v2211 = vshrl.u32 %v2006, 16
        %v2213 = vor.u32 %v2211, %v2206
        %v2272 = vunpack.c.l.b16 %v1874
        %v2273 = vunpack.c.h.b16 %v1874
        %v2274 = vunpack.c.l.b16 %v1875
        %v2275 = vunpack.c.h.b16 %v1875
        %v2276 = vunpack.c.l.b16 %v1876
        %v2277 = vunpack.c.h.b16 %v1876
        %v2278 = vunpack.c.l.b16 %v1877
        %v2279 = vunpack.c.h.b16 %v1877
        %v2280 = vunpack.c.l.b16 %v1878
        %v2281 = vunpack.c.h.b16 %v1878
        %v2282 = vunpack.c.l.b16 %v1879
        %v2283 = vunpack.c.h.b16 %v1879
        %v2284 = vunpack.c.l.b16 %v1880
        %v2285 = vunpack.c.h.b16 %v1880
        %v2286 = vunpack.c.l.b16 %v1881
        %v2287 = vunpack.c.h.b16 %v1881
        %v2288 = vunpack.c.l.b16 %v1882
        %v2289 = vunpack.c.h.b16 %v1882
        %v2290 = vunpack.c.l.b16 %v1883
        %v2291 = vunpack.c.h.b16 %v1883
        %v2292 = vunpack.c.l.b16 %v1884
        %v2293 = vunpack.c.h.b16 %v1884
        %v2294 = vunpack.c.l.b16 %v1885
        %v2295 = vunpack.c.h.b16 %v1885
        %v2296 = vunpack.c.l.b16 %v1886
        %v2297 = vunpack.c.h.b16 %v1886
        %v2298 = vunpack.c.l.b16 %v1887
        %v2299 = vunpack.c.h.b16 %v1887
        %v2300 = vunpack.c.l.b16 %v1888
        %v2301 = vunpack.c.h.b16 %v1888
        %v2302 = vunpack.c.l.b16 %v1889
        %v2303 = vunpack.c.h.b16 %v1889
        %v2304 = vunpack.c.l.b16 %v1890
        %v2305 = vunpack.c.h.b16 %v1890
        %v2306 = vunpack.c.l.b16 %v1891
        %v2307 = vunpack.c.h.b16 %v1891
        %v2308 = vunpack.c.l.b16 %v1892
        %v2309 = vunpack.c.h.b16 %v1892
        %v2310 = vunpack.c.l.b16 %v1893
        %v2311 = vunpack.c.h.b16 %v1893
        %v2312 = vunpack.c.l.b16 %v1894
        %v2313 = vunpack.c.h.b16 %v1894
        %v2314 = vunpack.c.l.b16 %v1895
        %v2315 = vunpack.c.h.b16 %v1895
        %v2316 = vunpack.c.l.b16 %v1896
        %v2317 = vunpack.c.h.b16 %v1896
        %v2318 = vunpack.c.l.b16 %v1897
        %v2319 = vunpack.c.h.b16 %v1897
        %v2320 = vunpack.c.l.b16 %v1898
        %v2321 = vunpack.c.h.b16 %v1898
        %v2322 = vunpack.c.l.b16 %v1899
        %v2323 = vunpack.c.h.b16 %v1899
        %v2324 = vunpack.c.l.b16 %v1900
        %v2325 = vunpack.c.h.b16 %v1900
        %v2326 = vunpack.c.l.b16 %v1901
        %v2327 = vunpack.c.h.b16 %v1901
        %v2328 = vunpack.c.l.b16 %v1902
        %v2329 = vunpack.c.h.b16 %v1902
        %v2330 = vunpack.c.l.b16 %v1903
        %v2331 = vunpack.c.h.b16 %v1903
        %v2332 = vunpack.c.l.b16 %v1904
        %v2333 = vunpack.c.h.b16 %v1904
        %v2334 = vunpack.c.l.b16 %v1905
        %v2335 = vunpack.c.h.b16 %v1905
        %v2336 = vpack.c.b16 %v2274, %v2272
        %v2337 = vpack.c.b16 %v2275, %v2273
        %v2338 = vpack.c.b16 %v2278, %v2276
        %v2339 = vpack.c.b16 %v2279, %v2277
        %v2340 = vpack.c.b16 %v2282, %v2280
        %v2341 = vpack.c.b16 %v2283, %v2281
        %v2342 = vpack.c.b16 %v2286, %v2284
        %v2343 = vpack.c.b16 %v2287, %v2285
        %v2344 = vpack.c.b16 %v2290, %v2288
        %v2345 = vpack.c.b16 %v2291, %v2289
        %v2346 = vpack.c.b16 %v2294, %v2292
        %v2347 = vpack.c.b16 %v2295, %v2293
        %v2348 = vpack.c.b16 %v2298, %v2296
        %v2349 = vpack.c.b16 %v2299, %v2297
        %v2350 = vpack.c.b16 %v2302, %v2300
        %v2351 = vpack.c.b16 %v2303, %v2301
        %v2352 = vpack.c.b16 %v2306, %v2304
        %v2353 = vpack.c.b16 %v2307, %v2305
        %v2354 = vpack.c.b16 %v2310, %v2308
        %v2355 = vpack.c.b16 %v2311, %v2309
        %v2356 = vpack.c.b16 %v2314, %v2312
        %v2357 = vpack.c.b16 %v2315, %v2313
        %v2358 = vpack.c.b16 %v2318, %v2316
        %v2359 = vpack.c.b16 %v2319, %v2317
        %v2360 = vpack.c.b16 %v2322, %v2320
        %v2361 = vpack.c.b16 %v2323, %v2321
        %v2362 = vpack.c.b16 %v2326, %v2324
        %v2363 = vpack.c.b16 %v2327, %v2325
        %v2364 = vpack.c.b16 %v2330, %v2328
        %v2365 = vpack.c.b16 %v2331, %v2329
        %v2366 = vpack.c.b16 %v2334, %v2332
        %v2367 = vpack.c.b16 %v2335, %v2333
        %2400 = vmatpush.bf16.msra.mxu0 %v2350
        %2401 = vmatpush.bf16.msra.mxu0 %v2348
        %2402 = vmatpush.bf16.msra.mxu0 %v2346
        %2403 = vmatpush.bf16.msra.mxu0 %v2344
        %2404 = vmatpush.bf16.msra.mxu0 %v2342
        %2405 = vmatpush.bf16.msra.mxu0 %v2340
        %2406 = vmatpush.bf16.msra.mxu0 %v2338
        %2407 = vmatpush.bf16.msra.mxu0 %v2336
        %2408 = vmatmul.bf16.gmra.mxu0 %v2019
        %v2409 = vpop.f32.mrf.mxu0
        %v2410 = vadd.f32 0.0, %v2409
        %v2411 = vpop.f32.mrf.mxu0
        %v2412 = vadd.f32 0.0, %v2411
        %2413 = vmatmul.bf16.gmra.mxu0 %v2039
        %v2414 = vpop.f32.mrf.mxu0
        %v2415 = vadd.f32 0.0, %v2414
        %v2416 = vpop.f32.mrf.mxu0
        %v2417 = vadd.f32 0.0, %v2416
        %2418 = vmatmul.bf16.gmra.mxu0 %v2055
        %v2419 = vpop.f32.mrf.mxu0
        %v2420 = vadd.f32 0.0, %v2419
        %v2421 = vpop.f32.mrf.mxu0
        %v2422 = vadd.f32 0.0, %v2421
        %2423 = vmatmul.bf16.gmra.mxu0 %v2071
        %v2424 = vpop.f32.mrf.mxu0
        %v2425 = vadd.f32 0.0, %v2424
        %v2426 = vpop.f32.mrf.mxu0
        %v2427 = vadd.f32 0.0, %v2426
        %2428 = vmatmul.bf16.gmra.mxu0 %v2087
        %v2429 = vpop.f32.mrf.mxu0
        %v2430 = vadd.f32 0.0, %v2429
        %v2431 = vpop.f32.mrf.mxu0
        %v2432 = vadd.f32 0.0, %v2431
        %2433 = vmatmul.bf16.gmra.mxu0 %v2103
        %v2434 = vpop.f32.mrf.mxu0
        %v2435 = vadd.f32 0.0, %v2434
        %v2436 = vpop.f32.mrf.mxu0
        %v2437 = vadd.f32 0.0, %v2436
        %2438 = vmatmul.bf16.gmra.mxu0 %v2119
        %v2439 = vpop.f32.mrf.mxu0
        %v2440 = vadd.f32 0.0, %v2439
        %v2441 = vpop.f32.mrf.mxu0
        %v2442 = vadd.f32 0.0, %v2441
        %2443 = vmatmul.bf16.gmra.mxu0 %v2135
        %v2444 = vpop.f32.mrf.mxu0
        %v2445 = vadd.f32 0.0, %v2444
        %v2446 = vpop.f32.mrf.mxu0
        %v2447 = vadd.f32 0.0, %v2446
        %2448 = vmatmul.bf16.gmra.mxu0 %v2151
        %v2449 = vpop.f32.mrf.mxu0
        %v2450 = vadd.f32 0.0, %v2449
        %v2451 = vpop.f32.mrf.mxu0
        %v2452 = vadd.f32 0.0, %v2451
        %2453 = vmatmul.bf16.gmra.mxu0 %v2167
        %v2454 = vpop.f32.mrf.mxu0
        %v2455 = vadd.f32 0.0, %v2454
        %v2456 = vpop.f32.mrf.mxu0
        %v2457 = vadd.f32 0.0, %v2456
        %2458 = vmatmul.bf16.gmra.mxu0 %v2183
        %v2459 = vpop.f32.mrf.mxu0
        %v2460 = vadd.f32 0.0, %v2459
        %v2461 = vpop.f32.mrf.mxu0
        %v2462 = vadd.f32 0.0, %v2461
        %2463 = vmatmul.bf16.gmra.mxu0 %v2199
        %v2464 = vpop.f32.mrf.mxu0
        %v2465 = vadd.f32 0.0, %v2464
        %v2466 = vpop.f32.mrf.mxu0
        %v2467 = vadd.f32 0.0, %v2466
        %2468 = vmatmul.bf16.gmra.mxu0 %v2210
        %v2469 = vpop.f32.mrf.mxu0
        %v2470 = vadd.f32 0.0, %v2469
        %v2471 = vpop.f32.mrf.mxu0
        %2472 = vdwg.mxu0
        %2473 = vmatpush.bf16.msra.mxu0 %v2366
        %2474 = vmatpush.bf16.msra.mxu0 %v2364
        %2475 = vmatpush.bf16.msra.mxu0 %v2362
        %2476 = vmatpush.bf16.msra.mxu0 %v2360
        %2477 = vmatpush.bf16.msra.mxu0 %v2358
        %2478 = vmatpush.bf16.msra.mxu0 %v2356
        %2479 = vmatpush.bf16.msra.mxu0 %v2354
        %2480 = vmatpush.bf16.msra.mxu0 %v2352
        %2481 = vmatmul.bf16.gmra.mxu0 %v2031
        %v2482 = vpop.f32.mrf.mxu0
        %v2483 = vadd.f32 %v2410, %v2482
        %v2484 = vpop.f32.mrf.mxu0
        %v2485 = vadd.f32 %v2412, %v2484
        %2486 = vmatmul.bf16.gmra.mxu0 %v2047
        %v2487 = vpop.f32.mrf.mxu0
        %v2488 = vadd.f32 %v2415, %v2487
        %v2489 = vpop.f32.mrf.mxu0
        %v2490 = vadd.f32 %v2417, %v2489
        %2491 = vmatmul.bf16.gmra.mxu0 %v2063
        %v2492 = vpop.f32.mrf.mxu0
        %v2493 = vadd.f32 %v2420, %v2492
        %v2494 = vpop.f32.mrf.mxu0
        %v2495 = vadd.f32 %v2422, %v2494
        %2496 = vmatmul.bf16.gmra.mxu0 %v2079
        %v2497 = vpop.f32.mrf.mxu0
        %v2498 = vadd.f32 %v2425, %v2497
        %v2499 = vpop.f32.mrf.mxu0
        %v2500 = vadd.f32 %v2427, %v2499
        %2501 = vmatmul.bf16.gmra.mxu0 %v2095
        %v2502 = vpop.f32.mrf.mxu0
        %v2503 = vadd.f32 %v2430, %v2502
        %v2504 = vpop.f32.mrf.mxu0
        %v2505 = vadd.f32 %v2432, %v2504
        %2506 = vmatmul.bf16.gmra.mxu0 %v2111
        %v2507 = vpop.f32.mrf.mxu0
        %v2508 = vadd.f32 %v2435, %v2507
        %v2509 = vpop.f32.mrf.mxu0
        %v2510 = vadd.f32 %v2437, %v2509
        %2511 = vmatmul.bf16.gmra.mxu0 %v2127
        %v2512 = vpop.f32.mrf.mxu0
        %v2513 = vadd.f32 %v2440, %v2512
        %v2514 = vpop.f32.mrf.mxu0
        %v2515 = vadd.f32 %v2442, %v2514
        %2516 = vmatmul.bf16.gmra.mxu0 %v2143
        %v2517 = vpop.f32.mrf.mxu0
        %v2518 = vadd.f32 %v2445, %v2517
        %v2519 = vpop.f32.mrf.mxu0
        %v2520 = vadd.f32 %v2447, %v2519
        %2521 = vmatmul.bf16.gmra.mxu0 %v2159
        %v2522 = vpop.f32.mrf.mxu0
        %v2523 = vadd.f32 %v2450, %v2522
        %v2524 = vpop.f32.mrf.mxu0
        %v2525 = vadd.f32 %v2452, %v2524
        %2526 = vmatmul.bf16.gmra.mxu0 %v2175
        %v2527 = vpop.f32.mrf.mxu0
        %v2528 = vadd.f32 %v2455, %v2527
        %v2529 = vpop.f32.mrf.mxu0
        %v2530 = vadd.f32 %v2457, %v2529
        %2531 = vmatmul.bf16.gmra.mxu0 %v2191
        %v2532 = vpop.f32.mrf.mxu0
        %v2533 = vadd.f32 %v2460, %v2532
        %v2534 = vpop.f32.mrf.mxu0
        %v2535 = vadd.f32 %v2462, %v2534
        %2536 = vmatmul.bf16.gmra.mxu0 %v2207
        %v2537 = vpop.f32.mrf.mxu0
        %v2538 = vadd.f32 %v2465, %v2537
        %v2539 = vpop.f32.mrf.mxu0
        %v2540 = vadd.f32 %v2467, %v2539
        %2541 = vmatmul.bf16.gmra.mxu0 %v2213
        %v2542 = vpop.f32.mrf.mxu0
        %v2543 = vadd.f32 %v2470, %v2542
        %v2544 = vpop.f32.mrf.mxu0
        %2545 = vdwg.mxu0
        %2546 = vmatpush.bf16.msra.mxu0 %v2351
        %2547 = vmatpush.bf16.msra.mxu0 %v2349
        %2548 = vmatpush.bf16.msra.mxu0 %v2347
        %2549 = vmatpush.bf16.msra.mxu0 %v2345
        %2550 = vmatpush.bf16.msra.mxu0 %v2343
        %2551 = vmatpush.bf16.msra.mxu0 %v2341
        %2552 = vmatpush.bf16.msra.mxu0 %v2339
        %2553 = vmatpush.bf16.msra.mxu0 %v2337
        %2554 = vmatmul.bf16.gmra.mxu0 %v2019
        %v2555 = vpop.f32.mrf.mxu0
        %v2556 = vadd.f32 0.0, %v2555
        %v2557 = vpop.f32.mrf.mxu0
        %v2558 = vadd.f32 0.0, %v2557
        %2559 = vmatmul.bf16.gmra.mxu0 %v2039
        %v2560 = vpop.f32.mrf.mxu0
        %v2561 = vadd.f32 0.0, %v2560
        %v2562 = vpop.f32.mrf.mxu0
        %v2563 = vadd.f32 0.0, %v2562
        %2564 = vmatmul.bf16.gmra.mxu0 %v2055
        %v2565 = vpop.f32.mrf.mxu0
        %v2566 = vadd.f32 0.0, %v2565
        %v2567 = vpop.f32.mrf.mxu0
        %v2568 = vadd.f32 0.0, %v2567
        %2569 = vmatmul.bf16.gmra.mxu0 %v2071
        %v2570 = vpop.f32.mrf.mxu0
        %v2571 = vadd.f32 0.0, %v2570
        %v2572 = vpop.f32.mrf.mxu0
        %v2573 = vadd.f32 0.0, %v2572
        %2574 = vmatmul.bf16.gmra.mxu0 %v2087
        %v2575 = vpop.f32.mrf.mxu0
        %v2576 = vadd.f32 0.0, %v2575
        %v2577 = vpop.f32.mrf.mxu0
        %v2578 = vadd.f32 0.0, %v2577
        %2579 = vmatmul.bf16.gmra.mxu0 %v2103
        %v2580 = vpop.f32.mrf.mxu0
        %v2581 = vadd.f32 0.0, %v2580
        %v2582 = vpop.f32.mrf.mxu0
        %v2583 = vadd.f32 0.0, %v2582
        %2584 = vmatmul.bf16.gmra.mxu0 %v2119
        %v2585 = vpop.f32.mrf.mxu0
        %v2586 = vadd.f32 0.0, %v2585
        %v2587 = vpop.f32.mrf.mxu0
        %v2588 = vadd.f32 0.0, %v2587
        %2589 = vmatmul.bf16.gmra.mxu0 %v2135
        %v2590 = vpop.f32.mrf.mxu0
        %v2591 = vadd.f32 0.0, %v2590
        %v2592 = vpop.f32.mrf.mxu0
        %v2593 = vadd.f32 0.0, %v2592
        %2594 = vmatmul.bf16.gmra.mxu0 %v2151
        %v2595 = vpop.f32.mrf.mxu0
        %v2596 = vadd.f32 0.0, %v2595
        %v2597 = vpop.f32.mrf.mxu0
        %v2598 = vadd.f32 0.0, %v2597
        %2599 = vmatmul.bf16.gmra.mxu0 %v2167
        %v2600 = vpop.f32.mrf.mxu0
        %v2601 = vadd.f32 0.0, %v2600
        %v2602 = vpop.f32.mrf.mxu0
        %v2603 = vadd.f32 0.0, %v2602
        %2604 = vmatmul.bf16.gmra.mxu0 %v2183
        %v2605 = vpop.f32.mrf.mxu0
        %v2606 = vadd.f32 0.0, %v2605
        %v2607 = vpop.f32.mrf.mxu0
        %v2608 = vadd.f32 0.0, %v2607
        %2609 = vmatmul.bf16.gmra.mxu0 %v2199
        %v2610 = vpop.f32.mrf.mxu0
        %v2611 = vadd.f32 0.0, %v2610
        %v2612 = vpop.f32.mrf.mxu0
        %v2613 = vadd.f32 0.0, %v2612
        %2614 = vmatmul.bf16.gmra.mxu0 %v2210
        %v2615 = vpop.f32.mrf.mxu0
        %v2616 = vadd.f32 0.0, %v2615
        %v2617 = vpop.f32.mrf.mxu0
        %2618 = vdwg.mxu0
        %2619 = vmatpush.bf16.msra.mxu0 %v2367
        %2620 = vmatpush.bf16.msra.mxu0 %v2365
        %2621 = vmatpush.bf16.msra.mxu0 %v2363
        %2622 = vmatpush.bf16.msra.mxu0 %v2361
        %2623 = vmatpush.bf16.msra.mxu0 %v2359
        %2624 = vmatpush.bf16.msra.mxu0 %v2357
        %2625 = vmatpush.bf16.msra.mxu0 %v2355
        %2626 = vmatpush.bf16.msra.mxu0 %v2353
        %2627 = vmatmul.bf16.gmra.mxu0 %v2031
        %v2628 = vpop.f32.mrf.mxu0
        %v2629 = vadd.f32 %v2556, %v2628
        %v2630 = vpop.f32.mrf.mxu0
        %v2631 = vadd.f32 %v2558, %v2630
        %2632 = vmatmul.bf16.gmra.mxu0 %v2047
        %v2633 = vpop.f32.mrf.mxu0
        %v2634 = vadd.f32 %v2561, %v2633
        %v2635 = vpop.f32.mrf.mxu0
        %v2636 = vadd.f32 %v2563, %v2635
        %2637 = vmatmul.bf16.gmra.mxu0 %v2063
        %v2638 = vpop.f32.mrf.mxu0
        %v2639 = vadd.f32 %v2566, %v2638
        %v2640 = vpop.f32.mrf.mxu0
        %v2641 = vadd.f32 %v2568, %v2640
        %2642 = vmatmul.bf16.gmra.mxu0 %v2079
        %v2643 = vpop.f32.mrf.mxu0
        %v2644 = vadd.f32 %v2571, %v2643
        %v2645 = vpop.f32.mrf.mxu0
        %v2646 = vadd.f32 %v2573, %v2645
        %2647 = vmatmul.bf16.gmra.mxu0 %v2095
        %v2648 = vpop.f32.mrf.mxu0
        %v2649 = vadd.f32 %v2576, %v2648
        %v2650 = vpop.f32.mrf.mxu0
        %v2651 = vadd.f32 %v2578, %v2650
        %2652 = vmatmul.bf16.gmra.mxu0 %v2111
        %v2653 = vpop.f32.mrf.mxu0
        %v2654 = vadd.f32 %v2581, %v2653
        %v2655 = vpop.f32.mrf.mxu0
        %v2656 = vadd.f32 %v2583, %v2655
        %2657 = vmatmul.bf16.gmra.mxu0 %v2127
        %v2658 = vpop.f32.mrf.mxu0
        %v2659 = vadd.f32 %v2586, %v2658
        %v2660 = vpop.f32.mrf.mxu0
        %v2661 = vadd.f32 %v2588, %v2660
        %2662 = vmatmul.bf16.gmra.mxu0 %v2143
        %v2663 = vpop.f32.mrf.mxu0
        %v2664 = vadd.f32 %v2591, %v2663
        %v2665 = vpop.f32.mrf.mxu0
        %v2666 = vadd.f32 %v2593, %v2665
        %2667 = vmatmul.bf16.gmra.mxu0 %v2159
        %v2668 = vpop.f32.mrf.mxu0
        %v2669 = vadd.f32 %v2596, %v2668
        %v2670 = vpop.f32.mrf.mxu0
        %v2671 = vadd.f32 %v2598, %v2670
        %2672 = vmatmul.bf16.gmra.mxu0 %v2175
        %v2673 = vpop.f32.mrf.mxu0
        %v2674 = vadd.f32 %v2601, %v2673
        %v2675 = vpop.f32.mrf.mxu0
        %v2676 = vadd.f32 %v2603, %v2675
        %2677 = vmatmul.bf16.gmra.mxu0 %v2191
        %v2678 = vpop.f32.mrf.mxu0
        %v2679 = vadd.f32 %v2606, %v2678
        %v2680 = vpop.f32.mrf.mxu0
        %v2681 = vadd.f32 %v2608, %v2680
        %2682 = vmatmul.bf16.gmra.mxu0 %v2207
        %v2683 = vpop.f32.mrf.mxu0
        %v2684 = vadd.f32 %v2611, %v2683
        %v2685 = vpop.f32.mrf.mxu0
        %v2686 = vadd.f32 %v2613, %v2685
        %2687 = vmatmul.bf16.gmra.mxu0 %v2213
        %v2688 = vpop.f32.mrf.mxu0
        %v2689 = vadd.f32 %v2616, %v2688
        %v2690 = vpop.f32.mrf.mxu0
        %2691 = vdwg.mxu0
        %2692 = vst [vmem:[#allocation3] sm:$0xff] %v2483
        %2693 = vst [vmem:[#allocation3 + $0x8] sm:$0xff] %v2629
        %2694 = vst [vmem:[#allocation3 + $0x10] sm:$0xff] %v2485
        %2695 = vst [vmem:[#allocation3 + $0x18] sm:$0xff] %v2631
        %2696 = vst [vmem:[#allocation3 + $0x20] sm:$0xff] %v2488
        %2697 = vst [vmem:[#allocation3 + $0x28] sm:$0xff] %v2634
        %2698 = vst [vmem:[#allocation3 + $0x30] sm:$0xff] %v2490
        %2699 = vst [vmem:[#allocation3 + $0x38] sm:$0xff] %v2636
        %2700 = vst [vmem:[#allocation3 + $0x40] sm:$0xff] %v2493
        %2701 = vst [vmem:[#allocation3 + $0x48] sm:$0xff] %v2639
        %2702 = vst [vmem:[#allocation3 + $0x50] sm:$0xff] %v2495
        %2703 = vst [vmem:[#allocation3 + $0x58] sm:$0xff] %v2641
        %2704 = vst [vmem:[#allocation3 + $0x60] sm:$0xff] %v2498
        %2705 = vst [vmem:[#allocation3 + $0x68] sm:$0xff] %v2644
        %2706 = vst [vmem:[#allocation3 + $0x70] sm:$0xff] %v2500
        %2707 = vst [vmem:[#allocation3 + $0x78] sm:$0xff] %v2646
        %2708 = vst [vmem:[#allocation3 + $0x80] sm:$0xff] %v2503
        %2709 = vst [vmem:[#allocation3 + $0x88] sm:$0xff] %v2649
        %2710 = vst [vmem:[#allocation3 + $0x90] sm:$0xff] %v2505
        %2711 = vst [vmem:[#allocation3 + $0x98] sm:$0xff] %v2651
        %2712 = vst [vmem:[#allocation3 + $0xa0] sm:$0xff] %v2508
        %2713 = vst [vmem:[#allocation3 + $0xa8] sm:$0xff] %v2654
        %2714 = vst [vmem:[#allocation3 + $0xb0] sm:$0xff] %v2510
        %2715 = vst [vmem:[#allocation3 + $0xb8] sm:$0xff] %v2656
        %2716 = vst [vmem:[#allocation3 + $0xc0] sm:$0xff] %v2513
        %2717 = vst [vmem:[#allocation3 + $0xc8] sm:$0xff] %v2659
        %2718 = vst [vmem:[#allocation3 + $0xd0] sm:$0xff] %v2515
        %2719 = vst [vmem:[#allocation3 + $0xd8] sm:$0xff] %v2661
        %2720 = vst [vmem:[#allocation3 + $0xe0] sm:$0xff] %v2518
        %2721 = vst [vmem:[#allocation3 + $0xe8] sm:$0xff] %v2664
        %2722 = vst [vmem:[#allocation3 + $0xf0] sm:$0xff] %v2520
        %2723 = vst [vmem:[#allocation3 + $0xf8] sm:$0xff] %v2666
        %2724 = vst [vmem:[#allocation3 + $0x100] sm:$0xff] %v2523
        %2725 = vst [vmem:[#allocation3 + $0x108] sm:$0xff] %v2669
        %2726 = vst [vmem:[#allocation3 + $0x110] sm:$0xff] %v2525
        %2727 = vst [vmem:[#allocation3 + $0x118] sm:$0xff] %v2671
        %2728 = vst [vmem:[#allocation3 + $0x120] sm:$0xff] %v2528
        %2729 = vst [vmem:[#allocation3 + $0x128] sm:$0xff] %v2674
        %2730 = vst [vmem:[#allocation3 + $0x130] sm:$0xff] %v2530
        %2731 = vst [vmem:[#allocation3 + $0x138] sm:$0xff] %v2676
        %2732 = vst [vmem:[#allocation3 + $0x140] sm:$0xff] %v2533
        %2733 = vst [vmem:[#allocation3 + $0x148] sm:$0xff] %v2679
        %2734 = vst [vmem:[#allocation3 + $0x150] sm:$0xff] %v2535
        %2735 = vst [vmem:[#allocation3 + $0x158] sm:$0xff] %v2681
        %2736 = vst [vmem:[#allocation3 + $0x160] sm:$0xff] %v2538
        %2737 = vst [vmem:[#allocation3 + $0x168] sm:$0xff] %v2684
        %2738 = vst [vmem:[#allocation3 + $0x170] sm:$0xff] %v2540
        %2739 = vst [vmem:[#allocation3 + $0x178] sm:$0xff] %v2686
        %2740 = vst [vmem:[#allocation3 + $0x180] sm:$0xf] %v2543
        %2741 = vst [vmem:[#allocation3 + $0x188] sm:$0xf] %v2689
        %v2742 = vld [vmem:[%s1485] sm:$0xee]
        %v2743 = vld [vmem:[%s1485 + $0x8] sm:$0xff]
        %v2744 = vld [vmem:[%s1485 + $0x10] sm:$0xff]
        %v2745 = vld [vmem:[%s1485 + $0x18] sm:$0xff]
        %v2746 = vld [vmem:[%s1485 + $0x20] sm:$0xff]
        %v2747 = vld [vmem:[%s1485 + $0x28] sm:$0xff]
        %v2748 = vld [vmem:[%s1485 + $0x30] sm:$0xff]
        %v2749 = vld [vmem:[%s1485 + $0x38] sm:$0xff]
        %v2750 = vld [vmem:[%s1485 + $0x40] sm:$0xff]
        %v2751 = vld [vmem:[%s1485 + $0x48] sm:$0xff]
        %v2752 = vld [vmem:[%s1485 + $0x50] sm:$0xff]
        %v2753 = vld [vmem:[%s1485 + $0x58] sm:$0xff]
        %v2754 = vld [vmem:[%s1485 + $0x60] sm:$0xff]
        %v2755 = vld [vmem:[%s1485 + $0x68] sm:$0xff]
        %v2756 = vld [vmem:[%s1485 + $0x70] sm:$0xff]
        %v2757 = vld [vmem:[%s1485 + $0x78] sm:$0xff]
        %v2758 = vld [vmem:[%s1485 + $0x80] sm:$0xff]
        %v2759 = vld [vmem:[%s1485 + $0x88] sm:$0xff]
        %v2760 = vld [vmem:[%s1485 + $0x90] sm:$0xff]
        %v2761 = vld [vmem:[%s1485 + $0x98] sm:$0xff]
        %v2762 = vld [vmem:[%s1485 + $0xa0] sm:$0xff]
        %v2763 = vld [vmem:[%s1485 + $0xa8] sm:$0xff]
        %v2764 = vld [vmem:[%s1485 + $0xb0] sm:$0xff]
        %v2765 = vld [vmem:[%s1485 + $0xb8] sm:$0xff]
        %v2766 = vld [vmem:[%s1485 + $0xc0] sm:$0x77]
        %s2767 = scalar_lea.vmem [#allocation9], 256
        %v2768 = vld [vmem:[%s2767] sm:$0xff]
        %v2769 = vld [vmem:[%s2767 + $0x8] sm:$0xff]
        %v2770 = vld [vmem:[%s2767 + $0x10] sm:$0xff]
        %v2771 = vld [vmem:[%s2767 + $0x18] sm:$0xff]
        %v2772 = vld [vmem:[%s2767 + $0x20] sm:$0xff]
        %v2773 = vld [vmem:[%s2767 + $0x28] sm:$0xff]
        %v2774 = vld [vmem:[%s2767 + $0x30] sm:$0xff]
        %v2775 = vld [vmem:[%s2767 + $0x38] sm:$0xff]
        %v2776 = vld [vmem:[%s2767 + $0x40] sm:$0xff]
        %v2777 = vld [vmem:[%s2767 + $0x48] sm:$0xff]
        %v2778 = vld [vmem:[%s2767 + $0x50] sm:$0xff]
        %v2779 = vld [vmem:[%s2767 + $0x58] sm:$0xff]
        %v2780 = vld [vmem:[%s2767 + $0x60] sm:$0xff]
        %v2781 = vld [vmem:[%s2767 + $0x68] sm:$0xff]
        %v2782 = vld [vmem:[%s2767 + $0x70] sm:$0xff]
        %v2783 = vld [vmem:[%s2767 + $0x78] sm:$0xff]
        %v2784 = vld [vmem:[%s2767 + $0x80] sm:$0xff]
        %v2785 = vld [vmem:[%s2767 + $0x88] sm:$0xff]
        %v2786 = vld [vmem:[%s2767 + $0x90] sm:$0xff]
        %v2787 = vld [vmem:[%s2767 + $0x98] sm:$0xff]
        %v2788 = vld [vmem:[%s2767 + $0xa0] sm:$0xff]
        %v2789 = vld [vmem:[%s2767 + $0xa8] sm:$0xff]
        %v2790 = vld [vmem:[%s2767 + $0xb0] sm:$0xff]
        %v2791 = vld [vmem:[%s2767 + $0xb8] sm:$0xff]
        %v2792 = vld [vmem:[%s2767 + $0xc0] sm:$0xff]
        %v2793 = vld [vmem:[%s2767 + $0xc8] sm:$0xff]
        %v2794 = vld [vmem:[%s2767 + $0xd0] sm:$0xff]
        %v2795 = vld [vmem:[%s2767 + $0xd8] sm:$0xff]
        %v2796 = vld [vmem:[%s2767 + $0xe0] sm:$0xff]
        %v2797 = vld [vmem:[%s2767 + $0xe8] sm:$0xff]
        %v2798 = vld [vmem:[%s2767 + $0xf0] sm:$0xff]
        %v2799 = vld [vmem:[%s2767 + $0xf8] sm:$0xff]
        %v2825 = vunpack.c.l.b16 %v2742
        %v2826 = vunpack.c.h.b16 %v2742
        %v2827 = vunpack.c.l.b16 %v2743
        %v2828 = vunpack.c.h.b16 %v2743
        %v2829 = vunpack.c.l.b16 %v2744
        %v2830 = vunpack.c.h.b16 %v2744
        %v2831 = vunpack.c.l.b16 %v2745
        %v2832 = vunpack.c.h.b16 %v2745
        %v2833 = vunpack.c.l.b16 %v2746
        %v2834 = vunpack.c.h.b16 %v2746
        %v2835 = vunpack.c.l.b16 %v2747
        %v2836 = vunpack.c.h.b16 %v2747
        %v2837 = vunpack.c.l.b16 %v2748
        %v2838 = vunpack.c.h.b16 %v2748
        %v2839 = vunpack.c.l.b16 %v2749
        %v2840 = vunpack.c.h.b16 %v2749
        %v2841 = vunpack.c.l.b16 %v2750
        %v2842 = vunpack.c.h.b16 %v2750
        %v2843 = vunpack.c.l.b16 %v2751
        %v2844 = vunpack.c.h.b16 %v2751
        %v2845 = vunpack.c.l.b16 %v2752
        %v2846 = vunpack.c.h.b16 %v2752
        %v2847 = vunpack.c.l.b16 %v2753
        %v2848 = vunpack.c.h.b16 %v2753
        %v2849 = vunpack.c.l.b16 %v2754
        %v2850 = vunpack.c.h.b16 %v2754
        %v2851 = vunpack.c.l.b16 %v2755
        %v2852 = vunpack.c.h.b16 %v2755
        %v2853 = vunpack.c.l.b16 %v2756
        %v2854 = vunpack.c.h.b16 %v2756
        %v2855 = vunpack.c.l.b16 %v2757
        %v2856 = vunpack.c.h.b16 %v2757
        %v2857 = vunpack.c.l.b16 %v2758
        %v2858 = vunpack.c.h.b16 %v2758
        %v2859 = vunpack.c.l.b16 %v2759
        %v2860 = vunpack.c.h.b16 %v2759
        %v2861 = vunpack.c.l.b16 %v2760
        %v2862 = vunpack.c.h.b16 %v2760
        %v2863 = vunpack.c.l.b16 %v2761
        %v2864 = vunpack.c.h.b16 %v2761
        %v2865 = vunpack.c.l.b16 %v2762
        %v2866 = vunpack.c.h.b16 %v2762
        %v2867 = vunpack.c.l.b16 %v2763
        %v2868 = vunpack.c.h.b16 %v2763
        %v2869 = vunpack.c.l.b16 %v2764
        %v2870 = vunpack.c.h.b16 %v2764
        %v2871 = vunpack.c.l.b16 %v2765
        %v2872 = vunpack.c.h.b16 %v2765
        %v2873 = vunpack.c.l.b16 %v2766
        %v2874 = vunpack.c.h.b16 %v2766
        %v2875 = vpack.c.b16 %v2827, %v2825
        %v2876 = vpack.c.b16 %v2828, %v2826
        %v2877 = vpack.c.b16 %v2831, %v2829
        %v2878 = vpack.c.b16 %v2832, %v2830
        %v2879 = vpack.c.b16 %v2835, %v2833
        %v2880 = vpack.c.b16 %v2836, %v2834
        %v2881 = vpack.c.b16 %v2839, %v2837
        %v2882 = vpack.c.b16 %v2840, %v2838
        %v2883 = vpack.c.b16 %v2843, %v2841
        %v2884 = vpack.c.b16 %v2844, %v2842
        %v2885 = vpack.c.b16 %v2847, %v2845
        %v2886 = vpack.c.b16 %v2848, %v2846
        %v2887 = vpack.c.b16 %v2851, %v2849
        %v2888 = vpack.c.b16 %v2852, %v2850
        %v2889 = vpack.c.b16 %v2855, %v2853
        %v2890 = vpack.c.b16 %v2856, %v2854
        %v2891 = vpack.c.b16 %v2859, %v2857
        %v2892 = vpack.c.b16 %v2860, %v2858
        %v2893 = vpack.c.b16 %v2863, %v2861
        %v2894 = vpack.c.b16 %v2864, %v2862
        %v2895 = vpack.c.b16 %v2867, %v2865
        %v2896 = vpack.c.b16 %v2868, %v2866
        %v2897 = vpack.c.b16 %v2871, %v2869
        %v2898 = vpack.c.b16 %v2872, %v2870
        %v2899 = vpack.c.b16 %v2873, %v2873
        %v2900 = vpack.c.b16 %v2874, %v2874
        %vm2901 = vcmask 1046528
        %v2902 = vrot.slane %v2875, 1
        %v2903 = vrot.slane %v2877, 1
        %v2904 = vsel %vm2901, %v2902, %v2903
        %v2905 = vrot.slane %v2876, 1
        %v2906 = vrot.slane %v2878, 1
        %v2907 = vsel %vm2901, %v2905, %v2906
        %v2908 = vrot.slane %v2879, 1
        %v2909 = vsel %vm2901, %v2903, %v2908
        %v2910 = vrot.slane %v2880, 1
        %v2911 = vsel %vm2901, %v2906, %v2910
        %v2912 = vrot.slane %v2881, 1
        %v2913 = vsel %vm2901, %v2908, %v2912
        %v2914 = vrot.slane %v2882, 1
        %v2915 = vsel %vm2901, %v2910, %v2914
        %v2916 = vrot.slane %v2883, 1
        %v2917 = vsel %vm2901, %v2912, %v2916
        %v2918 = vrot.slane %v2884, 1
        %v2919 = vsel %vm2901, %v2914, %v2918
        %v2920 = vrot.slane %v2885, 1
        %v2921 = vsel %vm2901, %v2916, %v2920
        %v2922 = vrot.slane %v2886, 1
        %v2923 = vsel %vm2901, %v2918, %v2922
        %v2924 = vrot.slane %v2887, 1
        %v2925 = vsel %vm2901, %v2920, %v2924
        %v2926 = vrot.slane %v2888, 1
        %v2927 = vsel %vm2901, %v2922, %v2926
        %v2928 = vrot.slane %v2889, 1
        %v2929 = vsel %vm2901, %v2924, %v2928
        %v2930 = vrot.slane %v2890, 1
        %v2931 = vsel %vm2901, %v2926, %v2930
        %v2932 = vrot.slane %v2891, 1
        %v2933 = vsel %vm2901, %v2928, %v2932
        %v2934 = vrot.slane %v2892, 1
        %v2935 = vsel %vm2901, %v2930, %v2934
        %v2936 = vrot.slane %v2893, 1
        %v2937 = vsel %vm2901, %v2932, %v2936
        %v2938 = vrot.slane %v2894, 1
        %v2939 = vsel %vm2901, %v2934, %v2938
        %v2940 = vrot.slane %v2895, 1
        %v2941 = vsel %vm2901, %v2936, %v2940
        %v2942 = vrot.slane %v2896, 1
        %v2943 = vsel %vm2901, %v2938, %v2942
        %v2944 = vrot.slane %v2897, 1
        %v2945 = vsel %vm2901, %v2940, %v2944
        %v2946 = vrot.slane %v2898, 1
        %v2947 = vsel %vm2901, %v2942, %v2946
        %v2948 = vrot.slane %v2899, 1
        %v2949 = vsel %vm2901, %v2944, %v2948
        %v2950 = vrot.slane %v2900, 1
        %v2951 = vsel %vm2901, %v2946, %v2950
        %v3010 = vunpack.c.l.b16 %v2768
        %v3011 = vunpack.c.h.b16 %v2768
        %v3012 = vunpack.c.l.b16 %v2769
        %v3013 = vunpack.c.h.b16 %v2769
        %v3014 = vunpack.c.l.b16 %v2770
        %v3015 = vunpack.c.h.b16 %v2770
        %v3016 = vunpack.c.l.b16 %v2771
        %v3017 = vunpack.c.h.b16 %v2771
        %v3018 = vunpack.c.l.b16 %v2772
        %v3019 = vunpack.c.h.b16 %v2772
        %v3020 = vunpack.c.l.b16 %v2773
        %v3021 = vunpack.c.h.b16 %v2773
        %v3022 = vunpack.c.l.b16 %v2774
        %v3023 = vunpack.c.h.b16 %v2774
        %v3024 = vunpack.c.l.b16 %v2775
        %v3025 = vunpack.c.h.b16 %v2775
        %v3026 = vunpack.c.l.b16 %v2776
        %v3027 = vunpack.c.h.b16 %v2776
        %v3028 = vunpack.c.l.b16 %v2777
        %v3029 = vunpack.c.h.b16 %v2777
        %v3030 = vunpack.c.l.b16 %v2778
        %v3031 = vunpack.c.h.b16 %v2778
        %v3032 = vunpack.c.l.b16 %v2779
        %v3033 = vunpack.c.h.b16 %v2779
        %v3034 = vunpack.c.l.b16 %v2780
        %v3035 = vunpack.c.h.b16 %v2780
        %v3036 = vunpack.c.l.b16 %v2781
        %v3037 = vunpack.c.h.b16 %v2781
        %v3038 = vunpack.c.l.b16 %v2782
        %v3039 = vunpack.c.h.b16 %v2782
        %v3040 = vunpack.c.l.b16 %v2783
        %v3041 = vunpack.c.h.b16 %v2783
        %v3042 = vunpack.c.l.b16 %v2784
        %v3043 = vunpack.c.h.b16 %v2784
        %v3044 = vunpack.c.l.b16 %v2785
        %v3045 = vunpack.c.h.b16 %v2785
        %v3046 = vunpack.c.l.b16 %v2786
        %v3047 = vunpack.c.h.b16 %v2786
        %v3048 = vunpack.c.l.b16 %v2787
        %v3049 = vunpack.c.h.b16 %v2787
        %v3050 = vunpack.c.l.b16 %v2788
        %v3051 = vunpack.c.h.b16 %v2788
        %v3052 = vunpack.c.l.b16 %v2789
        %v3053 = vunpack.c.h.b16 %v2789
        %v3054 = vunpack.c.l.b16 %v2790
        %v3055 = vunpack.c.h.b16 %v2790
        %v3056 = vunpack.c.l.b16 %v2791
        %v3057 = vunpack.c.h.b16 %v2791
        %v3058 = vunpack.c.l.b16 %v2792
        %v3059 = vunpack.c.h.b16 %v2792
        %v3060 = vunpack.c.l.b16 %v2793
        %v3061 = vunpack.c.h.b16 %v2793
        %v3062 = vunpack.c.l.b16 %v2794
        %v3063 = vunpack.c.h.b16 %v2794
        %v3064 = vunpack.c.l.b16 %v2795
        %v3065 = vunpack.c.h.b16 %v2795
        %v3066 = vunpack.c.l.b16 %v2796
        %v3067 = vunpack.c.h.b16 %v2796
        %v3068 = vunpack.c.l.b16 %v2797
        %v3069 = vunpack.c.h.b16 %v2797
        %v3070 = vunpack.c.l.b16 %v2798
        %v3071 = vunpack.c.h.b16 %v2798
        %v3072 = vunpack.c.l.b16 %v2799
        %v3073 = vunpack.c.h.b16 %v2799
        %v3074 = vpack.c.b16 %v3012, %v3010
        %v3075 = vpack.c.b16 %v3013, %v3011
        %v3076 = vpack.c.b16 %v3016, %v3014
        %v3077 = vpack.c.b16 %v3017, %v3015
        %v3078 = vpack.c.b16 %v3020, %v3018
        %v3079 = vpack.c.b16 %v3021, %v3019
        %v3080 = vpack.c.b16 %v3024, %v3022
        %v3081 = vpack.c.b16 %v3025, %v3023
        %v3082 = vpack.c.b16 %v3028, %v3026
        %v3083 = vpack.c.b16 %v3029, %v3027
        %v3084 = vpack.c.b16 %v3032, %v3030
        %v3085 = vpack.c.b16 %v3033, %v3031
        %v3086 = vpack.c.b16 %v3036, %v3034
        %v3087 = vpack.c.b16 %v3037, %v3035
        %v3088 = vpack.c.b16 %v3040, %v3038
        %v3089 = vpack.c.b16 %v3041, %v3039
        %v3090 = vpack.c.b16 %v3044, %v3042
        %v3091 = vpack.c.b16 %v3045, %v3043
        %v3092 = vpack.c.b16 %v3048, %v3046
        %v3093 = vpack.c.b16 %v3049, %v3047
        %v3094 = vpack.c.b16 %v3052, %v3050
        %v3095 = vpack.c.b16 %v3053, %v3051
        %v3096 = vpack.c.b16 %v3056, %v3054
        %v3097 = vpack.c.b16 %v3057, %v3055
        %v3098 = vpack.c.b16 %v3060, %v3058
        %v3099 = vpack.c.b16 %v3061, %v3059
        %v3100 = vpack.c.b16 %v3064, %v3062
        %v3101 = vpack.c.b16 %v3065, %v3063
        %v3102 = vpack.c.b16 %v3068, %v3066
        %v3103 = vpack.c.b16 %v3069, %v3067
        %v3104 = vpack.c.b16 %v3072, %v3070
        %v3105 = vpack.c.b16 %v3073, %v3071
        %3138 = vmatpush.bf16.msra.mxu0 %v3088
        %3139 = vmatpush.bf16.msra.mxu0 %v3086
        %3140 = vmatpush.bf16.msra.mxu0 %v3084
        %3141 = vmatpush.bf16.msra.mxu0 %v3082
        %3142 = vmatpush.bf16.msra.mxu0 %v3080
        %3143 = vmatpush.bf16.msra.mxu0 %v3078
        %3144 = vmatpush.bf16.msra.mxu0 %v3076
        %3145 = vmatpush.bf16.msra.mxu0 %v3074
        %3146 = vmatmul.bf16.gmra.mxu0 %v2904
        %v3147 = vpop.f32.mrf.mxu0
        %v3148 = vadd.f32 0.0, %v3147
        %v3149 = vpop.f32.mrf.mxu0
        %v3150 = vadd.f32 0.0, %v3149
        %3151 = vmatmul.bf16.gmra.mxu0 %v2909
        %v3152 = vpop.f32.mrf.mxu0
        %v3153 = vadd.f32 0.0, %v3152
        %v3154 = vpop.f32.mrf.mxu0
        %v3155 = vadd.f32 0.0, %v3154
        %3156 = vmatmul.bf16.gmra.mxu0 %v2913
        %v3157 = vpop.f32.mrf.mxu0
        %v3158 = vadd.f32 0.0, %v3157
        %v3159 = vpop.f32.mrf.mxu0
        %v3160 = vadd.f32 0.0, %v3159
        %3161 = vmatmul.bf16.gmra.mxu0 %v2917
        %v3162 = vpop.f32.mrf.mxu0
        %v3163 = vadd.f32 0.0, %v3162
        %v3164 = vpop.f32.mrf.mxu0
        %v3165 = vadd.f32 0.0, %v3164
        %3166 = vmatmul.bf16.gmra.mxu0 %v2921
        %v3167 = vpop.f32.mrf.mxu0
        %v3168 = vadd.f32 0.0, %v3167
        %v3169 = vpop.f32.mrf.mxu0
        %v3170 = vadd.f32 0.0, %v3169
        %3171 = vmatmul.bf16.gmra.mxu0 %v2925
        %v3172 = vpop.f32.mrf.mxu0
        %v3173 = vadd.f32 0.0, %v3172
        %v3174 = vpop.f32.mrf.mxu0
        %v3175 = vadd.f32 0.0, %v3174
        %3176 = vmatmul.bf16.gmra.mxu0 %v2929
        %v3177 = vpop.f32.mrf.mxu0
        %v3178 = vadd.f32 0.0, %v3177
        %v3179 = vpop.f32.mrf.mxu0
        %v3180 = vadd.f32 0.0, %v3179
        %3181 = vmatmul.bf16.gmra.mxu0 %v2933
        %v3182 = vpop.f32.mrf.mxu0
        %v3183 = vadd.f32 0.0, %v3182
        %v3184 = vpop.f32.mrf.mxu0
        %v3185 = vadd.f32 0.0, %v3184
        %3186 = vmatmul.bf16.gmra.mxu0 %v2937
        %v3187 = vpop.f32.mrf.mxu0
        %v3188 = vadd.f32 0.0, %v3187
        %v3189 = vpop.f32.mrf.mxu0
        %v3190 = vadd.f32 0.0, %v3189
        %3191 = vmatmul.bf16.gmra.mxu0 %v2941
        %v3192 = vpop.f32.mrf.mxu0
        %v3193 = vadd.f32 0.0, %v3192
        %v3194 = vpop.f32.mrf.mxu0
        %v3195 = vadd.f32 0.0, %v3194
        %3196 = vmatmul.bf16.gmra.mxu0 %v2945
        %v3197 = vpop.f32.mrf.mxu0
        %v3198 = vadd.f32 0.0, %v3197
        %v3199 = vpop.f32.mrf.mxu0
        %v3200 = vadd.f32 0.0, %v3199
        %3201 = vmatmul.bf16.gmra.mxu0 %v2949
        %v3202 = vpop.f32.mrf.mxu0
        %v3203 = vadd.f32 0.0, %v3202
        %v3204 = vpop.f32.mrf.mxu0
        %v3205 = vadd.f32 0.0, %v3204
        %3206 = vmatmul.bf16.gmra.mxu0 %v2948
        %v3207 = vpop.f32.mrf.mxu0
        %v3208 = vadd.f32 0.0, %v3207
        %v3209 = vpop.f32.mrf.mxu0
        %3210 = vdwg.mxu0
        %3211 = vmatpush.bf16.msra.mxu0 %v3104
        %3212 = vmatpush.bf16.msra.mxu0 %v3102
        %3213 = vmatpush.bf16.msra.mxu0 %v3100
        %3214 = vmatpush.bf16.msra.mxu0 %v3098
        %3215 = vmatpush.bf16.msra.mxu0 %v3096
        %3216 = vmatpush.bf16.msra.mxu0 %v3094
        %3217 = vmatpush.bf16.msra.mxu0 %v3092
        %3218 = vmatpush.bf16.msra.mxu0 %v3090
        %3219 = vmatmul.bf16.gmra.mxu0 %v2907
        %v3220 = vpop.f32.mrf.mxu0
        %v3221 = vadd.f32 %v3148, %v3220
        %v3222 = vpop.f32.mrf.mxu0
        %v3223 = vadd.f32 %v3150, %v3222
        %3224 = vmatmul.bf16.gmra.mxu0 %v2911
        %v3225 = vpop.f32.mrf.mxu0
        %v3226 = vadd.f32 %v3153, %v3225
        %v3227 = vpop.f32.mrf.mxu0
        %v3228 = vadd.f32 %v3155, %v3227
        %3229 = vmatmul.bf16.gmra.mxu0 %v2915
        %v3230 = vpop.f32.mrf.mxu0
        %v3231 = vadd.f32 %v3158, %v3230
        %v3232 = vpop.f32.mrf.mxu0
        %v3233 = vadd.f32 %v3160, %v3232
        %3234 = vmatmul.bf16.gmra.mxu0 %v2919
        %v3235 = vpop.f32.mrf.mxu0
        %v3236 = vadd.f32 %v3163, %v3235
        %v3237 = vpop.f32.mrf.mxu0
        %v3238 = vadd.f32 %v3165, %v3237
        %3239 = vmatmul.bf16.gmra.mxu0 %v2923
        %v3240 = vpop.f32.mrf.mxu0
        %v3241 = vadd.f32 %v3168, %v3240
        %v3242 = vpop.f32.mrf.mxu0
        %v3243 = vadd.f32 %v3170, %v3242
        %3244 = vmatmul.bf16.gmra.mxu0 %v2927
        %v3245 = vpop.f32.mrf.mxu0
        %v3246 = vadd.f32 %v3173, %v3245
        %v3247 = vpop.f32.mrf.mxu0
        %v3248 = vadd.f32 %v3175, %v3247
        %3249 = vmatmul.bf16.gmra.mxu0 %v2931
        %v3250 = vpop.f32.mrf.mxu0
        %v3251 = vadd.f32 %v3178, %v3250
        %v3252 = vpop.f32.mrf.mxu0
        %v3253 = vadd.f32 %v3180, %v3252
        %3254 = vmatmul.bf16.gmra.mxu0 %v2935
        %v3255 = vpop.f32.mrf.mxu0
        %v3256 = vadd.f32 %v3183, %v3255
        %v3257 = vpop.f32.mrf.mxu0
        %v3258 = vadd.f32 %v3185, %v3257
        %3259 = vmatmul.bf16.gmra.mxu0 %v2939
        %v3260 = vpop.f32.mrf.mxu0
        %v3261 = vadd.f32 %v3188, %v3260
        %v3262 = vpop.f32.mrf.mxu0
        %v3263 = vadd.f32 %v3190, %v3262
        %3264 = vmatmul.bf16.gmra.mxu0 %v2943
        %v3265 = vpop.f32.mrf.mxu0
        %v3266 = vadd.f32 %v3193, %v3265
        %v3267 = vpop.f32.mrf.mxu0
        %v3268 = vadd.f32 %v3195, %v3267
        %3269 = vmatmul.bf16.gmra.mxu0 %v2947
        %v3270 = vpop.f32.mrf.mxu0
        %v3271 = vadd.f32 %v3198, %v3270
        %v3272 = vpop.f32.mrf.mxu0
        %v3273 = vadd.f32 %v3200, %v3272
        %3274 = vmatmul.bf16.gmra.mxu0 %v2951
        %v3275 = vpop.f32.mrf.mxu0
        %v3276 = vadd.f32 %v3203, %v3275
        %v3277 = vpop.f32.mrf.mxu0
        %v3278 = vadd.f32 %v3205, %v3277
        %3279 = vmatmul.bf16.gmra.mxu0 %v2950
        %v3280 = vpop.f32.mrf.mxu0
        %v3281 = vadd.f32 %v3208, %v3280
        %v3282 = vpop.f32.mrf.mxu0
        %3283 = vdwg.mxu0
        %3284 = vmatpush.bf16.msra.mxu0 %v3089
        %3285 = vmatpush.bf16.msra.mxu0 %v3087
        %3286 = vmatpush.bf16.msra.mxu0 %v3085
        %3287 = vmatpush.bf16.msra.mxu0 %v3083
        %3288 = vmatpush.bf16.msra.mxu0 %v3081
        %3289 = vmatpush.bf16.msra.mxu0 %v3079
        %3290 = vmatpush.bf16.msra.mxu0 %v3077
        %3291 = vmatpush.bf16.msra.mxu0 %v3075
        %3292 = vmatmul.bf16.gmra.mxu0 %v2904
        %v3293 = vpop.f32.mrf.mxu0
        %v3294 = vadd.f32 0.0, %v3293
        %v3295 = vpop.f32.mrf.mxu0
        %v3296 = vadd.f32 0.0, %v3295
        %3297 = vmatmul.bf16.gmra.mxu0 %v2909
        %v3298 = vpop.f32.mrf.mxu0
        %v3299 = vadd.f32 0.0, %v3298
        %v3300 = vpop.f32.mrf.mxu0
        %v3301 = vadd.f32 0.0, %v3300
        %3302 = vmatmul.bf16.gmra.mxu0 %v2913
        %v3303 = vpop.f32.mrf.mxu0
        %v3304 = vadd.f32 0.0, %v3303
        %v3305 = vpop.f32.mrf.mxu0
        %v3306 = vadd.f32 0.0, %v3305
        %3307 = vmatmul.bf16.gmra.mxu0 %v2917
        %v3308 = vpop.f32.mrf.mxu0
        %v3309 = vadd.f32 0.0, %v3308
        %v3310 = vpop.f32.mrf.mxu0
        %v3311 = vadd.f32 0.0, %v3310
        %3312 = vmatmul.bf16.gmra.mxu0 %v2921
        %v3313 = vpop.f32.mrf.mxu0
        %v3314 = vadd.f32 0.0, %v3313
        %v3315 = vpop.f32.mrf.mxu0
        %v3316 = vadd.f32 0.0, %v3315
        %3317 = vmatmul.bf16.gmra.mxu0 %v2925
        %v3318 = vpop.f32.mrf.mxu0
        %v3319 = vadd.f32 0.0, %v3318
        %v3320 = vpop.f32.mrf.mxu0
        %v3321 = vadd.f32 0.0, %v3320
        %3322 = vmatmul.bf16.gmra.mxu0 %v2929
        %v3323 = vpop.f32.mrf.mxu0
        %v3324 = vadd.f32 0.0, %v3323
        %v3325 = vpop.f32.mrf.mxu0
        %v3326 = vadd.f32 0.0, %v3325
        %3327 = vmatmul.bf16.gmra.mxu0 %v2933
        %v3328 = vpop.f32.mrf.mxu0
        %v3329 = vadd.f32 0.0, %v3328
        %v3330 = vpop.f32.mrf.mxu0
        %v3331 = vadd.f32 0.0, %v3330
        %3332 = vmatmul.bf16.gmra.mxu0 %v2937
        %v3333 = vpop.f32.mrf.mxu0
        %v3334 = vadd.f32 0.0, %v3333
        %v3335 = vpop.f32.mrf.mxu0
        %v3336 = vadd.f32 0.0, %v3335
        %3337 = vmatmul.bf16.gmra.mxu0 %v2941
        %v3338 = vpop.f32.mrf.mxu0
        %v3339 = vadd.f32 0.0, %v3338
        %v3340 = vpop.f32.mrf.mxu0
        %v3341 = vadd.f32 0.0, %v3340
        %3342 = vmatmul.bf16.gmra.mxu0 %v2945
        %v3343 = vpop.f32.mrf.mxu0
        %v3344 = vadd.f32 0.0, %v3343
        %v3345 = vpop.f32.mrf.mxu0
        %v3346 = vadd.f32 0.0, %v3345
        %3347 = vmatmul.bf16.gmra.mxu0 %v2949
        %v3348 = vpop.f32.mrf.mxu0
        %v3349 = vadd.f32 0.0, %v3348
        %v3350 = vpop.f32.mrf.mxu0
        %v3351 = vadd.f32 0.0, %v3350
        %3352 = vmatmul.bf16.gmra.mxu0 %v2948
        %v3353 = vpop.f32.mrf.mxu0
        %v3354 = vadd.f32 0.0, %v3353
        %v3355 = vpop.f32.mrf.mxu0
        %3356 = vdwg.mxu0
        %3357 = vmatpush.bf16.msra.mxu0 %v3105
        %3358 = vmatpush.bf16.msra.mxu0 %v3103
        %3359 = vmatpush.bf16.msra.mxu0 %v3101
        %3360 = vmatpush.bf16.msra.mxu0 %v3099
        %3361 = vmatpush.bf16.msra.mxu0 %v3097
        %3362 = vmatpush.bf16.msra.mxu0 %v3095
        %3363 = vmatpush.bf16.msra.mxu0 %v3093
        %3364 = vmatpush.bf16.msra.mxu0 %v3091
        %3365 = vmatmul.bf16.gmra.mxu0 %v2907
        %v3366 = vpop.f32.mrf.mxu0
        %v3367 = vadd.f32 %v3294, %v3366
        %v3368 = vpop.f32.mrf.mxu0
        %v3369 = vadd.f32 %v3296, %v3368
        %3370 = vmatmul.bf16.gmra.mxu0 %v2911
        %v3371 = vpop.f32.mrf.mxu0
        %v3372 = vadd.f32 %v3299, %v3371
        %v3373 = vpop.f32.mrf.mxu0
        %v3374 = vadd.f32 %v3301, %v3373
        %3375 = vmatmul.bf16.gmra.mxu0 %v2915
        %v3376 = vpop.f32.mrf.mxu0
        %v3377 = vadd.f32 %v3304, %v3376
        %v3378 = vpop.f32.mrf.mxu0
        %v3379 = vadd.f32 %v3306, %v3378
        %3380 = vmatmul.bf16.gmra.mxu0 %v2919
        %v3381 = vpop.f32.mrf.mxu0
        %v3382 = vadd.f32 %v3309, %v3381
        %v3383 = vpop.f32.mrf.mxu0
        %v3384 = vadd.f32 %v3311, %v3383
        %3385 = vmatmul.bf16.gmra.mxu0 %v2923
        %v3386 = vpop.f32.mrf.mxu0
        %v3387 = vadd.f32 %v3314, %v3386
        %v3388 = vpop.f32.mrf.mxu0
        %v3389 = vadd.f32 %v3316, %v3388
        %3390 = vmatmul.bf16.gmra.mxu0 %v2927
        %v3391 = vpop.f32.mrf.mxu0
        %v3392 = vadd.f32 %v3319, %v3391
        %v3393 = vpop.f32.mrf.mxu0
        %v3394 = vadd.f32 %v3321, %v3393
        %3395 = vmatmul.bf16.gmra.mxu0 %v2931
        %v3396 = vpop.f32.mrf.mxu0
        %v3397 = vadd.f32 %v3324, %v3396
        %v3398 = vpop.f32.mrf.mxu0
        %v3399 = vadd.f32 %v3326, %v3398
        %3400 = vmatmul.bf16.gmra.mxu0 %v2935
        %v3401 = vpop.f32.mrf.mxu0
        %v3402 = vadd.f32 %v3329, %v3401
        %v3403 = vpop.f32.mrf.mxu0
        %v3404 = vadd.f32 %v3331, %v3403
        %3405 = vmatmul.bf16.gmra.mxu0 %v2939
        %v3406 = vpop.f32.mrf.mxu0
        %v3407 = vadd.f32 %v3334, %v3406
        %v3408 = vpop.f32.mrf.mxu0
        %v3409 = vadd.f32 %v3336, %v3408
        %3410 = vmatmul.bf16.gmra.mxu0 %v2943
        %v3411 = vpop.f32.mrf.mxu0
        %v3412 = vadd.f32 %v3339, %v3411
        %v3413 = vpop.f32.mrf.mxu0
        %v3414 = vadd.f32 %v3341, %v3413
        %3415 = vmatmul.bf16.gmra.mxu0 %v2947
        %v3416 = vpop.f32.mrf.mxu0
        %v3417 = vadd.f32 %v3344, %v3416
        %v3418 = vpop.f32.mrf.mxu0
        %v3419 = vadd.f32 %v3346, %v3418
        %3420 = vmatmul.bf16.gmra.mxu0 %v2951
        %v3421 = vpop.f32.mrf.mxu0
        %v3422 = vadd.f32 %v3349, %v3421
        %v3423 = vpop.f32.mrf.mxu0
        %v3424 = vadd.f32 %v3351, %v3423
        %3425 = vmatmul.bf16.gmra.mxu0 %v2950
        %v3426 = vpop.f32.mrf.mxu0
        %v3427 = vadd.f32 %v3354, %v3426
        %v3428 = vpop.f32.mrf.mxu0
        %3429 = vdwg.mxu0
        %v3430 = vld [vmem:[#allocation3] sm:$0xff]
        %v3431 = vld [vmem:[#allocation3 + $0x8] sm:$0xff]
        %v3432 = vld [vmem:[#allocation3 + $0x10] sm:$0xff]
        %v3433 = vld [vmem:[#allocation3 + $0x18] sm:$0xff]
        %v3434 = vld [vmem:[#allocation3 + $0x20] sm:$0xff]
        %v3435 = vld [vmem:[#allocation3 + $0x28] sm:$0xff]
        %v3436 = vld [vmem:[#allocation3 + $0x30] sm:$0xff]
        %v3437 = vld [vmem:[#allocation3 + $0x38] sm:$0xff]
        %v3438 = vld [vmem:[#allocation3 + $0x40] sm:$0xff]
        %v3439 = vld [vmem:[#allocation3 + $0x48] sm:$0xff]
        %v3440 = vld [vmem:[#allocation3 + $0x50] sm:$0xff]
        %v3441 = vld [vmem:[#allocation3 + $0x58] sm:$0xff]
        %v3442 = vld [vmem:[#allocation3 + $0x60] sm:$0xff]
        %v3443 = vld [vmem:[#allocation3 + $0x68] sm:$0xff]
        %v3444 = vld [vmem:[#allocation3 + $0x70] sm:$0xff]
        %v3445 = vld [vmem:[#allocation3 + $0x78] sm:$0xff]
        %v3446 = vld [vmem:[#allocation3 + $0x80] sm:$0xff]
        %v3447 = vld [vmem:[#allocation3 + $0x88] sm:$0xff]
        %v3448 = vld [vmem:[#allocation3 + $0x90] sm:$0xff]
        %v3449 = vld [vmem:[#allocation3 + $0x98] sm:$0xff]
        %v3450 = vld [vmem:[#allocation3 + $0xa0] sm:$0xff]
        %v3451 = vld [vmem:[#allocation3 + $0xa8] sm:$0xff]
        %v3452 = vld [vmem:[#allocation3 + $0xb0] sm:$0xff]
        %v3453 = vld [vmem:[#allocation3 + $0xb8] sm:$0xff]
        %v3454 = vld [vmem:[#allocation3 + $0xc0] sm:$0xff]
        %v3455 = vld [vmem:[#allocation3 + $0xc8] sm:$0xff]
        %v3456 = vld [vmem:[#allocation3 + $0xd0] sm:$0xff]
        %v3457 = vld [vmem:[#allocation3 + $0xd8] sm:$0xff]
        %v3458 = vld [vmem:[#allocation3 + $0xe0] sm:$0xff]
        %v3459 = vld [vmem:[#allocation3 + $0xe8] sm:$0xff]
        %v3460 = vld [vmem:[#allocation3 + $0xf0] sm:$0xff]
        %v3461 = vld [vmem:[#allocation3 + $0xf8] sm:$0xff]
        %v3462 = vld [vmem:[#allocation3 + $0x100] sm:$0xff]
        %v3463 = vld [vmem:[#allocation3 + $0x108] sm:$0xff]
        %v3464 = vld [vmem:[#allocation3 + $0x110] sm:$0xff]
        %v3465 = vld [vmem:[#allocation3 + $0x118] sm:$0xff]
        %v3466 = vld [vmem:[#allocation3 + $0x120] sm:$0xff]
        %v3467 = vld [vmem:[#allocation3 + $0x128] sm:$0xff]
        %v3468 = vld [vmem:[#allocation3 + $0x130] sm:$0xff]
        %v3469 = vld [vmem:[#allocation3 + $0x138] sm:$0xff]
        %v3470 = vld [vmem:[#allocation3 + $0x140] sm:$0xff]
        %v3471 = vld [vmem:[#allocation3 + $0x148] sm:$0xff]
        %v3472 = vld [vmem:[#allocation3 + $0x150] sm:$0xff]
        %v3473 = vld [vmem:[#allocation3 + $0x158] sm:$0xff]
        %v3474 = vld [vmem:[#allocation3 + $0x160] sm:$0xff]
        %v3475 = vld [vmem:[#allocation3 + $0x168] sm:$0xff]
        %v3476 = vld [vmem:[#allocation3 + $0x170] sm:$0xff]
        %v3477 = vld [vmem:[#allocation3 + $0x178] sm:$0xff]
        %v3478 = vld [vmem:[#allocation3 + $0x180] sm:$0xf]
        %v3479 = vld [vmem:[#allocation3 + $0x188] sm:$0xf]
        %v3480 = vadd.f32 %v3430, %v3221
        %v3481 = vadd.f32 %v3431, %v3367
        %v3482 = vadd.f32 %v3432, %v3223
        %v3483 = vadd.f32 %v3433, %v3369
        %v3484 = vadd.f32 %v3434, %v3226
        %v3485 = vadd.f32 %v3435, %v3372
        %v3486 = vadd.f32 %v3436, %v3228
        %v3487 = vadd.f32 %v3437, %v3374
        %v3488 = vadd.f32 %v3438, %v3231
        %v3489 = vadd.f32 %v3439, %v3377
        %v3490 = vadd.f32 %v3440, %v3233
        %v3491 = vadd.f32 %v3441, %v3379
        %v3492 = vadd.f32 %v3442, %v3236
        %v3493 = vadd.f32 %v3443, %v3382
        %v3494 = vadd.f32 %v3444, %v3238
        %v3495 = vadd.f32 %v3445, %v3384
        %v3496 = vadd.f32 %v3446, %v3241
        %v3497 = vadd.f32 %v3447, %v3387
        %v3498 = vadd.f32 %v3448, %v3243
        %v3499 = vadd.f32 %v3449, %v3389
        %v3500 = vadd.f32 %v3450, %v3246
        %v3501 = vadd.f32 %v3451, %v3392
        %v3502 = vadd.f32 %v3452, %v3248
        %v3503 = vadd.f32 %v3453, %v3394
        %v3504 = vadd.f32 %v3454, %v3251
        %v3505 = vadd.f32 %v3455, %v3397
        %v3506 = vadd.f32 %v3456, %v3253
        %v3507 = vadd.f32 %v3457, %v3399
        %v3508 = vadd.f32 %v3458, %v3256
        %v3509 = vadd.f32 %v3459, %v3402
        %v3510 = vadd.f32 %v3460, %v3258
        %v3511 = vadd.f32 %v3461, %v3404
        %v3512 = vadd.f32 %v3462, %v3261
        %v3513 = vadd.f32 %v3463, %v3407
        %v3514 = vadd.f32 %v3464, %v3263
        %v3515 = vadd.f32 %v3465, %v3409
        %v3516 = vadd.f32 %v3466, %v3266
        %v3517 = vadd.f32 %v3467, %v3412
        %v3518 = vadd.f32 %v3468, %v3268
        %v3519 = vadd.f32 %v3469, %v3414
        %v3520 = vadd.f32 %v3470, %v3271
        %v3521 = vadd.f32 %v3471, %v3417
        %v3522 = vadd.f32 %v3472, %v3273
        %v3523 = vadd.f32 %v3473, %v3419
        %v3524 = vadd.f32 %v3474, %v3276
        %v3525 = vadd.f32 %v3475, %v3422
        %v3526 = vadd.f32 %v3476, %v3278
        %v3527 = vadd.f32 %v3477, %v3424
        %v3528 = vadd.f32 %v3478, %v3281
        %v3529 = vadd.f32 %v3479, %v3427
        %3530 = vst [vmem:[#allocation3] sm:$0xff] %v3480
        %3531 = vst [vmem:[#allocation3 + $0x8] sm:$0xff] %v3481
        %3532 = vst [vmem:[#allocation3 + $0x10] sm:$0xff] %v3482
        %3533 = vst [vmem:[#allocation3 + $0x18] sm:$0xff] %v3483
        %3534 = vst [vmem:[#allocation3 + $0x20] sm:$0xff] %v3484
        %3535 = vst [vmem:[#allocation3 + $0x28] sm:$0xff] %v3485
        %3536 = vst [vmem:[#allocation3 + $0x30] sm:$0xff] %v3486
        %3537 = vst [vmem:[#allocation3 + $0x38] sm:$0xff] %v3487
        %3538 = vst [vmem:[#allocation3 + $0x40] sm:$0xff] %v3488
        %3539 = vst [vmem:[#allocation3 + $0x48] sm:$0xff] %v3489
        %3540 = vst [vmem:[#allocation3 + $0x50] sm:$0xff] %v3490
        %3541 = vst [vmem:[#allocation3 + $0x58] sm:$0xff] %v3491
        %3542 = vst [vmem:[#allocation3 + $0x60] sm:$0xff] %v3492
        %3543 = vst [vmem:[#allocation3 + $0x68] sm:$0xff] %v3493
        %3544 = vst [vmem:[#allocation3 + $0x70] sm:$0xff] %v3494
        %3545 = vst [vmem:[#allocation3 + $0x78] sm:$0xff] %v3495
        %3546 = vst [vmem:[#allocation3 + $0x80] sm:$0xff] %v3496
        %3547 = vst [vmem:[#allocation3 + $0x88] sm:$0xff] %v3497
        %3548 = vst [vmem:[#allocation3 + $0x90] sm:$0xff] %v3498
        %3549 = vst [vmem:[#allocation3 + $0x98] sm:$0xff] %v3499
        %3550 = vst [vmem:[#allocation3 + $0xa0] sm:$0xff] %v3500
        %3551 = vst [vmem:[#allocation3 + $0xa8] sm:$0xff] %v3501
        %3552 = vst [vmem:[#allocation3 + $0xb0] sm:$0xff] %v3502
        %3553 = vst [vmem:[#allocation3 + $0xb8] sm:$0xff] %v3503
        %3554 = vst [vmem:[#allocation3 + $0xc0] sm:$0xff] %v3504
        %3555 = vst [vmem:[#allocation3 + $0xc8] sm:$0xff] %v3505
        %3556 = vst [vmem:[#allocation3 + $0xd0] sm:$0xff] %v3506
        %3557 = vst [vmem:[#allocation3 + $0xd8] sm:$0xff] %v3507
        %3558 = vst [vmem:[#allocation3 + $0xe0] sm:$0xff] %v3508
        %3559 = vst [vmem:[#allocation3 + $0xe8] sm:$0xff] %v3509
        %3560 = vst [vmem:[#allocation3 + $0xf0] sm:$0xff] %v3510
        %3561 = vst [vmem:[#allocation3 + $0xf8] sm:$0xff] %v3511
        %3562 = vst [vmem:[#allocation3 + $0x100] sm:$0xff] %v3512
        %3563 = vst [vmem:[#allocation3 + $0x108] sm:$0xff] %v3513
        %3564 = vst [vmem:[#allocation3 + $0x110] sm:$0xff] %v3514
        %3565 = vst [vmem:[#allocation3 + $0x118] sm:$0xff] %v3515
        %3566 = vst [vmem:[#allocation3 + $0x120] sm:$0xff] %v3516
        %3567 = vst [vmem:[#allocation3 + $0x128] sm:$0xff] %v3517
        %3568 = vst [vmem:[#allocation3 + $0x130] sm:$0xff] %v3518
        %3569 = vst [vmem:[#allocation3 + $0x138] sm:$0xff] %v3519
        %3570 = vst [vmem:[#allocation3 + $0x140] sm:$0xff] %v3520
        %3571 = vst [vmem:[#allocation3 + $0x148] sm:$0xff] %v3521
        %3572 = vst [vmem:[#allocation3 + $0x150] sm:$0xff] %v3522
        %3573 = vst [vmem:[#allocation3 + $0x158] sm:$0xff] %v3523
        %3574 = vst [vmem:[#allocation3 + $0x160] sm:$0xff] %v3524
        %3575 = vst [vmem:[#allocation3 + $0x168] sm:$0xff] %v3525
        %3576 = vst [vmem:[#allocation3 + $0x170] sm:$0xff] %v3526
        %3577 = vst [vmem:[#allocation3 + $0x178] sm:$0xff] %v3527
        %3578 = vst [vmem:[#allocation3 + $0x180] sm:$0xf] %v3528
        %3579 = vst [vmem:[#allocation3 + $0x188] sm:$0xf] %v3529
        %v3580 = vld [vmem:[%s1492] sm:$0xee]
        %v3581 = vld [vmem:[%s1492 + $0x8] sm:$0xff]
        %v3582 = vld [vmem:[%s1492 + $0x10] sm:$0xff]
        %v3583 = vld [vmem:[%s1492 + $0x18] sm:$0xff]
        %v3584 = vld [vmem:[%s1492 + $0x20] sm:$0xff]
        %v3585 = vld [vmem:[%s1492 + $0x28] sm:$0xff]
        %v3586 = vld [vmem:[%s1492 + $0x30] sm:$0xff]
        %v3587 = vld [vmem:[%s1492 + $0x38] sm:$0xff]
        %v3588 = vld [vmem:[%s1492 + $0x40] sm:$0xff]
        %v3589 = vld [vmem:[%s1492 + $0x48] sm:$0xff]
        %v3590 = vld [vmem:[%s1492 + $0x50] sm:$0xff]
        %v3591 = vld [vmem:[%s1492 + $0x58] sm:$0xff]
        %v3592 = vld [vmem:[%s1492 + $0x60] sm:$0xff]
        %v3593 = vld [vmem:[%s1492 + $0x68] sm:$0xff]
        %v3594 = vld [vmem:[%s1492 + $0x70] sm:$0xff]
        %v3595 = vld [vmem:[%s1492 + $0x78] sm:$0xff]
        %v3596 = vld [vmem:[%s1492 + $0x80] sm:$0xff]
        %v3597 = vld [vmem:[%s1492 + $0x88] sm:$0xff]
        %v3598 = vld [vmem:[%s1492 + $0x90] sm:$0xff]
        %v3599 = vld [vmem:[%s1492 + $0x98] sm:$0xff]
        %v3600 = vld [vmem:[%s1492 + $0xa0] sm:$0xff]
        %v3601 = vld [vmem:[%s1492 + $0xa8] sm:$0xff]
        %v3602 = vld [vmem:[%s1492 + $0xb0] sm:$0xff]
        %v3603 = vld [vmem:[%s1492 + $0xb8] sm:$0xff]
        %v3604 = vld [vmem:[%s1492 + $0xc0] sm:$0xff]
        %s3605 = scalar_lea.vmem [#allocation9], 512
        %v3606 = vld [vmem:[%s3605] sm:$0xff]
        %v3607 = vld [vmem:[%s3605 + $0x8] sm:$0xff]
        %v3608 = vld [vmem:[%s3605 + $0x10] sm:$0xff]
        %v3609 = vld [vmem:[%s3605 + $0x18] sm:$0xff]
        %v3610 = vld [vmem:[%s3605 + $0x20] sm:$0xff]
        %v3611 = vld [vmem:[%s3605 + $0x28] sm:$0xff]
        %v3612 = vld [vmem:[%s3605 + $0x30] sm:$0xff]
        %v3613 = vld [vmem:[%s3605 + $0x38] sm:$0xff]
        %v3614 = vld [vmem:[%s3605 + $0x40] sm:$0xff]
        %v3615 = vld [vmem:[%s3605 + $0x48] sm:$0xff]
        %v3616 = vld [vmem:[%s3605 + $0x50] sm:$0xff]
        %v3617 = vld [vmem:[%s3605 + $0x58] sm:$0xff]
        %v3618 = vld [vmem:[%s3605 + $0x60] sm:$0xff]
        %v3619 = vld [vmem:[%s3605 + $0x68] sm:$0xff]
        %v3620 = vld [vmem:[%s3605 + $0x70] sm:$0xff]
        %v3621 = vld [vmem:[%s3605 + $0x78] sm:$0xff]
        %v3622 = vld [vmem:[%s3605 + $0x80] sm:$0xff]
        %v3623 = vld [vmem:[%s3605 + $0x88] sm:$0xff]
        %v3624 = vld [vmem:[%s3605 + $0x90] sm:$0xff]
        %v3625 = vld [vmem:[%s3605 + $0x98] sm:$0xff]
        %v3626 = vld [vmem:[%s3605 + $0xa0] sm:$0xff]
        %v3627 = vld [vmem:[%s3605 + $0xa8] sm:$0xff]
        %v3628 = vld [vmem:[%s3605 + $0xb0] sm:$0xff]
        %v3629 = vld [vmem:[%s3605 + $0xb8] sm:$0xff]
        %v3630 = vld [vmem:[%s3605 + $0xc0] sm:$0xff]
        %v3631 = vld [vmem:[%s3605 + $0xc8] sm:$0xff]
        %v3632 = vld [vmem:[%s3605 + $0xd0] sm:$0xff]
        %v3633 = vld [vmem:[%s3605 + $0xd8] sm:$0xff]
        %v3634 = vld [vmem:[%s3605 + $0xe0] sm:$0xff]
        %v3635 = vld [vmem:[%s3605 + $0xe8] sm:$0xff]
        %v3636 = vld [vmem:[%s3605 + $0xf0] sm:$0xff]
        %v3637 = vld [vmem:[%s3605 + $0xf8] sm:$0xff]
        %v3663 = vunpack.c.l.b16 %v3580
        %v3664 = vunpack.c.h.b16 %v3580
        %v3665 = vunpack.c.l.b16 %v3581
        %v3666 = vunpack.c.h.b16 %v3581
        %v3667 = vunpack.c.l.b16 %v3582
        %v3668 = vunpack.c.h.b16 %v3582
        %v3669 = vunpack.c.l.b16 %v3583
        %v3670 = vunpack.c.h.b16 %v3583
        %v3671 = vunpack.c.l.b16 %v3584
        %v3672 = vunpack.c.h.b16 %v3584
        %v3673 = vunpack.c.l.b16 %v3585
        %v3674 = vunpack.c.h.b16 %v3585
        %v3675 = vunpack.c.l.b16 %v3586
        %v3676 = vunpack.c.h.b16 %v3586
        %v3677 = vunpack.c.l.b16 %v3587
        %v3678 = vunpack.c.h.b16 %v3587
        %v3679 = vunpack.c.l.b16 %v3588
        %v3680 = vunpack.c.h.b16 %v3588
        %v3681 = vunpack.c.l.b16 %v3589
        %v3682 = vunpack.c.h.b16 %v3589
        %v3683 = vunpack.c.l.b16 %v3590
        %v3684 = vunpack.c.h.b16 %v3590
        %v3685 = vunpack.c.l.b16 %v3591
        %v3686 = vunpack.c.h.b16 %v3591
        %v3687 = vunpack.c.l.b16 %v3592
        %v3688 = vunpack.c.h.b16 %v3592
        %v3689 = vunpack.c.l.b16 %v3593
        %v3690 = vunpack.c.h.b16 %v3593
        %v3691 = vunpack.c.l.b16 %v3594
        %v3692 = vunpack.c.h.b16 %v3594
        %v3693 = vunpack.c.l.b16 %v3595
        %v3694 = vunpack.c.h.b16 %v3595
        %v3695 = vunpack.c.l.b16 %v3596
        %v3696 = vunpack.c.h.b16 %v3596
        %v3697 = vunpack.c.l.b16 %v3597
        %v3698 = vunpack.c.h.b16 %v3597
        %v3699 = vunpack.c.l.b16 %v3598
        %v3700 = vunpack.c.h.b16 %v3598
        %v3701 = vunpack.c.l.b16 %v3599
        %v3702 = vunpack.c.h.b16 %v3599
        %v3703 = vunpack.c.l.b16 %v3600
        %v3704 = vunpack.c.h.b16 %v3600
        %v3705 = vunpack.c.l.b16 %v3601
        %v3706 = vunpack.c.h.b16 %v3601
        %v3707 = vunpack.c.l.b16 %v3602
        %v3708 = vunpack.c.h.b16 %v3602
        %v3709 = vunpack.c.l.b16 %v3603
        %v3710 = vunpack.c.h.b16 %v3603
        %v3711 = vunpack.c.l.b16 %v3604
        %v3712 = vunpack.c.h.b16 %v3604
        %v3713 = vpack.c.b16 %v3665, %v3663
        %v3714 = vpack.c.b16 %v3666, %v3664
        %v3715 = vpack.c.b16 %v3669, %v3667
        %v3716 = vpack.c.b16 %v3670, %v3668
        %v3717 = vpack.c.b16 %v3673, %v3671
        %v3718 = vpack.c.b16 %v3674, %v3672
        %v3719 = vpack.c.b16 %v3677, %v3675
        %v3720 = vpack.c.b16 %v3678, %v3676
        %v3721 = vpack.c.b16 %v3681, %v3679
        %v3722 = vpack.c.b16 %v3682, %v3680
        %v3723 = vpack.c.b16 %v3685, %v3683
        %v3724 = vpack.c.b16 %v3686, %v3684
        %v3725 = vpack.c.b16 %v3689, %v3687
        %v3726 = vpack.c.b16 %v3690, %v3688
        %v3727 = vpack.c.b16 %v3693, %v3691
        %v3728 = vpack.c.b16 %v3694, %v3692
        %v3729 = vpack.c.b16 %v3697, %v3695
        %v3730 = vpack.c.b16 %v3698, %v3696
        %v3731 = vpack.c.b16 %v3701, %v3699
        %v3732 = vpack.c.b16 %v3702, %v3700
        %v3733 = vpack.c.b16 %v3705, %v3703
        %v3734 = vpack.c.b16 %v3706, %v3704
        %v3735 = vpack.c.b16 %v3709, %v3707
        %v3736 = vpack.c.b16 %v3710, %v3708
        %v3737 = vpack.c.b16 %v3711, %v3711
        %v3738 = vpack.c.b16 %v3712, %v3712
        %vm3739 = vsmask.f32 6400
        %v3741 = vshrl.u32 %v3713, 16
        %v3743 = vrot.slane %v3741, 1
        %v3744 = vshll.u32 %v3713, 16
        %v3746 = vrot.slane %v3744, 2
        %v3747 = vor.u32 %v3743, %v3746
        %v3749 = vshrl.u32 %v3715, 16
        %v3751 = vrot.slane %v3749, 1
        %v3752 = vshll.u32 %v3715, 16
        %v3754 = vrot.slane %v3752, 2
        %v3755 = vor.u32 %v3751, %v3754
        %v3756 = vsel %vm3739, %v3747, %v3755
        %v3758 = vshrl.u32 %v3714, 16
        %v3760 = vrot.slane %v3758, 1
        %v3761 = vshll.u32 %v3714, 16
        %v3763 = vrot.slane %v3761, 2
        %v3764 = vor.u32 %v3760, %v3763
        %v3766 = vshrl.u32 %v3716, 16
        %v3768 = vrot.slane %v3766, 1
        %v3769 = vshll.u32 %v3716, 16
        %v3771 = vrot.slane %v3769, 2
        %v3772 = vor.u32 %v3768, %v3771
        %v3773 = vsel %vm3739, %v3764, %v3772
        %v3775 = vshrl.u32 %v3717, 16
        %v3777 = vrot.slane %v3775, 1
        %v3778 = vshll.u32 %v3717, 16
        %v3780 = vrot.slane %v3778, 2
        %v3781 = vor.u32 %v3777, %v3780
        %v3782 = vsel %vm3739, %v3755, %v3781
        %v3784 = vshrl.u32 %v3718, 16
        %v3786 = vrot.slane %v3784, 1
        %v3787 = vshll.u32 %v3718, 16
        %v3789 = vrot.slane %v3787, 2
        %v3790 = vor.u32 %v3786, %v3789
        %v3791 = vsel %vm3739, %v3772, %v3790
        %v3793 = vshrl.u32 %v3719, 16
        %v3795 = vrot.slane %v3793, 1
        %v3796 = vshll.u32 %v3719, 16
        %v3798 = vrot.slane %v3796, 2
        %v3799 = vor.u32 %v3795, %v3798
        %v3800 = vsel %vm3739, %v3781, %v3799
        %v3802 = vshrl.u32 %v3720, 16
        %v3804 = vrot.slane %v3802, 1
        %v3805 = vshll.u32 %v3720, 16
        %v3807 = vrot.slane %v3805, 2
        %v3808 = vor.u32 %v3804, %v3807
        %v3809 = vsel %vm3739, %v3790, %v3808
        %v3811 = vshrl.u32 %v3721, 16
        %v3813 = vrot.slane %v3811, 1
        %v3814 = vshll.u32 %v3721, 16
        %v3816 = vrot.slane %v3814, 2
        %v3817 = vor.u32 %v3813, %v3816
        %v3818 = vsel %vm3739, %v3799, %v3817
        %v3820 = vshrl.u32 %v3722, 16
        %v3822 = vrot.slane %v3820, 1
        %v3823 = vshll.u32 %v3722, 16
        %v3825 = vrot.slane %v3823, 2
        %v3826 = vor.u32 %v3822, %v3825
        %v3827 = vsel %vm3739, %v3808, %v3826
        %v3829 = vshrl.u32 %v3723, 16
        %v3831 = vrot.slane %v3829, 1
        %v3832 = vshll.u32 %v3723, 16
        %v3834 = vrot.slane %v3832, 2
        %v3835 = vor.u32 %v3831, %v3834
        %v3836 = vsel %vm3739, %v3817, %v3835
        %v3838 = vshrl.u32 %v3724, 16
        %v3840 = vrot.slane %v3838, 1
        %v3841 = vshll.u32 %v3724, 16
        %v3843 = vrot.slane %v3841, 2
        %v3844 = vor.u32 %v3840, %v3843
        %v3845 = vsel %vm3739, %v3826, %v3844
        %v3847 = vshrl.u32 %v3725, 16
        %v3849 = vrot.slane %v3847, 1
        %v3850 = vshll.u32 %v3725, 16
        %v3852 = vrot.slane %v3850, 2
        %v3853 = vor.u32 %v3849, %v3852
        %v3854 = vsel %vm3739, %v3835, %v3853
        %v3856 = vshrl.u32 %v3726, 16
        %v3858 = vrot.slane %v3856, 1
        %v3859 = vshll.u32 %v3726, 16
        %v3861 = vrot.slane %v3859, 2
        %v3862 = vor.u32 %v3858, %v3861
        %v3863 = vsel %vm3739, %v3844, %v3862
        %v3865 = vshrl.u32 %v3727, 16
        %v3867 = vrot.slane %v3865, 1
        %v3868 = vshll.u32 %v3727, 16
        %v3870 = vrot.slane %v3868, 2
        %v3871 = vor.u32 %v3867, %v3870
        %v3872 = vsel %vm3739, %v3853, %v3871
        %v3874 = vshrl.u32 %v3728, 16
        %v3876 = vrot.slane %v3874, 1
        %v3877 = vshll.u32 %v3728, 16
        %v3879 = vrot.slane %v3877, 2
        %v3880 = vor.u32 %v3876, %v3879
        %v3881 = vsel %vm3739, %v3862, %v3880
        %v3883 = vshrl.u32 %v3729, 16
        %v3885 = vrot.slane %v3883, 1
        %v3886 = vshll.u32 %v3729, 16
        %v3888 = vrot.slane %v3886, 2
        %v3889 = vor.u32 %v3885, %v3888
        %v3890 = vsel %vm3739, %v3871, %v3889
        %v3892 = vshrl.u32 %v3730, 16
        %v3894 = vrot.slane %v3892, 1
        %v3895 = vshll.u32 %v3730, 16
        %v3897 = vrot.slane %v3895, 2
        %v3898 = vor.u32 %v3894, %v3897
        %v3899 = vsel %vm3739, %v3880, %v3898
        %v3901 = vshrl.u32 %v3731, 16
        %v3903 = vrot.slane %v3901, 1
        %v3904 = vshll.u32 %v3731, 16
        %v3906 = vrot.slane %v3904, 2
        %v3907 = vor.u32 %v3903, %v3906
        %v3908 = vsel %vm3739, %v3889, %v3907
        %v3910 = vshrl.u32 %v3732, 16
        %v3912 = vrot.slane %v3910, 1
        %v3913 = vshll.u32 %v3732, 16
        %v3915 = vrot.slane %v3913, 2
        %v3916 = vor.u32 %v3912, %v3915
        %v3917 = vsel %vm3739, %v3898, %v3916
        %v3919 = vshrl.u32 %v3733, 16
        %v3921 = vrot.slane %v3919, 1
        %v3922 = vshll.u32 %v3733, 16
        %v3924 = vrot.slane %v3922, 2
        %v3925 = vor.u32 %v3921, %v3924
        %v3926 = vsel %vm3739, %v3907, %v3925
        %v3928 = vshrl.u32 %v3734, 16
        %v3930 = vrot.slane %v3928, 1
        %v3931 = vshll.u32 %v3734, 16
        %v3933 = vrot.slane %v3931, 2
        %v3934 = vor.u32 %v3930, %v3933
        %v3935 = vsel %vm3739, %v3916, %v3934
        %v3937 = vshrl.u32 %v3735, 16
        %v3939 = vrot.slane %v3937, 1
        %v3940 = vshll.u32 %v3735, 16
        %v3942 = vrot.slane %v3940, 2
        %v3943 = vor.u32 %v3939, %v3942
        %v3944 = vsel %vm3739, %v3925, %v3943
        %v3946 = vshrl.u32 %v3736, 16
        %v3948 = vrot.slane %v3946, 1
        %v3949 = vshll.u32 %v3736, 16
        %v3951 = vrot.slane %v3949, 2
        %v3952 = vor.u32 %v3948, %v3951
        %v3953 = vsel %vm3739, %v3934, %v3952
        %v3955 = vshrl.u32 %v3737, 16
        %v3957 = vrot.slane %v3955, 1
        %v3958 = vshll.u32 %v3737, 16
        %v3960 = vrot.slane %v3958, 2
        %v3961 = vor.u32 %v3957, %v3960
        %v3962 = vsel %vm3739, %v3943, %v3961
        %v3964 = vshrl.u32 %v3738, 16
        %v3966 = vrot.slane %v3964, 1
        %v3967 = vshll.u32 %v3738, 16
        %v3969 = vrot.slane %v3967, 2
        %v3970 = vor.u32 %v3966, %v3969
        %v3971 = vsel %vm3739, %v3952, %v3970
        %v4030 = vunpack.c.l.b16 %v3606
        %v4031 = vunpack.c.h.b16 %v3606
        %v4032 = vunpack.c.l.b16 %v3607
        %v4033 = vunpack.c.h.b16 %v3607
        %v4034 = vunpack.c.l.b16 %v3608
        %v4035 = vunpack.c.h.b16 %v3608
        %v4036 = vunpack.c.l.b16 %v3609
        %v4037 = vunpack.c.h.b16 %v3609
        %v4038 = vunpack.c.l.b16 %v3610
        %v4039 = vunpack.c.h.b16 %v3610
        %v4040 = vunpack.c.l.b16 %v3611
        %v4041 = vunpack.c.h.b16 %v3611
        %v4042 = vunpack.c.l.b16 %v3612
        %v4043 = vunpack.c.h.b16 %v3612
        %v4044 = vunpack.c.l.b16 %v3613
        %v4045 = vunpack.c.h.b16 %v3613
        %v4046 = vunpack.c.l.b16 %v3614
        %v4047 = vunpack.c.h.b16 %v3614
        %v4048 = vunpack.c.l.b16 %v3615
        %v4049 = vunpack.c.h.b16 %v3615
        %v4050 = vunpack.c.l.b16 %v3616
        %v4051 = vunpack.c.h.b16 %v3616
        %v4052 = vunpack.c.l.b16 %v3617
        %v4053 = vunpack.c.h.b16 %v3617
        %v4054 = vunpack.c.l.b16 %v3618
        %v4055 = vunpack.c.h.b16 %v3618
        %v4056 = vunpack.c.l.b16 %v3619
        %v4057 = vunpack.c.h.b16 %v3619
        %v4058 = vunpack.c.l.b16 %v3620
        %v4059 = vunpack.c.h.b16 %v3620
        %v4060 = vunpack.c.l.b16 %v3621
        %v4061 = vunpack.c.h.b16 %v3621
        %v4062 = vunpack.c.l.b16 %v3622
        %v4063 = vunpack.c.h.b16 %v3622
        %v4064 = vunpack.c.l.b16 %v3623
        %v4065 = vunpack.c.h.b16 %v3623
        %v4066 = vunpack.c.l.b16 %v3624
        %v4067 = vunpack.c.h.b16 %v3624
        %v4068 = vunpack.c.l.b16 %v3625
        %v4069 = vunpack.c.h.b16 %v3625
        %v4070 = vunpack.c.l.b16 %v3626
        %v4071 = vunpack.c.h.b16 %v3626
        %v4072 = vunpack.c.l.b16 %v3627
        %v4073 = vunpack.c.h.b16 %v3627
        %v4074 = vunpack.c.l.b16 %v3628
        %v4075 = vunpack.c.h.b16 %v3628
        %v4076 = vunpack.c.l.b16 %v3629
        %v4077 = vunpack.c.h.b16 %v3629
        %v4078 = vunpack.c.l.b16 %v3630
        %v4079 = vunpack.c.h.b16 %v3630
        %v4080 = vunpack.c.l.b16 %v3631
        %v4081 = vunpack.c.h.b16 %v3631
        %v4082 = vunpack.c.l.b16 %v3632
        %v4083 = vunpack.c.h.b16 %v3632
        %v4084 = vunpack.c.l.b16 %v3633
        %v4085 = vunpack.c.h.b16 %v3633
        %v4086 = vunpack.c.l.b16 %v3634
        %v4087 = vunpack.c.h.b16 %v3634
        %v4088 = vunpack.c.l.b16 %v3635
        %v4089 = vunpack.c.h.b16 %v3635
        %v4090 = vunpack.c.l.b16 %v3636
        %v4091 = vunpack.c.h.b16 %v3636
        %v4092 = vunpack.c.l.b16 %v3637
        %v4093 = vunpack.c.h.b16 %v3637
        %v4094 = vpack.c.b16 %v4032, %v4030
        %v4095 = vpack.c.b16 %v4033, %v4031
        %v4096 = vpack.c.b16 %v4036, %v4034
        %v4097 = vpack.c.b16 %v4037, %v4035
        %v4098 = vpack.c.b16 %v4040, %v4038
        %v4099 = vpack.c.b16 %v4041, %v4039
        %v4100 = vpack.c.b16 %v4044, %v4042
        %v4101 = vpack.c.b16 %v4045, %v4043
        %v4102 = vpack.c.b16 %v4048, %v4046
        %v4103 = vpack.c.b16 %v4049, %v4047
        %v4104 = vpack.c.b16 %v4052, %v4050
        %v4105 = vpack.c.b16 %v4053, %v4051
        %v4106 = vpack.c.b16 %v4056, %v4054
        %v4107 = vpack.c.b16 %v4057, %v4055
        %v4108 = vpack.c.b16 %v4060, %v4058
        %v4109 = vpack.c.b16 %v4061, %v4059
        %v4110 = vpack.c.b16 %v4064, %v4062
        %v4111 = vpack.c.b16 %v4065, %v4063
        %v4112 = vpack.c.b16 %v4068, %v4066
        %v4113 = vpack.c.b16 %v4069, %v4067
        %v4114 = vpack.c.b16 %v4072, %v4070
        %v4115 = vpack.c.b16 %v4073, %v4071
        %v4116 = vpack.c.b16 %v4076, %v4074
        %v4117 = vpack.c.b16 %v4077, %v4075
        %v4118 = vpack.c.b16 %v4080, %v4078
        %v4119 = vpack.c.b16 %v4081, %v4079
        %v4120 = vpack.c.b16 %v4084, %v4082
        %v4121 = vpack.c.b16 %v4085, %v4083
        %v4122 = vpack.c.b16 %v4088, %v4086
        %v4123 = vpack.c.b16 %v4089, %v4087
        %v4124 = vpack.c.b16 %v4092, %v4090
        %v4125 = vpack.c.b16 %v4093, %v4091
        %4158 = vmatpush.bf16.msra.mxu0 %v4108
        %4159 = vmatpush.bf16.msra.mxu0 %v4106
        %4160 = vmatpush.bf16.msra.mxu0 %v4104
        %4161 = vmatpush.bf16.msra.mxu0 %v4102
        %4162 = vmatpush.bf16.msra.mxu0 %v4100
        %4163 = vmatpush.bf16.msra.mxu0 %v4098
        %4164 = vmatpush.bf16.msra.mxu0 %v4096
        %4165 = vmatpush.bf16.msra.mxu0 %v4094
        %4166 = vmatmul.bf16.gmra.mxu0 %v3756
        %v4167 = vpop.f32.mrf.mxu0
        %v4168 = vadd.f32 0.0, %v4167
        %v4169 = vpop.f32.mrf.mxu0
        %v4170 = vadd.f32 0.0, %v4169
        %4171 = vmatmul.bf16.gmra.mxu0 %v3782
        %v4172 = vpop.f32.mrf.mxu0
        %v4173 = vadd.f32 0.0, %v4172
        %v4174 = vpop.f32.mrf.mxu0
        %v4175 = vadd.f32 0.0, %v4174
        %4176 = vmatmul.bf16.gmra.mxu0 %v3800
        %v4177 = vpop.f32.mrf.mxu0
        %v4178 = vadd.f32 0.0, %v4177
        %v4179 = vpop.f32.mrf.mxu0
        %v4180 = vadd.f32 0.0, %v4179
        %4181 = vmatmul.bf16.gmra.mxu0 %v3818
        %v4182 = vpop.f32.mrf.mxu0
        %v4183 = vadd.f32 0.0, %v4182
        %v4184 = vpop.f32.mrf.mxu0
        %v4185 = vadd.f32 0.0, %v4184
        %4186 = vmatmul.bf16.gmra.mxu0 %v3836
        %v4187 = vpop.f32.mrf.mxu0
        %v4188 = vadd.f32 0.0, %v4187
        %v4189 = vpop.f32.mrf.mxu0
        %v4190 = vadd.f32 0.0, %v4189
        %4191 = vmatmul.bf16.gmra.mxu0 %v3854
        %v4192 = vpop.f32.mrf.mxu0
        %v4193 = vadd.f32 0.0, %v4192
        %v4194 = vpop.f32.mrf.mxu0
        %v4195 = vadd.f32 0.0, %v4194
        %4196 = vmatmul.bf16.gmra.mxu0 %v3872
        %v4197 = vpop.f32.mrf.mxu0
        %v4198 = vadd.f32 0.0, %v4197
        %v4199 = vpop.f32.mrf.mxu0
        %v4200 = vadd.f32 0.0, %v4199
        %4201 = vmatmul.bf16.gmra.mxu0 %v3890
        %v4202 = vpop.f32.mrf.mxu0
        %v4203 = vadd.f32 0.0, %v4202
        %v4204 = vpop.f32.mrf.mxu0
        %v4205 = vadd.f32 0.0, %v4204
        %4206 = vmatmul.bf16.gmra.mxu0 %v3908
        %v4207 = vpop.f32.mrf.mxu0
        %v4208 = vadd.f32 0.0, %v4207
        %v4209 = vpop.f32.mrf.mxu0
        %v4210 = vadd.f32 0.0, %v4209
        %4211 = vmatmul.bf16.gmra.mxu0 %v3926
        %v4212 = vpop.f32.mrf.mxu0
        %v4213 = vadd.f32 0.0, %v4212
        %v4214 = vpop.f32.mrf.mxu0
        %v4215 = vadd.f32 0.0, %v4214
        %4216 = vmatmul.bf16.gmra.mxu0 %v3944
        %v4217 = vpop.f32.mrf.mxu0
        %v4218 = vadd.f32 0.0, %v4217
        %v4219 = vpop.f32.mrf.mxu0
        %v4220 = vadd.f32 0.0, %v4219
        %4221 = vmatmul.bf16.gmra.mxu0 %v3962
        %v4222 = vpop.f32.mrf.mxu0
        %v4223 = vadd.f32 0.0, %v4222
        %v4224 = vpop.f32.mrf.mxu0
        %v4225 = vadd.f32 0.0, %v4224
        %4226 = vmatmul.bf16.gmra.mxu0 %v3961
        %v4227 = vpop.f32.mrf.mxu0
        %v4228 = vadd.f32 0.0, %v4227
        %v4229 = vpop.f32.mrf.mxu0
        %4230 = vdwg.mxu0
        %4231 = vmatpush.bf16.msra.mxu0 %v4124
        %4232 = vmatpush.bf16.msra.mxu0 %v4122
        %4233 = vmatpush.bf16.msra.mxu0 %v4120
        %4234 = vmatpush.bf16.msra.mxu0 %v4118
        %4235 = vmatpush.bf16.msra.mxu0 %v4116
        %4236 = vmatpush.bf16.msra.mxu0 %v4114
        %4237 = vmatpush.bf16.msra.mxu0 %v4112
        %4238 = vmatpush.bf16.msra.mxu0 %v4110
        %4239 = vmatmul.bf16.gmra.mxu0 %v3773
        %v4240 = vpop.f32.mrf.mxu0
        %v4241 = vadd.f32 %v4168, %v4240
        %v4242 = vpop.f32.mrf.mxu0
        %v4243 = vadd.f32 %v4170, %v4242
        %4244 = vmatmul.bf16.gmra.mxu0 %v3791
        %v4245 = vpop.f32.mrf.mxu0
        %v4246 = vadd.f32 %v4173, %v4245
        %v4247 = vpop.f32.mrf.mxu0
        %v4248 = vadd.f32 %v4175, %v4247
        %4249 = vmatmul.bf16.gmra.mxu0 %v3809
        %v4250 = vpop.f32.mrf.mxu0
        %v4251 = vadd.f32 %v4178, %v4250
        %v4252 = vpop.f32.mrf.mxu0
        %v4253 = vadd.f32 %v4180, %v4252
        %4254 = vmatmul.bf16.gmra.mxu0 %v3827
        %v4255 = vpop.f32.mrf.mxu0
        %v4256 = vadd.f32 %v4183, %v4255
        %v4257 = vpop.f32.mrf.mxu0
        %v4258 = vadd.f32 %v4185, %v4257
        %4259 = vmatmul.bf16.gmra.mxu0 %v3845
        %v4260 = vpop.f32.mrf.mxu0
        %v4261 = vadd.f32 %v4188, %v4260
        %v4262 = vpop.f32.mrf.mxu0
        %v4263 = vadd.f32 %v4190, %v4262
        %4264 = vmatmul.bf16.gmra.mxu0 %v3863
        %v4265 = vpop.f32.mrf.mxu0
        %v4266 = vadd.f32 %v4193, %v4265
        %v4267 = vpop.f32.mrf.mxu0
        %v4268 = vadd.f32 %v4195, %v4267
        %4269 = vmatmul.bf16.gmra.mxu0 %v3881
        %v4270 = vpop.f32.mrf.mxu0
        %v4271 = vadd.f32 %v4198, %v4270
        %v4272 = vpop.f32.mrf.mxu0
        %v4273 = vadd.f32 %v4200, %v4272
        %4274 = vmatmul.bf16.gmra.mxu0 %v3899
        %v4275 = vpop.f32.mrf.mxu0
        %v4276 = vadd.f32 %v4203, %v4275
        %v4277 = vpop.f32.mrf.mxu0
        %v4278 = vadd.f32 %v4205, %v4277
        %4279 = vmatmul.bf16.gmra.mxu0 %v3917
        %v4280 = vpop.f32.mrf.mxu0
        %v4281 = vadd.f32 %v4208, %v4280
        %v4282 = vpop.f32.mrf.mxu0
        %v4283 = vadd.f32 %v4210, %v4282
        %4284 = vmatmul.bf16.gmra.mxu0 %v3935
        %v4285 = vpop.f32.mrf.mxu0
        %v4286 = vadd.f32 %v4213, %v4285
        %v4287 = vpop.f32.mrf.mxu0
        %v4288 = vadd.f32 %v4215, %v4287
        %4289 = vmatmul.bf16.gmra.mxu0 %v3953
        %v4290 = vpop.f32.mrf.mxu0
        %v4291 = vadd.f32 %v4218, %v4290
        %v4292 = vpop.f32.mrf.mxu0
        %v4293 = vadd.f32 %v4220, %v4292
        %4294 = vmatmul.bf16.gmra.mxu0 %v3971
        %v4295 = vpop.f32.mrf.mxu0
        %v4296 = vadd.f32 %v4223, %v4295
        %v4297 = vpop.f32.mrf.mxu0
        %v4298 = vadd.f32 %v4225, %v4297
        %4299 = vmatmul.bf16.gmra.mxu0 %v3970
        %v4300 = vpop.f32.mrf.mxu0
        %v4301 = vadd.f32 %v4228, %v4300
        %v4302 = vpop.f32.mrf.mxu0
        %4303 = vdwg.mxu0
        %4304 = vmatpush.bf16.msra.mxu0 %v4109
        %4305 = vmatpush.bf16.msra.mxu0 %v4107
        %4306 = vmatpush.bf16.msra.mxu0 %v4105
        %4307 = vmatpush.bf16.msra.mxu0 %v4103
        %4308 = vmatpush.bf16.msra.mxu0 %v4101
        %4309 = vmatpush.bf16.msra.mxu0 %v4099
        %4310 = vmatpush.bf16.msra.mxu0 %v4097
        %4311 = vmatpush.bf16.msra.mxu0 %v4095
        %4312 = vmatmul.bf16.gmra.mxu0 %v3756
        %v4313 = vpop.f32.mrf.mxu0
        %v4314 = vadd.f32 0.0, %v4313
        %v4315 = vpop.f32.mrf.mxu0
        %v4316 = vadd.f32 0.0, %v4315
        %4317 = vmatmul.bf16.gmra.mxu0 %v3782
        %v4318 = vpop.f32.mrf.mxu0
        %v4319 = vadd.f32 0.0, %v4318
        %v4320 = vpop.f32.mrf.mxu0
        %v4321 = vadd.f32 0.0, %v4320
        %4322 = vmatmul.bf16.gmra.mxu0 %v3800
        %v4323 = vpop.f32.mrf.mxu0
        %v4324 = vadd.f32 0.0, %v4323
        %v4325 = vpop.f32.mrf.mxu0
        %v4326 = vadd.f32 0.0, %v4325
        %4327 = vmatmul.bf16.gmra.mxu0 %v3818
        %v4328 = vpop.f32.mrf.mxu0
        %v4329 = vadd.f32 0.0, %v4328
        %v4330 = vpop.f32.mrf.mxu0
        %v4331 = vadd.f32 0.0, %v4330
        %4332 = vmatmul.bf16.gmra.mxu0 %v3836
        %v4333 = vpop.f32.mrf.mxu0
        %v4334 = vadd.f32 0.0, %v4333
        %v4335 = vpop.f32.mrf.mxu0
        %v4336 = vadd.f32 0.0, %v4335
        %4337 = vmatmul.bf16.gmra.mxu0 %v3854
        %v4338 = vpop.f32.mrf.mxu0
        %v4339 = vadd.f32 0.0, %v4338
        %v4340 = vpop.f32.mrf.mxu0
        %v4341 = vadd.f32 0.0, %v4340
        %4342 = vmatmul.bf16.gmra.mxu0 %v3872
        %v4343 = vpop.f32.mrf.mxu0
        %v4344 = vadd.f32 0.0, %v4343
        %v4345 = vpop.f32.mrf.mxu0
        %v4346 = vadd.f32 0.0, %v4345
        %4347 = vmatmul.bf16.gmra.mxu0 %v3890
        %v4348 = vpop.f32.mrf.mxu0
        %v4349 = vadd.f32 0.0, %v4348
        %v4350 = vpop.f32.mrf.mxu0
        %v4351 = vadd.f32 0.0, %v4350
        %4352 = vmatmul.bf16.gmra.mxu0 %v3908
        %v4353 = vpop.f32.mrf.mxu0
        %v4354 = vadd.f32 0.0, %v4353
        %v4355 = vpop.f32.mrf.mxu0
        %v4356 = vadd.f32 0.0, %v4355
        %4357 = vmatmul.bf16.gmra.mxu0 %v3926
        %v4358 = vpop.f32.mrf.mxu0
        %v4359 = vadd.f32 0.0, %v4358
        %v4360 = vpop.f32.mrf.mxu0
        %v4361 = vadd.f32 0.0, %v4360
        %4362 = vmatmul.bf16.gmra.mxu0 %v3944
        %v4363 = vpop.f32.mrf.mxu0
        %v4364 = vadd.f32 0.0, %v4363
        %v4365 = vpop.f32.mrf.mxu0
        %v4366 = vadd.f32 0.0, %v4365
        %4367 = vmatmul.bf16.gmra.mxu0 %v3962
        %v4368 = vpop.f32.mrf.mxu0
        %v4369 = vadd.f32 0.0, %v4368
        %v4370 = vpop.f32.mrf.mxu0
        %v4371 = vadd.f32 0.0, %v4370
        %4372 = vmatmul.bf16.gmra.mxu0 %v3961
        %v4373 = vpop.f32.mrf.mxu0
        %v4374 = vadd.f32 0.0, %v4373
        %v4375 = vpop.f32.mrf.mxu0
        %4376 = vdwg.mxu0
        %4377 = vmatpush.bf16.msra.mxu0 %v4125
        %4378 = vmatpush.bf16.msra.mxu0 %v4123
        %4379 = vmatpush.bf16.msra.mxu0 %v4121
        %4380 = vmatpush.bf16.msra.mxu0 %v4119
        %4381 = vmatpush.bf16.msra.mxu0 %v4117
        %4382 = vmatpush.bf16.msra.mxu0 %v4115
        %4383 = vmatpush.bf16.msra.mxu0 %v4113
        %4384 = vmatpush.bf16.msra.mxu0 %v4111
        %4385 = vmatmul.bf16.gmra.mxu0 %v3773
        %v4386 = vpop.f32.mrf.mxu0
        %v4387 = vadd.f32 %v4314, %v4386
        %v4388 = vpop.f32.mrf.mxu0
        %v4389 = vadd.f32 %v4316, %v4388
        %4390 = vmatmul.bf16.gmra.mxu0 %v3791
        %v4391 = vpop.f32.mrf.mxu0
        %v4392 = vadd.f32 %v4319, %v4391
        %v4393 = vpop.f32.mrf.mxu0
        %v4394 = vadd.f32 %v4321, %v4393
        %4395 = vmatmul.bf16.gmra.mxu0 %v3809
        %v4396 = vpop.f32.mrf.mxu0
        %v4397 = vadd.f32 %v4324, %v4396
        %v4398 = vpop.f32.mrf.mxu0
        %v4399 = vadd.f32 %v4326, %v4398
        %4400 = vmatmul.bf16.gmra.mxu0 %v3827
        %v4401 = vpop.f32.mrf.mxu0
        %v4402 = vadd.f32 %v4329, %v4401
        %v4403 = vpop.f32.mrf.mxu0
        %v4404 = vadd.f32 %v4331, %v4403
        %4405 = vmatmul.bf16.gmra.mxu0 %v3845
        %v4406 = vpop.f32.mrf.mxu0
        %v4407 = vadd.f32 %v4334, %v4406
        %v4408 = vpop.f32.mrf.mxu0
        %v4409 = vadd.f32 %v4336, %v4408
        %4410 = vmatmul.bf16.gmra.mxu0 %v3863
        %v4411 = vpop.f32.mrf.mxu0
        %v4412 = vadd.f32 %v4339, %v4411
        %v4413 = vpop.f32.mrf.mxu0
        %v4414 = vadd.f32 %v4341, %v4413
        %4415 = vmatmul.bf16.gmra.mxu0 %v3881
        %v4416 = vpop.f32.mrf.mxu0
        %v4417 = vadd.f32 %v4344, %v4416
        %v4418 = vpop.f32.mrf.mxu0
        %v4419 = vadd.f32 %v4346, %v4418
        %4420 = vmatmul.bf16.gmra.mxu0 %v3899
        %v4421 = vpop.f32.mrf.mxu0
        %v4422 = vadd.f32 %v4349, %v4421
        %v4423 = vpop.f32.mrf.mxu0
        %v4424 = vadd.f32 %v4351, %v4423
        %4425 = vmatmul.bf16.gmra.mxu0 %v3917
        %v4426 = vpop.f32.mrf.mxu0
        %v4427 = vadd.f32 %v4354, %v4426
        %v4428 = vpop.f32.mrf.mxu0
        %v4429 = vadd.f32 %v4356, %v4428
        %4430 = vmatmul.bf16.gmra.mxu0 %v3935
        %v4431 = vpop.f32.mrf.mxu0
        %v4432 = vadd.f32 %v4359, %v4431
        %v4433 = vpop.f32.mrf.mxu0
        %v4434 = vadd.f32 %v4361, %v4433
        %4435 = vmatmul.bf16.gmra.mxu0 %v3953
        %v4436 = vpop.f32.mrf.mxu0
        %v4437 = vadd.f32 %v4364, %v4436
        %v4438 = vpop.f32.mrf.mxu0
        %v4439 = vadd.f32 %v4366, %v4438
        %4440 = vmatmul.bf16.gmra.mxu0 %v3971
        %v4441 = vpop.f32.mrf.mxu0
        %v4442 = vadd.f32 %v4369, %v4441
        %v4443 = vpop.f32.mrf.mxu0
        %v4444 = vadd.f32 %v4371, %v4443
        %4445 = vmatmul.bf16.gmra.mxu0 %v3970
        %v4446 = vpop.f32.mrf.mxu0
        %v4447 = vadd.f32 %v4374, %v4446
        %v4448 = vpop.f32.mrf.mxu0
        %4449 = vdwg.mxu0
        %v4450 = vld [vmem:[#allocation3] sm:$0xff]
        %v4451 = vld [vmem:[#allocation3 + $0x8] sm:$0xff]
        %v4452 = vld [vmem:[#allocation3 + $0x10] sm:$0xff]
        %v4453 = vld [vmem:[#allocation3 + $0x18] sm:$0xff]
        %v4454 = vld [vmem:[#allocation3 + $0x20] sm:$0xff]
        %v4455 = vld [vmem:[#allocation3 + $0x28] sm:$0xff]
        %v4456 = vld [vmem:[#allocation3 + $0x30] sm:$0xff]
        %v4457 = vld [vmem:[#allocation3 + $0x38] sm:$0xff]
        %v4458 = vld [vmem:[#allocation3 + $0x40] sm:$0xff]
        %v4459 = vld [vmem:[#allocation3 + $0x48] sm:$0xff]
        %v4460 = vld [vmem:[#allocation3 + $0x50] sm:$0xff]
        %v4461 = vld [vmem:[#allocation3 + $0x58] sm:$0xff]
        %v4462 = vld [vmem:[#allocation3 + $0x60] sm:$0xff]
        %v4463 = vld [vmem:[#allocation3 + $0x68] sm:$0xff]
        %v4464 = vld [vmem:[#allocation3 + $0x70] sm:$0xff]
        %v4465 = vld [vmem:[#allocation3 + $0x78] sm:$0xff]
        %v4466 = vld [vmem:[#allocation3 + $0x80] sm:$0xff]
        %v4467 = vld [vmem:[#allocation3 + $0x88] sm:$0xff]
        %v4468 = vld [vmem:[#allocation3 + $0x90] sm:$0xff]
        %v4469 = vld [vmem:[#allocation3 + $0x98] sm:$0xff]
        %v4470 = vld [vmem:[#allocation3 + $0xa0] sm:$0xff]
        %v4471 = vld [vmem:[#allocation3 + $0xa8] sm:$0xff]
        %v4472 = vld [vmem:[#allocation3 + $0xb0] sm:$0xff]
        %v4473 = vld [vmem:[#allocation3 + $0xb8] sm:$0xff]
        %v4474 = vld [vmem:[#allocation3 + $0xc0] sm:$0xff]
        %v4475 = vld [vmem:[#allocation3 + $0xc8] sm:$0xff]
        %v4476 = vld [vmem:[#allocation3 + $0xd0] sm:$0xff]
        %v4477 = vld [vmem:[#allocation3 + $0xd8] sm:$0xff]
        %v4478 = vld [vmem:[#allocation3 + $0xe0] sm:$0xff]
        %v4479 = vld [vmem:[#allocation3 + $0xe8] sm:$0xff]
        %v4480 = vld [vmem:[#allocation3 + $0xf0] sm:$0xff]
        %v4481 = vld [vmem:[#allocation3 + $0xf8] sm:$0xff]
        %v4482 = vld [vmem:[#allocation3 + $0x100] sm:$0xff]
        %v4483 = vld [vmem:[#allocation3 + $0x108] sm:$0xff]
        %v4484 = vld [vmem:[#allocation3 + $0x110] sm:$0xff]
        %v4485 = vld [vmem:[#allocation3 + $0x118] sm:$0xff]
        %v4486 = vld [vmem:[#allocation3 + $0x120] sm:$0xff]
        %v4487 = vld [vmem:[#allocation3 + $0x128] sm:$0xff]
        %v4488 = vld [vmem:[#allocation3 + $0x130] sm:$0xff]
        %v4489 = vld [vmem:[#allocation3 + $0x138] sm:$0xff]
        %v4490 = vld [vmem:[#allocation3 + $0x140] sm:$0xff]
        %v4491 = vld [vmem:[#allocation3 + $0x148] sm:$0xff]
        %v4492 = vld [vmem:[#allocation3 + $0x150] sm:$0xff]
        %v4493 = vld [vmem:[#allocation3 + $0x158] sm:$0xff]
        %v4494 = vld [vmem:[#allocation3 + $0x160] sm:$0xff]
        %v4495 = vld [vmem:[#allocation3 + $0x168] sm:$0xff]
        %v4496 = vld [vmem:[#allocation3 + $0x170] sm:$0xff]
        %v4497 = vld [vmem:[#allocation3 + $0x178] sm:$0xff]
        %v4498 = vld [vmem:[#allocation3 + $0x180] sm:$0xf]
        %v4499 = vld [vmem:[#allocation3 + $0x188] sm:$0xf]
        %v4500 = vadd.f32 %v4450, %v4241
        %v4501 = vadd.f32 %v4451, %v4387
        %v4502 = vadd.f32 %v4452, %v4243
        %v4503 = vadd.f32 %v4453, %v4389
        %v4504 = vadd.f32 %v4454, %v4246
        %v4505 = vadd.f32 %v4455, %v4392
        %v4506 = vadd.f32 %v4456, %v4248
        %v4507 = vadd.f32 %v4457, %v4394
        %v4508 = vadd.f32 %v4458, %v4251
        %v4509 = vadd.f32 %v4459, %v4397
        %v4510 = vadd.f32 %v4460, %v4253
        %v4511 = vadd.f32 %v4461, %v4399
        %v4512 = vadd.f32 %v4462, %v4256
        %v4513 = vadd.f32 %v4463, %v4402
        %v4514 = vadd.f32 %v4464, %v4258
        %v4515 = vadd.f32 %v4465, %v4404
        %v4516 = vadd.f32 %v4466, %v4261
        %v4517 = vadd.f32 %v4467, %v4407
        %v4518 = vadd.f32 %v4468, %v4263
        %v4519 = vadd.f32 %v4469, %v4409
        %v4520 = vadd.f32 %v4470, %v4266
        %v4521 = vadd.f32 %v4471, %v4412
        %v4522 = vadd.f32 %v4472, %v4268
        %v4523 = vadd.f32 %v4473, %v4414
        %v4524 = vadd.f32 %v4474, %v4271
        %v4525 = vadd.f32 %v4475, %v4417
        %v4526 = vadd.f32 %v4476, %v4273
        %v4527 = vadd.f32 %v4477, %v4419
        %v4528 = vadd.f32 %v4478, %v4276
        %v4529 = vadd.f32 %v4479, %v4422
        %v4530 = vadd.f32 %v4480, %v4278
        %v4531 = vadd.f32 %v4481, %v4424
        %v4532 = vadd.f32 %v4482, %v4281
        %v4533 = vadd.f32 %v4483, %v4427
        %v4534 = vadd.f32 %v4484, %v4283
        %v4535 = vadd.f32 %v4485, %v4429
        %v4536 = vadd.f32 %v4486, %v4286
        %v4537 = vadd.f32 %v4487, %v4432
        %v4538 = vadd.f32 %v4488, %v4288
        %v4539 = vadd.f32 %v4489, %v4434
        %v4540 = vadd.f32 %v4490, %v4291
        %v4541 = vadd.f32 %v4491, %v4437
        %v4542 = vadd.f32 %v4492, %v4293
        %v4543 = vadd.f32 %v4493, %v4439
        %v4544 = vadd.f32 %v4494, %v4296
        %v4545 = vadd.f32 %v4495, %v4442
        %v4546 = vadd.f32 %v4496, %v4298
        %v4547 = vadd.f32 %v4497, %v4444
        %v4548 = vadd.f32 %v4498, %v4301
        %v4549 = vadd.f32 %v4499, %v4447
        %4550 = vst [vmem:[#allocation3] sm:$0xff] %v4500
        %4551 = vst [vmem:[#allocation3 + $0x8] sm:$0xff] %v4501
        %4552 = vst [vmem:[#allocation3 + $0x10] sm:$0xff] %v4502
        %4553 = vst [vmem:[#allocation3 + $0x18] sm:$0xff] %v4503
        %4554 = vst [vmem:[#allocation3 + $0x20] sm:$0xff] %v4504
        %4555 = vst [vmem:[#allocation3 + $0x28] sm:$0xff] %v4505
        %4556 = vst [vmem:[#allocation3 + $0x30] sm:$0xff] %v4506
        %4557 = vst [vmem:[#allocation3 + $0x38] sm:$0xff] %v4507
        %4558 = vst [vmem:[#allocation3 + $0x40] sm:$0xff] %v4508
        %4559 = vst [vmem:[#allocation3 + $0x48] sm:$0xff] %v4509
        %4560 = vst [vmem:[#allocation3 + $0x50] sm:$0xff] %v4510
        %4561 = vst [vmem:[#allocation3 + $0x58] sm:$0xff] %v4511
        %4562 = vst [vmem:[#allocation3 + $0x60] sm:$0xff] %v4512
        %4563 = vst [vmem:[#allocation3 + $0x68] sm:$0xff] %v4513
        %4564 = vst [vmem:[#allocation3 + $0x70] sm:$0xff] %v4514
        %4565 = vst [vmem:[#allocation3 + $0x78] sm:$0xff] %v4515
        %4566 = vst [vmem:[#allocation3 + $0x80] sm:$0xff] %v4516
        %4567 = vst [vmem:[#allocation3 + $0x88] sm:$0xff] %v4517
        %4568 = vst [vmem:[#allocation3 + $0x90] sm:$0xff] %v4518
        %4569 = vst [vmem:[#allocation3 + $0x98] sm:$0xff] %v4519
        %4570 = vst [vmem:[#allocation3 + $0xa0] sm:$0xff] %v4520
        %4571 = vst [vmem:[#allocation3 + $0xa8] sm:$0xff] %v4521
        %4572 = vst [vmem:[#allocation3 + $0xb0] sm:$0xff] %v4522
        %4573 = vst [vmem:[#allocation3 + $0xb8] sm:$0xff] %v4523
        %4574 = vst [vmem:[#allocation3 + $0xc0] sm:$0xff] %v4524
        %4575 = vst [vmem:[#allocation3 + $0xc8] sm:$0xff] %v4525
        %4576 = vst [vmem:[#allocation3 + $0xd0] sm:$0xff] %v4526
        %4577 = vst [vmem:[#allocation3 + $0xd8] sm:$0xff] %v4527
        %4578 = vst [vmem:[#allocation3 + $0xe0] sm:$0xff] %v4528
        %4579 = vst [vmem:[#allocation3 + $0xe8] sm:$0xff] %v4529
        %4580 = vst [vmem:[#allocation3 + $0xf0] sm:$0xff] %v4530
        %4581 = vst [vmem:[#allocation3 + $0xf8] sm:$0xff] %v4531
        %4582 = vst [vmem:[#allocation3 + $0x100] sm:$0xff] %v4532
        %4583 = vst [vmem:[#allocation3 + $0x108] sm:$0xff] %v4533
        %4584 = vst [vmem:[#allocation3 + $0x110] sm:$0xff] %v4534
        %4585 = vst [vmem:[#allocation3 + $0x118] sm:$0xff] %v4535
        %4586 = vst [vmem:[#allocation3 + $0x120] sm:$0xff] %v4536
        %4587 = vst [vmem:[#allocation3 + $0x128] sm:$0xff] %v4537
        %4588 = vst [vmem:[#allocation3 + $0x130] sm:$0xff] %v4538
        %4589 = vst [vmem:[#allocation3 + $0x138] sm:$0xff] %v4539
        %4590 = vst [vmem:[#allocation3 + $0x140] sm:$0xff] %v4540
        %4591 = vst [vmem:[#allocation3 + $0x148] sm:$0xff] %v4541
        %4592 = vst [vmem:[#allocation3 + $0x150] sm:$0xff] %v4542
        %4593 = vst [vmem:[#allocation3 + $0x158] sm:$0xff] %v4543
        %4594 = vst [vmem:[#allocation3 + $0x160] sm:$0xff] %v4544
        %4595 = vst [vmem:[#allocation3 + $0x168] sm:$0xff] %v4545
        %4596 = vst [vmem:[#allocation3 + $0x170] sm:$0xff] %v4546
        %4597 = vst [vmem:[#allocation3 + $0x178] sm:$0xff] %v4547
        %4598 = vst [vmem:[#allocation3 + $0x180] sm:$0xf] %v4548
        %4599 = vst [vmem:[#allocation3 + $0x188] sm:$0xf] %v4549
        %v4600 = vld [vmem:[#allocation2 + $0x8] sm:$0x88]
        %v4601 = vld [vmem:[#allocation2 + $0x10] sm:$0xff]
        %v4602 = vld [vmem:[#allocation2 + $0x18] sm:$0xff]
        %v4603 = vld [vmem:[#allocation2 + $0x20] sm:$0xff]
        %v4604 = vld [vmem:[#allocation2 + $0x28] sm:$0xff]
        %v4605 = vld [vmem:[#allocation2 + $0x30] sm:$0xff]
        %v4606 = vld [vmem:[#allocation2 + $0x38] sm:$0xff]
        %v4607 = vld [vmem:[#allocation2 + $0x40] sm:$0xff]
        %v4608 = vld [vmem:[#allocation2 + $0x48] sm:$0xff]
        %v4609 = vld [vmem:[#allocation2 + $0x50] sm:$0xff]
        %v4610 = vld [vmem:[#allocation2 + $0x58] sm:$0xff]
        %v4611 = vld [vmem:[#allocation2 + $0x60] sm:$0xff]
        %v4612 = vld [vmem:[#allocation2 + $0x68] sm:$0xff]
        %v4613 = vld [vmem:[#allocation2 + $0x70] sm:$0xff]
        %v4614 = vld [vmem:[#allocation2 + $0x78] sm:$0xff]
        %v4615 = vld [vmem:[#allocation2 + $0x80] sm:$0xff]
        %v4616 = vld [vmem:[#allocation2 + $0x88] sm:$0xff]
        %v4617 = vld [vmem:[#allocation2 + $0x90] sm:$0xff]
        %v4618 = vld [vmem:[#allocation2 + $0x98] sm:$0xff]
        %v4619 = vld [vmem:[#allocation2 + $0xa0] sm:$0xff]
        %v4620 = vld [vmem:[#allocation2 + $0xa8] sm:$0xff]
        %v4621 = vld [vmem:[#allocation2 + $0xb0] sm:$0xff]
        %v4622 = vld [vmem:[#allocation2 + $0xb8] sm:$0xff]
        %v4623 = vld [vmem:[#allocation2 + $0xc0] sm:$0xff]
        %v4624 = vld [vmem:[#allocation2 + $0xc8] sm:$0xff]
        %v4625 = vld [vmem:[#allocation2 + $0xd0] sm:$0x33]
        %s4626 = scalar_lea.vmem [#allocation9], 768
        %v4627 = vld [vmem:[%s4626] sm:$0xff]
        %v4628 = vld [vmem:[%s4626 + $0x8] sm:$0xff]
        %v4629 = vld [vmem:[%s4626 + $0x10] sm:$0xff]
        %v4630 = vld [vmem:[%s4626 + $0x18] sm:$0xff]
        %v4631 = vld [vmem:[%s4626 + $0x20] sm:$0xff]
        %v4632 = vld [vmem:[%s4626 + $0x28] sm:$0xff]
        %v4633 = vld [vmem:[%s4626 + $0x30] sm:$0xff]
        %v4634 = vld [vmem:[%s4626 + $0x38] sm:$0xff]
        %v4635 = vld [vmem:[%s4626 + $0x40] sm:$0xff]
        %v4636 = vld [vmem:[%s4626 + $0x48] sm:$0xff]
        %v4637 = vld [vmem:[%s4626 + $0x50] sm:$0xff]
        %v4638 = vld [vmem:[%s4626 + $0x58] sm:$0xff]
        %v4639 = vld [vmem:[%s4626 + $0x60] sm:$0xff]
        %v4640 = vld [vmem:[%s4626 + $0x68] sm:$0xff]
        %v4641 = vld [vmem:[%s4626 + $0x70] sm:$0xff]
        %v4642 = vld [vmem:[%s4626 + $0x78] sm:$0xff]
        %v4643 = vld [vmem:[%s4626 + $0x80] sm:$0xff]
        %v4644 = vld [vmem:[%s4626 + $0x88] sm:$0xff]
        %v4645 = vld [vmem:[%s4626 + $0x90] sm:$0xff]
        %v4646 = vld [vmem:[%s4626 + $0x98] sm:$0xff]
        %v4647 = vld [vmem:[%s4626 + $0xa0] sm:$0xff]
        %v4648 = vld [vmem:[%s4626 + $0xa8] sm:$0xff]
        %v4649 = vld [vmem:[%s4626 + $0xb0] sm:$0xff]
        %v4650 = vld [vmem:[%s4626 + $0xb8] sm:$0xff]
        %v4651 = vld [vmem:[%s4626 + $0xc0] sm:$0xff]
        %v4652 = vld [vmem:[%s4626 + $0xc8] sm:$0xff]
        %v4653 = vld [vmem:[%s4626 + $0xd0] sm:$0xff]
        %v4654 = vld [vmem:[%s4626 + $0xd8] sm:$0xff]
        %v4655 = vld [vmem:[%s4626 + $0xe0] sm:$0xff]
        %v4656 = vld [vmem:[%s4626 + $0xe8] sm:$0xff]
        %v4657 = vld [vmem:[%s4626 + $0xf0] sm:$0xff]
        %v4658 = vld [vmem:[%s4626 + $0xf8] sm:$0xff]
        %v4685 = vunpack.c.l.b16 %v4600
        %v4686 = vunpack.c.h.b16 %v4600
        %v4687 = vunpack.c.l.b16 %v4601
        %v4688 = vunpack.c.h.b16 %v4601
        %v4689 = vunpack.c.l.b16 %v4602
        %v4690 = vunpack.c.h.b16 %v4602
        %v4691 = vunpack.c.l.b16 %v4603
        %v4692 = vunpack.c.h.b16 %v4603
        %v4693 = vunpack.c.l.b16 %v4604
        %v4694 = vunpack.c.h.b16 %v4604
        %v4695 = vunpack.c.l.b16 %v4605
        %v4696 = vunpack.c.h.b16 %v4605
        %v4697 = vunpack.c.l.b16 %v4606
        %v4698 = vunpack.c.h.b16 %v4606
        %v4699 = vunpack.c.l.b16 %v4607
        %v4700 = vunpack.c.h.b16 %v4607
        %v4701 = vunpack.c.l.b16 %v4608
        %v4702 = vunpack.c.h.b16 %v4608
        %v4703 = vunpack.c.l.b16 %v4609
        %v4704 = vunpack.c.h.b16 %v4609
        %v4705 = vunpack.c.l.b16 %v4610
        %v4706 = vunpack.c.h.b16 %v4610
        %v4707 = vunpack.c.l.b16 %v4611
        %v4708 = vunpack.c.h.b16 %v4611
        %v4709 = vunpack.c.l.b16 %v4612
        %v4710 = vunpack.c.h.b16 %v4612
        %v4711 = vunpack.c.l.b16 %v4613
        %v4712 = vunpack.c.h.b16 %v4613
        %v4713 = vunpack.c.l.b16 %v4614
        %v4714 = vunpack.c.h.b16 %v4614
        %v4715 = vunpack.c.l.b16 %v4615
        %v4716 = vunpack.c.h.b16 %v4615
        %v4717 = vunpack.c.l.b16 %v4616
        %v4718 = vunpack.c.h.b16 %v4616
        %v4719 = vunpack.c.l.b16 %v4617
        %v4720 = vunpack.c.h.b16 %v4617
        %v4721 = vunpack.c.l.b16 %v4618
        %v4722 = vunpack.c.h.b16 %v4618
        %v4723 = vunpack.c.l.b16 %v4619
        %v4724 = vunpack.c.h.b16 %v4619
        %v4725 = vunpack.c.l.b16 %v4620
        %v4726 = vunpack.c.h.b16 %v4620
        %v4727 = vunpack.c.l.b16 %v4621
        %v4728 = vunpack.c.h.b16 %v4621
        %v4729 = vunpack.c.l.b16 %v4622
        %v4730 = vunpack.c.h.b16 %v4622
        %v4731 = vunpack.c.l.b16 %v4623
        %v4732 = vunpack.c.h.b16 %v4623
        %v4733 = vunpack.c.l.b16 %v4624
        %v4734 = vunpack.c.h.b16 %v4624
        %v4735 = vunpack.c.l.b16 %v4625
        %v4736 = vunpack.c.h.b16 %v4625
        %v4737 = vpack.c.b16 %v4687, %v4685
        %v4738 = vpack.c.b16 %v4688, %v4686
        %v4739 = vpack.c.b16 %v4691, %v4689
        %v4740 = vpack.c.b16 %v4692, %v4690
        %v4741 = vpack.c.b16 %v4695, %v4693
        %v4742 = vpack.c.b16 %v4696, %v4694
        %v4743 = vpack.c.b16 %v4699, %v4697
        %v4744 = vpack.c.b16 %v4700, %v4698
        %v4745 = vpack.c.b16 %v4703, %v4701
        %v4746 = vpack.c.b16 %v4704, %v4702
        %v4747 = vpack.c.b16 %v4707, %v4705
        %v4748 = vpack.c.b16 %v4708, %v4706
        %v4749 = vpack.c.b16 %v4711, %v4709
        %v4750 = vpack.c.b16 %v4712, %v4710
        %v4751 = vpack.c.b16 %v4715, %v4713
        %v4752 = vpack.c.b16 %v4716, %v4714
        %v4753 = vpack.c.b16 %v4719, %v4717
        %v4754 = vpack.c.b16 %v4720, %v4718
        %v4755 = vpack.c.b16 %v4723, %v4721
        %v4756 = vpack.c.b16 %v4724, %v4722
        %v4757 = vpack.c.b16 %v4727, %v4725
        %v4758 = vpack.c.b16 %v4728, %v4726
        %v4759 = vpack.c.b16 %v4731, %v4729
        %v4760 = vpack.c.b16 %v4732, %v4730
        %v4761 = vpack.c.b16 %v4735, %v4733
        %v4762 = vpack.c.b16 %v4736, %v4734
        %vm4763 = vsmask.f32 4352
        %v4765 = vshrl.u32 %v4737, 16
        %v4767 = vrot.slane %v4765, 3
        %v4768 = vshll.u32 %v4737, 16
        %v4770 = vrot.slane %v4768, 4
        %v4771 = vor.u32 %v4767, %v4770
        %v4773 = vshrl.u32 %v4739, 16
        %v4775 = vrot.slane %v4773, 3
        %v4776 = vshll.u32 %v4739, 16
        %v4778 = vrot.slane %v4776, 4
        %v4779 = vor.u32 %v4775, %v4778
        %v4780 = vsel %vm4763, %v4771, %v4779
        %v4782 = vshrl.u32 %v4738, 16
        %v4784 = vrot.slane %v4782, 3
        %v4785 = vshll.u32 %v4738, 16
        %v4787 = vrot.slane %v4785, 4
        %v4788 = vor.u32 %v4784, %v4787
        %v4790 = vshrl.u32 %v4740, 16
        %v4792 = vrot.slane %v4790, 3
        %v4793 = vshll.u32 %v4740, 16
        %v4795 = vrot.slane %v4793, 4
        %v4796 = vor.u32 %v4792, %v4795
        %v4797 = vsel %vm4763, %v4788, %v4796
        %v4799 = vshrl.u32 %v4741, 16
        %v4801 = vrot.slane %v4799, 3
        %v4802 = vshll.u32 %v4741, 16
        %v4804 = vrot.slane %v4802, 4
        %v4805 = vor.u32 %v4801, %v4804
        %v4806 = vsel %vm4763, %v4779, %v4805
        %v4808 = vshrl.u32 %v4742, 16
        %v4810 = vrot.slane %v4808, 3
        %v4811 = vshll.u32 %v4742, 16
        %v4813 = vrot.slane %v4811, 4
        %v4814 = vor.u32 %v4810, %v4813
        %v4815 = vsel %vm4763, %v4796, %v4814
        %v4817 = vshrl.u32 %v4743, 16
        %v4819 = vrot.slane %v4817, 3
        %v4820 = vshll.u32 %v4743, 16
        %v4822 = vrot.slane %v4820, 4
        %v4823 = vor.u32 %v4819, %v4822
        %v4824 = vsel %vm4763, %v4805, %v4823
        %v4826 = vshrl.u32 %v4744, 16
        %v4828 = vrot.slane %v4826, 3
        %v4829 = vshll.u32 %v4744, 16
        %v4831 = vrot.slane %v4829, 4
        %v4832 = vor.u32 %v4828, %v4831
        %v4833 = vsel %vm4763, %v4814, %v4832
        %v4835 = vshrl.u32 %v4745, 16
        %v4837 = vrot.slane %v4835, 3
        %v4838 = vshll.u32 %v4745, 16
        %v4840 = vrot.slane %v4838, 4
        %v4841 = vor.u32 %v4837, %v4840
        %v4842 = vsel %vm4763, %v4823, %v4841
        %v4844 = vshrl.u32 %v4746, 16
        %v4846 = vrot.slane %v4844, 3
        %v4847 = vshll.u32 %v4746, 16
        %v4849 = vrot.slane %v4847, 4
        %v4850 = vor.u32 %v4846, %v4849
        %v4851 = vsel %vm4763, %v4832, %v4850
        %v4853 = vshrl.u32 %v4747, 16
        %v4855 = vrot.slane %v4853, 3
        %v4856 = vshll.u32 %v4747, 16
        %v4858 = vrot.slane %v4856, 4
        %v4859 = vor.u32 %v4855, %v4858
        %v4860 = vsel %vm4763, %v4841, %v4859
        %v4862 = vshrl.u32 %v4748, 16
        %v4864 = vrot.slane %v4862, 3
        %v4865 = vshll.u32 %v4748, 16
        %v4867 = vrot.slane %v4865, 4
        %v4868 = vor.u32 %v4864, %v4867
        %v4869 = vsel %vm4763, %v4850, %v4868
        %v4871 = vshrl.u32 %v4749, 16
        %v4873 = vrot.slane %v4871, 3
        %v4874 = vshll.u32 %v4749, 16
        %v4876 = vrot.slane %v4874, 4
        %v4877 = vor.u32 %v4873, %v4876
        %v4878 = vsel %vm4763, %v4859, %v4877
        %v4880 = vshrl.u32 %v4750, 16
        %v4882 = vrot.slane %v4880, 3
        %v4883 = vshll.u32 %v4750, 16
        %v4885 = vrot.slane %v4883, 4
        %v4886 = vor.u32 %v4882, %v4885
        %v4887 = vsel %vm4763, %v4868, %v4886
        %v4889 = vshrl.u32 %v4751, 16
        %v4891 = vrot.slane %v4889, 3
        %v4892 = vshll.u32 %v4751, 16
        %v4894 = vrot.slane %v4892, 4
        %v4895 = vor.u32 %v4891, %v4894
        %v4896 = vsel %vm4763, %v4877, %v4895
        %v4898 = vshrl.u32 %v4752, 16
        %v4900 = vrot.slane %v4898, 3
        %v4901 = vshll.u32 %v4752, 16
        %v4903 = vrot.slane %v4901, 4
        %v4904 = vor.u32 %v4900, %v4903
        %v4905 = vsel %vm4763, %v4886, %v4904
        %v4907 = vshrl.u32 %v4753, 16
        %v4909 = vrot.slane %v4907, 3
        %v4910 = vshll.u32 %v4753, 16
        %v4912 = vrot.slane %v4910, 4
        %v4913 = vor.u32 %v4909, %v4912
        %v4914 = vsel %vm4763, %v4895, %v4913
        %v4916 = vshrl.u32 %v4754, 16
        %v4918 = vrot.slane %v4916, 3
        %v4919 = vshll.u32 %v4754, 16
        %v4921 = vrot.slane %v4919, 4
        %v4922 = vor.u32 %v4918, %v4921
        %v4923 = vsel %vm4763, %v4904, %v4922
        %v4925 = vshrl.u32 %v4755, 16
        %v4927 = vrot.slane %v4925, 3
        %v4928 = vshll.u32 %v4755, 16
        %v4930 = vrot.slane %v4928, 4
        %v4931 = vor.u32 %v4927, %v4930
        %v4932 = vsel %vm4763, %v4913, %v4931
        %v4934 = vshrl.u32 %v4756, 16
        %v4936 = vrot.slane %v4934, 3
        %v4937 = vshll.u32 %v4756, 16
        %v4939 = vrot.slane %v4937, 4
        %v4940 = vor.u32 %v4936, %v4939
        %v4941 = vsel %vm4763, %v4922, %v4940
        %v4943 = vshrl.u32 %v4757, 16
        %v4945 = vrot.slane %v4943, 3
        %v4946 = vshll.u32 %v4757, 16
        %v4948 = vrot.slane %v4946, 4
        %v4949 = vor.u32 %v4945, %v4948
        %v4950 = vsel %vm4763, %v4931, %v4949
        %v4952 = vshrl.u32 %v4758, 16
        %v4954 = vrot.slane %v4952, 3
        %v4955 = vshll.u32 %v4758, 16
        %v4957 = vrot.slane %v4955, 4
        %v4958 = vor.u32 %v4954, %v4957
        %v4959 = vsel %vm4763, %v4940, %v4958
        %v4961 = vshrl.u32 %v4759, 16
        %v4963 = vrot.slane %v4961, 3
        %v4964 = vshll.u32 %v4759, 16
        %v4966 = vrot.slane %v4964, 4
        %v4967 = vor.u32 %v4963, %v4966
        %v4968 = vsel %vm4763, %v4949, %v4967
        %v4970 = vshrl.u32 %v4760, 16
        %v4972 = vrot.slane %v4970, 3
        %v4973 = vshll.u32 %v4760, 16
        %v4975 = vrot.slane %v4973, 4
        %v4976 = vor.u32 %v4972, %v4975
        %v4977 = vsel %vm4763, %v4958, %v4976
        %v4979 = vshrl.u32 %v4761, 16
        %v4981 = vrot.slane %v4979, 3
        %v4982 = vshll.u32 %v4761, 16
        %v4984 = vrot.slane %v4982, 4
        %v4985 = vor.u32 %v4981, %v4984
        %v4986 = vsel %vm4763, %v4967, %v4985
        %v4988 = vshrl.u32 %v4762, 16
        %v4990 = vrot.slane %v4988, 3
        %v4991 = vshll.u32 %v4762, 16
        %v4993 = vrot.slane %v4991, 4
        %v4994 = vor.u32 %v4990, %v4993
        %v4995 = vsel %vm4763, %v4976, %v4994
        %v5054 = vunpack.c.l.b16 %v4627
        %v5055 = vunpack.c.h.b16 %v4627
        %v5056 = vunpack.c.l.b16 %v4628
        %v5057 = vunpack.c.h.b16 %v4628
        %v5058 = vunpack.c.l.b16 %v4629
        %v5059 = vunpack.c.h.b16 %v4629
        %v5060 = vunpack.c.l.b16 %v4630
        %v5061 = vunpack.c.h.b16 %v4630
        %v5062 = vunpack.c.l.b16 %v4631
        %v5063 = vunpack.c.h.b16 %v4631
        %v5064 = vunpack.c.l.b16 %v4632
        %v5065 = vunpack.c.h.b16 %v4632
        %v5066 = vunpack.c.l.b16 %v4633
        %v5067 = vunpack.c.h.b16 %v4633
        %v5068 = vunpack.c.l.b16 %v4634
        %v5069 = vunpack.c.h.b16 %v4634
        %v5070 = vunpack.c.l.b16 %v4635
        %v5071 = vunpack.c.h.b16 %v4635
        %v5072 = vunpack.c.l.b16 %v4636
        %v5073 = vunpack.c.h.b16 %v4636
        %v5074 = vunpack.c.l.b16 %v4637
        %v5075 = vunpack.c.h.b16 %v4637
        %v5076 = vunpack.c.l.b16 %v4638
        %v5077 = vunpack.c.h.b16 %v4638
        %v5078 = vunpack.c.l.b16 %v4639
        %v5079 = vunpack.c.h.b16 %v4639
        %v5080 = vunpack.c.l.b16 %v4640
        %v5081 = vunpack.c.h.b16 %v4640
        %v5082 = vunpack.c.l.b16 %v4641
        %v5083 = vunpack.c.h.b16 %v4641
        %v5084 = vunpack.c.l.b16 %v4642
        %v5085 = vunpack.c.h.b16 %v4642
        %v5086 = vunpack.c.l.b16 %v4643
        %v5087 = vunpack.c.h.b16 %v4643
        %v5088 = vunpack.c.l.b16 %v4644
        %v5089 = vunpack.c.h.b16 %v4644
        %v5090 = vunpack.c.l.b16 %v4645
        %v5091 = vunpack.c.h.b16 %v4645
        %v5092 = vunpack.c.l.b16 %v4646
        %v5093 = vunpack.c.h.b16 %v4646
        %v5094 = vunpack.c.l.b16 %v4647
        %v5095 = vunpack.c.h.b16 %v4647
        %v5096 = vunpack.c.l.b16 %v4648
        %v5097 = vunpack.c.h.b16 %v4648
        %v5098 = vunpack.c.l.b16 %v4649
        %v5099 = vunpack.c.h.b16 %v4649
        %v5100 = vunpack.c.l.b16 %v4650
        %v5101 = vunpack.c.h.b16 %v4650
        %v5102 = vunpack.c.l.b16 %v4651
        %v5103 = vunpack.c.h.b16 %v4651
        %v5104 = vunpack.c.l.b16 %v4652
        %v5105 = vunpack.c.h.b16 %v4652
        %v5106 = vunpack.c.l.b16 %v4653
        %v5107 = vunpack.c.h.b16 %v4653
        %v5108 = vunpack.c.l.b16 %v4654
        %v5109 = vunpack.c.h.b16 %v4654
        %v5110 = vunpack.c.l.b16 %v4655
        %v5111 = vunpack.c.h.b16 %v4655
        %v5112 = vunpack.c.l.b16 %v4656
        %v5113 = vunpack.c.h.b16 %v4656
        %v5114 = vunpack.c.l.b16 %v4657
        %v5115 = vunpack.c.h.b16 %v4657
        %v5116 = vunpack.c.l.b16 %v4658
        %v5117 = vunpack.c.h.b16 %v4658
        %v5118 = vpack.c.b16 %v5056, %v5054
        %v5119 = vpack.c.b16 %v5057, %v5055
        %v5120 = vpack.c.b16 %v5060, %v5058
        %v5121 = vpack.c.b16 %v5061, %v5059
        %v5122 = vpack.c.b16 %v5064, %v5062
        %v5123 = vpack.c.b16 %v5065, %v5063
        %v5124 = vpack.c.b16 %v5068, %v5066
        %v5125 = vpack.c.b16 %v5069, %v5067
        %v5126 = vpack.c.b16 %v5072, %v5070
        %v5127 = vpack.c.b16 %v5073, %v5071
        %v5128 = vpack.c.b16 %v5076, %v5074
        %v5129 = vpack.c.b16 %v5077, %v5075
        %v5130 = vpack.c.b16 %v5080, %v5078
        %v5131 = vpack.c.b16 %v5081, %v5079
        %v5132 = vpack.c.b16 %v5084, %v5082
        %v5133 = vpack.c.b16 %v5085, %v5083
        %v5134 = vpack.c.b16 %v5088, %v5086
        %v5135 = vpack.c.b16 %v5089, %v5087
        %v5136 = vpack.c.b16 %v5092, %v5090
        %v5137 = vpack.c.b16 %v5093, %v5091
        %v5138 = vpack.c.b16 %v5096, %v5094
        %v5139 = vpack.c.b16 %v5097, %v5095
        %v5140 = vpack.c.b16 %v5100, %v5098
        %v5141 = vpack.c.b16 %v5101, %v5099
        %v5142 = vpack.c.b16 %v5104, %v5102
        %v5143 = vpack.c.b16 %v5105, %v5103
        %v5144 = vpack.c.b16 %v5108, %v5106
        %v5145 = vpack.c.b16 %v5109, %v5107
        %v5146 = vpack.c.b16 %v5112, %v5110
        %v5147 = vpack.c.b16 %v5113, %v5111
        %v5148 = vpack.c.b16 %v5116, %v5114
        %v5149 = vpack.c.b16 %v5117, %v5115
        %5182 = vmatpush.bf16.msra.mxu0 %v5132
        %5183 = vmatpush.bf16.msra.mxu0 %v5130
        %5184 = vmatpush.bf16.msra.mxu0 %v5128
        %5185 = vmatpush.bf16.msra.mxu0 %v5126
        %5186 = vmatpush.bf16.msra.mxu0 %v5124
        %5187 = vmatpush.bf16.msra.mxu0 %v5122
        %5188 = vmatpush.bf16.msra.mxu0 %v5120
        %5189 = vmatpush.bf16.msra.mxu0 %v5118
        %5190 = vmatmul.bf16.gmra.mxu0 %v4780
        %v5191 = vpop.f32.mrf.mxu0
        %v5192 = vadd.f32 0.0, %v5191
        %v5193 = vpop.f32.mrf.mxu0
        %v5194 = vadd.f32 0.0, %v5193
        %5195 = vmatmul.bf16.gmra.mxu0 %v4806
        %v5196 = vpop.f32.mrf.mxu0
        %v5197 = vadd.f32 0.0, %v5196
        %v5198 = vpop.f32.mrf.mxu0
        %v5199 = vadd.f32 0.0, %v5198
        %5200 = vmatmul.bf16.gmra.mxu0 %v4824
        %v5201 = vpop.f32.mrf.mxu0
        %v5202 = vadd.f32 0.0, %v5201
        %v5203 = vpop.f32.mrf.mxu0
        %v5204 = vadd.f32 0.0, %v5203
        %5205 = vmatmul.bf16.gmra.mxu0 %v4842
        %v5206 = vpop.f32.mrf.mxu0
        %v5207 = vadd.f32 0.0, %v5206
        %v5208 = vpop.f32.mrf.mxu0
        %v5209 = vadd.f32 0.0, %v5208
        %5210 = vmatmul.bf16.gmra.mxu0 %v4860
        %v5211 = vpop.f32.mrf.mxu0
        %v5212 = vadd.f32 0.0, %v5211
        %v5213 = vpop.f32.mrf.mxu0
        %v5214 = vadd.f32 0.0, %v5213
        %5215 = vmatmul.bf16.gmra.mxu0 %v4878
        %v5216 = vpop.f32.mrf.mxu0
        %v5217 = vadd.f32 0.0, %v5216
        %v5218 = vpop.f32.mrf.mxu0
        %v5219 = vadd.f32 0.0, %v5218
        %5220 = vmatmul.bf16.gmra.mxu0 %v4896
        %v5221 = vpop.f32.mrf.mxu0
        %v5222 = vadd.f32 0.0, %v5221
        %v5223 = vpop.f32.mrf.mxu0
        %v5224 = vadd.f32 0.0, %v5223
        %5225 = vmatmul.bf16.gmra.mxu0 %v4914
        %v5226 = vpop.f32.mrf.mxu0
        %v5227 = vadd.f32 0.0, %v5226
        %v5228 = vpop.f32.mrf.mxu0
        %v5229 = vadd.f32 0.0, %v5228
        %5230 = vmatmul.bf16.gmra.mxu0 %v4932
        %v5231 = vpop.f32.mrf.mxu0
        %v5232 = vadd.f32 0.0, %v5231
        %v5233 = vpop.f32.mrf.mxu0
        %v5234 = vadd.f32 0.0, %v5233
        %5235 = vmatmul.bf16.gmra.mxu0 %v4950
        %v5236 = vpop.f32.mrf.mxu0
        %v5237 = vadd.f32 0.0, %v5236
        %v5238 = vpop.f32.mrf.mxu0
        %v5239 = vadd.f32 0.0, %v5238
        %5240 = vmatmul.bf16.gmra.mxu0 %v4968
        %v5241 = vpop.f32.mrf.mxu0
        %v5242 = vadd.f32 0.0, %v5241
        %v5243 = vpop.f32.mrf.mxu0
        %v5244 = vadd.f32 0.0, %v5243
        %5245 = vmatmul.bf16.gmra.mxu0 %v4986
        %v5246 = vpop.f32.mrf.mxu0
        %v5247 = vadd.f32 0.0, %v5246
        %v5248 = vpop.f32.mrf.mxu0
        %v5249 = vadd.f32 0.0, %v5248
        %5250 = vmatmul.bf16.gmra.mxu0 %v4985
        %v5251 = vpop.f32.mrf.mxu0
        %v5252 = vadd.f32 0.0, %v5251
        %v5253 = vpop.f32.mrf.mxu0
        %5254 = vdwg.mxu0
        %5255 = vmatpush.bf16.msra.mxu0 %v5148
        %5256 = vmatpush.bf16.msra.mxu0 %v5146
        %5257 = vmatpush.bf16.msra.mxu0 %v5144
        %5258 = vmatpush.bf16.msra.mxu0 %v5142
        %5259 = vmatpush.bf16.msra.mxu0 %v5140
        %5260 = vmatpush.bf16.msra.mxu0 %v5138
        %5261 = vmatpush.bf16.msra.mxu0 %v5136
        %5262 = vmatpush.bf16.msra.mxu0 %v5134
        %5263 = vmatmul.bf16.gmra.mxu0 %v4797
        %v5264 = vpop.f32.mrf.mxu0
        %v5265 = vadd.f32 %v5192, %v5264
        %v5266 = vpop.f32.mrf.mxu0
        %v5267 = vadd.f32 %v5194, %v5266
        %5268 = vmatmul.bf16.gmra.mxu0 %v4815
        %v5269 = vpop.f32.mrf.mxu0
        %v5270 = vadd.f32 %v5197, %v5269
        %v5271 = vpop.f32.mrf.mxu0
        %v5272 = vadd.f32 %v5199, %v5271
        %5273 = vmatmul.bf16.gmra.mxu0 %v4833
        %v5274 = vpop.f32.mrf.mxu0
        %v5275 = vadd.f32 %v5202, %v5274
        %v5276 = vpop.f32.mrf.mxu0
        %v5277 = vadd.f32 %v5204, %v5276
        %5278 = vmatmul.bf16.gmra.mxu0 %v4851
        %v5279 = vpop.f32.mrf.mxu0
        %v5280 = vadd.f32 %v5207, %v5279
        %v5281 = vpop.f32.mrf.mxu0
        %v5282 = vadd.f32 %v5209, %v5281
        %5283 = vmatmul.bf16.gmra.mxu0 %v4869
        %v5284 = vpop.f32.mrf.mxu0
        %v5285 = vadd.f32 %v5212, %v5284
        %v5286 = vpop.f32.mrf.mxu0
        %v5287 = vadd.f32 %v5214, %v5286
        %5288 = vmatmul.bf16.gmra.mxu0 %v4887
        %v5289 = vpop.f32.mrf.mxu0
        %v5290 = vadd.f32 %v5217, %v5289
        %v5291 = vpop.f32.mrf.mxu0
        %v5292 = vadd.f32 %v5219, %v5291
        %5293 = vmatmul.bf16.gmra.mxu0 %v4905
        %v5294 = vpop.f32.mrf.mxu0
        %v5295 = vadd.f32 %v5222, %v5294
        %v5296 = vpop.f32.mrf.mxu0
        %v5297 = vadd.f32 %v5224, %v5296
        %5298 = vmatmul.bf16.gmra.mxu0 %v4923
        %v5299 = vpop.f32.mrf.mxu0
        %v5300 = vadd.f32 %v5227, %v5299
        %v5301 = vpop.f32.mrf.mxu0
        %v5302 = vadd.f32 %v5229, %v5301
        %5303 = vmatmul.bf16.gmra.mxu0 %v4941
        %v5304 = vpop.f32.mrf.mxu0
        %v5305 = vadd.f32 %v5232, %v5304
        %v5306 = vpop.f32.mrf.mxu0
        %v5307 = vadd.f32 %v5234, %v5306
        %5308 = vmatmul.bf16.gmra.mxu0 %v4959
        %v5309 = vpop.f32.mrf.mxu0
        %v5310 = vadd.f32 %v5237, %v5309
        %v5311 = vpop.f32.mrf.mxu0
        %v5312 = vadd.f32 %v5239, %v5311
        %5313 = vmatmul.bf16.gmra.mxu0 %v4977
        %v5314 = vpop.f32.mrf.mxu0
        %v5315 = vadd.f32 %v5242, %v5314
        %v5316 = vpop.f32.mrf.mxu0
        %v5317 = vadd.f32 %v5244, %v5316
        %5318 = vmatmul.bf16.gmra.mxu0 %v4995
        %v5319 = vpop.f32.mrf.mxu0
        %v5320 = vadd.f32 %v5247, %v5319
        %v5321 = vpop.f32.mrf.mxu0
        %v5322 = vadd.f32 %v5249, %v5321
        %5323 = vmatmul.bf16.gmra.mxu0 %v4994
        %v5324 = vpop.f32.mrf.mxu0
        %v5325 = vadd.f32 %v5252, %v5324
        %v5326 = vpop.f32.mrf.mxu0
        %5327 = vdwg.mxu0
        %5328 = vmatpush.bf16.msra.mxu0 %v5133
        %5329 = vmatpush.bf16.msra.mxu0 %v5131
        %5330 = vmatpush.bf16.msra.mxu0 %v5129
        %5331 = vmatpush.bf16.msra.mxu0 %v5127
        %5332 = vmatpush.bf16.msra.mxu0 %v5125
        %5333 = vmatpush.bf16.msra.mxu0 %v5123
        %5334 = vmatpush.bf16.msra.mxu0 %v5121
        %5335 = vmatpush.bf16.msra.mxu0 %v5119
        %5336 = vmatmul.bf16.gmra.mxu0 %v4780
        %v5337 = vpop.f32.mrf.mxu0
        %v5338 = vadd.f32 0.0, %v5337
        %v5339 = vpop.f32.mrf.mxu0
        %v5340 = vadd.f32 0.0, %v5339
        %5341 = vmatmul.bf16.gmra.mxu0 %v4806
        %v5342 = vpop.f32.mrf.mxu0
        %v5343 = vadd.f32 0.0, %v5342
        %v5344 = vpop.f32.mrf.mxu0
        %v5345 = vadd.f32 0.0, %v5344
        %5346 = vmatmul.bf16.gmra.mxu0 %v4824
        %v5347 = vpop.f32.mrf.mxu0
        %v5348 = vadd.f32 0.0, %v5347
        %v5349 = vpop.f32.mrf.mxu0
        %v5350 = vadd.f32 0.0, %v5349
        %5351 = vmatmul.bf16.gmra.mxu0 %v4842
        %v5352 = vpop.f32.mrf.mxu0
        %v5353 = vadd.f32 0.0, %v5352
        %v5354 = vpop.f32.mrf.mxu0
        %v5355 = vadd.f32 0.0, %v5354
        %5356 = vmatmul.bf16.gmra.mxu0 %v4860
        %v5357 = vpop.f32.mrf.mxu0
        %v5358 = vadd.f32 0.0, %v5357
        %v5359 = vpop.f32.mrf.mxu0
        %v5360 = vadd.f32 0.0, %v5359
        %5361 = vmatmul.bf16.gmra.mxu0 %v4878
        %v5362 = vpop.f32.mrf.mxu0
        %v5363 = vadd.f32 0.0, %v5362
        %v5364 = vpop.f32.mrf.mxu0
        %v5365 = vadd.f32 0.0, %v5364
        %5366 = vmatmul.bf16.gmra.mxu0 %v4896
        %v5367 = vpop.f32.mrf.mxu0
        %v5368 = vadd.f32 0.0, %v5367
        %v5369 = vpop.f32.mrf.mxu0
        %v5370 = vadd.f32 0.0, %v5369
        %5371 = vmatmul.bf16.gmra.mxu0 %v4914
        %v5372 = vpop.f32.mrf.mxu0
        %v5373 = vadd.f32 0.0, %v5372
        %v5374 = vpop.f32.mrf.mxu0
        %v5375 = vadd.f32 0.0, %v5374
        %5376 = vmatmul.bf16.gmra.mxu0 %v4932
        %v5377 = vpop.f32.mrf.mxu0
        %v5378 = vadd.f32 0.0, %v5377
        %v5379 = vpop.f32.mrf.mxu0
        %v5380 = vadd.f32 0.0, %v5379
        %5381 = vmatmul.bf16.gmra.mxu0 %v4950
        %v5382 = vpop.f32.mrf.mxu0
        %v5383 = vadd.f32 0.0, %v5382
        %v5384 = vpop.f32.mrf.mxu0
        %v5385 = vadd.f32 0.0, %v5384
        %5386 = vmatmul.bf16.gmra.mxu0 %v4968
        %v5387 = vpop.f32.mrf.mxu0
        %v5388 = vadd.f32 0.0, %v5387
        %v5389 = vpop.f32.mrf.mxu0
        %v5390 = vadd.f32 0.0, %v5389
        %5391 = vmatmul.bf16.gmra.mxu0 %v4986
        %v5392 = vpop.f32.mrf.mxu0
        %v5393 = vadd.f32 0.0, %v5392
        %v5394 = vpop.f32.mrf.mxu0
        %v5395 = vadd.f32 0.0, %v5394
        %5396 = vmatmul.bf16.gmra.mxu0 %v4985
        %v5397 = vpop.f32.mrf.mxu0
        %v5398 = vadd.f32 0.0, %v5397
        %v5399 = vpop.f32.mrf.mxu0
        %5400 = vdwg.mxu0
        %5401 = vmatpush.bf16.msra.mxu0 %v5149
        %5402 = vmatpush.bf16.msra.mxu0 %v5147
        %5403 = vmatpush.bf16.msra.mxu0 %v5145
        %5404 = vmatpush.bf16.msra.mxu0 %v5143
        %5405 = vmatpush.bf16.msra.mxu0 %v5141
        %5406 = vmatpush.bf16.msra.mxu0 %v5139
        %5407 = vmatpush.bf16.msra.mxu0 %v5137
        %5408 = vmatpush.bf16.msra.mxu0 %v5135
        %5409 = vmatmul.bf16.gmra.mxu0 %v4797
        %v5410 = vpop.f32.mrf.mxu0
        %v5411 = vadd.f32 %v5338, %v5410
        %v5412 = vpop.f32.mrf.mxu0
        %v5413 = vadd.f32 %v5340, %v5412
        %5414 = vmatmul.bf16.gmra.mxu0 %v4815
        %v5415 = vpop.f32.mrf.mxu0
        %v5416 = vadd.f32 %v5343, %v5415
        %v5417 = vpop.f32.mrf.mxu0
        %v5418 = vadd.f32 %v5345, %v5417
        %5419 = vmatmul.bf16.gmra.mxu0 %v4833
        %v5420 = vpop.f32.mrf.mxu0
        %v5421 = vadd.f32 %v5348, %v5420
        %v5422 = vpop.f32.mrf.mxu0
        %v5423 = vadd.f32 %v5350, %v5422
        %5424 = vmatmul.bf16.gmra.mxu0 %v4851
        %v5425 = vpop.f32.mrf.mxu0
        %v5426 = vadd.f32 %v5353, %v5425
        %v5427 = vpop.f32.mrf.mxu0
        %v5428 = vadd.f32 %v5355, %v5427
        %5429 = vmatmul.bf16.gmra.mxu0 %v4869
        %v5430 = vpop.f32.mrf.mxu0
        %v5431 = vadd.f32 %v5358, %v5430
        %v5432 = vpop.f32.mrf.mxu0
        %v5433 = vadd.f32 %v5360, %v5432
        %5434 = vmatmul.bf16.gmra.mxu0 %v4887
        %v5435 = vpop.f32.mrf.mxu0
        %v5436 = vadd.f32 %v5363, %v5435
        %v5437 = vpop.f32.mrf.mxu0
        %v5438 = vadd.f32 %v5365, %v5437
        %5439 = vmatmul.bf16.gmra.mxu0 %v4905
        %v5440 = vpop.f32.mrf.mxu0
        %v5441 = vadd.f32 %v5368, %v5440
        %v5442 = vpop.f32.mrf.mxu0
        %v5443 = vadd.f32 %v5370, %v5442
        %5444 = vmatmul.bf16.gmra.mxu0 %v4923
        %v5445 = vpop.f32.mrf.mxu0
        %v5446 = vadd.f32 %v5373, %v5445
        %v5447 = vpop.f32.mrf.mxu0
        %v5448 = vadd.f32 %v5375, %v5447
        %5449 = vmatmul.bf16.gmra.mxu0 %v4941
        %v5450 = vpop.f32.mrf.mxu0
        %v5451 = vadd.f32 %v5378, %v5450
        %v5452 = vpop.f32.mrf.mxu0
        %v5453 = vadd.f32 %v5380, %v5452
        %5454 = vmatmul.bf16.gmra.mxu0 %v4959
        %v5455 = vpop.f32.mrf.mxu0
        %v5456 = vadd.f32 %v5383, %v5455
        %v5457 = vpop.f32.mrf.mxu0
        %v5458 = vadd.f32 %v5385, %v5457
        %5459 = vmatmul.bf16.gmra.mxu0 %v4977
        %v5460 = vpop.f32.mrf.mxu0
        %v5461 = vadd.f32 %v5388, %v5460
        %v5462 = vpop.f32.mrf.mxu0
        %v5463 = vadd.f32 %v5390, %v5462
        %5464 = vmatmul.bf16.gmra.mxu0 %v4995
        %v5465 = vpop.f32.mrf.mxu0
        %v5466 = vadd.f32 %v5393, %v5465
        %v5467 = vpop.f32.mrf.mxu0
        %v5468 = vadd.f32 %v5395, %v5467
        %5469 = vmatmul.bf16.gmra.mxu0 %v4994
        %v5470 = vpop.f32.mrf.mxu0
        %v5471 = vadd.f32 %v5398, %v5470
        %v5472 = vpop.f32.mrf.mxu0
        %5473 = vdwg.mxu0
        %v5474 = vld [vmem:[#allocation3] sm:$0xff]
        %v5475 = vld [vmem:[#allocation3 + $0x8] sm:$0xff]
        %v5476 = vld [vmem:[#allocation3 + $0x10] sm:$0xff]
        %v5477 = vld [vmem:[#allocation3 + $0x18] sm:$0xff]
        %v5478 = vld [vmem:[#allocation3 + $0x20] sm:$0xff]
        %v5479 = vld [vmem:[#allocation3 + $0x28] sm:$0xff]
        %v5480 = vld [vmem:[#allocation3 + $0x30] sm:$0xff]
        %v5481 = vld [vmem:[#allocation3 + $0x38] sm:$0xff]
        %v5482 = vld [vmem:[#allocation3 + $0x40] sm:$0xff]
        %v5483 = vld [vmem:[#allocation3 + $0x48] sm:$0xff]
        %v5484 = vld [vmem:[#allocation3 + $0x50] sm:$0xff]
        %v5485 = vld [vmem:[#allocation3 + $0x58] sm:$0xff]
        %v5486 = vld [vmem:[#allocation3 + $0x60] sm:$0xff]
        %v5487 = vld [vmem:[#allocation3 + $0x68] sm:$0xff]
        %v5488 = vld [vmem:[#allocation3 + $0x70] sm:$0xff]
        %v5489 = vld [vmem:[#allocation3 + $0x78] sm:$0xff]
        %v5490 = vld [vmem:[#allocation3 + $0x80] sm:$0xff]
        %v5491 = vld [vmem:[#allocation3 + $0x88] sm:$0xff]
        %v5492 = vld [vmem:[#allocation3 + $0x90] sm:$0xff]
        %v5493 = vld [vmem:[#allocation3 + $0x98] sm:$0xff]
        %v5494 = vld [vmem:[#allocation3 + $0xa0] sm:$0xff]
        %v5495 = vld [vmem:[#allocation3 + $0xa8] sm:$0xff]
        %v5496 = vld [vmem:[#allocation3 + $0xb0] sm:$0xff]
        %v5497 = vld [vmem:[#allocation3 + $0xb8] sm:$0xff]
        %v5498 = vld [vmem:[#allocation3 + $0xc0] sm:$0xff]
        %v5499 = vld [vmem:[#allocation3 + $0xc8] sm:$0xff]
        %v5500 = vld [vmem:[#allocation3 + $0xd0] sm:$0xff]
        %v5501 = vld [vmem:[#allocation3 + $0xd8] sm:$0xff]
        %v5502 = vld [vmem:[#allocation3 + $0xe0] sm:$0xff]
        %v5503 = vld [vmem:[#allocation3 + $0xe8] sm:$0xff]
        %v5504 = vld [vmem:[#allocation3 + $0xf0] sm:$0xff]
        %v5505 = vld [vmem:[#allocation3 + $0xf8] sm:$0xff]
        %v5506 = vld [vmem:[#allocation3 + $0x100] sm:$0xff]
        %v5507 = vld [vmem:[#allocation3 + $0x108] sm:$0xff]
        %v5508 = vld [vmem:[#allocation3 + $0x110] sm:$0xff]
        %v5509 = vld [vmem:[#allocation3 + $0x118] sm:$0xff]
        %v5510 = vld [vmem:[#allocation3 + $0x120] sm:$0xff]
        %v5511 = vld [vmem:[#allocation3 + $0x128] sm:$0xff]
        %v5512 = vld [vmem:[#allocation3 + $0x130] sm:$0xff]
        %v5513 = vld [vmem:[#allocation3 + $0x138] sm:$0xff]
        %v5514 = vld [vmem:[#allocation3 + $0x140] sm:$0xff]
        %v5515 = vld [vmem:[#allocation3 + $0x148] sm:$0xff]
        %v5516 = vld [vmem:[#allocation3 + $0x150] sm:$0xff]
        %v5517 = vld [vmem:[#allocation3 + $0x158] sm:$0xff]
        %v5518 = vld [vmem:[#allocation3 + $0x160] sm:$0xff]
        %v5519 = vld [vmem:[#allocation3 + $0x168] sm:$0xff]
        %v5520 = vld [vmem:[#allocation3 + $0x170] sm:$0xff]
        %v5521 = vld [vmem:[#allocation3 + $0x178] sm:$0xff]
        %v5522 = vld [vmem:[#allocation3 + $0x180] sm:$0xf]
        %v5523 = vld [vmem:[#allocation3 + $0x188] sm:$0xf]
        %v5524 = vadd.f32 %v5474, %v5265
        %v5525 = vadd.f32 %v5475, %v5411
        %v5526 = vadd.f32 %v5476, %v5267
        %v5527 = vadd.f32 %v5477, %v5413
        %v5528 = vadd.f32 %v5478, %v5270
        %v5529 = vadd.f32 %v5479, %v5416
        %v5530 = vadd.f32 %v5480, %v5272
        %v5531 = vadd.f32 %v5481, %v5418
        %v5532 = vadd.f32 %v5482, %v5275
        %v5533 = vadd.f32 %v5483, %v5421
        %v5534 = vadd.f32 %v5484, %v5277
        %v5535 = vadd.f32 %v5485, %v5423
        %v5536 = vadd.f32 %v5486, %v5280
        %v5537 = vadd.f32 %v5487, %v5426
        %v5538 = vadd.f32 %v5488, %v5282
        %v5539 = vadd.f32 %v5489, %v5428
        %v5540 = vadd.f32 %v5490, %v5285
        %v5541 = vadd.f32 %v5491, %v5431
        %v5542 = vadd.f32 %v5492, %v5287
        %v5543 = vadd.f32 %v5493, %v5433
        %v5544 = vadd.f32 %v5494, %v5290
        %v5545 = vadd.f32 %v5495, %v5436
        %v5546 = vadd.f32 %v5496, %v5292
        %v5547 = vadd.f32 %v5497, %v5438
        %v5548 = vadd.f32 %v5498, %v5295
        %v5549 = vadd.f32 %v5499, %v5441
        %v5550 = vadd.f32 %v5500, %v5297
        %v5551 = vadd.f32 %v5501, %v5443
        %v5552 = vadd.f32 %v5502, %v5300
        %v5553 = vadd.f32 %v5503, %v5446
        %v5554 = vadd.f32 %v5504, %v5302
        %v5555 = vadd.f32 %v5505, %v5448
        %v5556 = vadd.f32 %v5506, %v5305
        %v5557 = vadd.f32 %v5507, %v5451
        %v5558 = vadd.f32 %v5508, %v5307
        %v5559 = vadd.f32 %v5509, %v5453
        %v5560 = vadd.f32 %v5510, %v5310
        %v5561 = vadd.f32 %v5511, %v5456
        %v5562 = vadd.f32 %v5512, %v5312
        %v5563 = vadd.f32 %v5513, %v5458
        %v5564 = vadd.f32 %v5514, %v5315
        %v5565 = vadd.f32 %v5515, %v5461
        %v5566 = vadd.f32 %v5516, %v5317
        %v5567 = vadd.f32 %v5517, %v5463
        %v5568 = vadd.f32 %v5518, %v5320
        %v5569 = vadd.f32 %v5519, %v5466
        %v5570 = vadd.f32 %v5520, %v5322
        %v5571 = vadd.f32 %v5521, %v5468
        %v5572 = vadd.f32 %v5522, %v5325
        %v5573 = vadd.f32 %v5523, %v5471
        %5574 = vst [vmem:[#allocation3] sm:$0xff] %v5524
        %5575 = vst [vmem:[#allocation3 + $0x8] sm:$0xff] %v5525
        %5576 = vst [vmem:[#allocation3 + $0x10] sm:$0xff] %v5526
        %5577 = vst [vmem:[#allocation3 + $0x18] sm:$0xff] %v5527
        %5578 = vst [vmem:[#allocation3 + $0x20] sm:$0xff] %v5528
        %5579 = vst [vmem:[#allocation3 + $0x28] sm:$0xff] %v5529
        %5580 = vst [vmem:[#allocation3 + $0x30] sm:$0xff] %v5530
        %5581 = vst [vmem:[#allocation3 + $0x38] sm:$0xff] %v5531
        %5582 = vst [vmem:[#allocation3 + $0x40] sm:$0xff] %v5532
        %5583 = vst [vmem:[#allocation3 + $0x48] sm:$0xff] %v5533
        %5584 = vst [vmem:[#allocation3 + $0x50] sm:$0xff] %v5534
        %5585 = vst [vmem:[#allocation3 + $0x58] sm:$0xff] %v5535
        %5586 = vst [vmem:[#allocation3 + $0x60] sm:$0xff] %v5536
        %5587 = vst [vmem:[#allocation3 + $0x68] sm:$0xff] %v5537
        %5588 = vst [vmem:[#allocation3 + $0x70] sm:$0xff] %v5538
        %5589 = vst [vmem:[#allocation3 + $0x78] sm:$0xff] %v5539
        %5590 = vst [vmem:[#allocation3 + $0x80] sm:$0xff] %v5540
        %5591 = vst [vmem:[#allocation3 + $0x88] sm:$0xff] %v5541
        %5592 = vst [vmem:[#allocation3 + $0x90] sm:$0xff] %v5542
        %5593 = vst [vmem:[#allocation3 + $0x98] sm:$0xff] %v5543
        %5594 = vst [vmem:[#allocation3 + $0xa0] sm:$0xff] %v5544
        %5595 = vst [vmem:[#allocation3 + $0xa8] sm:$0xff] %v5545
        %5596 = vst [vmem:[#allocation3 + $0xb0] sm:$0xff] %v5546
        %5597 = vst [vmem:[#allocation3 + $0xb8] sm:$0xff] %v5547
        %5598 = vst [vmem:[#allocation3 + $0xc0] sm:$0xff] %v5548
        %5599 = vst [vmem:[#allocation3 + $0xc8] sm:$0xff] %v5549
        %5600 = vst [vmem:[#allocation3 + $0xd0] sm:$0xff] %v5550
        %5601 = vst [vmem:[#allocation3 + $0xd8] sm:$0xff] %v5551
        %5602 = vst [vmem:[#allocation3 + $0xe0] sm:$0xff] %v5552
        %5603 = vst [vmem:[#allocation3 + $0xe8] sm:$0xff] %v5553
        %5604 = vst [vmem:[#allocation3 + $0xf0] sm:$0xff] %v5554
        %5605 = vst [vmem:[#allocation3 + $0xf8] sm:$0xff] %v5555
        %5606 = vst [vmem:[#allocation3 + $0x100] sm:$0xff] %v5556
        %5607 = vst [vmem:[#allocation3 + $0x108] sm:$0xff] %v5557
        %5608 = vst [vmem:[#allocation3 + $0x110] sm:$0xff] %v5558
        %5609 = vst [vmem:[#allocation3 + $0x118] sm:$0xff] %v5559
        %5610 = vst [vmem:[#allocation3 + $0x120] sm:$0xff] %v5560
        %5611 = vst [vmem:[#allocation3 + $0x128] sm:$0xff] %v5561
        %5612 = vst [vmem:[#allocation3 + $0x130] sm:$0xff] %v5562
        %5613 = vst [vmem:[#allocation3 + $0x138] sm:$0xff] %v5563
        %5614 = vst [vmem:[#allocation3 + $0x140] sm:$0xff] %v5564
        %5615 = vst [vmem:[#allocation3 + $0x148] sm:$0xff] %v5565
        %5616 = vst [vmem:[#allocation3 + $0x150] sm:$0xff] %v5566
        %5617 = vst [vmem:[#allocation3 + $0x158] sm:$0xff] %v5567
        %5618 = vst [vmem:[#allocation3 + $0x160] sm:$0xff] %v5568
        %5619 = vst [vmem:[#allocation3 + $0x168] sm:$0xff] %v5569
        %5620 = vst [vmem:[#allocation3 + $0x170] sm:$0xff] %v5570
        %5621 = vst [vmem:[#allocation3 + $0x178] sm:$0xff] %v5571
        %5622 = vst [vmem:[#allocation3 + $0x180] sm:$0xf] %v5572
        %5623 = vst [vmem:[#allocation3 + $0x188] sm:$0xf] %v5573
        %v5624 = vld [vmem:[%s1485 + $0x10] sm:$0xff]
        %v5625 = vld [vmem:[%s1485 + $0x18] sm:$0xff]
        %v5626 = vld [vmem:[%s1485 + $0x20] sm:$0xff]
        %v5627 = vld [vmem:[%s1485 + $0x28] sm:$0xff]
        %v5628 = vld [vmem:[%s1485 + $0x30] sm:$0xff]
        %v5629 = vld [vmem:[%s1485 + $0x38] sm:$0xff]
        %v5630 = vld [vmem:[%s1485 + $0x40] sm:$0xff]
        %v5631 = vld [vmem:[%s1485 + $0x48] sm:$0xff]
        %v5632 = vld [vmem:[%s1485 + $0x50] sm:$0xff]
        %v5633 = vld [vmem:[%s1485 + $0x58] sm:$0xff]
        %v5634 = vld [vmem:[%s1485 + $0x60] sm:$0xff]
        %v5635 = vld [vmem:[%s1485 + $0x68] sm:$0xff]
        %v5636 = vld [vmem:[%s1485 + $0x70] sm:$0xff]
        %v5637 = vld [vmem:[%s1485 + $0x78] sm:$0xff]
        %v5638 = vld [vmem:[%s1485 + $0x80] sm:$0xff]
        %v5639 = vld [vmem:[%s1485 + $0x88] sm:$0xff]
        %v5640 = vld [vmem:[%s1485 + $0x90] sm:$0xff]
        %v5641 = vld [vmem:[%s1485 + $0x98] sm:$0xff]
        %v5642 = vld [vmem:[%s1485 + $0xa0] sm:$0xff]
        %v5643 = vld [vmem:[%s1485 + $0xa8] sm:$0xff]
        %v5644 = vld [vmem:[%s1485 + $0xb0] sm:$0xff]
        %v5645 = vld [vmem:[%s1485 + $0xb8] sm:$0xff]
        %v5646 = vld [vmem:[%s1485 + $0xc0] sm:$0xff]
        %v5647 = vld [vmem:[%s1485 + $0xc8] sm:$0xff]
        %v5648 = vld [vmem:[%s1485 + $0xd0] sm:$0x33]
        %s5649 = scalar_lea.vmem [#allocation9], 1024
        %v5650 = vld [vmem:[%s5649] sm:$0xff]
        %v5651 = vld [vmem:[%s5649 + $0x8] sm:$0xff]
        %v5652 = vld [vmem:[%s5649 + $0x10] sm:$0xff]
        %v5653 = vld [vmem:[%s5649 + $0x18] sm:$0xff]
        %v5654 = vld [vmem:[%s5649 + $0x20] sm:$0xff]
        %v5655 = vld [vmem:[%s5649 + $0x28] sm:$0xff]
        %v5656 = vld [vmem:[%s5649 + $0x30] sm:$0xff]
        %v5657 = vld [vmem:[%s5649 + $0x38] sm:$0xff]
        %v5658 = vld [vmem:[%s5649 + $0x40] sm:$0xff]
        %v5659 = vld [vmem:[%s5649 + $0x48] sm:$0xff]
        %v5660 = vld [vmem:[%s5649 + $0x50] sm:$0xff]
        %v5661 = vld [vmem:[%s5649 + $0x58] sm:$0xff]
        %v5662 = vld [vmem:[%s5649 + $0x60] sm:$0xff]
        %v5663 = vld [vmem:[%s5649 + $0x68] sm:$0xff]
        %v5664 = vld [vmem:[%s5649 + $0x70] sm:$0xff]
        %v5665 = vld [vmem:[%s5649 + $0x78] sm:$0xff]
        %v5666 = vld [vmem:[%s5649 + $0x80] sm:$0xff]
        %v5667 = vld [vmem:[%s5649 + $0x88] sm:$0xff]
        %v5668 = vld [vmem:[%s5649 + $0x90] sm:$0xff]
        %v5669 = vld [vmem:[%s5649 + $0x98] sm:$0xff]
        %v5670 = vld [vmem:[%s5649 + $0xa0] sm:$0xff]
        %v5671 = vld [vmem:[%s5649 + $0xa8] sm:$0xff]
        %v5672 = vld [vmem:[%s5649 + $0xb0] sm:$0xff]
        %v5673 = vld [vmem:[%s5649 + $0xb8] sm:$0xff]
        %v5674 = vld [vmem:[%s5649 + $0xc0] sm:$0xff]
        %v5675 = vld [vmem:[%s5649 + $0xc8] sm:$0xff]
        %v5676 = vld [vmem:[%s5649 + $0xd0] sm:$0xff]
        %v5677 = vld [vmem:[%s5649 + $0xd8] sm:$0xff]
        %v5678 = vld [vmem:[%s5649 + $0xe0] sm:$0xff]
        %v5679 = vld [vmem:[%s5649 + $0xe8] sm:$0xff]
        %v5680 = vld [vmem:[%s5649 + $0xf0] sm:$0xff]
        %v5681 = vld [vmem:[%s5649 + $0xf8] sm:$0xff]
        %v5707 = vunpack.c.l.b16 %v5624
        %v5708 = vunpack.c.h.b16 %v5624
        %v5709 = vunpack.c.l.b16 %v5625
        %v5710 = vunpack.c.h.b16 %v5625
        %v5711 = vunpack.c.l.b16 %v5626
        %v5712 = vunpack.c.h.b16 %v5626
        %v5713 = vunpack.c.l.b16 %v5627
        %v5714 = vunpack.c.h.b16 %v5627
        %v5715 = vunpack.c.l.b16 %v5628
        %v5716 = vunpack.c.h.b16 %v5628
        %v5717 = vunpack.c.l.b16 %v5629
        %v5718 = vunpack.c.h.b16 %v5629
        %v5719 = vunpack.c.l.b16 %v5630
        %v5720 = vunpack.c.h.b16 %v5630
        %v5721 = vunpack.c.l.b16 %v5631
        %v5722 = vunpack.c.h.b16 %v5631
        %v5723 = vunpack.c.l.b16 %v5632
        %v5724 = vunpack.c.h.b16 %v5632
        %v5725 = vunpack.c.l.b16 %v5633
        %v5726 = vunpack.c.h.b16 %v5633
        %v5727 = vunpack.c.l.b16 %v5634
        %v5728 = vunpack.c.h.b16 %v5634
        %v5729 = vunpack.c.l.b16 %v5635
        %v5730 = vunpack.c.h.b16 %v5635
        %v5731 = vunpack.c.l.b16 %v5636
        %v5732 = vunpack.c.h.b16 %v5636
        %v5733 = vunpack.c.l.b16 %v5637
        %v5734 = vunpack.c.h.b16 %v5637
        %v5735 = vunpack.c.l.b16 %v5638
        %v5736 = vunpack.c.h.b16 %v5638
        %v5737 = vunpack.c.l.b16 %v5639
        %v5738 = vunpack.c.h.b16 %v5639
        %v5739 = vunpack.c.l.b16 %v5640
        %v5740 = vunpack.c.h.b16 %v5640
        %v5741 = vunpack.c.l.b16 %v5641
        %v5742 = vunpack.c.h.b16 %v5641
        %v5743 = vunpack.c.l.b16 %v5642
        %v5744 = vunpack.c.h.b16 %v5642
        %v5745 = vunpack.c.l.b16 %v5643
        %v5746 = vunpack.c.h.b16 %v5643
        %v5747 = vunpack.c.l.b16 %v5644
        %v5748 = vunpack.c.h.b16 %v5644
        %v5749 = vunpack.c.l.b16 %v5645
        %v5750 = vunpack.c.h.b16 %v5645
        %v5751 = vunpack.c.l.b16 %v5646
        %v5752 = vunpack.c.h.b16 %v5646
        %v5753 = vunpack.c.l.b16 %v5647
        %v5754 = vunpack.c.h.b16 %v5647
        %v5755 = vunpack.c.l.b16 %v5648
        %v5756 = vunpack.c.h.b16 %v5648
        %v5757 = vpack.c.b16 %v5709, %v5707
        %v5758 = vpack.c.b16 %v5710, %v5708
        %v5759 = vpack.c.b16 %v5713, %v5711
        %v5760 = vpack.c.b16 %v5714, %v5712
        %v5761 = vpack.c.b16 %v5717, %v5715
        %v5762 = vpack.c.b16 %v5718, %v5716
        %v5763 = vpack.c.b16 %v5721, %v5719
        %v5764 = vpack.c.b16 %v5722, %v5720
        %v5765 = vpack.c.b16 %v5725, %v5723
        %v5766 = vpack.c.b16 %v5726, %v5724
        %v5767 = vpack.c.b16 %v5729, %v5727
        %v5768 = vpack.c.b16 %v5730, %v5728
        %v5769 = vpack.c.b16 %v5733, %v5731
        %v5770 = vpack.c.b16 %v5734, %v5732
        %v5771 = vpack.c.b16 %v5737, %v5735
        %v5772 = vpack.c.b16 %v5738, %v5736
        %v5773 = vpack.c.b16 %v5741, %v5739
        %v5774 = vpack.c.b16 %v5742, %v5740
        %v5775 = vpack.c.b16 %v5745, %v5743
        %v5776 = vpack.c.b16 %v5746, %v5744
        %v5777 = vpack.c.b16 %v5749, %v5747
        %v5778 = vpack.c.b16 %v5750, %v5748
        %v5779 = vpack.c.b16 %v5753, %v5751
        %v5780 = vpack.c.b16 %v5754, %v5752
        %v5781 = vpack.c.b16 %v5755, %v5755
        %v5782 = vpack.c.b16 %v5756, %v5756
        %v5841 = vunpack.c.l.b16 %v5650
        %v5842 = vunpack.c.h.b16 %v5650
        %v5843 = vunpack.c.l.b16 %v5651
        %v5844 = vunpack.c.h.b16 %v5651
        %v5845 = vunpack.c.l.b16 %v5652
        %v5846 = vunpack.c.h.b16 %v5652
        %v5847 = vunpack.c.l.b16 %v5653
        %v5848 = vunpack.c.h.b16 %v5653
        %v5849 = vunpack.c.l.b16 %v5654
        %v5850 = vunpack.c.h.b16 %v5654
        %v5851 = vunpack.c.l.b16 %v5655
        %v5852 = vunpack.c.h.b16 %v5655
        %v5853 = vunpack.c.l.b16 %v5656
        %v5854 = vunpack.c.h.b16 %v5656
        %v5855 = vunpack.c.l.b16 %v5657
        %v5856 = vunpack.c.h.b16 %v5657
        %v5857 = vunpack.c.l.b16 %v5658
        %v5858 = vunpack.c.h.b16 %v5658
        %v5859 = vunpack.c.l.b16 %v5659
        %v5860 = vunpack.c.h.b16 %v5659
        %v5861 = vunpack.c.l.b16 %v5660
        %v5862 = vunpack.c.h.b16 %v5660
        %v5863 = vunpack.c.l.b16 %v5661
        %v5864 = vunpack.c.h.b16 %v5661
        %v5865 = vunpack.c.l.b16 %v5662
        %v5866 = vunpack.c.h.b16 %v5662
        %v5867 = vunpack.c.l.b16 %v5663
        %v5868 = vunpack.c.h.b16 %v5663
        %v5869 = vunpack.c.l.b16 %v5664
        %v5870 = vunpack.c.h.b16 %v5664
        %v5871 = vunpack.c.l.b16 %v5665
        %v5872 = vunpack.c.h.b16 %v5665
        %v5873 = vunpack.c.l.b16 %v5666
        %v5874 = vunpack.c.h.b16 %v5666
        %v5875 = vunpack.c.l.b16 %v5667
        %v5876 = vunpack.c.h.b16 %v5667
        %v5877 = vunpack.c.l.b16 %v5668
        %v5878 = vunpack.c.h.b16 %v5668
        %v5879 = vunpack.c.l.b16 %v5669
        %v5880 = vunpack.c.h.b16 %v5669
        %v5881 = vunpack.c.l.b16 %v5670
        %v5882 = vunpack.c.h.b16 %v5670
        %v5883 = vunpack.c.l.b16 %v5671
        %v5884 = vunpack.c.h.b16 %v5671
        %v5885 = vunpack.c.l.b16 %v5672
        %v5886 = vunpack.c.h.b16 %v5672
        %v5887 = vunpack.c.l.b16 %v5673
        %v5888 = vunpack.c.h.b16 %v5673
        %v5889 = vunpack.c.l.b16 %v5674
        %v5890 = vunpack.c.h.b16 %v5674
        %v5891 = vunpack.c.l.b16 %v5675
        %v5892 = vunpack.c.h.b16 %v5675
        %v5893 = vunpack.c.l.b16 %v5676
        %v5894 = vunpack.c.h.b16 %v5676
        %v5895 = vunpack.c.l.b16 %v5677
        %v5896 = vunpack.c.h.b16 %v5677
        %v5897 = vunpack.c.l.b16 %v5678
        %v5898 = vunpack.c.h.b16 %v5678
        %v5899 = vunpack.c.l.b16 %v5679
        %v5900 = vunpack.c.h.b16 %v5679
        %v5901 = vunpack.c.l.b16 %v5680
        %v5902 = vunpack.c.h.b16 %v5680
        %v5903 = vunpack.c.l.b16 %v5681
        %v5904 = vunpack.c.h.b16 %v5681
        %v5905 = vpack.c.b16 %v5843, %v5841
        %v5906 = vpack.c.b16 %v5844, %v5842
        %v5907 = vpack.c.b16 %v5847, %v5845
        %v5908 = vpack.c.b16 %v5848, %v5846
        %v5909 = vpack.c.b16 %v5851, %v5849
        %v5910 = vpack.c.b16 %v5852, %v5850
        %v5911 = vpack.c.b16 %v5855, %v5853
        %v5912 = vpack.c.b16 %v5856, %v5854
        %v5913 = vpack.c.b16 %v5859, %v5857
        %v5914 = vpack.c.b16 %v5860, %v5858
        %v5915 = vpack.c.b16 %v5863, %v5861
        %v5916 = vpack.c.b16 %v5864, %v5862
        %v5917 = vpack.c.b16 %v5867, %v5865
        %v5918 = vpack.c.b16 %v5868, %v5866
        %v5919 = vpack.c.b16 %v5871, %v5869
        %v5920 = vpack.c.b16 %v5872, %v5870
        %v5921 = vpack.c.b16 %v5875, %v5873
        %v5922 = vpack.c.b16 %v5876, %v5874
        %v5923 = vpack.c.b16 %v5879, %v5877
        %v5924 = vpack.c.b16 %v5880, %v5878
        %v5925 = vpack.c.b16 %v5883, %v5881
        %v5926 = vpack.c.b16 %v5884, %v5882
        %v5927 = vpack.c.b16 %v5887, %v5885
        %v5928 = vpack.c.b16 %v5888, %v5886
        %v5929 = vpack.c.b16 %v5891, %v5889
        %v5930 = vpack.c.b16 %v5892, %v5890
        %v5931 = vpack.c.b16 %v5895, %v5893
        %v5932 = vpack.c.b16 %v5896, %v5894
        %v5933 = vpack.c.b16 %v5899, %v5897
        %v5934 = vpack.c.b16 %v5900, %v5898
        %v5935 = vpack.c.b16 %v5903, %v5901
        %v5936 = vpack.c.b16 %v5904, %v5902
        %5969 = vmatpush.bf16.msra.mxu0 %v5919
        %5970 = vmatpush.bf16.msra.mxu0 %v5917
        %5971 = vmatpush.bf16.msra.mxu0 %v5915
        %5972 = vmatpush.bf16.msra.mxu0 %v5913
        %5973 = vmatpush.bf16.msra.mxu0 %v5911
        %5974 = vmatpush.bf16.msra.mxu0 %v5909
        %5975 = vmatpush.bf16.msra.mxu0 %v5907
        %5976 = vmatpush.bf16.msra.mxu0 %v5905
        %5977 = vmatmul.bf16.gmra.mxu0 %v5757
        %v5978 = vpop.f32.mrf.mxu0
        %v5979 = vadd.f32 0.0, %v5978
        %v5980 = vpop.f32.mrf.mxu0
        %v5981 = vadd.f32 0.0, %v5980
        %5982 = vmatmul.bf16.gmra.mxu0 %v5759
        %v5983 = vpop.f32.mrf.mxu0
        %v5984 = vadd.f32 0.0, %v5983
        %v5985 = vpop.f32.mrf.mxu0
        %v5986 = vadd.f32 0.0, %v5985
        %5987 = vmatmul.bf16.gmra.mxu0 %v5761
        %v5988 = vpop.f32.mrf.mxu0
        %v5989 = vadd.f32 0.0, %v5988
        %v5990 = vpop.f32.mrf.mxu0
        %v5991 = vadd.f32 0.0, %v5990
        %5992 = vmatmul.bf16.gmra.mxu0 %v5763
        %v5993 = vpop.f32.mrf.mxu0
        %v5994 = vadd.f32 0.0, %v5993
        %v5995 = vpop.f32.mrf.mxu0
        %v5996 = vadd.f32 0.0, %v5995
        %5997 = vmatmul.bf16.gmra.mxu0 %v5765
        %v5998 = vpop.f32.mrf.mxu0
        %v5999 = vadd.f32 0.0, %v5998
        %v6000 = vpop.f32.mrf.mxu0
        %v6001 = vadd.f32 0.0, %v6000
        %6002 = vmatmul.bf16.gmra.mxu0 %v5767
        %v6003 = vpop.f32.mrf.mxu0
        %v6004 = vadd.f32 0.0, %v6003
        %v6005 = vpop.f32.mrf.mxu0
        %v6006 = vadd.f32 0.0, %v6005
        %6007 = vmatmul.bf16.gmra.mxu0 %v5769
        %v6008 = vpop.f32.mrf.mxu0
        %v6009 = vadd.f32 0.0, %v6008
        %v6010 = vpop.f32.mrf.mxu0
        %v6011 = vadd.f32 0.0, %v6010
        %6012 = vmatmul.bf16.gmra.mxu0 %v5771
        %v6013 = vpop.f32.mrf.mxu0
        %v6014 = vadd.f32 0.0, %v6013
        %v6015 = vpop.f32.mrf.mxu0
        %v6016 = vadd.f32 0.0, %v6015
        %6017 = vmatmul.bf16.gmra.mxu0 %v5773
        %v6018 = vpop.f32.mrf.mxu0
        %v6019 = vadd.f32 0.0, %v6018
        %v6020 = vpop.f32.mrf.mxu0
        %v6021 = vadd.f32 0.0, %v6020
        %6022 = vmatmul.bf16.gmra.mxu0 %v5775
        %v6023 = vpop.f32.mrf.mxu0
        %v6024 = vadd.f32 0.0, %v6023
        %v6025 = vpop.f32.mrf.mxu0
        %v6026 = vadd.f32 0.0, %v6025
        %6027 = vmatmul.bf16.gmra.mxu0 %v5777
        %v6028 = vpop.f32.mrf.mxu0
        %v6029 = vadd.f32 0.0, %v6028
        %v6030 = vpop.f32.mrf.mxu0
        %v6031 = vadd.f32 0.0, %v6030
        %6032 = vmatmul.bf16.gmra.mxu0 %v5779
        %v6033 = vpop.f32.mrf.mxu0
        %v6034 = vadd.f32 0.0, %v6033
        %v6035 = vpop.f32.mrf.mxu0
        %v6036 = vadd.f32 0.0, %v6035
        %6037 = vmatmul.bf16.gmra.mxu0 %v5781
        %v6038 = vpop.f32.mrf.mxu0
        %v6039 = vadd.f32 0.0, %v6038
        %v6040 = vpop.f32.mrf.mxu0
        %6041 = vdwg.mxu0
        %6042 = vmatpush.bf16.msra.mxu0 %v5935
        %6043 = vmatpush.bf16.msra.mxu0 %v5933
        %6044 = vmatpush.bf16.msra.mxu0 %v5931
        %6045 = vmatpush.bf16.msra.mxu0 %v5929
        %6046 = vmatpush.bf16.msra.mxu0 %v5927
        %6047 = vmatpush.bf16.msra.mxu0 %v5925
        %6048 = vmatpush.bf16.msra.mxu0 %v5923
        %6049 = vmatpush.bf16.msra.mxu0 %v5921
        %6050 = vmatmul.bf16.gmra.mxu0 %v5758
        %v6051 = vpop.f32.mrf.mxu0
        %v6052 = vadd.f32 %v5979, %v6051
        %v6053 = vpop.f32.mrf.mxu0
        %v6054 = vadd.f32 %v5981, %v6053
        %6055 = vmatmul.bf16.gmra.mxu0 %v5760
        %v6056 = vpop.f32.mrf.mxu0
        %v6057 = vadd.f32 %v5984, %v6056
        %v6058 = vpop.f32.mrf.mxu0
        %v6059 = vadd.f32 %v5986, %v6058
        %6060 = vmatmul.bf16.gmra.mxu0 %v5762
        %v6061 = vpop.f32.mrf.mxu0
        %v6062 = vadd.f32 %v5989, %v6061
        %v6063 = vpop.f32.mrf.mxu0
        %v6064 = vadd.f32 %v5991, %v6063
        %6065 = vmatmul.bf16.gmra.mxu0 %v5764
        %v6066 = vpop.f32.mrf.mxu0
        %v6067 = vadd.f32 %v5994, %v6066
        %v6068 = vpop.f32.mrf.mxu0
        %v6069 = vadd.f32 %v5996, %v6068
        %6070 = vmatmul.bf16.gmra.mxu0 %v5766
        %v6071 = vpop.f32.mrf.mxu0
        %v6072 = vadd.f32 %v5999, %v6071
        %v6073 = vpop.f32.mrf.mxu0
        %v6074 = vadd.f32 %v6001, %v6073
        %6075 = vmatmul.bf16.gmra.mxu0 %v5768
        %v6076 = vpop.f32.mrf.mxu0
        %v6077 = vadd.f32 %v6004, %v6076
        %v6078 = vpop.f32.mrf.mxu0
        %v6079 = vadd.f32 %v6006, %v6078
        %6080 = vmatmul.bf16.gmra.mxu0 %v5770
        %v6081 = vpop.f32.mrf.mxu0
        %v6082 = vadd.f32 %v6009, %v6081
        %v6083 = vpop.f32.mrf.mxu0
        %v6084 = vadd.f32 %v6011, %v6083
        %6085 = vmatmul.bf16.gmra.mxu0 %v5772
        %v6086 = vpop.f32.mrf.mxu0
        %v6087 = vadd.f32 %v6014, %v6086
        %v6088 = vpop.f32.mrf.mxu0
        %v6089 = vadd.f32 %v6016, %v6088
        %6090 = vmatmul.bf16.gmra.mxu0 %v5774
        %v6091 = vpop.f32.mrf.mxu0
        %v6092 = vadd.f32 %v6019, %v6091
        %v6093 = vpop.f32.mrf.mxu0
        %v6094 = vadd.f32 %v6021, %v6093
        %6095 = vmatmul.bf16.gmra.mxu0 %v5776
        %v6096 = vpop.f32.mrf.mxu0
        %v6097 = vadd.f32 %v6024, %v6096
        %v6098 = vpop.f32.mrf.mxu0
        %v6099 = vadd.f32 %v6026, %v6098
        %6100 = vmatmul.bf16.gmra.mxu0 %v5778
        %v6101 = vpop.f32.mrf.mxu0
        %v6102 = vadd.f32 %v6029, %v6101
        %v6103 = vpop.f32.mrf.mxu0
        %v6104 = vadd.f32 %v6031, %v6103
        %6105 = vmatmul.bf16.gmra.mxu0 %v5780
        %v6106 = vpop.f32.mrf.mxu0
        %v6107 = vadd.f32 %v6034, %v6106
        %v6108 = vpop.f32.mrf.mxu0
        %v6109 = vadd.f32 %v6036, %v6108
        %6110 = vmatmul.bf16.gmra.mxu0 %v5782
        %v6111 = vpop.f32.mrf.mxu0
        %v6112 = vadd.f32 %v6039, %v6111
        %v6113 = vpop.f32.mrf.mxu0
        %6114 = vdwg.mxu0
        %6115 = vmatpush.bf16.msra.mxu0 %v5920
        %6116 = vmatpush.bf16.msra.mxu0 %v5918
        %6117 = vmatpush.bf16.msra.mxu0 %v5916
        %6118 = vmatpush.bf16.msra.mxu0 %v5914
        %6119 = vmatpush.bf16.msra.mxu0 %v5912
        %6120 = vmatpush.bf16.msra.mxu0 %v5910
        %6121 = vmatpush.bf16.msra.mxu0 %v5908
        %6122 = vmatpush.bf16.msra.mxu0 %v5906
        %6123 = vmatmul.bf16.gmra.mxu0 %v5757
        %v6124 = vpop.f32.mrf.mxu0
        %v6125 = vadd.f32 0.0, %v6124
        %v6126 = vpop.f32.mrf.mxu0
        %v6127 = vadd.f32 0.0, %v6126
        %6128 = vmatmul.bf16.gmra.mxu0 %v5759
        %v6129 = vpop.f32.mrf.mxu0
        %v6130 = vadd.f32 0.0, %v6129
        %v6131 = vpop.f32.mrf.mxu0
        %v6132 = vadd.f32 0.0, %v6131
        %6133 = vmatmul.bf16.gmra.mxu0 %v5761
        %v6134 = vpop.f32.mrf.mxu0
        %v6135 = vadd.f32 0.0, %v6134
        %v6136 = vpop.f32.mrf.mxu0
        %v6137 = vadd.f32 0.0, %v6136
        %6138 = vmatmul.bf16.gmra.mxu0 %v5763
        %v6139 = vpop.f32.mrf.mxu0
        %v6140 = vadd.f32 0.0, %v6139
        %v6141 = vpop.f32.mrf.mxu0
        %v6142 = vadd.f32 0.0, %v6141
        %6143 = vmatmul.bf16.gmra.mxu0 %v5765
        %v6144 = vpop.f32.mrf.mxu0
        %v6145 = vadd.f32 0.0, %v6144
        %v6146 = vpop.f32.mrf.mxu0
        %v6147 = vadd.f32 0.0, %v6146
        %6148 = vmatmul.bf16.gmra.mxu0 %v5767
        %v6149 = vpop.f32.mrf.mxu0
        %v6150 = vadd.f32 0.0, %v6149
        %v6151 = vpop.f32.mrf.mxu0
        %v6152 = vadd.f32 0.0, %v6151
        %6153 = vmatmul.bf16.gmra.mxu0 %v5769
        %v6154 = vpop.f32.mrf.mxu0
        %v6155 = vadd.f32 0.0, %v6154
        %v6156 = vpop.f32.mrf.mxu0
        %v6157 = vadd.f32 0.0, %v6156
        %6158 = vmatmul.bf16.gmra.mxu0 %v5771
        %v6159 = vpop.f32.mrf.mxu0
        %v6160 = vadd.f32 0.0, %v6159
        %v6161 = vpop.f32.mrf.mxu0
        %v6162 = vadd.f32 0.0, %v6161
        %6163 = vmatmul.bf16.gmra.mxu0 %v5773
        %v6164 = vpop.f32.mrf.mxu0
        %v6165 = vadd.f32 0.0, %v6164
        %v6166 = vpop.f32.mrf.mxu0
        %v6167 = vadd.f32 0.0, %v6166
        %6168 = vmatmul.bf16.gmra.mxu0 %v5775
        %v6169 = vpop.f32.mrf.mxu0
        %v6170 = vadd.f32 0.0, %v6169
        %v6171 = vpop.f32.mrf.mxu0
        %v6172 = vadd.f32 0.0, %v6171
        %6173 = vmatmul.bf16.gmra.mxu0 %v5777
        %v6174 = vpop.f32.mrf.mxu0
        %v6175 = vadd.f32 0.0, %v6174
        %v6176 = vpop.f32.mrf.mxu0
        %v6177 = vadd.f32 0.0, %v6176
        %6178 = vmatmul.bf16.gmra.mxu0 %v5779
        %v6179 = vpop.f32.mrf.mxu0
        %v6180 = vadd.f32 0.0, %v6179
        %v6181 = vpop.f32.mrf.mxu0
        %v6182 = vadd.f32 0.0, %v6181
        %6183 = vmatmul.bf16.gmra.mxu0 %v5781
        %v6184 = vpop.f32.mrf.mxu0
        %v6185 = vadd.f32 0.0, %v6184
        %v6186 = vpop.f32.mrf.mxu0
        %6187 = vdwg.mxu0
        %6188 = vmatpush.bf16.msra.mxu0 %v5936
        %6189 = vmatpush.bf16.msra.mxu0 %v5934
        %6190 = vmatpush.bf16.msra.mxu0 %v5932
        %6191 = vmatpush.bf16.msra.mxu0 %v5930
        %6192 = vmatpush.bf16.msra.mxu0 %v5928
        %6193 = vmatpush.bf16.msra.mxu0 %v5926
        %6194 = vmatpush.bf16.msra.mxu0 %v5924
        %6195 = vmatpush.bf16.msra.mxu0 %v5922
        %6196 = vmatmul.bf16.gmra.mxu0 %v5758
        %v6197 = vpop.f32.mrf.mxu0
        %v6198 = vadd.f32 %v6125, %v6197
        %v6199 = vpop.f32.mrf.mxu0
        %v6200 = vadd.f32 %v6127, %v6199
        %6201 = vmatmul.bf16.gmra.mxu0 %v5760
        %v6202 = vpop.f32.mrf.mxu0
        %v6203 = vadd.f32 %v6130, %v6202
        %v6204 = vpop.f32.mrf.mxu0
        %v6205 = vadd.f32 %v6132, %v6204
        %6206 = vmatmul.bf16.gmra.mxu0 %v5762
        %v6207 = vpop.f32.mrf.mxu0
        %v6208 = vadd.f32 %v6135, %v6207
        %v6209 = vpop.f32.mrf.mxu0
        %v6210 = vadd.f32 %v6137, %v6209
        %6211 = vmatmul.bf16.gmra.mxu0 %v5764
        %v6212 = vpop.f32.mrf.mxu0
        %v6213 = vadd.f32 %v6140, %v6212
        %v6214 = vpop.f32.mrf.mxu0
        %v6215 = vadd.f32 %v6142, %v6214
        %6216 = vmatmul.bf16.gmra.mxu0 %v5766
        %v6217 = vpop.f32.mrf.mxu0
        %v6218 = vadd.f32 %v6145, %v6217
        %v6219 = vpop.f32.mrf.mxu0
        %v6220 = vadd.f32 %v6147, %v6219
        %6221 = vmatmul.bf16.gmra.mxu0 %v5768
        %v6222 = vpop.f32.mrf.mxu0
        %v6223 = vadd.f32 %v6150, %v6222
        %v6224 = vpop.f32.mrf.mxu0
        %v6225 = vadd.f32 %v6152, %v6224
        %6226 = vmatmul.bf16.gmra.mxu0 %v5770
        %v6227 = vpop.f32.mrf.mxu0
        %v6228 = vadd.f32 %v6155, %v6227
        %v6229 = vpop.f32.mrf.mxu0
        %v6230 = vadd.f32 %v6157, %v6229
        %6231 = vmatmul.bf16.gmra.mxu0 %v5772
        %v6232 = vpop.f32.mrf.mxu0
        %v6233 = vadd.f32 %v6160, %v6232
        %v6234 = vpop.f32.mrf.mxu0
        %v6235 = vadd.f32 %v6162, %v6234
        %6236 = vmatmul.bf16.gmra.mxu0 %v5774
        %v6237 = vpop.f32.mrf.mxu0
        %v6238 = vadd.f32 %v6165, %v6237
        %v6239 = vpop.f32.mrf.mxu0
        %v6240 = vadd.f32 %v6167, %v6239
        %6241 = vmatmul.bf16.gmra.mxu0 %v5776
        %v6242 = vpop.f32.mrf.mxu0
        %v6243 = vadd.f32 %v6170, %v6242
        %v6244 = vpop.f32.mrf.mxu0
        %v6245 = vadd.f32 %v6172, %v6244
        %6246 = vmatmul.bf16.gmra.mxu0 %v5778
        %v6247 = vpop.f32.mrf.mxu0
        %v6248 = vadd.f32 %v6175, %v6247
        %v6249 = vpop.f32.mrf.mxu0
        %v6250 = vadd.f32 %v6177, %v6249
        %6251 = vmatmul.bf16.gmra.mxu0 %v5780
        %v6252 = vpop.f32.mrf.mxu0
        %v6253 = vadd.f32 %v6180, %v6252
        %v6254 = vpop.f32.mrf.mxu0
        %v6255 = vadd.f32 %v6182, %v6254
        %6256 = vmatmul.bf16.gmra.mxu0 %v5782
        %v6257 = vpop.f32.mrf.mxu0
        %v6258 = vadd.f32 %v6185, %v6257
        %v6259 = vpop.f32.mrf.mxu0
        %6260 = vdwg.mxu0
        %v6261 = vld [vmem:[#allocation3] sm:$0xff]
        %v6262 = vld [vmem:[#allocation3 + $0x8] sm:$0xff]
        %v6263 = vld [vmem:[#allocation3 + $0x10] sm:$0xff]
        %v6264 = vld [vmem:[#allocation3 + $0x18] sm:$0xff]
        %v6265 = vld [vmem:[#allocation3 + $0x20] sm:$0xff]
        %v6266 = vld [vmem:[#allocation3 + $0x28] sm:$0xff]
        %v6267 = vld [vmem:[#allocation3 + $0x30] sm:$0xff]
        %v6268 = vld [vmem:[#allocation3 + $0x38] sm:$0xff]
        %v6269 = vld [vmem:[#allocation3 + $0x40] sm:$0xff]
        %v6270 = vld [vmem:[#allocation3 + $0x48] sm:$0xff]
        %v6271 = vld [vmem:[#allocation3 + $0x50] sm:$0xff]
        %v6272 = vld [vmem:[#allocation3 + $0x58] sm:$0xff]
        %v6273 = vld [vmem:[#allocation3 + $0x60] sm:$0xff]
        %v6274 = vld [vmem:[#allocation3 + $0x68] sm:$0xff]
        %v6275 = vld [vmem:[#allocation3 + $0x70] sm:$0xff]
        %v6276 = vld [vmem:[#allocation3 + $0x78] sm:$0xff]
        %v6277 = vld [vmem:[#allocation3 + $0x80] sm:$0xff]
        %v6278 = vld [vmem:[#allocation3 + $0x88] sm:$0xff]
        %v6279 = vld [vmem:[#allocation3 + $0x90] sm:$0xff]
        %v6280 = vld [vmem:[#allocation3 + $0x98] sm:$0xff]
        %v6281 = vld [vmem:[#allocation3 + $0xa0] sm:$0xff]
        %v6282 = vld [vmem:[#allocation3 + $0xa8] sm:$0xff]
        %v6283 = vld [vmem:[#allocation3 + $0xb0] sm:$0xff]
        %v6284 = vld [vmem:[#allocation3 + $0xb8] sm:$0xff]
        %v6285 = vld [vmem:[#allocation3 + $0xc0] sm:$0xff]
        %v6286 = vld [vmem:[#allocation3 + $0xc8] sm:$0xff]
        %v6287 = vld [vmem:[#allocation3 + $0xd0] sm:$0xff]
        %v6288 = vld [vmem:[#allocation3 + $0xd8] sm:$0xff]
        %v6289 = vld [vmem:[#allocation3 + $0xe0] sm:$0xff]
        %v6290 = vld [vmem:[#allocation3 + $0xe8] sm:$0xff]
        %v6291 = vld [vmem:[#allocation3 + $0xf0] sm:$0xff]
        %v6292 = vld [vmem:[#allocation3 + $0xf8] sm:$0xff]
        %v6293 = vld [vmem:[#allocation3 + $0x100] sm:$0xff]
        %v6294 = vld [vmem:[#allocation3 + $0x108] sm:$0xff]
        %v6295 = vld [vmem:[#allocation3 + $0x110] sm:$0xff]
        %v6296 = vld [vmem:[#allocation3 + $0x118] sm:$0xff]
        %v6297 = vld [vmem:[#allocation3 + $0x120] sm:$0xff]
        %v6298 = vld [vmem:[#allocation3 + $0x128] sm:$0xff]
        %v6299 = vld [vmem:[#allocation3 + $0x130] sm:$0xff]
        %v6300 = vld [vmem:[#allocation3 + $0x138] sm:$0xff]
        %v6301 = vld [vmem:[#allocation3 + $0x140] sm:$0xff]
        %v6302 = vld [vmem:[#allocation3 + $0x148] sm:$0xff]
        %v6303 = vld [vmem:[#allocation3 + $0x150] sm:$0xff]
        %v6304 = vld [vmem:[#allocation3 + $0x158] sm:$0xff]
        %v6305 = vld [vmem:[#allocation3 + $0x160] sm:$0xff]
        %v6306 = vld [vmem:[#allocation3 + $0x168] sm:$0xff]
        %v6307 = vld [vmem:[#allocation3 + $0x170] sm:$0xff]
        %v6308 = vld [vmem:[#allocation3 + $0x178] sm:$0xff]
        %v6309 = vld [vmem:[#allocation3 + $0x180] sm:$0xf]
        %v6310 = vld [vmem:[#allocation3 + $0x188] sm:$0xf]
        %v6311 = vadd.f32 %v6261, %v6052
        %v6312 = vadd.f32 %v6262, %v6198
        %v6313 = vadd.f32 %v6263, %v6054
        %v6314 = vadd.f32 %v6264, %v6200
        %v6315 = vadd.f32 %v6265, %v6057
        %v6316 = vadd.f32 %v6266, %v6203
        %v6317 = vadd.f32 %v6267, %v6059
        %v6318 = vadd.f32 %v6268, %v6205
        %v6319 = vadd.f32 %v6269, %v6062
        %v6320 = vadd.f32 %v6270, %v6208
        %v6321 = vadd.f32 %v6271, %v6064
        %v6322 = vadd.f32 %v6272, %v6210
        %v6323 = vadd.f32 %v6273, %v6067
        %v6324 = vadd.f32 %v6274, %v6213
        %v6325 = vadd.f32 %v6275, %v6069
        %v6326 = vadd.f32 %v6276, %v6215
        %v6327 = vadd.f32 %v6277, %v6072
        %v6328 = vadd.f32 %v6278, %v6218
        %v6329 = vadd.f32 %v6279, %v6074
        %v6330 = vadd.f32 %v6280, %v6220
        %v6331 = vadd.f32 %v6281, %v6077
        %v6332 = vadd.f32 %v6282, %v6223
        %v6333 = vadd.f32 %v6283, %v6079
        %v6334 = vadd.f32 %v6284, %v6225
        %v6335 = vadd.f32 %v6285, %v6082
        %v6336 = vadd.f32 %v6286, %v6228
        %v6337 = vadd.f32 %v6287, %v6084
        %v6338 = vadd.f32 %v6288, %v6230
        %v6339 = vadd.f32 %v6289, %v6087
        %v6340 = vadd.f32 %v6290, %v6233
        %v6341 = vadd.f32 %v6291, %v6089
        %v6342 = vadd.f32 %v6292, %v6235
        %v6343 = vadd.f32 %v6293, %v6092
        %v6344 = vadd.f32 %v6294, %v6238
        %v6345 = vadd.f32 %v6295, %v6094
        %v6346 = vadd.f32 %v6296, %v6240
        %v6347 = vadd.f32 %v6297, %v6097
        %v6348 = vadd.f32 %v6298, %v6243
        %v6349 = vadd.f32 %v6299, %v6099
        %v6350 = vadd.f32 %v6300, %v6245
        %v6351 = vadd.f32 %v6301, %v6102
        %v6352 = vadd.f32 %v6302, %v6248
        %v6353 = vadd.f32 %v6303, %v6104
        %v6354 = vadd.f32 %v6304, %v6250
        %v6355 = vadd.f32 %v6305, %v6107
        %v6356 = vadd.f32 %v6306, %v6253
        %v6357 = vadd.f32 %v6307, %v6109
        %v6358 = vadd.f32 %v6308, %v6255
        %v6359 = vadd.f32 %v6309, %v6112
        %v6360 = vadd.f32 %v6310, %v6258
        %6361 = vst [vmem:[#allocation3] sm:$0xff] %v6311
        %6362 = vst [vmem:[#allocation3 + $0x8] sm:$0xff] %v6312
        %6363 = vst [vmem:[#allocation3 + $0x10] sm:$0xff] %v6313
        %6364 = vst [vmem:[#allocation3 + $0x18] sm:$0xff] %v6314
        %6365 = vst [vmem:[#allocation3 + $0x20] sm:$0xff] %v6315
        %6366 = vst [vmem:[#allocation3 + $0x28] sm:$0xff] %v6316
        %6367 = vst [vmem:[#allocation3 + $0x30] sm:$0xff] %v6317
        %6368 = vst [vmem:[#allocation3 + $0x38] sm:$0xff] %v6318
        %6369 = vst [vmem:[#allocation3 + $0x40] sm:$0xff] %v6319
        %6370 = vst [vmem:[#allocation3 + $0x48] sm:$0xff] %v6320
        %6371 = vst [vmem:[#allocation3 + $0x50] sm:$0xff] %v6321
        %6372 = vst [vmem:[#allocation3 + $0x58] sm:$0xff] %v6322
        %6373 = vst [vmem:[#allocation3 + $0x60] sm:$0xff] %v6323
        %6374 = vst [vmem:[#allocation3 + $0x68] sm:$0xff] %v6324
        %6375 = vst [vmem:[#allocation3 + $0x70] sm:$0xff] %v6325
        %6376 = vst [vmem:[#allocation3 + $0x78] sm:$0xff] %v6326
        %6377 = vst [vmem:[#allocation3 + $0x80] sm:$0xff] %v6327
        %6378 = vst [vmem:[#allocation3 + $0x88] sm:$0xff] %v6328
        %6379 = vst [vmem:[#allocation3 + $0x90] sm:$0xff] %v6329
        %6380 = vst [vmem:[#allocation3 + $0x98] sm:$0xff] %v6330
        %6381 = vst [vmem:[#allocation3 + $0xa0] sm:$0xff] %v6331
        %6382 = vst [vmem:[#allocation3 + $0xa8] sm:$0xff] %v6332
        %6383 = vst [vmem:[#allocation3 + $0xb0] sm:$0xff] %v6333
        %6384 = vst [vmem:[#allocation3 + $0xb8] sm:$0xff] %v6334
        %6385 = vst [vmem:[#allocation3 + $0xc0] sm:$0xff] %v6335
        %6386 = vst [vmem:[#allocation3 + $0xc8] sm:$0xff] %v6336
        %6387 = vst [vmem:[#allocation3 + $0xd0] sm:$0xff] %v6337
        %6388 = vst [vmem:[#allocation3 + $0xd8] sm:$0xff] %v6338
        %6389 = vst [vmem:[#allocation3 + $0xe0] sm:$0xff] %v6339
        %6390 = vst [vmem:[#allocation3 + $0xe8] sm:$0xff] %v6340
        %6391 = vst [vmem:[#allocation3 + $0xf0] sm:$0xff] %v6341
        %6392 = vst [vmem:[#allocation3 + $0xf8] sm:$0xff] %v6342
        %6393 = vst [vmem:[#allocation3 + $0x100] sm:$0xff] %v6343
        %6394 = vst [vmem:[#allocation3 + $0x108] sm:$0xff] %v6344
        %6395 = vst [vmem:[#allocation3 + $0x110] sm:$0xff] %v6345
        %6396 = vst [vmem:[#allocation3 + $0x118] sm:$0xff] %v6346
        %6397 = vst [vmem:[#allocation3 + $0x120] sm:$0xff] %v6347
        %6398 = vst [vmem:[#allocation3 + $0x128] sm:$0xff] %v6348
        %6399 = vst [vmem:[#allocation3 + $0x130] sm:$0xff] %v6349
        %6400 = vst [vmem:[#allocation3 + $0x138] sm:$0xff] %v6350
        %6401 = vst [vmem:[#allocation3 + $0x140] sm:$0xff] %v6351
        %6402 = vst [vmem:[#allocation3 + $0x148] sm:$0xff] %v6352
        %6403 = vst [vmem:[#allocation3 + $0x150] sm:$0xff] %v6353
        %6404 = vst [vmem:[#allocation3 + $0x158] sm:$0xff] %v6354
        %6405 = vst [vmem:[#allocation3 + $0x160] sm:$0xff] %v6355
        %6406 = vst [vmem:[#allocation3 + $0x168] sm:$0xff] %v6356
        %6407 = vst [vmem:[#allocation3 + $0x170] sm:$0xff] %v6357
        %6408 = vst [vmem:[#allocation3 + $0x178] sm:$0xff] %v6358
        %6409 = vst [vmem:[#allocation3 + $0x180] sm:$0xf] %v6359
        %6410 = vst [vmem:[#allocation3 + $0x188] sm:$0xf] %v6360
        %v6411 = vld [vmem:[%s1492 + $0x10] sm:$0xff]
        %v6412 = vld [vmem:[%s1492 + $0x18] sm:$0xff]
        %v6413 = vld [vmem:[%s1492 + $0x20] sm:$0xff]
        %v6414 = vld [vmem:[%s1492 + $0x28] sm:$0xff]
        %v6415 = vld [vmem:[%s1492 + $0x30] sm:$0xff]
        %v6416 = vld [vmem:[%s1492 + $0x38] sm:$0xff]
        %v6417 = vld [vmem:[%s1492 + $0x40] sm:$0xff]
        %v6418 = vld [vmem:[%s1492 + $0x48] sm:$0xff]
        %v6419 = vld [vmem:[%s1492 + $0x50] sm:$0xff]
        %v6420 = vld [vmem:[%s1492 + $0x58] sm:$0xff]
        %v6421 = vld [vmem:[%s1492 + $0x60] sm:$0xff]
        %v6422 = vld [vmem:[%s1492 + $0x68] sm:$0xff]
        %v6423 = vld [vmem:[%s1492 + $0x70] sm:$0xff]
        %v6424 = vld [vmem:[%s1492 + $0x78] sm:$0xff]
        %v6425 = vld [vmem:[%s1492 + $0x80] sm:$0xff]
        %v6426 = vld [vmem:[%s1492 + $0x88] sm:$0xff]
        %v6427 = vld [vmem:[%s1492 + $0x90] sm:$0xff]
        %v6428 = vld [vmem:[%s1492 + $0x98] sm:$0xff]
        %v6429 = vld [vmem:[%s1492 + $0xa0] sm:$0xff]
        %v6430 = vld [vmem:[%s1492 + $0xa8] sm:$0xff]
        %v6431 = vld [vmem:[%s1492 + $0xb0] sm:$0xff]
        %v6432 = vld [vmem:[%s1492 + $0xb8] sm:$0xff]
        %v6433 = vld [vmem:[%s1492 + $0xc0] sm:$0xff]
        %v6434 = vld [vmem:[%s1492 + $0xc8] sm:$0xff]
        %v6435 = vld [vmem:[%s1492 + $0xd0] sm:$0x77]
        %s6436 = scalar_lea.vmem [#allocation9], 1280
        %v6437 = vld [vmem:[%s6436] sm:$0xff]
        %v6438 = vld [vmem:[%s6436 + $0x8] sm:$0xff]
        %v6439 = vld [vmem:[%s6436 + $0x10] sm:$0xff]
        %v6440 = vld [vmem:[%s6436 + $0x18] sm:$0xff]
        %v6441 = vld [vmem:[%s6436 + $0x20] sm:$0xff]
        %v6442 = vld [vmem:[%s6436 + $0x28] sm:$0xff]
        %v6443 = vld [vmem:[%s6436 + $0x30] sm:$0xff]
        %v6444 = vld [vmem:[%s6436 + $0x38] sm:$0xff]
        %v6445 = vld [vmem:[%s6436 + $0x40] sm:$0xff]
        %v6446 = vld [vmem:[%s6436 + $0x48] sm:$0xff]
        %v6447 = vld [vmem:[%s6436 + $0x50] sm:$0xff]
        %v6448 = vld [vmem:[%s6436 + $0x58] sm:$0xff]
        %v6449 = vld [vmem:[%s6436 + $0x60] sm:$0xff]
        %v6450 = vld [vmem:[%s6436 + $0x68] sm:$0xff]
        %v6451 = vld [vmem:[%s6436 + $0x70] sm:$0xff]
        %v6452 = vld [vmem:[%s6436 + $0x78] sm:$0xff]
        %v6453 = vld [vmem:[%s6436 + $0x80] sm:$0xff]
        %v6454 = vld [vmem:[%s6436 + $0x88] sm:$0xff]
        %v6455 = vld [vmem:[%s6436 + $0x90] sm:$0xff]
        %v6456 = vld [vmem:[%s6436 + $0x98] sm:$0xff]
        %v6457 = vld [vmem:[%s6436 + $0xa0] sm:$0xff]
        %v6458 = vld [vmem:[%s6436 + $0xa8] sm:$0xff]
        %v6459 = vld [vmem:[%s6436 + $0xb0] sm:$0xff]
        %v6460 = vld [vmem:[%s6436 + $0xb8] sm:$0xff]
        %v6461 = vld [vmem:[%s6436 + $0xc0] sm:$0xff]
        %v6462 = vld [vmem:[%s6436 + $0xc8] sm:$0xff]
        %v6463 = vld [vmem:[%s6436 + $0xd0] sm:$0xff]
        %v6464 = vld [vmem:[%s6436 + $0xd8] sm:$0xff]
        %v6465 = vld [vmem:[%s6436 + $0xe0] sm:$0xff]
        %v6466 = vld [vmem:[%s6436 + $0xe8] sm:$0xff]
        %v6467 = vld [vmem:[%s6436 + $0xf0] sm:$0xff]
        %v6468 = vld [vmem:[%s6436 + $0xf8] sm:$0xff]
        %v6494 = vunpack.c.l.b16 %v6411
        %v6495 = vunpack.c.h.b16 %v6411
        %v6496 = vunpack.c.l.b16 %v6412
        %v6497 = vunpack.c.h.b16 %v6412
        %v6498 = vunpack.c.l.b16 %v6413
        %v6499 = vunpack.c.h.b16 %v6413
        %v6500 = vunpack.c.l.b16 %v6414
        %v6501 = vunpack.c.h.b16 %v6414
        %v6502 = vunpack.c.l.b16 %v6415
        %v6503 = vunpack.c.h.b16 %v6415
        %v6504 = vunpack.c.l.b16 %v6416
        %v6505 = vunpack.c.h.b16 %v6416
        %v6506 = vunpack.c.l.b16 %v6417
        %v6507 = vunpack.c.h.b16 %v6417
        %v6508 = vunpack.c.l.b16 %v6418
        %v6509 = vunpack.c.h.b16 %v6418
        %v6510 = vunpack.c.l.b16 %v6419
        %v6511 = vunpack.c.h.b16 %v6419
        %v6512 = vunpack.c.l.b16 %v6420
        %v6513 = vunpack.c.h.b16 %v6420
        %v6514 = vunpack.c.l.b16 %v6421
        %v6515 = vunpack.c.h.b16 %v6421
        %v6516 = vunpack.c.l.b16 %v6422
        %v6517 = vunpack.c.h.b16 %v6422
        %v6518 = vunpack.c.l.b16 %v6423
        %v6519 = vunpack.c.h.b16 %v6423
        %v6520 = vunpack.c.l.b16 %v6424
        %v6521 = vunpack.c.h.b16 %v6424
        %v6522 = vunpack.c.l.b16 %v6425
        %v6523 = vunpack.c.h.b16 %v6425
        %v6524 = vunpack.c.l.b16 %v6426
        %v6525 = vunpack.c.h.b16 %v6426
        %v6526 = vunpack.c.l.b16 %v6427
        %v6527 = vunpack.c.h.b16 %v6427
        %v6528 = vunpack.c.l.b16 %v6428
        %v6529 = vunpack.c.h.b16 %v6428
        %v6530 = vunpack.c.l.b16 %v6429
        %v6531 = vunpack.c.h.b16 %v6429
        %v6532 = vunpack.c.l.b16 %v6430
        %v6533 = vunpack.c.h.b16 %v6430
        %v6534 = vunpack.c.l.b16 %v6431
        %v6535 = vunpack.c.h.b16 %v6431
        %v6536 = vunpack.c.l.b16 %v6432
        %v6537 = vunpack.c.h.b16 %v6432
        %v6538 = vunpack.c.l.b16 %v6433
        %v6539 = vunpack.c.h.b16 %v6433
        %v6540 = vunpack.c.l.b16 %v6434
        %v6541 = vunpack.c.h.b16 %v6434
        %v6542 = vunpack.c.l.b16 %v6435
        %v6543 = vunpack.c.h.b16 %v6435
        %v6544 = vpack.c.b16 %v6496, %v6494
        %v6545 = vpack.c.b16 %v6497, %v6495
        %v6546 = vpack.c.b16 %v6500, %v6498
        %v6547 = vpack.c.b16 %v6501, %v6499
        %v6548 = vpack.c.b16 %v6504, %v6502
        %v6549 = vpack.c.b16 %v6505, %v6503
        %v6550 = vpack.c.b16 %v6508, %v6506
        %v6551 = vpack.c.b16 %v6509, %v6507
        %v6552 = vpack.c.b16 %v6512, %v6510
        %v6553 = vpack.c.b16 %v6513, %v6511
        %v6554 = vpack.c.b16 %v6516, %v6514
        %v6555 = vpack.c.b16 %v6517, %v6515
        %v6556 = vpack.c.b16 %v6520, %v6518
        %v6557 = vpack.c.b16 %v6521, %v6519
        %v6558 = vpack.c.b16 %v6524, %v6522
        %v6559 = vpack.c.b16 %v6525, %v6523
        %v6560 = vpack.c.b16 %v6528, %v6526
        %v6561 = vpack.c.b16 %v6529, %v6527
        %v6562 = vpack.c.b16 %v6532, %v6530
        %v6563 = vpack.c.b16 %v6533, %v6531
        %v6564 = vpack.c.b16 %v6536, %v6534
        %v6565 = vpack.c.b16 %v6537, %v6535
        %v6566 = vpack.c.b16 %v6540, %v6538
        %v6567 = vpack.c.b16 %v6541, %v6539
        %v6568 = vpack.c.b16 %v6542, %v6542
        %v6569 = vpack.c.b16 %v6543, %v6543
        %v6571 = vshrl.u32 %v6544, 16
        %v6573 = vshll.u32 %v6544, 16
        %v6575 = vrot.slane %v6573, 1
        %v6576 = vor.u32 %v6571, %v6575
        %v6578 = vshll.u32 %v6546, 16
        %v6580 = vrot.slane %v6578, 1
        %v6581 = vsel %vm2007, %v6576, %v6580
        %v6583 = vshrl.u32 %v6545, 16
        %v6585 = vshll.u32 %v6545, 16
        %v6587 = vrot.slane %v6585, 1
        %v6588 = vor.u32 %v6583, %v6587
        %v6590 = vshll.u32 %v6547, 16
        %v6592 = vrot.slane %v6590, 1
        %v6593 = vsel %vm2007, %v6588, %v6592
        %v6594 = vshrl.u32 %v6546, 16
        %v6596 = vor.u32 %v6594, %v6580
        %v6598 = vshll.u32 %v6548, 16
        %v6600 = vrot.slane %v6598, 1
        %v6601 = vsel %vm2007, %v6596, %v6600
        %v6602 = vshrl.u32 %v6547, 16
        %v6604 = vor.u32 %v6602, %v6592
        %v6606 = vshll.u32 %v6549, 16
        %v6608 = vrot.slane %v6606, 1
        %v6609 = vsel %vm2007, %v6604, %v6608
        %v6610 = vshrl.u32 %v6548, 16
        %v6612 = vor.u32 %v6610, %v6600
        %v6614 = vshll.u32 %v6550, 16
        %v6616 = vrot.slane %v6614, 1
        %v6617 = vsel %vm2007, %v6612, %v6616
        %v6618 = vshrl.u32 %v6549, 16
        %v6620 = vor.u32 %v6618, %v6608
        %v6622 = vshll.u32 %v6551, 16
        %v6624 = vrot.slane %v6622, 1
        %v6625 = vsel %vm2007, %v6620, %v6624
        %v6626 = vshrl.u32 %v6550, 16
        %v6628 = vor.u32 %v6626, %v6616
        %v6630 = vshll.u32 %v6552, 16
        %v6632 = vrot.slane %v6630, 1
        %v6633 = vsel %vm2007, %v6628, %v6632
        %v6634 = vshrl.u32 %v6551, 16
        %v6636 = vor.u32 %v6634, %v6624
        %v6638 = vshll.u32 %v6553, 16
        %v6640 = vrot.slane %v6638, 1
        %v6641 = vsel %vm2007, %v6636, %v6640
        %v6642 = vshrl.u32 %v6552, 16
        %v6644 = vor.u32 %v6642, %v6632
        %v6646 = vshll.u32 %v6554, 16
        %v6648 = vrot.slane %v6646, 1
        %v6649 = vsel %vm2007, %v6644, %v6648
        %v6650 = vshrl.u32 %v6553, 16
        %v6652 = vor.u32 %v6650, %v6640
        %v6654 = vshll.u32 %v6555, 16
        %v6656 = vrot.slane %v6654, 1
        %v6657 = vsel %vm2007, %v6652, %v6656
        %v6658 = vshrl.u32 %v6554, 16
        %v6660 = vor.u32 %v6658, %v6648
        %v6662 = vshll.u32 %v6556, 16
        %v6664 = vrot.slane %v6662, 1
        %v6665 = vsel %vm2007, %v6660, %v6664
        %v6666 = vshrl.u32 %v6555, 16
        %v6668 = vor.u32 %v6666, %v6656
        %v6670 = vshll.u32 %v6557, 16
        %v6672 = vrot.slane %v6670, 1
        %v6673 = vsel %vm2007, %v6668, %v6672
        %v6674 = vshrl.u32 %v6556, 16
        %v6676 = vor.u32 %v6674, %v6664
        %v6678 = vshll.u32 %v6558, 16
        %v6680 = vrot.slane %v6678, 1
        %v6681 = vsel %vm2007, %v6676, %v6680
        %v6682 = vshrl.u32 %v6557, 16
        %v6684 = vor.u32 %v6682, %v6672
        %v6686 = vshll.u32 %v6559, 16
        %v6688 = vrot.slane %v6686, 1
        %v6689 = vsel %vm2007, %v6684, %v6688
        %v6690 = vshrl.u32 %v6558, 16
        %v6692 = vor.u32 %v6690, %v6680
        %v6694 = vshll.u32 %v6560, 16
        %v6696 = vrot.slane %v6694, 1
        %v6697 = vsel %vm2007, %v6692, %v6696
        %v6698 = vshrl.u32 %v6559, 16
        %v6700 = vor.u32 %v6698, %v6688
        %v6702 = vshll.u32 %v6561, 16
        %v6704 = vrot.slane %v6702, 1
        %v6705 = vsel %vm2007, %v6700, %v6704
        %v6706 = vshrl.u32 %v6560, 16
        %v6708 = vor.u32 %v6706, %v6696
        %v6710 = vshll.u32 %v6562, 16
        %v6712 = vrot.slane %v6710, 1
        %v6713 = vsel %vm2007, %v6708, %v6712
        %v6714 = vshrl.u32 %v6561, 16
        %v6716 = vor.u32 %v6714, %v6704
        %v6718 = vshll.u32 %v6563, 16
        %v6720 = vrot.slane %v6718, 1
        %v6721 = vsel %vm2007, %v6716, %v6720
        %v6722 = vshrl.u32 %v6562, 16
        %v6724 = vor.u32 %v6722, %v6712
        %v6726 = vshll.u32 %v6564, 16
        %v6728 = vrot.slane %v6726, 1
        %v6729 = vsel %vm2007, %v6724, %v6728
        %v6730 = vshrl.u32 %v6563, 16
        %v6732 = vor.u32 %v6730, %v6720
        %v6734 = vshll.u32 %v6565, 16
        %v6736 = vrot.slane %v6734, 1
        %v6737 = vsel %vm2007, %v6732, %v6736
        %v6738 = vshrl.u32 %v6564, 16
        %v6740 = vor.u32 %v6738, %v6728
        %v6742 = vshll.u32 %v6566, 16
        %v6744 = vrot.slane %v6742, 1
        %v6745 = vsel %vm2007, %v6740, %v6744
        %v6746 = vshrl.u32 %v6565, 16
        %v6748 = vor.u32 %v6746, %v6736
        %v6750 = vshll.u32 %v6567, 16
        %v6752 = vrot.slane %v6750, 1
        %v6753 = vsel %vm2007, %v6748, %v6752
        %v6754 = vshrl.u32 %v6566, 16
        %v6756 = vor.u32 %v6754, %v6744
        %v6758 = vshll.u32 %v6568, 16
        %v6760 = vrot.slane %v6758, 1
        %v6761 = vsel %vm2007, %v6756, %v6760
        %v6762 = vshrl.u32 %v6567, 16
        %v6764 = vor.u32 %v6762, %v6752
        %v6766 = vshll.u32 %v6569, 16
        %v6768 = vrot.slane %v6766, 1
        %v6769 = vsel %vm2007, %v6764, %v6768
        %v6770 = vshrl.u32 %v6568, 16
        %v6772 = vor.u32 %v6770, %v6760
        %v6773 = vshrl.u32 %v6569, 16
        %v6775 = vor.u32 %v6773, %v6768
        %v6834 = vunpack.c.l.b16 %v6437
        %v6835 = vunpack.c.h.b16 %v6437
        %v6836 = vunpack.c.l.b16 %v6438
        %v6837 = vunpack.c.h.b16 %v6438
        %v6838 = vunpack.c.l.b16 %v6439
        %v6839 = vunpack.c.h.b16 %v6439
        %v6840 = vunpack.c.l.b16 %v6440
        %v6841 = vunpack.c.h.b16 %v6440
        %v6842 = vunpack.c.l.b16 %v6441
        %v6843 = vunpack.c.h.b16 %v6441
        %v6844 = vunpack.c.l.b16 %v6442
        %v6845 = vunpack.c.h.b16 %v6442
        %v6846 = vunpack.c.l.b16 %v6443
        %v6847 = vunpack.c.h.b16 %v6443
        %v6848 = vunpack.c.l.b16 %v6444
        %v6849 = vunpack.c.h.b16 %v6444
        %v6850 = vunpack.c.l.b16 %v6445
        %v6851 = vunpack.c.h.b16 %v6445
        %v6852 = vunpack.c.l.b16 %v6446
        %v6853 = vunpack.c.h.b16 %v6446
        %v6854 = vunpack.c.l.b16 %v6447
        %v6855 = vunpack.c.h.b16 %v6447
        %v6856 = vunpack.c.l.b16 %v6448
        %v6857 = vunpack.c.h.b16 %v6448
        %v6858 = vunpack.c.l.b16 %v6449
        %v6859 = vunpack.c.h.b16 %v6449
        %v6860 = vunpack.c.l.b16 %v6450
        %v6861 = vunpack.c.h.b16 %v6450
        %v6862 = vunpack.c.l.b16 %v6451
        %v6863 = vunpack.c.h.b16 %v6451
        %v6864 = vunpack.c.l.b16 %v6452
        %v6865 = vunpack.c.h.b16 %v6452
        %v6866 = vunpack.c.l.b16 %v6453
        %v6867 = vunpack.c.h.b16 %v6453
        %v6868 = vunpack.c.l.b16 %v6454
        %v6869 = vunpack.c.h.b16 %v6454
        %v6870 = vunpack.c.l.b16 %v6455
        %v6871 = vunpack.c.h.b16 %v6455
        %v6872 = vunpack.c.l.b16 %v6456
        %v6873 = vunpack.c.h.b16 %v6456
        %v6874 = vunpack.c.l.b16 %v6457
        %v6875 = vunpack.c.h.b16 %v6457
        %v6876 = vunpack.c.l.b16 %v6458
        %v6877 = vunpack.c.h.b16 %v6458
        %v6878 = vunpack.c.l.b16 %v6459
        %v6879 = vunpack.c.h.b16 %v6459
        %v6880 = vunpack.c.l.b16 %v6460
        %v6881 = vunpack.c.h.b16 %v6460
        %v6882 = vunpack.c.l.b16 %v6461
        %v6883 = vunpack.c.h.b16 %v6461
        %v6884 = vunpack.c.l.b16 %v6462
        %v6885 = vunpack.c.h.b16 %v6462
        %v6886 = vunpack.c.l.b16 %v6463
        %v6887 = vunpack.c.h.b16 %v6463
        %v6888 = vunpack.c.l.b16 %v6464
        %v6889 = vunpack.c.h.b16 %v6464
        %v6890 = vunpack.c.l.b16 %v6465
        %v6891 = vunpack.c.h.b16 %v6465
        %v6892 = vunpack.c.l.b16 %v6466
        %v6893 = vunpack.c.h.b16 %v6466
        %v6894 = vunpack.c.l.b16 %v6467
        %v6895 = vunpack.c.h.b16 %v6467
        %v6896 = vunpack.c.l.b16 %v6468
        %v6897 = vunpack.c.h.b16 %v6468
        %v6898 = vpack.c.b16 %v6836, %v6834
        %v6899 = vpack.c.b16 %v6837, %v6835
        %v6900 = vpack.c.b16 %v6840, %v6838
        %v6901 = vpack.c.b16 %v6841, %v6839
        %v6902 = vpack.c.b16 %v6844, %v6842
        %v6903 = vpack.c.b16 %v6845, %v6843
        %v6904 = vpack.c.b16 %v6848, %v6846
        %v6905 = vpack.c.b16 %v6849, %v6847
        %v6906 = vpack.c.b16 %v6852, %v6850
        %v6907 = vpack.c.b16 %v6853, %v6851
        %v6908 = vpack.c.b16 %v6856, %v6854
        %v6909 = vpack.c.b16 %v6857, %v6855
        %v6910 = vpack.c.b16 %v6860, %v6858
        %v6911 = vpack.c.b16 %v6861, %v6859
        %v6912 = vpack.c.b16 %v6864, %v6862
        %v6913 = vpack.c.b16 %v6865, %v6863
        %v6914 = vpack.c.b16 %v6868, %v6866
        %v6915 = vpack.c.b16 %v6869, %v6867
        %v6916 = vpack.c.b16 %v6872, %v6870
        %v6917 = vpack.c.b16 %v6873, %v6871
        %v6918 = vpack.c.b16 %v6876, %v6874
        %v6919 = vpack.c.b16 %v6877, %v6875
        %v6920 = vpack.c.b16 %v6880, %v6878
        %v6921 = vpack.c.b16 %v6881, %v6879
        %v6922 = vpack.c.b16 %v6884, %v6882
        %v6923 = vpack.c.b16 %v6885, %v6883
        %v6924 = vpack.c.b16 %v6888, %v6886
        %v6925 = vpack.c.b16 %v6889, %v6887
        %v6926 = vpack.c.b16 %v6892, %v6890
        %v6927 = vpack.c.b16 %v6893, %v6891
        %v6928 = vpack.c.b16 %v6896, %v6894
        %v6929 = vpack.c.b16 %v6897, %v6895
        %6962 = vmatpush.bf16.msra.mxu0 %v6912
        %6963 = vmatpush.bf16.msra.mxu0 %v6910
        %6964 = vmatpush.bf16.msra.mxu0 %v6908
        %6965 = vmatpush.bf16.msra.mxu0 %v6906
        %6966 = vmatpush.bf16.msra.mxu0 %v6904
        %6967 = vmatpush.bf16.msra.mxu0 %v6902
        %6968 = vmatpush.bf16.msra.mxu0 %v6900
        %6969 = vmatpush.bf16.msra.mxu0 %v6898
        %6970 = vmatmul.bf16.gmra.mxu0 %v6581
        %v6971 = vpop.f32.mrf.mxu0
        %v6972 = vadd.f32 0.0, %v6971
        %v6973 = vpop.f32.mrf.mxu0
        %v6974 = vadd.f32 0.0, %v6973
        %6975 = vmatmul.bf16.gmra.mxu0 %v6601
        %v6976 = vpop.f32.mrf.mxu0
        %v6977 = vadd.f32 0.0, %v6976
        %v6978 = vpop.f32.mrf.mxu0
        %v6979 = vadd.f32 0.0, %v6978
        %6980 = vmatmul.bf16.gmra.mxu0 %v6617
        %v6981 = vpop.f32.mrf.mxu0
        %v6982 = vadd.f32 0.0, %v6981
        %v6983 = vpop.f32.mrf.mxu0
        %v6984 = vadd.f32 0.0, %v6983
        %6985 = vmatmul.bf16.gmra.mxu0 %v6633
        %v6986 = vpop.f32.mrf.mxu0
        %v6987 = vadd.f32 0.0, %v6986
        %v6988 = vpop.f32.mrf.mxu0
        %v6989 = vadd.f32 0.0, %v6988
        %6990 = vmatmul.bf16.gmra.mxu0 %v6649
        %v6991 = vpop.f32.mrf.mxu0
        %v6992 = vadd.f32 0.0, %v6991
        %v6993 = vpop.f32.mrf.mxu0
        %v6994 = vadd.f32 0.0, %v6993
        %6995 = vmatmul.bf16.gmra.mxu0 %v6665
        %v6996 = vpop.f32.mrf.mxu0
        %v6997 = vadd.f32 0.0, %v6996
        %v6998 = vpop.f32.mrf.mxu0
        %v6999 = vadd.f32 0.0, %v6998
        %7000 = vmatmul.bf16.gmra.mxu0 %v6681
        %v7001 = vpop.f32.mrf.mxu0
        %v7002 = vadd.f32 0.0, %v7001
        %v7003 = vpop.f32.mrf.mxu0
        %v7004 = vadd.f32 0.0, %v7003
        %7005 = vmatmul.bf16.gmra.mxu0 %v6697
        %v7006 = vpop.f32.mrf.mxu0
        %v7007 = vadd.f32 0.0, %v7006
        %v7008 = vpop.f32.mrf.mxu0
        %v7009 = vadd.f32 0.0, %v7008
        %7010 = vmatmul.bf16.gmra.mxu0 %v6713
        %v7011 = vpop.f32.mrf.mxu0
        %v7012 = vadd.f32 0.0, %v7011
        %v7013 = vpop.f32.mrf.mxu0
        %v7014 = vadd.f32 0.0, %v7013
        %7015 = vmatmul.bf16.gmra.mxu0 %v6729
        %v7016 = vpop.f32.mrf.mxu0
        %v7017 = vadd.f32 0.0, %v7016
        %v7018 = vpop.f32.mrf.mxu0
        %v7019 = vadd.f32 0.0, %v7018
        %7020 = vmatmul.bf16.gmra.mxu0 %v6745
        %v7021 = vpop.f32.mrf.mxu0
        %v7022 = vadd.f32 0.0, %v7021
        %v7023 = vpop.f32.mrf.mxu0
        %v7024 = vadd.f32 0.0, %v7023
        %7025 = vmatmul.bf16.gmra.mxu0 %v6761
        %v7026 = vpop.f32.mrf.mxu0
        %v7027 = vadd.f32 0.0, %v7026
        %v7028 = vpop.f32.mrf.mxu0
        %v7029 = vadd.f32 0.0, %v7028
        %7030 = vmatmul.bf16.gmra.mxu0 %v6772
        %v7031 = vpop.f32.mrf.mxu0
        %v7032 = vadd.f32 0.0, %v7031
        %v7033 = vpop.f32.mrf.mxu0
        %7034 = vdwg.mxu0
        %7035 = vmatpush.bf16.msra.mxu0 %v6928
        %7036 = vmatpush.bf16.msra.mxu0 %v6926
        %7037 = vmatpush.bf16.msra.mxu0 %v6924
        %7038 = vmatpush.bf16.msra.mxu0 %v6922
        %7039 = vmatpush.bf16.msra.mxu0 %v6920
        %7040 = vmatpush.bf16.msra.mxu0 %v6918
        %7041 = vmatpush.bf16.msra.mxu0 %v6916
        %7042 = vmatpush.bf16.msra.mxu0 %v6914
        %7043 = vmatmul.bf16.gmra.mxu0 %v6593
        %v7044 = vpop.f32.mrf.mxu0
        %v7045 = vadd.f32 %v6972, %v7044
        %v7046 = vpop.f32.mrf.mxu0
        %v7047 = vadd.f32 %v6974, %v7046
        %7048 = vmatmul.bf16.gmra.mxu0 %v6609
        %v7049 = vpop.f32.mrf.mxu0
        %v7050 = vadd.f32 %v6977, %v7049
        %v7051 = vpop.f32.mrf.mxu0
        %v7052 = vadd.f32 %v6979, %v7051
        %7053 = vmatmul.bf16.gmra.mxu0 %v6625
        %v7054 = vpop.f32.mrf.mxu0
        %v7055 = vadd.f32 %v6982, %v7054
        %v7056 = vpop.f32.mrf.mxu0
        %v7057 = vadd.f32 %v6984, %v7056
        %7058 = vmatmul.bf16.gmra.mxu0 %v6641
        %v7059 = vpop.f32.mrf.mxu0
        %v7060 = vadd.f32 %v6987, %v7059
        %v7061 = vpop.f32.mrf.mxu0
        %v7062 = vadd.f32 %v6989, %v7061
        %7063 = vmatmul.bf16.gmra.mxu0 %v6657
        %v7064 = vpop.f32.mrf.mxu0
        %v7065 = vadd.f32 %v6992, %v7064
        %v7066 = vpop.f32.mrf.mxu0
        %v7067 = vadd.f32 %v6994, %v7066
        %7068 = vmatmul.bf16.gmra.mxu0 %v6673
        %v7069 = vpop.f32.mrf.mxu0
        %v7070 = vadd.f32 %v6997, %v7069
        %v7071 = vpop.f32.mrf.mxu0
        %v7072 = vadd.f32 %v6999, %v7071
        %7073 = vmatmul.bf16.gmra.mxu0 %v6689
        %v7074 = vpop.f32.mrf.mxu0
        %v7075 = vadd.f32 %v7002, %v7074
        %v7076 = vpop.f32.mrf.mxu0
        %v7077 = vadd.f32 %v7004, %v7076
        %7078 = vmatmul.bf16.gmra.mxu0 %v6705
        %v7079 = vpop.f32.mrf.mxu0
        %v7080 = vadd.f32 %v7007, %v7079
        %v7081 = vpop.f32.mrf.mxu0
        %v7082 = vadd.f32 %v7009, %v7081
        %7083 = vmatmul.bf16.gmra.mxu0 %v6721
        %v7084 = vpop.f32.mrf.mxu0
        %v7085 = vadd.f32 %v7012, %v7084
        %v7086 = vpop.f32.mrf.mxu0
        %v7087 = vadd.f32 %v7014, %v7086
        %7088 = vmatmul.bf16.gmra.mxu0 %v6737
        %v7089 = vpop.f32.mrf.mxu0
        %v7090 = vadd.f32 %v7017, %v7089
        %v7091 = vpop.f32.mrf.mxu0
        %v7092 = vadd.f32 %v7019, %v7091
        %7093 = vmatmul.bf16.gmra.mxu0 %v6753
        %v7094 = vpop.f32.mrf.mxu0
        %v7095 = vadd.f32 %v7022, %v7094
        %v7096 = vpop.f32.mrf.mxu0
        %v7097 = vadd.f32 %v7024, %v7096
        %7098 = vmatmul.bf16.gmra.mxu0 %v6769
        %v7099 = vpop.f32.mrf.mxu0
        %v7100 = vadd.f32 %v7027, %v7099
        %v7101 = vpop.f32.mrf.mxu0
        %v7102 = vadd.f32 %v7029, %v7101
        %7103 = vmatmul.bf16.gmra.mxu0 %v6775
        %v7104 = vpop.f32.mrf.mxu0
        %v7105 = vadd.f32 %v7032, %v7104
        %v7106 = vpop.f32.mrf.mxu0
        %7107 = vdwg.mxu0
        %7108 = vmatpush.bf16.msra.mxu0 %v6913
        %7109 = vmatpush.bf16.msra.mxu0 %v6911
        %7110 = vmatpush.bf16.msra.mxu0 %v6909
        %7111 = vmatpush.bf16.msra.mxu0 %v6907
        %7112 = vmatpush.bf16.msra.mxu0 %v6905
        %7113 = vmatpush.bf16.msra.mxu0 %v6903
        %7114 = vmatpush.bf16.msra.mxu0 %v6901
        %7115 = vmatpush.bf16.msra.mxu0 %v6899
        %7116 = vmatmul.bf16.gmra.mxu0 %v6581
        %v7117 = vpop.f32.mrf.mxu0
        %v7118 = vadd.f32 0.0, %v7117
        %v7119 = vpop.f32.mrf.mxu0
        %v7120 = vadd.f32 0.0, %v7119
        %7121 = vmatmul.bf16.gmra.mxu0 %v6601
        %v7122 = vpop.f32.mrf.mxu0
        %v7123 = vadd.f32 0.0, %v7122
        %v7124 = vpop.f32.mrf.mxu0
        %v7125 = vadd.f32 0.0, %v7124
        %7126 = vmatmul.bf16.gmra.mxu0 %v6617
        %v7127 = vpop.f32.mrf.mxu0
        %v7128 = vadd.f32 0.0, %v7127
        %v7129 = vpop.f32.mrf.mxu0
        %v7130 = vadd.f32 0.0, %v7129
        %7131 = vmatmul.bf16.gmra.mxu0 %v6633
        %v7132 = vpop.f32.mrf.mxu0
        %v7133 = vadd.f32 0.0, %v7132
        %v7134 = vpop.f32.mrf.mxu0
        %v7135 = vadd.f32 0.0, %v7134
        %7136 = vmatmul.bf16.gmra.mxu0 %v6649
        %v7137 = vpop.f32.mrf.mxu0
        %v7138 = vadd.f32 0.0, %v7137
        %v7139 = vpop.f32.mrf.mxu0
        %v7140 = vadd.f32 0.0, %v7139
        %7141 = vmatmul.bf16.gmra.mxu0 %v6665
        %v7142 = vpop.f32.mrf.mxu0
        %v7143 = vadd.f32 0.0, %v7142
        %v7144 = vpop.f32.mrf.mxu0
        %v7145 = vadd.f32 0.0, %v7144
        %7146 = vmatmul.bf16.gmra.mxu0 %v6681
        %v7147 = vpop.f32.mrf.mxu0
        %v7148 = vadd.f32 0.0, %v7147
        %v7149 = vpop.f32.mrf.mxu0
        %v7150 = vadd.f32 0.0, %v7149
        %7151 = vmatmul.bf16.gmra.mxu0 %v6697
        %v7152 = vpop.f32.mrf.mxu0
        %v7153 = vadd.f32 0.0, %v7152
        %v7154 = vpop.f32.mrf.mxu0
        %v7155 = vadd.f32 0.0, %v7154
        %7156 = vmatmul.bf16.gmra.mxu0 %v6713
        %v7157 = vpop.f32.mrf.mxu0
        %v7158 = vadd.f32 0.0, %v7157
        %v7159 = vpop.f32.mrf.mxu0
        %v7160 = vadd.f32 0.0, %v7159
        %7161 = vmatmul.bf16.gmra.mxu0 %v6729
        %v7162 = vpop.f32.mrf.mxu0
        %v7163 = vadd.f32 0.0, %v7162
        %v7164 = vpop.f32.mrf.mxu0
        %v7165 = vadd.f32 0.0, %v7164
        %7166 = vmatmul.bf16.gmra.mxu0 %v6745
        %v7167 = vpop.f32.mrf.mxu0
        %v7168 = vadd.f32 0.0, %v7167
        %v7169 = vpop.f32.mrf.mxu0
        %v7170 = vadd.f32 0.0, %v7169
        %7171 = vmatmul.bf16.gmra.mxu0 %v6761
        %v7172 = vpop.f32.mrf.mxu0
        %v7173 = vadd.f32 0.0, %v7172
        %v7174 = vpop.f32.mrf.mxu0
        %v7175 = vadd.f32 0.0, %v7174
        %7176 = vmatmul.bf16.gmra.mxu0 %v6772
        %v7177 = vpop.f32.mrf.mxu0
        %v7178 = vadd.f32 0.0, %v7177
        %v7179 = vpop.f32.mrf.mxu0
        %7180 = vdwg.mxu0
        %7181 = vmatpush.bf16.msra.mxu0 %v6929
        %7182 = vmatpush.bf16.msra.mxu0 %v6927
        %7183 = vmatpush.bf16.msra.mxu0 %v6925
        %7184 = vmatpush.bf16.msra.mxu0 %v6923
        %7185 = vmatpush.bf16.msra.mxu0 %v6921
        %7186 = vmatpush.bf16.msra.mxu0 %v6919
        %7187 = vmatpush.bf16.msra.mxu0 %v6917
        %7188 = vmatpush.bf16.msra.mxu0 %v6915
        %7189 = vmatmul.bf16.gmra.mxu0 %v6593
        %v7190 = vpop.f32.mrf.mxu0
        %v7191 = vadd.f32 %v7118, %v7190
        %v7192 = vpop.f32.mrf.mxu0
        %v7193 = vadd.f32 %v7120, %v7192
        %7194 = vmatmul.bf16.gmra.mxu0 %v6609
        %v7195 = vpop.f32.mrf.mxu0
        %v7196 = vadd.f32 %v7123, %v7195
        %v7197 = vpop.f32.mrf.mxu0
        %v7198 = vadd.f32 %v7125, %v7197
        %7199 = vmatmul.bf16.gmra.mxu0 %v6625
        %v7200 = vpop.f32.mrf.mxu0
        %v7201 = vadd.f32 %v7128, %v7200
        %v7202 = vpop.f32.mrf.mxu0
        %v7203 = vadd.f32 %v7130, %v7202
        %7204 = vmatmul.bf16.gmra.mxu0 %v6641
        %v7205 = vpop.f32.mrf.mxu0
        %v7206 = vadd.f32 %v7133, %v7205
        %v7207 = vpop.f32.mrf.mxu0
        %v7208 = vadd.f32 %v7135, %v7207
        %7209 = vmatmul.bf16.gmra.mxu0 %v6657
        %v7210 = vpop.f32.mrf.mxu0
        %v7211 = vadd.f32 %v7138, %v7210
        %v7212 = vpop.f32.mrf.mxu0
        %v7213 = vadd.f32 %v7140, %v7212
        %7214 = vmatmul.bf16.gmra.mxu0 %v6673
        %v7215 = vpop.f32.mrf.mxu0
        %v7216 = vadd.f32 %v7143, %v7215
        %v7217 = vpop.f32.mrf.mxu0
        %v7218 = vadd.f32 %v7145, %v7217
        %7219 = vmatmul.bf16.gmra.mxu0 %v6689
        %v7220 = vpop.f32.mrf.mxu0
        %v7221 = vadd.f32 %v7148, %v7220
        %v7222 = vpop.f32.mrf.mxu0
        %v7223 = vadd.f32 %v7150, %v7222
        %7224 = vmatmul.bf16.gmra.mxu0 %v6705
        %v7225 = vpop.f32.mrf.mxu0
        %v7226 = vadd.f32 %v7153, %v7225
        %v7227 = vpop.f32.mrf.mxu0
        %v7228 = vadd.f32 %v7155, %v7227
        %7229 = vmatmul.bf16.gmra.mxu0 %v6721
        %v7230 = vpop.f32.mrf.mxu0
        %v7231 = vadd.f32 %v7158, %v7230
        %v7232 = vpop.f32.mrf.mxu0
        %v7233 = vadd.f32 %v7160, %v7232
        %7234 = vmatmul.bf16.gmra.mxu0 %v6737
        %v7235 = vpop.f32.mrf.mxu0
        %v7236 = vadd.f32 %v7163, %v7235
        %v7237 = vpop.f32.mrf.mxu0
        %v7238 = vadd.f32 %v7165, %v7237
        %7239 = vmatmul.bf16.gmra.mxu0 %v6753
        %v7240 = vpop.f32.mrf.mxu0
        %v7241 = vadd.f32 %v7168, %v7240
        %v7242 = vpop.f32.mrf.mxu0
        %v7243 = vadd.f32 %v7170, %v7242
        %7244 = vmatmul.bf16.gmra.mxu0 %v6769
        %v7245 = vpop.f32.mrf.mxu0
        %v7246 = vadd.f32 %v7173, %v7245
        %v7247 = vpop.f32.mrf.mxu0
        %v7248 = vadd.f32 %v7175, %v7247
        %7249 = vmatmul.bf16.gmra.mxu0 %v6775
        %v7250 = vpop.f32.mrf.mxu0
        %v7251 = vadd.f32 %v7178, %v7250
        %v7252 = vpop.f32.mrf.mxu0
        %7253 = vdwg.mxu0
        %v7254 = vld [vmem:[#allocation3] sm:$0xff]
        %v7255 = vld [vmem:[#allocation3 + $0x8] sm:$0xff]
        %v7256 = vld [vmem:[#allocation3 + $0x10] sm:$0xff]
        %v7257 = vld [vmem:[#allocation3 + $0x18] sm:$0xff]
        %v7258 = vld [vmem:[#allocation3 + $0x20] sm:$0xff]
        %v7259 = vld [vmem:[#allocation3 + $0x28] sm:$0xff]
        %v7260 = vld [vmem:[#allocation3 + $0x30] sm:$0xff]
        %v7261 = vld [vmem:[#allocation3 + $0x38] sm:$0xff]
        %v7262 = vld [vmem:[#allocation3 + $0x40] sm:$0xff]
        %v7263 = vld [vmem:[#allocation3 + $0x48] sm:$0xff]
        %v7264 = vld [vmem:[#allocation3 + $0x50] sm:$0xff]
        %v7265 = vld [vmem:[#allocation3 + $0x58] sm:$0xff]
        %v7266 = vld [vmem:[#allocation3 + $0x60] sm:$0xff]
        %v7267 = vld [vmem:[#allocation3 + $0x68] sm:$0xff]
        %v7268 = vld [vmem:[#allocation3 + $0x70] sm:$0xff]
        %v7269 = vld [vmem:[#allocation3 + $0x78] sm:$0xff]
        %v7270 = vld [vmem:[#allocation3 + $0x80] sm:$0xff]
        %v7271 = vld [vmem:[#allocation3 + $0x88] sm:$0xff]
        %v7272 = vld [vmem:[#allocation3 + $0x90] sm:$0xff]
        %v7273 = vld [vmem:[#allocation3 + $0x98] sm:$0xff]
        %v7274 = vld [vmem:[#allocation3 + $0xa0] sm:$0xff]
        %v7275 = vld [vmem:[#allocation3 + $0xa8] sm:$0xff]
        %v7276 = vld [vmem:[#allocation3 + $0xb0] sm:$0xff]
        %v7277 = vld [vmem:[#allocation3 + $0xb8] sm:$0xff]
        %v7278 = vld [vmem:[#allocation3 + $0xc0] sm:$0xff]
        %v7279 = vld [vmem:[#allocation3 + $0xc8] sm:$0xff]
        %v7280 = vld [vmem:[#allocation3 + $0xd0] sm:$0xff]
        %v7281 = vld [vmem:[#allocation3 + $0xd8] sm:$0xff]
        %v7282 = vld [vmem:[#allocation3 + $0xe0] sm:$0xff]
        %v7283 = vld [vmem:[#allocation3 + $0xe8] sm:$0xff]
        %v7284 = vld [vmem:[#allocation3 + $0xf0] sm:$0xff]
        %v7285 = vld [vmem:[#allocation3 + $0xf8] sm:$0xff]
        %v7286 = vld [vmem:[#allocation3 + $0x100] sm:$0xff]
        %v7287 = vld [vmem:[#allocation3 + $0x108] sm:$0xff]
        %v7288 = vld [vmem:[#allocation3 + $0x110] sm:$0xff]
        %v7289 = vld [vmem:[#allocation3 + $0x118] sm:$0xff]
        %v7290 = vld [vmem:[#allocation3 + $0x120] sm:$0xff]
        %v7291 = vld [vmem:[#allocation3 + $0x128] sm:$0xff]
        %v7292 = vld [vmem:[#allocation3 + $0x130] sm:$0xff]
        %v7293 = vld [vmem:[#allocation3 + $0x138] sm:$0xff]
        %v7294 = vld [vmem:[#allocation3 + $0x140] sm:$0xff]
        %v7295 = vld [vmem:[#allocation3 + $0x148] sm:$0xff]
        %v7296 = vld [vmem:[#allocation3 + $0x150] sm:$0xff]
        %v7297 = vld [vmem:[#allocation3 + $0x158] sm:$0xff]
        %v7298 = vld [vmem:[#allocation3 + $0x160] sm:$0xff]
        %v7299 = vld [vmem:[#allocation3 + $0x168] sm:$0xff]
        %v7300 = vld [vmem:[#allocation3 + $0x170] sm:$0xff]
        %v7301 = vld [vmem:[#allocation3 + $0x178] sm:$0xff]
        %v7302 = vld [vmem:[#allocation3 + $0x180] sm:$0xf]
        %v7303 = vld [vmem:[#allocation3 + $0x188] sm:$0xf]
        %v7304 = vadd.f32 %v7254, %v7045
        %v7305 = vadd.f32 %v7255, %v7191
        %v7306 = vadd.f32 %v7256, %v7047
        %v7307 = vadd.f32 %v7257, %v7193
        %v7308 = vadd.f32 %v7258, %v7050
        %v7309 = vadd.f32 %v7259, %v7196
        %v7310 = vadd.f32 %v7260, %v7052
        %v7311 = vadd.f32 %v7261, %v7198
        %v7312 = vadd.f32 %v7262, %v7055
        %v7313 = vadd.f32 %v7263, %v7201
        %v7314 = vadd.f32 %v7264, %v7057
        %v7315 = vadd.f32 %v7265, %v7203
        %v7316 = vadd.f32 %v7266, %v7060
        %v7317 = vadd.f32 %v7267, %v7206
        %v7318 = vadd.f32 %v7268, %v7062
        %v7319 = vadd.f32 %v7269, %v7208
        %v7320 = vadd.f32 %v7270, %v7065
        %v7321 = vadd.f32 %v7271, %v7211
        %v7322 = vadd.f32 %v7272, %v7067
        %v7323 = vadd.f32 %v7273, %v7213
        %v7324 = vadd.f32 %v7274, %v7070
        %v7325 = vadd.f32 %v7275, %v7216
        %v7326 = vadd.f32 %v7276, %v7072
        %v7327 = vadd.f32 %v7277, %v7218
        %v7328 = vadd.f32 %v7278, %v7075
        %v7329 = vadd.f32 %v7279, %v7221
        %v7330 = vadd.f32 %v7280, %v7077
        %v7331 = vadd.f32 %v7281, %v7223
        %v7332 = vadd.f32 %v7282, %v7080
        %v7333 = vadd.f32 %v7283, %v7226
        %v7334 = vadd.f32 %v7284, %v7082
        %v7335 = vadd.f32 %v7285, %v7228
        %v7336 = vadd.f32 %v7286, %v7085
        %v7337 = vadd.f32 %v7287, %v7231
        %v7338 = vadd.f32 %v7288, %v7087
        %v7339 = vadd.f32 %v7289, %v7233
        %v7340 = vadd.f32 %v7290, %v7090
        %v7341 = vadd.f32 %v7291, %v7236
        %v7342 = vadd.f32 %v7292, %v7092
        %v7343 = vadd.f32 %v7293, %v7238
        %v7344 = vadd.f32 %v7294, %v7095
        %v7345 = vadd.f32 %v7295, %v7241
        %v7346 = vadd.f32 %v7296, %v7097
        %v7347 = vadd.f32 %v7297, %v7243
        %v7348 = vadd.f32 %v7298, %v7100
        %v7349 = vadd.f32 %v7299, %v7246
        %v7350 = vadd.f32 %v7300, %v7102
        %v7351 = vadd.f32 %v7301, %v7248
        %v7352 = vadd.f32 %v7302, %v7105
        %v7353 = vadd.f32 %v7303, %v7251
        %7354 = vst [vmem:[#allocation3] sm:$0xff] %v7304
        %7355 = vst [vmem:[#allocation3 + $0x8] sm:$0xff] %v7305
        %7356 = vst [vmem:[#allocation3 + $0x10] sm:$0xff] %v7306
        %7357 = vst [vmem:[#allocation3 + $0x18] sm:$0xff] %v7307
        %7358 = vst [vmem:[#allocation3 + $0x20] sm:$0xff] %v7308
        %7359 = vst [vmem:[#allocation3 + $0x28] sm:$0xff] %v7309
        %7360 = vst [vmem:[#allocation3 + $0x30] sm:$0xff] %v7310
        %7361 = vst [vmem:[#allocation3 + $0x38] sm:$0xff] %v7311
        %7362 = vst [vmem:[#allocation3 + $0x40] sm:$0xff] %v7312
        %7363 = vst [vmem:[#allocation3 + $0x48] sm:$0xff] %v7313
        %7364 = vst [vmem:[#allocation3 + $0x50] sm:$0xff] %v7314
        %7365 = vst [vmem:[#allocation3 + $0x58] sm:$0xff] %v7315
        %7366 = vst [vmem:[#allocation3 + $0x60] sm:$0xff] %v7316
        %7367 = vst [vmem:[#allocation3 + $0x68] sm:$0xff] %v7317
        %7368 = vst [vmem:[#allocation3 + $0x70] sm:$0xff] %v7318
        %7369 = vst [vmem:[#allocation3 + $0x78] sm:$0xff] %v7319
        %7370 = vst [vmem:[#allocation3 + $0x80] sm:$0xff] %v7320
        %7371 = vst [vmem:[#allocation3 + $0x88] sm:$0xff] %v7321
        %7372 = vst [vmem:[#allocation3 + $0x90] sm:$0xff] %v7322
        %7373 = vst [vmem:[#allocation3 + $0x98] sm:$0xff] %v7323
        %7374 = vst [vmem:[#allocation3 + $0xa0] sm:$0xff] %v7324
        %7375 = vst [vmem:[#allocation3 + $0xa8] sm:$0xff] %v7325
        %7376 = vst [vmem:[#allocation3 + $0xb0] sm:$0xff] %v7326
        %7377 = vst [vmem:[#allocation3 + $0xb8] sm:$0xff] %v7327
        %7378 = vst [vmem:[#allocation3 + $0xc0] sm:$0xff] %v7328
        %7379 = vst [vmem:[#allocation3 + $0xc8] sm:$0xff] %v7329
        %7380 = vst [vmem:[#allocation3 + $0xd0] sm:$0xff] %v7330
        %7381 = vst [vmem:[#allocation3 + $0xd8] sm:$0xff] %v7331
        %7382 = vst [vmem:[#allocation3 + $0xe0] sm:$0xff] %v7332
        %7383 = vst [vmem:[#allocation3 + $0xe8] sm:$0xff] %v7333
        %7384 = vst [vmem:[#allocation3 + $0xf0] sm:$0xff] %v7334
        %7385 = vst [vmem:[#allocation3 + $0xf8] sm:$0xff] %v7335
        %7386 = vst [vmem:[#allocation3 + $0x100] sm:$0xff] %v7336
        %7387 = vst [vmem:[#allocation3 + $0x108] sm:$0xff] %v7337
        %7388 = vst [vmem:[#allocation3 + $0x110] sm:$0xff] %v7338
        %7389 = vst [vmem:[#allocation3 + $0x118] sm:$0xff] %v7339
        %7390 = vst [vmem:[#allocation3 + $0x120] sm:$0xff] %v7340
        %7391 = vst [vmem:[#allocation3 + $0x128] sm:$0xff] %v7341
        %7392 = vst [vmem:[#allocation3 + $0x130] sm:$0xff] %v7342
        %7393 = vst [vmem:[#allocation3 + $0x138] sm:$0xff] %v7343
        %7394 = vst [vmem:[#allocation3 + $0x140] sm:$0xff] %v7344
        %7395 = vst [vmem:[#allocation3 + $0x148] sm:$0xff] %v7345
        %7396 = vst [vmem:[#allocation3 + $0x150] sm:$0xff] %v7346
        %7397 = vst [vmem:[#allocation3 + $0x158] sm:$0xff] %v7347
        %7398 = vst [vmem:[#allocation3 + $0x160] sm:$0xff] %v7348
        %7399 = vst [vmem:[#allocation3 + $0x168] sm:$0xff] %v7349
        %7400 = vst [vmem:[#allocation3 + $0x170] sm:$0xff] %v7350
        %7401 = vst [vmem:[#allocation3 + $0x178] sm:$0xff] %v7351
        %7402 = vst [vmem:[#allocation3 + $0x180] sm:$0xf] %v7352
        %7403 = vst [vmem:[#allocation3 + $0x188] sm:$0xf] %v7353
        %v7404 = vld [vmem:[#allocation2 + $0x18] sm:$0xcc]
        %v7405 = vld [vmem:[#allocation2 + $0x20] sm:$0xff]
        %v7406 = vld [vmem:[#allocation2 + $0x28] sm:$0xff]
        %v7407 = vld [vmem:[#allocation2 + $0x30] sm:$0xff]
        %v7408 = vld [vmem:[#allocation2 + $0x38] sm:$0xff]
        %v7409 = vld [vmem:[#allocation2 + $0x40] sm:$0xff]
        %v7410 = vld [vmem:[#allocation2 + $0x48] sm:$0xff]
        %v7411 = vld [vmem:[#allocation2 + $0x50] sm:$0xff]
        %v7412 = vld [vmem:[#allocation2 + $0x58] sm:$0xff]
        %v7413 = vld [vmem:[#allocation2 + $0x60] sm:$0xff]
        %v7414 = vld [vmem:[#allocation2 + $0x68] sm:$0xff]
        %v7415 = vld [vmem:[#allocation2 + $0x70] sm:$0xff]
        %v7416 = vld [vmem:[#allocation2 + $0x78] sm:$0xff]
        %v7417 = vld [vmem:[#allocation2 + $0x80] sm:$0xff]
        %v7418 = vld [vmem:[#allocation2 + $0x88] sm:$0xff]
        %v7419 = vld [vmem:[#allocation2 + $0x90] sm:$0xff]
        %v7420 = vld [vmem:[#allocation2 + $0x98] sm:$0xff]
        %v7421 = vld [vmem:[#allocation2 + $0xa0] sm:$0xff]
        %v7422 = vld [vmem:[#allocation2 + $0xa8] sm:$0xff]
        %v7423 = vld [vmem:[#allocation2 + $0xb0] sm:$0xff]
        %v7424 = vld [vmem:[#allocation2 + $0xb8] sm:$0xff]
        %v7425 = vld [vmem:[#allocation2 + $0xc0] sm:$0xff]
        %v7426 = vld [vmem:[#allocation2 + $0xc8] sm:$0xff]
        %v7427 = vld [vmem:[#allocation2 + $0xd0] sm:$0xff]
        %v7428 = vld [vmem:[#allocation2 + $0xd8] sm:$0xff]
        %v7429 = vld [vmem:[#allocation2 + $0xe0] sm:$0x11]
        %s7430 = scalar_lea.vmem [#allocation9], 1536
        %v7431 = vld [vmem:[%s7430] sm:$0xff]
        %v7432 = vld [vmem:[%s7430 + $0x8] sm:$0xff]
        %v7433 = vld [vmem:[%s7430 + $0x10] sm:$0xff]
        %v7434 = vld [vmem:[%s7430 + $0x18] sm:$0xff]
        %v7435 = vld [vmem:[%s7430 + $0x20] sm:$0xff]
        %v7436 = vld [vmem:[%s7430 + $0x28] sm:$0xff]
        %v7437 = vld [vmem:[%s7430 + $0x30] sm:$0xff]
        %v7438 = vld [vmem:[%s7430 + $0x38] sm:$0xff]
        %v7439 = vld [vmem:[%s7430 + $0x40] sm:$0xff]
        %v7440 = vld [vmem:[%s7430 + $0x48] sm:$0xff]
        %v7441 = vld [vmem:[%s7430 + $0x50] sm:$0xff]
        %v7442 = vld [vmem:[%s7430 + $0x58] sm:$0xff]
        %v7443 = vld [vmem:[%s7430 + $0x60] sm:$0xff]
        %v7444 = vld [vmem:[%s7430 + $0x68] sm:$0xff]
        %v7445 = vld [vmem:[%s7430 + $0x70] sm:$0xff]
        %v7446 = vld [vmem:[%s7430 + $0x78] sm:$0xff]
        %v7447 = vld [vmem:[%s7430 + $0x80] sm:$0xff]
        %v7448 = vld [vmem:[%s7430 + $0x88] sm:$0xff]
        %v7449 = vld [vmem:[%s7430 + $0x90] sm:$0xff]
        %v7450 = vld [vmem:[%s7430 + $0x98] sm:$0xff]
        %v7451 = vld [vmem:[%s7430 + $0xa0] sm:$0xff]
        %v7452 = vld [vmem:[%s7430 + $0xa8] sm:$0xff]
        %v7453 = vld [vmem:[%s7430 + $0xb0] sm:$0xff]
        %v7454 = vld [vmem:[%s7430 + $0xb8] sm:$0xff]
        %v7455 = vld [vmem:[%s7430 + $0xc0] sm:$0xff]
        %v7456 = vld [vmem:[%s7430 + $0xc8] sm:$0xff]
        %v7457 = vld [vmem:[%s7430 + $0xd0] sm:$0xff]
        %v7458 = vld [vmem:[%s7430 + $0xd8] sm:$0xff]
        %v7459 = vld [vmem:[%s7430 + $0xe0] sm:$0xff]
        %v7460 = vld [vmem:[%s7430 + $0xe8] sm:$0xff]
        %v7461 = vld [vmem:[%s7430 + $0xf0] sm:$0xff]
        %v7462 = vld [vmem:[%s7430 + $0xf8] sm:$0xff]
        %v7489 = vunpack.c.l.b16 %v7404
        %v7490 = vunpack.c.h.b16 %v7404
        %v7491 = vunpack.c.l.b16 %v7405
        %v7492 = vunpack.c.h.b16 %v7405
        %v7493 = vunpack.c.l.b16 %v7406
        %v7494 = vunpack.c.h.b16 %v7406
        %v7495 = vunpack.c.l.b16 %v7407
        %v7496 = vunpack.c.h.b16 %v7407
        %v7497 = vunpack.c.l.b16 %v7408
        %v7498 = vunpack.c.h.b16 %v7408
        %v7499 = vunpack.c.l.b16 %v7409
        %v7500 = vunpack.c.h.b16 %v7409
        %v7501 = vunpack.c.l.b16 %v7410
        %v7502 = vunpack.c.h.b16 %v7410
        %v7503 = vunpack.c.l.b16 %v7411
        %v7504 = vunpack.c.h.b16 %v7411
        %v7505 = vunpack.c.l.b16 %v7412
        %v7506 = vunpack.c.h.b16 %v7412
        %v7507 = vunpack.c.l.b16 %v7413
        %v7508 = vunpack.c.h.b16 %v7413
        %v7509 = vunpack.c.l.b16 %v7414
        %v7510 = vunpack.c.h.b16 %v7414
        %v7511 = vunpack.c.l.b16 %v7415
        %v7512 = vunpack.c.h.b16 %v7415
        %v7513 = vunpack.c.l.b16 %v7416
        %v7514 = vunpack.c.h.b16 %v7416
        %v7515 = vunpack.c.l.b16 %v7417
        %v7516 = vunpack.c.h.b16 %v7417
        %v7517 = vunpack.c.l.b16 %v7418
        %v7518 = vunpack.c.h.b16 %v7418
        %v7519 = vunpack.c.l.b16 %v7419
        %v7520 = vunpack.c.h.b16 %v7419
        %v7521 = vunpack.c.l.b16 %v7420
        %v7522 = vunpack.c.h.b16 %v7420
        %v7523 = vunpack.c.l.b16 %v7421
        %v7524 = vunpack.c.h.b16 %v7421
        %v7525 = vunpack.c.l.b16 %v7422
        %v7526 = vunpack.c.h.b16 %v7422
        %v7527 = vunpack.c.l.b16 %v7423
        %v7528 = vunpack.c.h.b16 %v7423
        %v7529 = vunpack.c.l.b16 %v7424
        %v7530 = vunpack.c.h.b16 %v7424
        %v7531 = vunpack.c.l.b16 %v7425
        %v7532 = vunpack.c.h.b16 %v7425
        %v7533 = vunpack.c.l.b16 %v7426
        %v7534 = vunpack.c.h.b16 %v7426
        %v7535 = vunpack.c.l.b16 %v7427
        %v7536 = vunpack.c.h.b16 %v7427
        %v7537 = vunpack.c.l.b16 %v7428
        %v7538 = vunpack.c.h.b16 %v7428
        %v7539 = vunpack.c.l.b16 %v7429
        %v7540 = vunpack.c.h.b16 %v7429
        %v7541 = vpack.c.b16 %v7491, %v7489
        %v7542 = vpack.c.b16 %v7492, %v7490
        %v7543 = vpack.c.b16 %v7495, %v7493
        %v7544 = vpack.c.b16 %v7496, %v7494
        %v7545 = vpack.c.b16 %v7499, %v7497
        %v7546 = vpack.c.b16 %v7500, %v7498
        %v7547 = vpack.c.b16 %v7503, %v7501
        %v7548 = vpack.c.b16 %v7504, %v7502
        %v7549 = vpack.c.b16 %v7507, %v7505
        %v7550 = vpack.c.b16 %v7508, %v7506
        %v7551 = vpack.c.b16 %v7511, %v7509
        %v7552 = vpack.c.b16 %v7512, %v7510
        %v7553 = vpack.c.b16 %v7515, %v7513
        %v7554 = vpack.c.b16 %v7516, %v7514
        %v7555 = vpack.c.b16 %v7519, %v7517
        %v7556 = vpack.c.b16 %v7520, %v7518
        %v7557 = vpack.c.b16 %v7523, %v7521
        %v7558 = vpack.c.b16 %v7524, %v7522
        %v7559 = vpack.c.b16 %v7527, %v7525
        %v7560 = vpack.c.b16 %v7528, %v7526
        %v7561 = vpack.c.b16 %v7531, %v7529
        %v7562 = vpack.c.b16 %v7532, %v7530
        %v7563 = vpack.c.b16 %v7535, %v7533
        %v7564 = vpack.c.b16 %v7536, %v7534
        %v7565 = vpack.c.b16 %v7539, %v7537
        %v7566 = vpack.c.b16 %v7540, %v7538
        %vm7567 = vsmask.f32 5376
        %v7569 = vshrl.u32 %v7541, 16
        %v7571 = vrot.slane %v7569, 2
        %v7572 = vshll.u32 %v7541, 16
        %v7574 = vrot.slane %v7572, 3
        %v7575 = vor.u32 %v7571, %v7574
        %v7577 = vshrl.u32 %v7543, 16
        %v7579 = vrot.slane %v7577, 2
        %v7580 = vshll.u32 %v7543, 16
        %v7582 = vrot.slane %v7580, 3
        %v7583 = vor.u32 %v7579, %v7582
        %v7584 = vsel %vm7567, %v7575, %v7583
        %v7586 = vshrl.u32 %v7542, 16
        %v7588 = vrot.slane %v7586, 2
        %v7589 = vshll.u32 %v7542, 16
        %v7591 = vrot.slane %v7589, 3
        %v7592 = vor.u32 %v7588, %v7591
        %v7594 = vshrl.u32 %v7544, 16
        %v7596 = vrot.slane %v7594, 2
        %v7597 = vshll.u32 %v7544, 16
        %v7599 = vrot.slane %v7597, 3
        %v7600 = vor.u32 %v7596, %v7599
        %v7601 = vsel %vm7567, %v7592, %v7600
        %v7603 = vshrl.u32 %v7545, 16
        %v7605 = vrot.slane %v7603, 2
        %v7606 = vshll.u32 %v7545, 16
        %v7608 = vrot.slane %v7606, 3
        %v7609 = vor.u32 %v7605, %v7608
        %v7610 = vsel %vm7567, %v7583, %v7609
        %v7612 = vshrl.u32 %v7546, 16
        %v7614 = vrot.slane %v7612, 2
        %v7615 = vshll.u32 %v7546, 16
        %v7617 = vrot.slane %v7615, 3
        %v7618 = vor.u32 %v7614, %v7617
        %v7619 = vsel %vm7567, %v7600, %v7618
        %v7621 = vshrl.u32 %v7547, 16
        %v7623 = vrot.slane %v7621, 2
        %v7624 = vshll.u32 %v7547, 16
        %v7626 = vrot.slane %v7624, 3
        %v7627 = vor.u32 %v7623, %v7626
        %v7628 = vsel %vm7567, %v7609, %v7627
        %v7630 = vshrl.u32 %v7548, 16
        %v7632 = vrot.slane %v7630, 2
        %v7633 = vshll.u32 %v7548, 16
        %v7635 = vrot.slane %v7633, 3
        %v7636 = vor.u32 %v7632, %v7635
        %v7637 = vsel %vm7567, %v7618, %v7636
        %v7639 = vshrl.u32 %v7549, 16
        %v7641 = vrot.slane %v7639, 2
        %v7642 = vshll.u32 %v7549, 16
        %v7644 = vrot.slane %v7642, 3
        %v7645 = vor.u32 %v7641, %v7644
        %v7646 = vsel %vm7567, %v7627, %v7645
        %v7648 = vshrl.u32 %v7550, 16
        %v7650 = vrot.slane %v7648, 2
        %v7651 = vshll.u32 %v7550, 16
        %v7653 = vrot.slane %v7651, 3
        %v7654 = vor.u32 %v7650, %v7653
        %v7655 = vsel %vm7567, %v7636, %v7654
        %v7657 = vshrl.u32 %v7551, 16
        %v7659 = vrot.slane %v7657, 2
        %v7660 = vshll.u32 %v7551, 16
        %v7662 = vrot.slane %v7660, 3
        %v7663 = vor.u32 %v7659, %v7662
        %v7664 = vsel %vm7567, %v7645, %v7663
        %v7666 = vshrl.u32 %v7552, 16
        %v7668 = vrot.slane %v7666, 2
        %v7669 = vshll.u32 %v7552, 16
        %v7671 = vrot.slane %v7669, 3
        %v7672 = vor.u32 %v7668, %v7671
        %v7673 = vsel %vm7567, %v7654, %v7672
        %v7675 = vshrl.u32 %v7553, 16
        %v7677 = vrot.slane %v7675, 2
        %v7678 = vshll.u32 %v7553, 16
        %v7680 = vrot.slane %v7678, 3
        %v7681 = vor.u32 %v7677, %v7680
        %v7682 = vsel %vm7567, %v7663, %v7681
        %v7684 = vshrl.u32 %v7554, 16
        %v7686 = vrot.slane %v7684, 2
        %v7687 = vshll.u32 %v7554, 16
        %v7689 = vrot.slane %v7687, 3
        %v7690 = vor.u32 %v7686, %v7689
        %v7691 = vsel %vm7567, %v7672, %v7690
        %v7693 = vshrl.u32 %v7555, 16
        %v7695 = vrot.slane %v7693, 2
        %v7696 = vshll.u32 %v7555, 16
        %v7698 = vrot.slane %v7696, 3
        %v7699 = vor.u32 %v7695, %v7698
        %v7700 = vsel %vm7567, %v7681, %v7699
        %v7702 = vshrl.u32 %v7556, 16
        %v7704 = vrot.slane %v7702, 2
        %v7705 = vshll.u32 %v7556, 16
        %v7707 = vrot.slane %v7705, 3
        %v7708 = vor.u32 %v7704, %v7707
        %v7709 = vsel %vm7567, %v7690, %v7708
        %v7711 = vshrl.u32 %v7557, 16
        %v7713 = vrot.slane %v7711, 2
        %v7714 = vshll.u32 %v7557, 16
        %v7716 = vrot.slane %v7714, 3
        %v7717 = vor.u32 %v7713, %v7716
        %v7718 = vsel %vm7567, %v7699, %v7717
        %v7720 = vshrl.u32 %v7558, 16
        %v7722 = vrot.slane %v7720, 2
        %v7723 = vshll.u32 %v7558, 16
        %v7725 = vrot.slane %v7723, 3
        %v7726 = vor.u32 %v7722, %v7725
        %v7727 = vsel %vm7567, %v7708, %v7726
        %v7729 = vshrl.u32 %v7559, 16
        %v7731 = vrot.slane %v7729, 2
        %v7732 = vshll.u32 %v7559, 16
        %v7734 = vrot.slane %v7732, 3
        %v7735 = vor.u32 %v7731, %v7734
        %v7736 = vsel %vm7567, %v7717, %v7735
        %v7738 = vshrl.u32 %v7560, 16
        %v7740 = vrot.slane %v7738, 2
        %v7741 = vshll.u32 %v7560, 16
        %v7743 = vrot.slane %v7741, 3
        %v7744 = vor.u32 %v7740, %v7743
        %v7745 = vsel %vm7567, %v7726, %v7744
        %v7747 = vshrl.u32 %v7561, 16
        %v7749 = vrot.slane %v7747, 2
        %v7750 = vshll.u32 %v7561, 16
        %v7752 = vrot.slane %v7750, 3
        %v7753 = vor.u32 %v7749, %v7752
        %v7754 = vsel %vm7567, %v7735, %v7753
        %v7756 = vshrl.u32 %v7562, 16
        %v7758 = vrot.slane %v7756, 2
        %v7759 = vshll.u32 %v7562, 16
        %v7761 = vrot.slane %v7759, 3
        %v7762 = vor.u32 %v7758, %v7761
        %v7763 = vsel %vm7567, %v7744, %v7762
        %v7765 = vshrl.u32 %v7563, 16
        %v7767 = vrot.slane %v7765, 2
        %v7768 = vshll.u32 %v7563, 16
        %v7770 = vrot.slane %v7768, 3
        %v7771 = vor.u32 %v7767, %v7770
        %v7772 = vsel %vm7567, %v7753, %v7771
        %v7774 = vshrl.u32 %v7564, 16
        %v7776 = vrot.slane %v7774, 2
        %v7777 = vshll.u32 %v7564, 16
        %v7779 = vrot.slane %v7777, 3
        %v7780 = vor.u32 %v7776, %v7779
        %v7781 = vsel %vm7567, %v7762, %v7780
        %v7783 = vshrl.u32 %v7565, 16
        %v7785 = vrot.slane %v7783, 2
        %v7786 = vshll.u32 %v7565, 16
        %v7788 = vrot.slane %v7786, 3
        %v7789 = vor.u32 %v7785, %v7788
        %v7790 = vsel %vm7567, %v7771, %v7789
        %v7792 = vshrl.u32 %v7566, 16
        %v7794 = vrot.slane %v7792, 2
        %v7795 = vshll.u32 %v7566, 16
        %v7797 = vrot.slane %v7795, 3
        %v7798 = vor.u32 %v7794, %v7797
        %v7799 = vsel %vm7567, %v7780, %v7798
        %v7858 = vunpack.c.l.b16 %v7431
        %v7859 = vunpack.c.h.b16 %v7431
        %v7860 = vunpack.c.l.b16 %v7432
        %v7861 = vunpack.c.h.b16 %v7432
        %v7862 = vunpack.c.l.b16 %v7433
        %v7863 = vunpack.c.h.b16 %v7433
        %v7864 = vunpack.c.l.b16 %v7434
        %v7865 = vunpack.c.h.b16 %v7434
        %v7866 = vunpack.c.l.b16 %v7435
        %v7867 = vunpack.c.h.b16 %v7435
        %v7868 = vunpack.c.l.b16 %v7436
        %v7869 = vunpack.c.h.b16 %v7436
        %v7870 = vunpack.c.l.b16 %v7437
        %v7871 = vunpack.c.h.b16 %v7437
        %v7872 = vunpack.c.l.b16 %v7438
        %v7873 = vunpack.c.h.b16 %v7438
        %v7874 = vunpack.c.l.b16 %v7439
        %v7875 = vunpack.c.h.b16 %v7439
        %v7876 = vunpack.c.l.b16 %v7440
        %v7877 = vunpack.c.h.b16 %v7440
        %v7878 = vunpack.c.l.b16 %v7441
        %v7879 = vunpack.c.h.b16 %v7441
        %v7880 = vunpack.c.l.b16 %v7442
        %v7881 = vunpack.c.h.b16 %v7442
        %v7882 = vunpack.c.l.b16 %v7443
        %v7883 = vunpack.c.h.b16 %v7443
        %v7884 = vunpack.c.l.b16 %v7444
        %v7885 = vunpack.c.h.b16 %v7444
        %v7886 = vunpack.c.l.b16 %v7445
        %v7887 = vunpack.c.h.b16 %v7445
        %v7888 = vunpack.c.l.b16 %v7446
        %v7889 = vunpack.c.h.b16 %v7446
        %v7890 = vunpack.c.l.b16 %v7447
        %v7891 = vunpack.c.h.b16 %v7447
        %v7892 = vunpack.c.l.b16 %v7448
        %v7893 = vunpack.c.h.b16 %v7448
        %v7894 = vunpack.c.l.b16 %v7449
        %v7895 = vunpack.c.h.b16 %v7449
        %v7896 = vunpack.c.l.b16 %v7450
        %v7897 = vunpack.c.h.b16 %v7450
        %v7898 = vunpack.c.l.b16 %v7451
        %v7899 = vunpack.c.h.b16 %v7451
        %v7900 = vunpack.c.l.b16 %v7452
        %v7901 = vunpack.c.h.b16 %v7452
        %v7902 = vunpack.c.l.b16 %v7453
        %v7903 = vunpack.c.h.b16 %v7453
        %v7904 = vunpack.c.l.b16 %v7454
        %v7905 = vunpack.c.h.b16 %v7454
        %v7906 = vunpack.c.l.b16 %v7455
        %v7907 = vunpack.c.h.b16 %v7455
        %v7908 = vunpack.c.l.b16 %v7456
        %v7909 = vunpack.c.h.b16 %v7456
        %v7910 = vunpack.c.l.b16 %v7457
        %v7911 = vunpack.c.h.b16 %v7457
        %v7912 = vunpack.c.l.b16 %v7458
        %v7913 = vunpack.c.h.b16 %v7458
        %v7914 = vunpack.c.l.b16 %v7459
        %v7915 = vunpack.c.h.b16 %v7459
        %v7916 = vunpack.c.l.b16 %v7460
        %v7917 = vunpack.c.h.b16 %v7460
        %v7918 = vunpack.c.l.b16 %v7461
        %v7919 = vunpack.c.h.b16 %v7461
        %v7920 = vunpack.c.l.b16 %v7462
        %v7921 = vunpack.c.h.b16 %v7462
        %v7922 = vpack.c.b16 %v7860, %v7858
        %v7923 = vpack.c.b16 %v7861, %v7859
        %v7924 = vpack.c.b16 %v7864, %v7862
        %v7925 = vpack.c.b16 %v7865, %v7863
        %v7926 = vpack.c.b16 %v7868, %v7866
        %v7927 = vpack.c.b16 %v7869, %v7867
        %v7928 = vpack.c.b16 %v7872, %v7870
        %v7929 = vpack.c.b16 %v7873, %v7871
        %v7930 = vpack.c.b16 %v7876, %v7874
        %v7931 = vpack.c.b16 %v7877, %v7875
        %v7932 = vpack.c.b16 %v7880, %v7878
        %v7933 = vpack.c.b16 %v7881, %v7879
        %v7934 = vpack.c.b16 %v7884, %v7882
        %v7935 = vpack.c.b16 %v7885, %v7883
        %v7936 = vpack.c.b16 %v7888, %v7886
        %v7937 = vpack.c.b16 %v7889, %v7887
        %v7938 = vpack.c.b16 %v7892, %v7890
        %v7939 = vpack.c.b16 %v7893, %v7891
        %v7940 = vpack.c.b16 %v7896, %v7894
        %v7941 = vpack.c.b16 %v7897, %v7895
        %v7942 = vpack.c.b16 %v7900, %v7898
        %v7943 = vpack.c.b16 %v7901, %v7899
        %v7944 = vpack.c.b16 %v7904, %v7902
        %v7945 = vpack.c.b16 %v7905, %v7903
        %v7946 = vpack.c.b16 %v7908, %v7906
        %v7947 = vpack.c.b16 %v7909, %v7907
        %v7948 = vpack.c.b16 %v7912, %v7910
        %v7949 = vpack.c.b16 %v7913, %v7911
        %v7950 = vpack.c.b16 %v7916, %v7914
        %v7951 = vpack.c.b16 %v7917, %v7915
        %v7952 = vpack.c.b16 %v7920, %v7918
        %v7953 = vpack.c.b16 %v7921, %v7919
        %7986 = vmatpush.bf16.msra.mxu0 %v7936
        %7987 = vmatpush.bf16.msra.mxu0 %v7934
        %7988 = vmatpush.bf16.msra.mxu0 %v7932
        %7989 = vmatpush.bf16.msra.mxu0 %v7930
        %7990 = vmatpush.bf16.msra.mxu0 %v7928
        %7991 = vmatpush.bf16.msra.mxu0 %v7926
        %7992 = vmatpush.bf16.msra.mxu0 %v7924
        %7993 = vmatpush.bf16.msra.mxu0 %v7922
        %7994 = vmatmul.bf16.gmra.mxu0 %v7584
        %v7995 = vpop.f32.mrf.mxu0
        %v7996 = vadd.f32 0.0, %v7995
        %v7997 = vpop.f32.mrf.mxu0
        %v7998 = vadd.f32 0.0, %v7997
        %7999 = vmatmul.bf16.gmra.mxu0 %v7610
        %v8000 = vpop.f32.mrf.mxu0
        %v8001 = vadd.f32 0.0, %v8000
        %v8002 = vpop.f32.mrf.mxu0
        %v8003 = vadd.f32 0.0, %v8002
        %8004 = vmatmul.bf16.gmra.mxu0 %v7628
        %v8005 = vpop.f32.mrf.mxu0
        %v8006 = vadd.f32 0.0, %v8005
        %v8007 = vpop.f32.mrf.mxu0
        %v8008 = vadd.f32 0.0, %v8007
        %8009 = vmatmul.bf16.gmra.mxu0 %v7646
        %v8010 = vpop.f32.mrf.mxu0
        %v8011 = vadd.f32 0.0, %v8010
        %v8012 = vpop.f32.mrf.mxu0
        %v8013 = vadd.f32 0.0, %v8012
        %8014 = vmatmul.bf16.gmra.mxu0 %v7664
        %v8015 = vpop.f32.mrf.mxu0
        %v8016 = vadd.f32 0.0, %v8015
        %v8017 = vpop.f32.mrf.mxu0
        %v8018 = vadd.f32 0.0, %v8017
        %8019 = vmatmul.bf16.gmra.mxu0 %v7682
        %v8020 = vpop.f32.mrf.mxu0
        %v8021 = vadd.f32 0.0, %v8020
        %v8022 = vpop.f32.mrf.mxu0
        %v8023 = vadd.f32 0.0, %v8022
        %8024 = vmatmul.bf16.gmra.mxu0 %v7700
        %v8025 = vpop.f32.mrf.mxu0
        %v8026 = vadd.f32 0.0, %v8025
        %v8027 = vpop.f32.mrf.mxu0
        %v8028 = vadd.f32 0.0, %v8027
        %8029 = vmatmul.bf16.gmra.mxu0 %v7718
        %v8030 = vpop.f32.mrf.mxu0
        %v8031 = vadd.f32 0.0, %v8030
        %v8032 = vpop.f32.mrf.mxu0
        %v8033 = vadd.f32 0.0, %v8032
        %8034 = vmatmul.bf16.gmra.mxu0 %v7736
        %v8035 = vpop.f32.mrf.mxu0
        %v8036 = vadd.f32 0.0, %v8035
        %v8037 = vpop.f32.mrf.mxu0
        %v8038 = vadd.f32 0.0, %v8037
        %8039 = vmatmul.bf16.gmra.mxu0 %v7754
        %v8040 = vpop.f32.mrf.mxu0
        %v8041 = vadd.f32 0.0, %v8040
        %v8042 = vpop.f32.mrf.mxu0
        %v8043 = vadd.f32 0.0, %v8042
        %8044 = vmatmul.bf16.gmra.mxu0 %v7772
        %v8045 = vpop.f32.mrf.mxu0
        %v8046 = vadd.f32 0.0, %v8045
        %v8047 = vpop.f32.mrf.mxu0
        %v8048 = vadd.f32 0.0, %v8047
        %8049 = vmatmul.bf16.gmra.mxu0 %v7790
        %v8050 = vpop.f32.mrf.mxu0
        %v8051 = vadd.f32 0.0, %v8050
        %v8052 = vpop.f32.mrf.mxu0
        %v8053 = vadd.f32 0.0, %v8052
        %8054 = vmatmul.bf16.gmra.mxu0 %v7789
        %v8055 = vpop.f32.mrf.mxu0
        %v8056 = vadd.f32 0.0, %v8055
        %v8057 = vpop.f32.mrf.mxu0
        %8058 = vdwg.mxu0
        %8059 = vmatpush.bf16.msra.mxu0 %v7952
        %8060 = vmatpush.bf16.msra.mxu0 %v7950
        %8061 = vmatpush.bf16.msra.mxu0 %v7948
        %8062 = vmatpush.bf16.msra.mxu0 %v7946
        %8063 = vmatpush.bf16.msra.mxu0 %v7944
        %8064 = vmatpush.bf16.msra.mxu0 %v7942
        %8065 = vmatpush.bf16.msra.mxu0 %v7940
        %8066 = vmatpush.bf16.msra.mxu0 %v7938
        %8067 = vmatmul.bf16.gmra.mxu0 %v7601
        %v8068 = vpop.f32.mrf.mxu0
        %v8069 = vadd.f32 %v7996, %v8068
        %v8070 = vpop.f32.mrf.mxu0
        %v8071 = vadd.f32 %v7998, %v8070
        %8072 = vmatmul.bf16.gmra.mxu0 %v7619
        %v8073 = vpop.f32.mrf.mxu0
        %v8074 = vadd.f32 %v8001, %v8073
        %v8075 = vpop.f32.mrf.mxu0
        %v8076 = vadd.f32 %v8003, %v8075
        %8077 = vmatmul.bf16.gmra.mxu0 %v7637
        %v8078 = vpop.f32.mrf.mxu0
        %v8079 = vadd.f32 %v8006, %v8078
        %v8080 = vpop.f32.mrf.mxu0
        %v8081 = vadd.f32 %v8008, %v8080
        %8082 = vmatmul.bf16.gmra.mxu0 %v7655
        %v8083 = vpop.f32.mrf.mxu0
        %v8084 = vadd.f32 %v8011, %v8083
        %v8085 = vpop.f32.mrf.mxu0
        %v8086 = vadd.f32 %v8013, %v8085
        %8087 = vmatmul.bf16.gmra.mxu0 %v7673
        %v8088 = vpop.f32.mrf.mxu0
        %v8089 = vadd.f32 %v8016, %v8088
        %v8090 = vpop.f32.mrf.mxu0
        %v8091 = vadd.f32 %v8018, %v8090
        %8092 = vmatmul.bf16.gmra.mxu0 %v7691
        %v8093 = vpop.f32.mrf.mxu0
        %v8094 = vadd.f32 %v8021, %v8093
        %v8095 = vpop.f32.mrf.mxu0
        %v8096 = vadd.f32 %v8023, %v8095
        %8097 = vmatmul.bf16.gmra.mxu0 %v7709
        %v8098 = vpop.f32.mrf.mxu0
        %v8099 = vadd.f32 %v8026, %v8098
        %v8100 = vpop.f32.mrf.mxu0
        %v8101 = vadd.f32 %v8028, %v8100
        %8102 = vmatmul.bf16.gmra.mxu0 %v7727
        %v8103 = vpop.f32.mrf.mxu0
        %v8104 = vadd.f32 %v8031, %v8103
        %v8105 = vpop.f32.mrf.mxu0
        %v8106 = vadd.f32 %v8033, %v8105
        %8107 = vmatmul.bf16.gmra.mxu0 %v7745
        %v8108 = vpop.f32.mrf.mxu0
        %v8109 = vadd.f32 %v8036, %v8108
        %v8110 = vpop.f32.mrf.mxu0
        %v8111 = vadd.f32 %v8038, %v8110
        %8112 = vmatmul.bf16.gmra.mxu0 %v7763
        %v8113 = vpop.f32.mrf.mxu0
        %v8114 = vadd.f32 %v8041, %v8113
        %v8115 = vpop.f32.mrf.mxu0
        %v8116 = vadd.f32 %v8043, %v8115
        %8117 = vmatmul.bf16.gmra.mxu0 %v7781
        %v8118 = vpop.f32.mrf.mxu0
        %v8119 = vadd.f32 %v8046, %v8118
        %v8120 = vpop.f32.mrf.mxu0
        %v8121 = vadd.f32 %v8048, %v8120
        %8122 = vmatmul.bf16.gmra.mxu0 %v7799
        %v8123 = vpop.f32.mrf.mxu0
        %v8124 = vadd.f32 %v8051, %v8123
        %v8125 = vpop.f32.mrf.mxu0
        %v8126 = vadd.f32 %v8053, %v8125
        %8127 = vmatmul.bf16.gmra.mxu0 %v7798
        %v8128 = vpop.f32.mrf.mxu0
        %v8129 = vadd.f32 %v8056, %v8128
        %v8130 = vpop.f32.mrf.mxu0
        %8131 = vdwg.mxu0
        %8132 = vmatpush.bf16.msra.mxu0 %v7937
        %8133 = vmatpush.bf16.msra.mxu0 %v7935
        %8134 = vmatpush.bf16.msra.mxu0 %v7933
        %8135 = vmatpush.bf16.msra.mxu0 %v7931
        %8136 = vmatpush.bf16.msra.mxu0 %v7929
        %8137 = vmatpush.bf16.msra.mxu0 %v7927
        %8138 = vmatpush.bf16.msra.mxu0 %v7925
        %8139 = vmatpush.bf16.msra.mxu0 %v7923
        %8140 = vmatmul.bf16.gmra.mxu0 %v7584
        %v8141 = vpop.f32.mrf.mxu0
        %v8142 = vadd.f32 0.0, %v8141
        %v8143 = vpop.f32.mrf.mxu0
        %v8144 = vadd.f32 0.0, %v8143
        %8145 = vmatmul.bf16.gmra.mxu0 %v7610
        %v8146 = vpop.f32.mrf.mxu0
        %v8147 = vadd.f32 0.0, %v8146
        %v8148 = vpop.f32.mrf.mxu0
        %v8149 = vadd.f32 0.0, %v8148
        %8150 = vmatmul.bf16.gmra.mxu0 %v7628
        %v8151 = vpop.f32.mrf.mxu0
        %v8152 = vadd.f32 0.0, %v8151
        %v8153 = vpop.f32.mrf.mxu0
        %v8154 = vadd.f32 0.0, %v8153
        %8155 = vmatmul.bf16.gmra.mxu0 %v7646
        %v8156 = vpop.f32.mrf.mxu0
        %v8157 = vadd.f32 0.0, %v8156
        %v8158 = vpop.f32.mrf.mxu0
        %v8159 = vadd.f32 0.0, %v8158
        %8160 = vmatmul.bf16.gmra.mxu0 %v7664
        %v8161 = vpop.f32.mrf.mxu0
        %v8162 = vadd.f32 0.0, %v8161
        %v8163 = vpop.f32.mrf.mxu0
        %v8164 = vadd.f32 0.0, %v8163
        %8165 = vmatmul.bf16.gmra.mxu0 %v7682
        %v8166 = vpop.f32.mrf.mxu0
        %v8167 = vadd.f32 0.0, %v8166
        %v8168 = vpop.f32.mrf.mxu0
        %v8169 = vadd.f32 0.0, %v8168
        %8170 = vmatmul.bf16.gmra.mxu0 %v7700
        %v8171 = vpop.f32.mrf.mxu0
        %v8172 = vadd.f32 0.0, %v8171
        %v8173 = vpop.f32.mrf.mxu0
        %v8174 = vadd.f32 0.0, %v8173
        %8175 = vmatmul.bf16.gmra.mxu0 %v7718
        %v8176 = vpop.f32.mrf.mxu0
        %v8177 = vadd.f32 0.0, %v8176
        %v8178 = vpop.f32.mrf.mxu0
        %v8179 = vadd.f32 0.0, %v8178
        %8180 = vmatmul.bf16.gmra.mxu0 %v7736
        %v8181 = vpop.f32.mrf.mxu0
        %v8182 = vadd.f32 0.0, %v8181
        %v8183 = vpop.f32.mrf.mxu0
        %v8184 = vadd.f32 0.0, %v8183
        %8185 = vmatmul.bf16.gmra.mxu0 %v7754
        %v8186 = vpop.f32.mrf.mxu0
        %v8187 = vadd.f32 0.0, %v8186
        %v8188 = vpop.f32.mrf.mxu0
        %v8189 = vadd.f32 0.0, %v8188
        %8190 = vmatmul.bf16.gmra.mxu0 %v7772
        %v8191 = vpop.f32.mrf.mxu0
        %v8192 = vadd.f32 0.0, %v8191
        %v8193 = vpop.f32.mrf.mxu0
        %v8194 = vadd.f32 0.0, %v8193
        %8195 = vmatmul.bf16.gmra.mxu0 %v7790
        %v8196 = vpop.f32.mrf.mxu0
        %v8197 = vadd.f32 0.0, %v8196
        %v8198 = vpop.f32.mrf.mxu0
        %v8199 = vadd.f32 0.0, %v8198
        %8200 = vmatmul.bf16.gmra.mxu0 %v7789
        %v8201 = vpop.f32.mrf.mxu0
        %v8202 = vadd.f32 0.0, %v8201
        %v8203 = vpop.f32.mrf.mxu0
        %8204 = vdwg.mxu0
        %8205 = vmatpush.bf16.msra.mxu0 %v7953
        %8206 = vmatpush.bf16.msra.mxu0 %v7951
        %8207 = vmatpush.bf16.msra.mxu0 %v7949
        %8208 = vmatpush.bf16.msra.mxu0 %v7947
        %8209 = vmatpush.bf16.msra.mxu0 %v7945
        %8210 = vmatpush.bf16.msra.mxu0 %v7943
        %8211 = vmatpush.bf16.msra.mxu0 %v7941
        %8212 = vmatpush.bf16.msra.mxu0 %v7939
        %8213 = vmatmul.bf16.gmra.mxu0 %v7601
        %v8214 = vpop.f32.mrf.mxu0
        %v8215 = vadd.f32 %v8142, %v8214
        %v8216 = vpop.f32.mrf.mxu0
        %v8217 = vadd.f32 %v8144, %v8216
        %8218 = vmatmul.bf16.gmra.mxu0 %v7619
        %v8219 = vpop.f32.mrf.mxu0
        %v8220 = vadd.f32 %v8147, %v8219
        %v8221 = vpop.f32.mrf.mxu0
        %v8222 = vadd.f32 %v8149, %v8221
        %8223 = vmatmul.bf16.gmra.mxu0 %v7637
        %v8224 = vpop.f32.mrf.mxu0
        %v8225 = vadd.f32 %v8152, %v8224
        %v8226 = vpop.f32.mrf.mxu0
        %v8227 = vadd.f32 %v8154, %v8226
        %8228 = vmatmul.bf16.gmra.mxu0 %v7655
        %v8229 = vpop.f32.mrf.mxu0
        %v8230 = vadd.f32 %v8157, %v8229
        %v8231 = vpop.f32.mrf.mxu0
        %v8232 = vadd.f32 %v8159, %v8231
        %8233 = vmatmul.bf16.gmra.mxu0 %v7673
        %v8234 = vpop.f32.mrf.mxu0
        %v8235 = vadd.f32 %v8162, %v8234
        %v8236 = vpop.f32.mrf.mxu0
        %v8237 = vadd.f32 %v8164, %v8236
        %8238 = vmatmul.bf16.gmra.mxu0 %v7691
        %v8239 = vpop.f32.mrf.mxu0
        %v8240 = vadd.f32 %v8167, %v8239
        %v8241 = vpop.f32.mrf.mxu0
        %v8242 = vadd.f32 %v8169, %v8241
        %8243 = vmatmul.bf16.gmra.mxu0 %v7709
        %v8244 = vpop.f32.mrf.mxu0
        %v8245 = vadd.f32 %v8172, %v8244
        %v8246 = vpop.f32.mrf.mxu0
        %v8247 = vadd.f32 %v8174, %v8246
        %8248 = vmatmul.bf16.gmra.mxu0 %v7727
        %v8249 = vpop.f32.mrf.mxu0
        %v8250 = vadd.f32 %v8177, %v8249
        %v8251 = vpop.f32.mrf.mxu0
        %v8252 = vadd.f32 %v8179, %v8251
        %8253 = vmatmul.bf16.gmra.mxu0 %v7745
        %v8254 = vpop.f32.mrf.mxu0
        %v8255 = vadd.f32 %v8182, %v8254
        %v8256 = vpop.f32.mrf.mxu0
        %v8257 = vadd.f32 %v8184, %v8256
        %8258 = vmatmul.bf16.gmra.mxu0 %v7763
        %v8259 = vpop.f32.mrf.mxu0
        %v8260 = vadd.f32 %v8187, %v8259
        %v8261 = vpop.f32.mrf.mxu0
        %v8262 = vadd.f32 %v8189, %v8261
        %8263 = vmatmul.bf16.gmra.mxu0 %v7781
        %v8264 = vpop.f32.mrf.mxu0
        %v8265 = vadd.f32 %v8192, %v8264
        %v8266 = vpop.f32.mrf.mxu0
        %v8267 = vadd.f32 %v8194, %v8266
        %8268 = vmatmul.bf16.gmra.mxu0 %v7799
        %v8269 = vpop.f32.mrf.mxu0
        %v8270 = vadd.f32 %v8197, %v8269
        %v8271 = vpop.f32.mrf.mxu0
        %v8272 = vadd.f32 %v8199, %v8271
        %8273 = vmatmul.bf16.gmra.mxu0 %v7798
        %v8274 = vpop.f32.mrf.mxu0
        %v8275 = vadd.f32 %v8202, %v8274
        %v8276 = vpop.f32.mrf.mxu0
        %8277 = vdwg.mxu0
        %v8278 = vld [vmem:[#allocation3] sm:$0xff]
        %v8279 = vld [vmem:[#allocation3 + $0x8] sm:$0xff]
        %v8280 = vld [vmem:[#allocation3 + $0x10] sm:$0xff]
        %v8281 = vld [vmem:[#allocation3 + $0x18] sm:$0xff]
        %v8282 = vld [vmem:[#allocation3 + $0x20] sm:$0xff]
        %v8283 = vld [vmem:[#allocation3 + $0x28] sm:$0xff]
        %v8284 = vld [vmem:[#allocation3 + $0x30] sm:$0xff]
        %v8285 = vld [vmem:[#allocation3 + $0x38] sm:$0xff]
        %v8286 = vld [vmem:[#allocation3 + $0x40] sm:$0xff]
        %v8287 = vld [vmem:[#allocation3 + $0x48] sm:$0xff]
        %v8288 = vld [vmem:[#allocation3 + $0x50] sm:$0xff]
        %v8289 = vld [vmem:[#allocation3 + $0x58] sm:$0xff]
        %v8290 = vld [vmem:[#allocation3 + $0x60] sm:$0xff]
        %v8291 = vld [vmem:[#allocation3 + $0x68] sm:$0xff]
        %v8292 = vld [vmem:[#allocation3 + $0x70] sm:$0xff]
        %v8293 = vld [vmem:[#allocation3 + $0x78] sm:$0xff]
        %v8294 = vld [vmem:[#allocation3 + $0x80] sm:$0xff]
        %v8295 = vld [vmem:[#allocation3 + $0x88] sm:$0xff]
        %v8296 = vld [vmem:[#allocation3 + $0x90] sm:$0xff]
        %v8297 = vld [vmem:[#allocation3 + $0x98] sm:$0xff]
        %v8298 = vld [vmem:[#allocation3 + $0xa0] sm:$0xff]
        %v8299 = vld [vmem:[#allocation3 + $0xa8] sm:$0xff]
        %v8300 = vld [vmem:[#allocation3 + $0xb0] sm:$0xff]
        %v8301 = vld [vmem:[#allocation3 + $0xb8] sm:$0xff]
        %v8302 = vld [vmem:[#allocation3 + $0xc0] sm:$0xff]
        %v8303 = vld [vmem:[#allocation3 + $0xc8] sm:$0xff]
        %v8304 = vld [vmem:[#allocation3 + $0xd0] sm:$0xff]
        %v8305 = vld [vmem:[#allocation3 + $0xd8] sm:$0xff]
        %v8306 = vld [vmem:[#allocation3 + $0xe0] sm:$0xff]
        %v8307 = vld [vmem:[#allocation3 + $0xe8] sm:$0xff]
        %v8308 = vld [vmem:[#allocation3 + $0xf0] sm:$0xff]
        %v8309 = vld [vmem:[#allocation3 + $0xf8] sm:$0xff]
        %v8310 = vld [vmem:[#allocation3 + $0x100] sm:$0xff]
        %v8311 = vld [vmem:[#allocation3 + $0x108] sm:$0xff]
        %v8312 = vld [vmem:[#allocation3 + $0x110] sm:$0xff]
        %v8313 = vld [vmem:[#allocation3 + $0x118] sm:$0xff]
        %v8314 = vld [vmem:[#allocation3 + $0x120] sm:$0xff]
        %v8315 = vld [vmem:[#allocation3 + $0x128] sm:$0xff]
        %v8316 = vld [vmem:[#allocation3 + $0x130] sm:$0xff]
        %v8317 = vld [vmem:[#allocation3 + $0x138] sm:$0xff]
        %v8318 = vld [vmem:[#allocation3 + $0x140] sm:$0xff]
        %v8319 = vld [vmem:[#allocation3 + $0x148] sm:$0xff]
        %v8320 = vld [vmem:[#allocation3 + $0x150] sm:$0xff]
        %v8321 = vld [vmem:[#allocation3 + $0x158] sm:$0xff]
        %v8322 = vld [vmem:[#allocation3 + $0x160] sm:$0xff]
        %v8323 = vld [vmem:[#allocation3 + $0x168] sm:$0xff]
        %v8324 = vld [vmem:[#allocation3 + $0x170] sm:$0xff]
        %v8325 = vld [vmem:[#allocation3 + $0x178] sm:$0xff]
        %v8326 = vld [vmem:[#allocation3 + $0x180] sm:$0xf]
        %v8327 = vld [vmem:[#allocation3 + $0x188] sm:$0xf]
        %v8328 = vadd.f32 %v8278, %v8069
        %v8329 = vadd.f32 %v8279, %v8215
        %v8330 = vadd.f32 %v8280, %v8071
        %v8331 = vadd.f32 %v8281, %v8217
        %v8332 = vadd.f32 %v8282, %v8074
        %v8333 = vadd.f32 %v8283, %v8220
        %v8334 = vadd.f32 %v8284, %v8076
        %v8335 = vadd.f32 %v8285, %v8222
        %v8336 = vadd.f32 %v8286, %v8079
        %v8337 = vadd.f32 %v8287, %v8225
        %v8338 = vadd.f32 %v8288, %v8081
        %v8339 = vadd.f32 %v8289, %v8227
        %v8340 = vadd.f32 %v8290, %v8084
        %v8341 = vadd.f32 %v8291, %v8230
        %v8342 = vadd.f32 %v8292, %v8086
        %v8343 = vadd.f32 %v8293, %v8232
        %v8344 = vadd.f32 %v8294, %v8089
        %v8345 = vadd.f32 %v8295, %v8235
        %v8346 = vadd.f32 %v8296, %v8091
        %v8347 = vadd.f32 %v8297, %v8237
        %v8348 = vadd.f32 %v8298, %v8094
        %v8349 = vadd.f32 %v8299, %v8240
        %v8350 = vadd.f32 %v8300, %v8096
        %v8351 = vadd.f32 %v8301, %v8242
        %v8352 = vadd.f32 %v8302, %v8099
        %v8353 = vadd.f32 %v8303, %v8245
        %v8354 = vadd.f32 %v8304, %v8101
        %v8355 = vadd.f32 %v8305, %v8247
        %v8356 = vadd.f32 %v8306, %v8104
        %v8357 = vadd.f32 %v8307, %v8250
        %v8358 = vadd.f32 %v8308, %v8106
        %v8359 = vadd.f32 %v8309, %v8252
        %v8360 = vadd.f32 %v8310, %v8109
        %v8361 = vadd.f32 %v8311, %v8255
        %v8362 = vadd.f32 %v8312, %v8111
        %v8363 = vadd.f32 %v8313, %v8257
        %v8364 = vadd.f32 %v8314, %v8114
        %v8365 = vadd.f32 %v8315, %v8260
        %v8366 = vadd.f32 %v8316, %v8116
        %v8367 = vadd.f32 %v8317, %v8262
        %v8368 = vadd.f32 %v8318, %v8119
        %v8369 = vadd.f32 %v8319, %v8265
        %v8370 = vadd.f32 %v8320, %v8121
        %v8371 = vadd.f32 %v8321, %v8267
        %v8372 = vadd.f32 %v8322, %v8124
        %v8373 = vadd.f32 %v8323, %v8270
        %v8374 = vadd.f32 %v8324, %v8126
        %v8375 = vadd.f32 %v8325, %v8272
        %v8376 = vadd.f32 %v8326, %v8129
        %v8377 = vadd.f32 %v8327, %v8275
        %8378 = vst [vmem:[#allocation3] sm:$0xff] %v8328
        %8379 = vst [vmem:[#allocation3 + $0x8] sm:$0xff] %v8329
        %8380 = vst [vmem:[#allocation3 + $0x10] sm:$0xff] %v8330
        %8381 = vst [vmem:[#allocation3 + $0x18] sm:$0xff] %v8331
        %8382 = vst [vmem:[#allocation3 + $0x20] sm:$0xff] %v8332
        %8383 = vst [vmem:[#allocation3 + $0x28] sm:$0xff] %v8333
        %8384 = vst [vmem:[#allocation3 + $0x30] sm:$0xff] %v8334
        %8385 = vst [vmem:[#allocation3 + $0x38] sm:$0xff] %v8335
        %8386 = vst [vmem:[#allocation3 + $0x40] sm:$0xff] %v8336
        %8387 = vst [vmem:[#allocation3 + $0x48] sm:$0xff] %v8337
        %8388 = vst [vmem:[#allocation3 + $0x50] sm:$0xff] %v8338
        %8389 = vst [vmem:[#allocation3 + $0x58] sm:$0xff] %v8339
        %8390 = vst [vmem:[#allocation3 + $0x60] sm:$0xff] %v8340
        %8391 = vst [vmem:[#allocation3 + $0x68] sm:$0xff] %v8341
        %8392 = vst [vmem:[#allocation3 + $0x70] sm:$0xff] %v8342
        %8393 = vst [vmem:[#allocation3 + $0x78] sm:$0xff] %v8343
        %8394 = vst [vmem:[#allocation3 + $0x80] sm:$0xff] %v8344
        %8395 = vst [vmem:[#allocation3 + $0x88] sm:$0xff] %v8345
        %8396 = vst [vmem:[#allocation3 + $0x90] sm:$0xff] %v8346
        %8397 = vst [vmem:[#allocation3 + $0x98] sm:$0xff] %v8347
        %8398 = vst [vmem:[#allocation3 + $0xa0] sm:$0xff] %v8348
        %8399 = vst [vmem:[#allocation3 + $0xa8] sm:$0xff] %v8349
        %8400 = vst [vmem:[#allocation3 + $0xb0] sm:$0xff] %v8350
        %8401 = vst [vmem:[#allocation3 + $0xb8] sm:$0xff] %v8351
        %8402 = vst [vmem:[#allocation3 + $0xc0] sm:$0xff] %v8352
        %8403 = vst [vmem:[#allocation3 + $0xc8] sm:$0xff] %v8353
        %8404 = vst [vmem:[#allocation3 + $0xd0] sm:$0xff] %v8354
        %8405 = vst [vmem:[#allocation3 + $0xd8] sm:$0xff] %v8355
        %8406 = vst [vmem:[#allocation3 + $0xe0] sm:$0xff] %v8356
        %8407 = vst [vmem:[#allocation3 + $0xe8] sm:$0xff] %v8357
        %8408 = vst [vmem:[#allocation3 + $0xf0] sm:$0xff] %v8358
        %8409 = vst [vmem:[#allocation3 + $0xf8] sm:$0xff] %v8359
        %8410 = vst [vmem:[#allocation3 + $0x100] sm:$0xff] %v8360
        %8411 = vst [vmem:[#allocation3 + $0x108] sm:$0xff] %v8361
        %8412 = vst [vmem:[#allocation3 + $0x110] sm:$0xff] %v8362
        %8413 = vst [vmem:[#allocation3 + $0x118] sm:$0xff] %v8363
        %8414 = vst [vmem:[#allocation3 + $0x120] sm:$0xff] %v8364
        %8415 = vst [vmem:[#allocation3 + $0x128] sm:$0xff] %v8365
        %8416 = vst [vmem:[#allocation3 + $0x130] sm:$0xff] %v8366
        %8417 = vst [vmem:[#allocation3 + $0x138] sm:$0xff] %v8367
        %8418 = vst [vmem:[#allocation3 + $0x140] sm:$0xff] %v8368
        %8419 = vst [vmem:[#allocation3 + $0x148] sm:$0xff] %v8369
        %8420 = vst [vmem:[#allocation3 + $0x150] sm:$0xff] %v8370
        %8421 = vst [vmem:[#allocation3 + $0x158] sm:$0xff] %v8371
        %8422 = vst [vmem:[#allocation3 + $0x160] sm:$0xff] %v8372
        %8423 = vst [vmem:[#allocation3 + $0x168] sm:$0xff] %v8373
        %8424 = vst [vmem:[#allocation3 + $0x170] sm:$0xff] %v8374
        %8425 = vst [vmem:[#allocation3 + $0x178] sm:$0xff] %v8375
        %8426 = vst [vmem:[#allocation3 + $0x180] sm:$0xf] %v8376
        %8427 = vst [vmem:[#allocation3 + $0x188] sm:$0xf] %v8377
        %v8428 = vld [vmem:[%s1485 + $0x18] sm:$0x88]
        %v8429 = vld [vmem:[%s1485 + $0x20] sm:$0xff]
        %v8430 = vld [vmem:[%s1485 + $0x28] sm:$0xff]
        %v8431 = vld [vmem:[%s1485 + $0x30] sm:$0xff]
        %v8432 = vld [vmem:[%s1485 + $0x38] sm:$0xff]
        %v8433 = vld [vmem:[%s1485 + $0x40] sm:$0xff]
        %v8434 = vld [vmem:[%s1485 + $0x48] sm:$0xff]
        %v8435 = vld [vmem:[%s1485 + $0x50] sm:$0xff]
        %v8436 = vld [vmem:[%s1485 + $0x58] sm:$0xff]
        %v8437 = vld [vmem:[%s1485 + $0x60] sm:$0xff]
        %v8438 = vld [vmem:[%s1485 + $0x68] sm:$0xff]
        %v8439 = vld [vmem:[%s1485 + $0x70] sm:$0xff]
        %v8440 = vld [vmem:[%s1485 + $0x78] sm:$0xff]
        %v8441 = vld [vmem:[%s1485 + $0x80] sm:$0xff]
        %v8442 = vld [vmem:[%s1485 + $0x88] sm:$0xff]
        %v8443 = vld [vmem:[%s1485 + $0x90] sm:$0xff]
        %v8444 = vld [vmem:[%s1485 + $0x98] sm:$0xff]
        %v8445 = vld [vmem:[%s1485 + $0xa0] sm:$0xff]
        %v8446 = vld [vmem:[%s1485 + $0xa8] sm:$0xff]
        %v8447 = vld [vmem:[%s1485 + $0xb0] sm:$0xff]
        %v8448 = vld [vmem:[%s1485 + $0xb8] sm:$0xff]
        %v8449 = vld [vmem:[%s1485 + $0xc0] sm:$0xff]
        %v8450 = vld [vmem:[%s1485 + $0xc8] sm:$0xff]
        %v8451 = vld [vmem:[%s1485 + $0xd0] sm:$0xff]
        %v8452 = vld [vmem:[%s1485 + $0xd8] sm:$0xff]
        %v8453 = vld [vmem:[%s1485 + $0xe0] sm:$0x11]
        %s8454 = scalar_lea.vmem [#allocation9], 1792
        %v8455 = vld [vmem:[%s8454] sm:$0xff]
        %v8456 = vld [vmem:[%s8454 + $0x8] sm:$0xff]
        %v8457 = vld [vmem:[%s8454 + $0x10] sm:$0xff]
        %v8458 = vld [vmem:[%s8454 + $0x18] sm:$0xff]
        %v8459 = vld [vmem:[%s8454 + $0x20] sm:$0xff]
        %v8460 = vld [vmem:[%s8454 + $0x28] sm:$0xff]
        %v8461 = vld [vmem:[%s8454 + $0x30] sm:$0xff]
        %v8462 = vld [vmem:[%s8454 + $0x38] sm:$0xff]
        %v8463 = vld [vmem:[%s8454 + $0x40] sm:$0xff]
        %v8464 = vld [vmem:[%s8454 + $0x48] sm:$0xff]
        %v8465 = vld [vmem:[%s8454 + $0x50] sm:$0xff]
        %v8466 = vld [vmem:[%s8454 + $0x58] sm:$0xff]
        %v8467 = vld [vmem:[%s8454 + $0x60] sm:$0xff]
        %v8468 = vld [vmem:[%s8454 + $0x68] sm:$0xff]
        %v8469 = vld [vmem:[%s8454 + $0x70] sm:$0xff]
        %v8470 = vld [vmem:[%s8454 + $0x78] sm:$0xff]
        %v8471 = vld [vmem:[%s8454 + $0x80] sm:$0xff]
        %v8472 = vld [vmem:[%s8454 + $0x88] sm:$0xff]
        %v8473 = vld [vmem:[%s8454 + $0x90] sm:$0xff]
        %v8474 = vld [vmem:[%s8454 + $0x98] sm:$0xff]
        %v8475 = vld [vmem:[%s8454 + $0xa0] sm:$0xff]
        %v8476 = vld [vmem:[%s8454 + $0xa8] sm:$0xff]
        %v8477 = vld [vmem:[%s8454 + $0xb0] sm:$0xff]
        %v8478 = vld [vmem:[%s8454 + $0xb8] sm:$0xff]
        %v8479 = vld [vmem:[%s8454 + $0xc0] sm:$0xff]
        %v8480 = vld [vmem:[%s8454 + $0xc8] sm:$0xff]
        %v8481 = vld [vmem:[%s8454 + $0xd0] sm:$0xff]
        %v8482 = vld [vmem:[%s8454 + $0xd8] sm:$0xff]
        %v8483 = vld [vmem:[%s8454 + $0xe0] sm:$0xff]
        %v8484 = vld [vmem:[%s8454 + $0xe8] sm:$0xff]
        %v8485 = vld [vmem:[%s8454 + $0xf0] sm:$0xff]
        %v8486 = vld [vmem:[%s8454 + $0xf8] sm:$0xff]
        %v8513 = vunpack.c.l.b16 %v8428
        %v8514 = vunpack.c.h.b16 %v8428
        %v8515 = vunpack.c.l.b16 %v8429
        %v8516 = vunpack.c.h.b16 %v8429
        %v8517 = vunpack.c.l.b16 %v8430
        %v8518 = vunpack.c.h.b16 %v8430
        %v8519 = vunpack.c.l.b16 %v8431
        %v8520 = vunpack.c.h.b16 %v8431
        %v8521 = vunpack.c.l.b16 %v8432
        %v8522 = vunpack.c.h.b16 %v8432
        %v8523 = vunpack.c.l.b16 %v8433
        %v8524 = vunpack.c.h.b16 %v8433
        %v8525 = vunpack.c.l.b16 %v8434
        %v8526 = vunpack.c.h.b16 %v8434
        %v8527 = vunpack.c.l.b16 %v8435
        %v8528 = vunpack.c.h.b16 %v8435
        %v8529 = vunpack.c.l.b16 %v8436
        %v8530 = vunpack.c.h.b16 %v8436
        %v8531 = vunpack.c.l.b16 %v8437
        %v8532 = vunpack.c.h.b16 %v8437
        %v8533 = vunpack.c.l.b16 %v8438
        %v8534 = vunpack.c.h.b16 %v8438
        %v8535 = vunpack.c.l.b16 %v8439
        %v8536 = vunpack.c.h.b16 %v8439
        %v8537 = vunpack.c.l.b16 %v8440
        %v8538 = vunpack.c.h.b16 %v8440
        %v8539 = vunpack.c.l.b16 %v8441
        %v8540 = vunpack.c.h.b16 %v8441
        %v8541 = vunpack.c.l.b16 %v8442
        %v8542 = vunpack.c.h.b16 %v8442
        %v8543 = vunpack.c.l.b16 %v8443
        %v8544 = vunpack.c.h.b16 %v8443
        %v8545 = vunpack.c.l.b16 %v8444
        %v8546 = vunpack.c.h.b16 %v8444
        %v8547 = vunpack.c.l.b16 %v8445
        %v8548 = vunpack.c.h.b16 %v8445
        %v8549 = vunpack.c.l.b16 %v8446
        %v8550 = vunpack.c.h.b16 %v8446
        %v8551 = vunpack.c.l.b16 %v8447
        %v8552 = vunpack.c.h.b16 %v8447
        %v8553 = vunpack.c.l.b16 %v8448
        %v8554 = vunpack.c.h.b16 %v8448
        %v8555 = vunpack.c.l.b16 %v8449
        %v8556 = vunpack.c.h.b16 %v8449
        %v8557 = vunpack.c.l.b16 %v8450
        %v8558 = vunpack.c.h.b16 %v8450
        %v8559 = vunpack.c.l.b16 %v8451
        %v8560 = vunpack.c.h.b16 %v8451
        %v8561 = vunpack.c.l.b16 %v8452
        %v8562 = vunpack.c.h.b16 %v8452
        %v8563 = vunpack.c.l.b16 %v8453
        %v8564 = vunpack.c.h.b16 %v8453
        %v8565 = vpack.c.b16 %v8515, %v8513
        %v8566 = vpack.c.b16 %v8516, %v8514
        %v8567 = vpack.c.b16 %v8519, %v8517
        %v8568 = vpack.c.b16 %v8520, %v8518
        %v8569 = vpack.c.b16 %v8523, %v8521
        %v8570 = vpack.c.b16 %v8524, %v8522
        %v8571 = vpack.c.b16 %v8527, %v8525
        %v8572 = vpack.c.b16 %v8528, %v8526
        %v8573 = vpack.c.b16 %v8531, %v8529
        %v8574 = vpack.c.b16 %v8532, %v8530
        %v8575 = vpack.c.b16 %v8535, %v8533
        %v8576 = vpack.c.b16 %v8536, %v8534
        %v8577 = vpack.c.b16 %v8539, %v8537
        %v8578 = vpack.c.b16 %v8540, %v8538
        %v8579 = vpack.c.b16 %v8543, %v8541
        %v8580 = vpack.c.b16 %v8544, %v8542
        %v8581 = vpack.c.b16 %v8547, %v8545
        %v8582 = vpack.c.b16 %v8548, %v8546
        %v8583 = vpack.c.b16 %v8551, %v8549
        %v8584 = vpack.c.b16 %v8552, %v8550
        %v8585 = vpack.c.b16 %v8555, %v8553
        %v8586 = vpack.c.b16 %v8556, %v8554
        %v8587 = vpack.c.b16 %v8559, %v8557
        %v8588 = vpack.c.b16 %v8560, %v8558
        %v8589 = vpack.c.b16 %v8563, %v8561
        %v8590 = vpack.c.b16 %v8564, %v8562
        %vm8591 = vcmask 1044480
        %v8592 = vrot.slane %v8565, 3
        %v8593 = vrot.slane %v8567, 3
        %v8594 = vsel %vm8591, %v8592, %v8593
        %v8595 = vrot.slane %v8566, 3
        %v8596 = vrot.slane %v8568, 3
        %v8597 = vsel %vm8591, %v8595, %v8596
        %v8598 = vrot.slane %v8569, 3
        %v8599 = vsel %vm8591, %v8593, %v8598
        %v8600 = vrot.slane %v8570, 3
        %v8601 = vsel %vm8591, %v8596, %v8600
        %v8602 = vrot.slane %v8571, 3
        %v8603 = vsel %vm8591, %v8598, %v8602
        %v8604 = vrot.slane %v8572, 3
        %v8605 = vsel %vm8591, %v8600, %v8604
        %v8606 = vrot.slane %v8573, 3
        %v8607 = vsel %vm8591, %v8602, %v8606
        %v8608 = vrot.slane %v8574, 3
        %v8609 = vsel %vm8591, %v8604, %v8608
        %v8610 = vrot.slane %v8575, 3
        %v8611 = vsel %vm8591, %v8606, %v8610
        %v8612 = vrot.slane %v8576, 3
        %v8613 = vsel %vm8591, %v8608, %v8612
        %v8614 = vrot.slane %v8577, 3
        %v8615 = vsel %vm8591, %v8610, %v8614
        %v8616 = vrot.slane %v8578, 3
        %v8617 = vsel %vm8591, %v8612, %v8616
        %v8618 = vrot.slane %v8579, 3
        %v8619 = vsel %vm8591, %v8614, %v8618
        %v8620 = vrot.slane %v8580, 3
        %v8621 = vsel %vm8591, %v8616, %v8620
        %v8622 = vrot.slane %v8581, 3
        %v8623 = vsel %vm8591, %v8618, %v8622
        %v8624 = vrot.slane %v8582, 3
        %v8625 = vsel %vm8591, %v8620, %v8624
        %v8626 = vrot.slane %v8583, 3
        %v8627 = vsel %vm8591, %v8622, %v8626
        %v8628 = vrot.slane %v8584, 3
        %v8629 = vsel %vm8591, %v8624, %v8628
        %v8630 = vrot.slane %v8585, 3
        %v8631 = vsel %vm8591, %v8626, %v8630
        %v8632 = vrot.slane %v8586, 3
        %v8633 = vsel %vm8591, %v8628, %v8632
        %v8634 = vrot.slane %v8587, 3
        %v8635 = vsel %vm8591, %v8630, %v8634
        %v8636 = vrot.slane %v8588, 3
        %v8637 = vsel %vm8591, %v8632, %v8636
        %v8638 = vrot.slane %v8589, 3
        %v8639 = vsel %vm8591, %v8634, %v8638
        %v8640 = vrot.slane %v8590, 3
        %v8641 = vsel %vm8591, %v8636, %v8640
        %v8700 = vunpack.c.l.b16 %v8455
        %v8701 = vunpack.c.h.b16 %v8455
        %v8702 = vunpack.c.l.b16 %v8456
        %v8703 = vunpack.c.h.b16 %v8456
        %v8704 = vunpack.c.l.b16 %v8457
        %v8705 = vunpack.c.h.b16 %v8457
        %v8706 = vunpack.c.l.b16 %v8458
        %v8707 = vunpack.c.h.b16 %v8458
        %v8708 = vunpack.c.l.b16 %v8459
        %v8709 = vunpack.c.h.b16 %v8459
        %v8710 = vunpack.c.l.b16 %v8460
        %v8711 = vunpack.c.h.b16 %v8460
        %v8712 = vunpack.c.l.b16 %v8461
        %v8713 = vunpack.c.h.b16 %v8461
        %v8714 = vunpack.c.l.b16 %v8462
        %v8715 = vunpack.c.h.b16 %v8462
        %v8716 = vunpack.c.l.b16 %v8463
        %v8717 = vunpack.c.h.b16 %v8463
        %v8718 = vunpack.c.l.b16 %v8464
        %v8719 = vunpack.c.h.b16 %v8464
        %v8720 = vunpack.c.l.b16 %v8465
        %v8721 = vunpack.c.h.b16 %v8465
        %v8722 = vunpack.c.l.b16 %v8466
        %v8723 = vunpack.c.h.b16 %v8466
        %v8724 = vunpack.c.l.b16 %v8467
        %v8725 = vunpack.c.h.b16 %v8467
        %v8726 = vunpack.c.l.b16 %v8468
        %v8727 = vunpack.c.h.b16 %v8468
        %v8728 = vunpack.c.l.b16 %v8469
        %v8729 = vunpack.c.h.b16 %v8469
        %v8730 = vunpack.c.l.b16 %v8470
        %v8731 = vunpack.c.h.b16 %v8470
        %v8732 = vunpack.c.l.b16 %v8471
        %v8733 = vunpack.c.h.b16 %v8471
        %v8734 = vunpack.c.l.b16 %v8472
        %v8735 = vunpack.c.h.b16 %v8472
        %v8736 = vunpack.c.l.b16 %v8473
        %v8737 = vunpack.c.h.b16 %v8473
        %v8738 = vunpack.c.l.b16 %v8474
        %v8739 = vunpack.c.h.b16 %v8474
        %v8740 = vunpack.c.l.b16 %v8475
        %v8741 = vunpack.c.h.b16 %v8475
        %v8742 = vunpack.c.l.b16 %v8476
        %v8743 = vunpack.c.h.b16 %v8476
        %v8744 = vunpack.c.l.b16 %v8477
        %v8745 = vunpack.c.h.b16 %v8477
        %v8746 = vunpack.c.l.b16 %v8478
        %v8747 = vunpack.c.h.b16 %v8478
        %v8748 = vunpack.c.l.b16 %v8479
        %v8749 = vunpack.c.h.b16 %v8479
        %v8750 = vunpack.c.l.b16 %v8480
        %v8751 = vunpack.c.h.b16 %v8480
        %v8752 = vunpack.c.l.b16 %v8481
        %v8753 = vunpack.c.h.b16 %v8481
        %v8754 = vunpack.c.l.b16 %v8482
        %v8755 = vunpack.c.h.b16 %v8482
        %v8756 = vunpack.c.l.b16 %v8483
        %v8757 = vunpack.c.h.b16 %v8483
        %v8758 = vunpack.c.l.b16 %v8484
        %v8759 = vunpack.c.h.b16 %v8484
        %v8760 = vunpack.c.l.b16 %v8485
        %v8761 = vunpack.c.h.b16 %v8485
        %v8762 = vunpack.c.l.b16 %v8486
        %v8763 = vunpack.c.h.b16 %v8486
        %v8764 = vpack.c.b16 %v8702, %v8700
        %v8765 = vpack.c.b16 %v8703, %v8701
        %v8766 = vpack.c.b16 %v8706, %v8704
        %v8767 = vpack.c.b16 %v8707, %v8705
        %v8768 = vpack.c.b16 %v8710, %v8708
        %v8769 = vpack.c.b16 %v8711, %v8709
        %v8770 = vpack.c.b16 %v8714, %v8712
        %v8771 = vpack.c.b16 %v8715, %v8713
        %v8772 = vpack.c.b16 %v8718, %v8716
        %v8773 = vpack.c.b16 %v8719, %v8717
        %v8774 = vpack.c.b16 %v8722, %v8720
        %v8775 = vpack.c.b16 %v8723, %v8721
        %v8776 = vpack.c.b16 %v8726, %v8724
        %v8777 = vpack.c.b16 %v8727, %v8725
        %v8778 = vpack.c.b16 %v8730, %v8728
        %v8779 = vpack.c.b16 %v8731, %v8729
        %v8780 = vpack.c.b16 %v8734, %v8732
        %v8781 = vpack.c.b16 %v8735, %v8733
        %v8782 = vpack.c.b16 %v8738, %v8736
        %v8783 = vpack.c.b16 %v8739, %v8737
        %v8784 = vpack.c.b16 %v8742, %v8740
        %v8785 = vpack.c.b16 %v8743, %v8741
        %v8786 = vpack.c.b16 %v8746, %v8744
        %v8787 = vpack.c.b16 %v8747, %v8745
        %v8788 = vpack.c.b16 %v8750, %v8748
        %v8789 = vpack.c.b16 %v8751, %v8749
        %v8790 = vpack.c.b16 %v8754, %v8752
        %v8791 = vpack.c.b16 %v8755, %v8753
        %v8792 = vpack.c.b16 %v8758, %v8756
        %v8793 = vpack.c.b16 %v8759, %v8757
        %v8794 = vpack.c.b16 %v8762, %v8760
        %v8795 = vpack.c.b16 %v8763, %v8761
        %8828 = vmatpush.bf16.msra.mxu0 %v8778
        %8829 = vmatpush.bf16.msra.mxu0 %v8776
        %8830 = vmatpush.bf16.msra.mxu0 %v8774
        %8831 = vmatpush.bf16.msra.mxu0 %v8772
        %8832 = vmatpush.bf16.msra.mxu0 %v8770
        %8833 = vmatpush.bf16.msra.mxu0 %v8768
        %8834 = vmatpush.bf16.msra.mxu0 %v8766
        %8835 = vmatpush.bf16.msra.mxu0 %v8764
        %8836 = vmatmul.bf16.gmra.mxu0 %v8594
        %v8837 = vpop.f32.mrf.mxu0
        %v8838 = vadd.f32 0.0, %v8837
        %v8839 = vpop.f32.mrf.mxu0
        %v8840 = vadd.f32 0.0, %v8839
        %8841 = vmatmul.bf16.gmra.mxu0 %v8599
        %v8842 = vpop.f32.mrf.mxu0
        %v8843 = vadd.f32 0.0, %v8842
        %v8844 = vpop.f32.mrf.mxu0
        %v8845 = vadd.f32 0.0, %v8844
        %8846 = vmatmul.bf16.gmra.mxu0 %v8603
        %v8847 = vpop.f32.mrf.mxu0
        %v8848 = vadd.f32 0.0, %v8847
        %v8849 = vpop.f32.mrf.mxu0
        %v8850 = vadd.f32 0.0, %v8849
        %8851 = vmatmul.bf16.gmra.mxu0 %v8607
        %v8852 = vpop.f32.mrf.mxu0
        %v8853 = vadd.f32 0.0, %v8852
        %v8854 = vpop.f32.mrf.mxu0
        %v8855 = vadd.f32 0.0, %v8854
        %8856 = vmatmul.bf16.gmra.mxu0 %v8611
        %v8857 = vpop.f32.mrf.mxu0
        %v8858 = vadd.f32 0.0, %v8857
        %v8859 = vpop.f32.mrf.mxu0
        %v8860 = vadd.f32 0.0, %v8859
        %8861 = vmatmul.bf16.gmra.mxu0 %v8615
        %v8862 = vpop.f32.mrf.mxu0
        %v8863 = vadd.f32 0.0, %v8862
        %v8864 = vpop.f32.mrf.mxu0
        %v8865 = vadd.f32 0.0, %v8864
        %8866 = vmatmul.bf16.gmra.mxu0 %v8619
        %v8867 = vpop.f32.mrf.mxu0
        %v8868 = vadd.f32 0.0, %v8867
        %v8869 = vpop.f32.mrf.mxu0
        %v8870 = vadd.f32 0.0, %v8869
        %8871 = vmatmul.bf16.gmra.mxu0 %v8623
        %v8872 = vpop.f32.mrf.mxu0
        %v8873 = vadd.f32 0.0, %v8872
        %v8874 = vpop.f32.mrf.mxu0
        %v8875 = vadd.f32 0.0, %v8874
        %8876 = vmatmul.bf16.gmra.mxu0 %v8627
        %v8877 = vpop.f32.mrf.mxu0
        %v8878 = vadd.f32 0.0, %v8877
        %v8879 = vpop.f32.mrf.mxu0
        %v8880 = vadd.f32 0.0, %v8879
        %8881 = vmatmul.bf16.gmra.mxu0 %v8631
        %v8882 = vpop.f32.mrf.mxu0
        %v8883 = vadd.f32 0.0, %v8882
        %v8884 = vpop.f32.mrf.mxu0
        %v8885 = vadd.f32 0.0, %v8884
        %8886 = vmatmul.bf16.gmra.mxu0 %v8635
        %v8887 = vpop.f32.mrf.mxu0
        %v8888 = vadd.f32 0.0, %v8887
        %v8889 = vpop.f32.mrf.mxu0
        %v8890 = vadd.f32 0.0, %v8889
        %8891 = vmatmul.bf16.gmra.mxu0 %v8639
        %v8892 = vpop.f32.mrf.mxu0
        %v8893 = vadd.f32 0.0, %v8892
        %v8894 = vpop.f32.mrf.mxu0
        %v8895 = vadd.f32 0.0, %v8894
        %8896 = vmatmul.bf16.gmra.mxu0 %v8638
        %v8897 = vpop.f32.mrf.mxu0
        %v8898 = vadd.f32 0.0, %v8897
        %v8899 = vpop.f32.mrf.mxu0
        %8900 = vdwg.mxu0
        %8901 = vmatpush.bf16.msra.mxu0 %v8794
        %8902 = vmatpush.bf16.msra.mxu0 %v8792
        %8903 = vmatpush.bf16.msra.mxu0 %v8790
        %8904 = vmatpush.bf16.msra.mxu0 %v8788
        %8905 = vmatpush.bf16.msra.mxu0 %v8786
        %8906 = vmatpush.bf16.msra.mxu0 %v8784
        %8907 = vmatpush.bf16.msra.mxu0 %v8782
        %8908 = vmatpush.bf16.msra.mxu0 %v8780
        %8909 = vmatmul.bf16.gmra.mxu0 %v8597
        %v8910 = vpop.f32.mrf.mxu0
        %v8911 = vadd.f32 %v8838, %v8910
        %v8912 = vpop.f32.mrf.mxu0
        %v8913 = vadd.f32 %v8840, %v8912
        %8914 = vmatmul.bf16.gmra.mxu0 %v8601
        %v8915 = vpop.f32.mrf.mxu0
        %v8916 = vadd.f32 %v8843, %v8915
        %v8917 = vpop.f32.mrf.mxu0
        %v8918 = vadd.f32 %v8845, %v8917
        %8919 = vmatmul.bf16.gmra.mxu0 %v8605
        %v8920 = vpop.f32.mrf.mxu0
        %v8921 = vadd.f32 %v8848, %v8920
        %v8922 = vpop.f32.mrf.mxu0
        %v8923 = vadd.f32 %v8850, %v8922
        %8924 = vmatmul.bf16.gmra.mxu0 %v8609
        %v8925 = vpop.f32.mrf.mxu0
        %v8926 = vadd.f32 %v8853, %v8925
        %v8927 = vpop.f32.mrf.mxu0
        %v8928 = vadd.f32 %v8855, %v8927
        %8929 = vmatmul.bf16.gmra.mxu0 %v8613
        %v8930 = vpop.f32.mrf.mxu0
        %v8931 = vadd.f32 %v8858, %v8930
        %v8932 = vpop.f32.mrf.mxu0
        %v8933 = vadd.f32 %v8860, %v8932
        %8934 = vmatmul.bf16.gmra.mxu0 %v8617
        %v8935 = vpop.f32.mrf.mxu0
        %v8936 = vadd.f32 %v8863, %v8935
        %v8937 = vpop.f32.mrf.mxu0
        %v8938 = vadd.f32 %v8865, %v8937
        %8939 = vmatmul.bf16.gmra.mxu0 %v8621
        %v8940 = vpop.f32.mrf.mxu0
        %v8941 = vadd.f32 %v8868, %v8940
        %v8942 = vpop.f32.mrf.mxu0
        %v8943 = vadd.f32 %v8870, %v8942
        %8944 = vmatmul.bf16.gmra.mxu0 %v8625
        %v8945 = vpop.f32.mrf.mxu0
        %v8946 = vadd.f32 %v8873, %v8945
        %v8947 = vpop.f32.mrf.mxu0
        %v8948 = vadd.f32 %v8875, %v8947
        %8949 = vmatmul.bf16.gmra.mxu0 %v8629
        %v8950 = vpop.f32.mrf.mxu0
        %v8951 = vadd.f32 %v8878, %v8950
        %v8952 = vpop.f32.mrf.mxu0
        %v8953 = vadd.f32 %v8880, %v8952
        %8954 = vmatmul.bf16.gmra.mxu0 %v8633
        %v8955 = vpop.f32.mrf.mxu0
        %v8956 = vadd.f32 %v8883, %v8955
        %v8957 = vpop.f32.mrf.mxu0
        %v8958 = vadd.f32 %v8885, %v8957
        %8959 = vmatmul.bf16.gmra.mxu0 %v8637
        %v8960 = vpop.f32.mrf.mxu0
        %v8961 = vadd.f32 %v8888, %v8960
        %v8962 = vpop.f32.mrf.mxu0
        %v8963 = vadd.f32 %v8890, %v8962
        %8964 = vmatmul.bf16.gmra.mxu0 %v8641
        %v8965 = vpop.f32.mrf.mxu0
        %v8966 = vadd.f32 %v8893, %v8965
        %v8967 = vpop.f32.mrf.mxu0
        %v8968 = vadd.f32 %v8895, %v8967
        %8969 = vmatmul.bf16.gmra.mxu0 %v8640
        %v8970 = vpop.f32.mrf.mxu0
        %v8971 = vadd.f32 %v8898, %v8970
        %v8972 = vpop.f32.mrf.mxu0
        %8973 = vdwg.mxu0
        %8974 = vmatpush.bf16.msra.mxu0 %v8779
        %8975 = vmatpush.bf16.msra.mxu0 %v8777
        %8976 = vmatpush.bf16.msra.mxu0 %v8775
        %8977 = vmatpush.bf16.msra.mxu0 %v8773
        %8978 = vmatpush.bf16.msra.mxu0 %v8771
        %8979 = vmatpush.bf16.msra.mxu0 %v8769
        %8980 = vmatpush.bf16.msra.mxu0 %v8767
        %8981 = vmatpush.bf16.msra.mxu0 %v8765
        %8982 = vmatmul.bf16.gmra.mxu0 %v8594
        %v8983 = vpop.f32.mrf.mxu0
        %v8984 = vadd.f32 0.0, %v8983
        %v8985 = vpop.f32.mrf.mxu0
        %v8986 = vadd.f32 0.0, %v8985
        %8987 = vmatmul.bf16.gmra.mxu0 %v8599
        %v8988 = vpop.f32.mrf.mxu0
        %v8989 = vadd.f32 0.0, %v8988
        %v8990 = vpop.f32.mrf.mxu0
        %v8991 = vadd.f32 0.0, %v8990
        %8992 = vmatmul.bf16.gmra.mxu0 %v8603
        %v8993 = vpop.f32.mrf.mxu0
        %v8994 = vadd.f32 0.0, %v8993
        %v8995 = vpop.f32.mrf.mxu0
        %v8996 = vadd.f32 0.0, %v8995
        %8997 = vmatmul.bf16.gmra.mxu0 %v8607
        %v8998 = vpop.f32.mrf.mxu0
        %v8999 = vadd.f32 0.0, %v8998
        %v9000 = vpop.f32.mrf.mxu0
        %v9001 = vadd.f32 0.0, %v9000
        %9002 = vmatmul.bf16.gmra.mxu0 %v8611
        %v9003 = vpop.f32.mrf.mxu0
        %v9004 = vadd.f32 0.0, %v9003
        %v9005 = vpop.f32.mrf.mxu0
        %v9006 = vadd.f32 0.0, %v9005
        %9007 = vmatmul.bf16.gmra.mxu0 %v8615
        %v9008 = vpop.f32.mrf.mxu0
        %v9009 = vadd.f32 0.0, %v9008
        %v9010 = vpop.f32.mrf.mxu0
        %v9011 = vadd.f32 0.0, %v9010
        %9012 = vmatmul.bf16.gmra.mxu0 %v8619
        %v9013 = vpop.f32.mrf.mxu0
        %v9014 = vadd.f32 0.0, %v9013
        %v9015 = vpop.f32.mrf.mxu0
        %v9016 = vadd.f32 0.0, %v9015
        %9017 = vmatmul.bf16.gmra.mxu0 %v8623
        %v9018 = vpop.f32.mrf.mxu0
        %v9019 = vadd.f32 0.0, %v9018
        %v9020 = vpop.f32.mrf.mxu0
        %v9021 = vadd.f32 0.0, %v9020
        %9022 = vmatmul.bf16.gmra.mxu0 %v8627
        %v9023 = vpop.f32.mrf.mxu0
        %v9024 = vadd.f32 0.0, %v9023
        %v9025 = vpop.f32.mrf.mxu0
        %v9026 = vadd.f32 0.0, %v9025
        %9027 = vmatmul.bf16.gmra.mxu0 %v8631
        %v9028 = vpop.f32.mrf.mxu0
        %v9029 = vadd.f32 0.0, %v9028
        %v9030 = vpop.f32.mrf.mxu0
        %v9031 = vadd.f32 0.0, %v9030
        %9032 = vmatmul.bf16.gmra.mxu0 %v8635
        %v9033 = vpop.f32.mrf.mxu0
        %v9034 = vadd.f32 0.0, %v9033
        %v9035 = vpop.f32.mrf.mxu0
        %v9036 = vadd.f32 0.0, %v9035
        %9037 = vmatmul.bf16.gmra.mxu0 %v8639
        %v9038 = vpop.f32.mrf.mxu0
        %v9039 = vadd.f32 0.0, %v9038
        %v9040 = vpop.f32.mrf.mxu0
        %v9041 = vadd.f32 0.0, %v9040
        %9042 = vmatmul.bf16.gmra.mxu0 %v8638
        %v9043 = vpop.f32.mrf.mxu0
        %v9044 = vadd.f32 0.0, %v9043
        %v9045 = vpop.f32.mrf.mxu0
        %9046 = vdwg.mxu0
        %9047 = vmatpush.bf16.msra.mxu0 %v8795
        %9048 = vmatpush.bf16.msra.mxu0 %v8793
        %9049 = vmatpush.bf16.msra.mxu0 %v8791
        %9050 = vmatpush.bf16.msra.mxu0 %v8789
        %9051 = vmatpush.bf16.msra.mxu0 %v8787
        %9052 = vmatpush.bf16.msra.mxu0 %v8785
        %9053 = vmatpush.bf16.msra.mxu0 %v8783
        %9054 = vmatpush.bf16.msra.mxu0 %v8781
        %9055 = vmatmul.bf16.gmra.mxu0 %v8597
        %v9056 = vpop.f32.mrf.mxu0
        %v9057 = vadd.f32 %v8984, %v9056
        %v9058 = vpop.f32.mrf.mxu0
        %v9059 = vadd.f32 %v8986, %v9058
        %9060 = vmatmul.bf16.gmra.mxu0 %v8601
        %v9061 = vpop.f32.mrf.mxu0
        %v9062 = vadd.f32 %v8989, %v9061
        %v9063 = vpop.f32.mrf.mxu0
        %v9064 = vadd.f32 %v8991, %v9063
        %9065 = vmatmul.bf16.gmra.mxu0 %v8605
        %v9066 = vpop.f32.mrf.mxu0
        %v9067 = vadd.f32 %v8994, %v9066
        %v9068 = vpop.f32.mrf.mxu0
        %v9069 = vadd.f32 %v8996, %v9068
        %9070 = vmatmul.bf16.gmra.mxu0 %v8609
        %v9071 = vpop.f32.mrf.mxu0
        %v9072 = vadd.f32 %v8999, %v9071
        %v9073 = vpop.f32.mrf.mxu0
        %v9074 = vadd.f32 %v9001, %v9073
        %9075 = vmatmul.bf16.gmra.mxu0 %v8613
        %v9076 = vpop.f32.mrf.mxu0
        %v9077 = vadd.f32 %v9004, %v9076
        %v9078 = vpop.f32.mrf.mxu0
        %v9079 = vadd.f32 %v9006, %v9078
        %9080 = vmatmul.bf16.gmra.mxu0 %v8617
        %v9081 = vpop.f32.mrf.mxu0
        %v9082 = vadd.f32 %v9009, %v9081
        %v9083 = vpop.f32.mrf.mxu0
        %v9084 = vadd.f32 %v9011, %v9083
        %9085 = vmatmul.bf16.gmra.mxu0 %v8621
        %v9086 = vpop.f32.mrf.mxu0
        %v9087 = vadd.f32 %v9014, %v9086
        %v9088 = vpop.f32.mrf.mxu0
        %v9089 = vadd.f32 %v9016, %v9088
        %9090 = vmatmul.bf16.gmra.mxu0 %v8625
        %v9091 = vpop.f32.mrf.mxu0
        %v9092 = vadd.f32 %v9019, %v9091
        %v9093 = vpop.f32.mrf.mxu0
        %v9094 = vadd.f32 %v9021, %v9093
        %9095 = vmatmul.bf16.gmra.mxu0 %v8629
        %v9096 = vpop.f32.mrf.mxu0
        %v9097 = vadd.f32 %v9024, %v9096
        %v9098 = vpop.f32.mrf.mxu0
        %v9099 = vadd.f32 %v9026, %v9098
        %9100 = vmatmul.bf16.gmra.mxu0 %v8633
        %v9101 = vpop.f32.mrf.mxu0
        %v9102 = vadd.f32 %v9029, %v9101
        %v9103 = vpop.f32.mrf.mxu0
        %v9104 = vadd.f32 %v9031, %v9103
        %9105 = vmatmul.bf16.gmra.mxu0 %v8637
        %v9106 = vpop.f32.mrf.mxu0
        %v9107 = vadd.f32 %v9034, %v9106
        %v9108 = vpop.f32.mrf.mxu0
        %v9109 = vadd.f32 %v9036, %v9108
        %9110 = vmatmul.bf16.gmra.mxu0 %v8641
        %v9111 = vpop.f32.mrf.mxu0
        %v9112 = vadd.f32 %v9039, %v9111
        %v9113 = vpop.f32.mrf.mxu0
        %v9114 = vadd.f32 %v9041, %v9113
        %9115 = vmatmul.bf16.gmra.mxu0 %v8640
        %v9116 = vpop.f32.mrf.mxu0
        %v9117 = vadd.f32 %v9044, %v9116
        %v9118 = vpop.f32.mrf.mxu0
        %9119 = vdwg.mxu0
        %v9120 = vld [vmem:[#allocation3] sm:$0xff]
        %v9121 = vld [vmem:[#allocation3 + $0x8] sm:$0xff]
        %v9122 = vld [vmem:[#allocation3 + $0x10] sm:$0xff]
        %v9123 = vld [vmem:[#allocation3 + $0x18] sm:$0xff]
        %v9124 = vld [vmem:[#allocation3 + $0x20] sm:$0xff]
        %v9125 = vld [vmem:[#allocation3 + $0x28] sm:$0xff]
        %v9126 = vld [vmem:[#allocation3 + $0x30] sm:$0xff]
        %v9127 = vld [vmem:[#allocation3 + $0x38] sm:$0xff]
        %v9128 = vld [vmem:[#allocation3 + $0x40] sm:$0xff]
        %v9129 = vld [vmem:[#allocation3 + $0x48] sm:$0xff]
        %v9130 = vld [vmem:[#allocation3 + $0x50] sm:$0xff]
        %v9131 = vld [vmem:[#allocation3 + $0x58] sm:$0xff]
        %v9132 = vld [vmem:[#allocation3 + $0x60] sm:$0xff]
        %v9133 = vld [vmem:[#allocation3 + $0x68] sm:$0xff]
        %v9134 = vld [vmem:[#allocation3 + $0x70] sm:$0xff]
        %v9135 = vld [vmem:[#allocation3 + $0x78] sm:$0xff]
        %v9136 = vld [vmem:[#allocation3 + $0x80] sm:$0xff]
        %v9137 = vld [vmem:[#allocation3 + $0x88] sm:$0xff]
        %v9138 = vld [vmem:[#allocation3 + $0x90] sm:$0xff]
        %v9139 = vld [vmem:[#allocation3 + $0x98] sm:$0xff]
        %v9140 = vld [vmem:[#allocation3 + $0xa0] sm:$0xff]
        %v9141 = vld [vmem:[#allocation3 + $0xa8] sm:$0xff]
        %v9142 = vld [vmem:[#allocation3 + $0xb0] sm:$0xff]
        %v9143 = vld [vmem:[#allocation3 + $0xb8] sm:$0xff]
        %v9144 = vld [vmem:[#allocation3 + $0xc0] sm:$0xff]
        %v9145 = vld [vmem:[#allocation3 + $0xc8] sm:$0xff]
        %v9146 = vld [vmem:[#allocation3 + $0xd0] sm:$0xff]
        %v9147 = vld [vmem:[#allocation3 + $0xd8] sm:$0xff]
        %v9148 = vld [vmem:[#allocation3 + $0xe0] sm:$0xff]
        %v9149 = vld [vmem:[#allocation3 + $0xe8] sm:$0xff]
        %v9150 = vld [vmem:[#allocation3 + $0xf0] sm:$0xff]
        %v9151 = vld [vmem:[#allocation3 + $0xf8] sm:$0xff]
        %v9152 = vld [vmem:[#allocation3 + $0x100] sm:$0xff]
        %v9153 = vld [vmem:[#allocation3 + $0x108] sm:$0xff]
        %v9154 = vld [vmem:[#allocation3 + $0x110] sm:$0xff]
        %v9155 = vld [vmem:[#allocation3 + $0x118] sm:$0xff]
        %v9156 = vld [vmem:[#allocation3 + $0x120] sm:$0xff]
        %v9157 = vld [vmem:[#allocation3 + $0x128] sm:$0xff]
        %v9158 = vld [vmem:[#allocation3 + $0x130] sm:$0xff]
        %v9159 = vld [vmem:[#allocation3 + $0x138] sm:$0xff]
        %v9160 = vld [vmem:[#allocation3 + $0x140] sm:$0xff]
        %v9161 = vld [vmem:[#allocation3 + $0x148] sm:$0xff]
        %v9162 = vld [vmem:[#allocation3 + $0x150] sm:$0xff]
        %v9163 = vld [vmem:[#allocation3 + $0x158] sm:$0xff]
        %v9164 = vld [vmem:[#allocation3 + $0x160] sm:$0xff]
        %v9165 = vld [vmem:[#allocation3 + $0x168] sm:$0xff]
        %v9166 = vld [vmem:[#allocation3 + $0x170] sm:$0xff]
        %v9167 = vld [vmem:[#allocation3 + $0x178] sm:$0xff]
        %v9168 = vld [vmem:[#allocation3 + $0x180] sm:$0xf]
        %v9169 = vld [vmem:[#allocation3 + $0x188] sm:$0xf]
        %v9170 = vadd.f32 %v9120, %v8911
        %v9171 = vadd.f32 %v9121, %v9057
        %v9172 = vadd.f32 %v9122, %v8913
        %v9173 = vadd.f32 %v9123, %v9059
        %v9174 = vadd.f32 %v9124, %v8916
        %v9175 = vadd.f32 %v9125, %v9062
        %v9176 = vadd.f32 %v9126, %v8918
        %v9177 = vadd.f32 %v9127, %v9064
        %v9178 = vadd.f32 %v9128, %v8921
        %v9179 = vadd.f32 %v9129, %v9067
        %v9180 = vadd.f32 %v9130, %v8923
        %v9181 = vadd.f32 %v9131, %v9069
        %v9182 = vadd.f32 %v9132, %v8926
        %v9183 = vadd.f32 %v9133, %v9072
        %v9184 = vadd.f32 %v9134, %v8928
        %v9185 = vadd.f32 %v9135, %v9074
        %v9186 = vadd.f32 %v9136, %v8931
        %v9187 = vadd.f32 %v9137, %v9077
        %v9188 = vadd.f32 %v9138, %v8933
        %v9189 = vadd.f32 %v9139, %v9079
        %v9190 = vadd.f32 %v9140, %v8936
        %v9191 = vadd.f32 %v9141, %v9082
        %v9192 = vadd.f32 %v9142, %v8938
        %v9193 = vadd.f32 %v9143, %v9084
        %v9194 = vadd.f32 %v9144, %v8941
        %v9195 = vadd.f32 %v9145, %v9087
        %v9196 = vadd.f32 %v9146, %v8943
        %v9197 = vadd.f32 %v9147, %v9089
        %v9198 = vadd.f32 %v9148, %v8946
        %v9199 = vadd.f32 %v9149, %v9092
        %v9200 = vadd.f32 %v9150, %v8948
        %v9201 = vadd.f32 %v9151, %v9094
        %v9202 = vadd.f32 %v9152, %v8951
        %v9203 = vadd.f32 %v9153, %v9097
        %v9204 = vadd.f32 %v9154, %v8953
        %v9205 = vadd.f32 %v9155, %v9099
        %v9206 = vadd.f32 %v9156, %v8956
        %v9207 = vadd.f32 %v9157, %v9102
        %v9208 = vadd.f32 %v9158, %v8958
        %v9209 = vadd.f32 %v9159, %v9104
        %v9210 = vadd.f32 %v9160, %v8961
        %v9211 = vadd.f32 %v9161, %v9107
        %v9212 = vadd.f32 %v9162, %v8963
        %v9213 = vadd.f32 %v9163, %v9109
        %v9214 = vadd.f32 %v9164, %v8966
        %v9215 = vadd.f32 %v9165, %v9112
        %v9216 = vadd.f32 %v9166, %v8968
        %v9217 = vadd.f32 %v9167, %v9114
        %v9218 = vadd.f32 %v9168, %v8971
        %v9219 = vadd.f32 %v9169, %v9117
        %9220 = vst [vmem:[#allocation3] sm:$0xff] %v9170
        %9221 = vst [vmem:[#allocation3 + $0x8] sm:$0xff] %v9171
        %9222 = vst [vmem:[#allocation3 + $0x10] sm:$0xff] %v9172
        %9223 = vst [vmem:[#allocation3 + $0x18] sm:$0xff] %v9173
        %9224 = vst [vmem:[#allocation3 + $0x20] sm:$0xff] %v9174
        %9225 = vst [vmem:[#allocation3 + $0x28] sm:$0xff] %v9175
        %9226 = vst [vmem:[#allocation3 + $0x30] sm:$0xff] %v9176
        %9227 = vst [vmem:[#allocation3 + $0x38] sm:$0xff] %v9177
        %9228 = vst [vmem:[#allocation3 + $0x40] sm:$0xff] %v9178
        %9229 = vst [vmem:[#allocation3 + $0x48] sm:$0xff] %v9179
        %9230 = vst [vmem:[#allocation3 + $0x50] sm:$0xff] %v9180
        %9231 = vst [vmem:[#allocation3 + $0x58] sm:$0xff] %v9181
        %9232 = vst [vmem:[#allocation3 + $0x60] sm:$0xff] %v9182
        %9233 = vst [vmem:[#allocation3 + $0x68] sm:$0xff] %v9183
        %9234 = vst [vmem:[#allocation3 + $0x70] sm:$0xff] %v9184
        %9235 = vst [vmem:[#allocation3 + $0x78] sm:$0xff] %v9185
        %9236 = vst [vmem:[#allocation3 + $0x80] sm:$0xff] %v9186
        %9237 = vst [vmem:[#allocation3 + $0x88] sm:$0xff] %v9187
        %9238 = vst [vmem:[#allocation3 + $0x90] sm:$0xff] %v9188
        %9239 = vst [vmem:[#allocation3 + $0x98] sm:$0xff] %v9189
        %9240 = vst [vmem:[#allocation3 + $0xa0] sm:$0xff] %v9190
        %9241 = vst [vmem:[#allocation3 + $0xa8] sm:$0xff] %v9191
        %9242 = vst [vmem:[#allocation3 + $0xb0] sm:$0xff] %v9192
        %9243 = vst [vmem:[#allocation3 + $0xb8] sm:$0xff] %v9193
        %9244 = vst [vmem:[#allocation3 + $0xc0] sm:$0xff] %v9194
        %9245 = vst [vmem:[#allocation3 + $0xc8] sm:$0xff] %v9195
        %9246 = vst [vmem:[#allocation3 + $0xd0] sm:$0xff] %v9196
        %9247 = vst [vmem:[#allocation3 + $0xd8] sm:$0xff] %v9197
        %9248 = vst [vmem:[#allocation3 + $0xe0] sm:$0xff] %v9198
        %9249 = vst [vmem:[#allocation3 + $0xe8] sm:$0xff] %v9199
        %9250 = vst [vmem:[#allocation3 + $0xf0] sm:$0xff] %v9200
        %9251 = vst [vmem:[#allocation3 + $0xf8] sm:$0xff] %v9201
        %9252 = vst [vmem:[#allocation3 + $0x100] sm:$0xff] %v9202
        %9253 = vst [vmem:[#allocation3 + $0x108] sm:$0xff] %v9203
        %9254 = vst [vmem:[#allocation3 + $0x110] sm:$0xff] %v9204
        %9255 = vst [vmem:[#allocation3 + $0x118] sm:$0xff] %v9205
        %9256 = vst [vmem:[#allocation3 + $0x120] sm:$0xff] %v9206
        %9257 = vst [vmem:[#allocation3 + $0x128] sm:$0xff] %v9207
        %9258 = vst [vmem:[#allocation3 + $0x130] sm:$0xff] %v9208
        %9259 = vst [vmem:[#allocation3 + $0x138] sm:$0xff] %v9209
        %9260 = vst [vmem:[#allocation3 + $0x140] sm:$0xff] %v9210
        %9261 = vst [vmem:[#allocation3 + $0x148] sm:$0xff] %v9211
        %9262 = vst [vmem:[#allocation3 + $0x150] sm:$0xff] %v9212
        %9263 = vst [vmem:[#allocation3 + $0x158] sm:$0xff] %v9213
        %9264 = vst [vmem:[#allocation3 + $0x160] sm:$0xff] %v9214
        %9265 = vst [vmem:[#allocation3 + $0x168] sm:$0xff] %v9215
        %9266 = vst [vmem:[#allocation3 + $0x170] sm:$0xff] %v9216
        %9267 = vst [vmem:[#allocation3 + $0x178] sm:$0xff] %v9217
        %9268 = vst [vmem:[#allocation3 + $0x180] sm:$0xf] %v9218
        %9269 = vst [vmem:[#allocation3 + $0x188] sm:$0xf] %v9219
        %v9270 = vld [vmem:[%s1492 + $0x18] sm:$0x88]
        %v9271 = vld [vmem:[%s1492 + $0x20] sm:$0xff]
        %v9272 = vld [vmem:[%s1492 + $0x28] sm:$0xff]
        %v9273 = vld [vmem:[%s1492 + $0x30] sm:$0xff]
        %v9274 = vld [vmem:[%s1492 + $0x38] sm:$0xff]
        %v9275 = vld [vmem:[%s1492 + $0x40] sm:$0xff]
        %v9276 = vld [vmem:[%s1492 + $0x48] sm:$0xff]
        %v9277 = vld [vmem:[%s1492 + $0x50] sm:$0xff]
        %v9278 = vld [vmem:[%s1492 + $0x58] sm:$0xff]
        %v9279 = vld [vmem:[%s1492 + $0x60] sm:$0xff]
        %v9280 = vld [vmem:[%s1492 + $0x68] sm:$0xff]
        %v9281 = vld [vmem:[%s1492 + $0x70] sm:$0xff]
        %v9282 = vld [vmem:[%s1492 + $0x78] sm:$0xff]
        %v9283 = vld [vmem:[%s1492 + $0x80] sm:$0xff]
        %v9284 = vld [vmem:[%s1492 + $0x88] sm:$0xff]
        %v9285 = vld [vmem:[%s1492 + $0x90] sm:$0xff]
        %v9286 = vld [vmem:[%s1492 + $0x98] sm:$0xff]
        %v9287 = vld [vmem:[%s1492 + $0xa0] sm:$0xff]
        %v9288 = vld [vmem:[%s1492 + $0xa8] sm:$0xff]
        %v9289 = vld [vmem:[%s1492 + $0xb0] sm:$0xff]
        %v9290 = vld [vmem:[%s1492 + $0xb8] sm:$0xff]
        %v9291 = vld [vmem:[%s1492 + $0xc0] sm:$0xff]
        %v9292 = vld [vmem:[%s1492 + $0xc8] sm:$0xff]
        %v9293 = vld [vmem:[%s1492 + $0xd0] sm:$0xff]
        %v9294 = vld [vmem:[%s1492 + $0xd8] sm:$0xff]
        %v9295 = vld [vmem:[%s1492 + $0xe0] sm:$0x33]
        %s9296 = scalar_lea.vmem [#allocation9], 2048
        %v9297 = vld [vmem:[%s9296] sm:$0xff]
        %v9298 = vld [vmem:[%s9296 + $0x8] sm:$0xff]
        %v9299 = vld [vmem:[%s9296 + $0x10] sm:$0xff]
        %v9300 = vld [vmem:[%s9296 + $0x18] sm:$0xff]
        %v9301 = vld [vmem:[%s9296 + $0x20] sm:$0xff]
        %v9302 = vld [vmem:[%s9296 + $0x28] sm:$0xff]
        %v9303 = vld [vmem:[%s9296 + $0x30] sm:$0xff]
        %v9304 = vld [vmem:[%s9296 + $0x38] sm:$0xff]
        %v9305 = vld [vmem:[%s9296 + $0x40] sm:$0xff]
        %v9306 = vld [vmem:[%s9296 + $0x48] sm:$0xff]
        %v9307 = vld [vmem:[%s9296 + $0x50] sm:$0xff]
        %v9308 = vld [vmem:[%s9296 + $0x58] sm:$0xff]
        %v9309 = vld [vmem:[%s9296 + $0x60] sm:$0xff]
        %v9310 = vld [vmem:[%s9296 + $0x68] sm:$0xff]
        %v9311 = vld [vmem:[%s9296 + $0x70] sm:$0xff]
        %v9312 = vld [vmem:[%s9296 + $0x78] sm:$0xff]
        %v9313 = vld [vmem:[%s9296 + $0x80] sm:$0xff]
        %v9314 = vld [vmem:[%s9296 + $0x88] sm:$0xff]
        %v9315 = vld [vmem:[%s9296 + $0x90] sm:$0xff]
        %v9316 = vld [vmem:[%s9296 + $0x98] sm:$0xff]
        %v9317 = vld [vmem:[%s9296 + $0xa0] sm:$0xff]
        %v9318 = vld [vmem:[%s9296 + $0xa8] sm:$0xff]
        %v9319 = vld [vmem:[%s9296 + $0xb0] sm:$0xff]
        %v9320 = vld [vmem:[%s9296 + $0xb8] sm:$0xff]
        %v9321 = vld [vmem:[%s9296 + $0xc0] sm:$0xff]
        %v9322 = vld [vmem:[%s9296 + $0xc8] sm:$0xff]
        %v9323 = vld [vmem:[%s9296 + $0xd0] sm:$0xff]
        %v9324 = vld [vmem:[%s9296 + $0xd8] sm:$0xff]
        %v9325 = vld [vmem:[%s9296 + $0xe0] sm:$0xff]
        %v9326 = vld [vmem:[%s9296 + $0xe8] sm:$0xff]
        %v9327 = vld [vmem:[%s9296 + $0xf0] sm:$0xff]
        %v9328 = vld [vmem:[%s9296 + $0xf8] sm:$0xff]
        %v9355 = vunpack.c.l.b16 %v9270
        %v9356 = vunpack.c.h.b16 %v9270
        %v9357 = vunpack.c.l.b16 %v9271
        %v9358 = vunpack.c.h.b16 %v9271
        %v9359 = vunpack.c.l.b16 %v9272
        %v9360 = vunpack.c.h.b16 %v9272
        %v9361 = vunpack.c.l.b16 %v9273
        %v9362 = vunpack.c.h.b16 %v9273
        %v9363 = vunpack.c.l.b16 %v9274
        %v9364 = vunpack.c.h.b16 %v9274
        %v9365 = vunpack.c.l.b16 %v9275
        %v9366 = vunpack.c.h.b16 %v9275
        %v9367 = vunpack.c.l.b16 %v9276
        %v9368 = vunpack.c.h.b16 %v9276
        %v9369 = vunpack.c.l.b16 %v9277
        %v9370 = vunpack.c.h.b16 %v9277
        %v9371 = vunpack.c.l.b16 %v9278
        %v9372 = vunpack.c.h.b16 %v9278
        %v9373 = vunpack.c.l.b16 %v9279
        %v9374 = vunpack.c.h.b16 %v9279
        %v9375 = vunpack.c.l.b16 %v9280
        %v9376 = vunpack.c.h.b16 %v9280
        %v9377 = vunpack.c.l.b16 %v9281
        %v9378 = vunpack.c.h.b16 %v9281
        %v9379 = vunpack.c.l.b16 %v9282
        %v9380 = vunpack.c.h.b16 %v9282
        %v9381 = vunpack.c.l.b16 %v9283
        %v9382 = vunpack.c.h.b16 %v9283
        %v9383 = vunpack.c.l.b16 %v9284
        %v9384 = vunpack.c.h.b16 %v9284
        %v9385 = vunpack.c.l.b16 %v9285
        %v9386 = vunpack.c.h.b16 %v9285
        %v9387 = vunpack.c.l.b16 %v9286
        %v9388 = vunpack.c.h.b16 %v9286
        %v9389 = vunpack.c.l.b16 %v9287
        %v9390 = vunpack.c.h.b16 %v9287
        %v9391 = vunpack.c.l.b16 %v9288
        %v9392 = vunpack.c.h.b16 %v9288
        %v9393 = vunpack.c.l.b16 %v9289
        %v9394 = vunpack.c.h.b16 %v9289
        %v9395 = vunpack.c.l.b16 %v9290
        %v9396 = vunpack.c.h.b16 %v9290
        %v9397 = vunpack.c.l.b16 %v9291
        %v9398 = vunpack.c.h.b16 %v9291
        %v9399 = vunpack.c.l.b16 %v9292
        %v9400 = vunpack.c.h.b16 %v9292
        %v9401 = vunpack.c.l.b16 %v9293
        %v9402 = vunpack.c.h.b16 %v9293
        %v9403 = vunpack.c.l.b16 %v9294
        %v9404 = vunpack.c.h.b16 %v9294
        %v9405 = vunpack.c.l.b16 %v9295
        %v9406 = vunpack.c.h.b16 %v9295
        %v9407 = vpack.c.b16 %v9357, %v9355
        %v9408 = vpack.c.b16 %v9358, %v9356
        %v9409 = vpack.c.b16 %v9361, %v9359
        %v9410 = vpack.c.b16 %v9362, %v9360
        %v9411 = vpack.c.b16 %v9365, %v9363
        %v9412 = vpack.c.b16 %v9366, %v9364
        %v9413 = vpack.c.b16 %v9369, %v9367
        %v9414 = vpack.c.b16 %v9370, %v9368
        %v9415 = vpack.c.b16 %v9373, %v9371
        %v9416 = vpack.c.b16 %v9374, %v9372
        %v9417 = vpack.c.b16 %v9377, %v9375
        %v9418 = vpack.c.b16 %v9378, %v9376
        %v9419 = vpack.c.b16 %v9381, %v9379
        %v9420 = vpack.c.b16 %v9382, %v9380
        %v9421 = vpack.c.b16 %v9385, %v9383
        %v9422 = vpack.c.b16 %v9386, %v9384
        %v9423 = vpack.c.b16 %v9389, %v9387
        %v9424 = vpack.c.b16 %v9390, %v9388
        %v9425 = vpack.c.b16 %v9393, %v9391
        %v9426 = vpack.c.b16 %v9394, %v9392
        %v9427 = vpack.c.b16 %v9397, %v9395
        %v9428 = vpack.c.b16 %v9398, %v9396
        %v9429 = vpack.c.b16 %v9401, %v9399
        %v9430 = vpack.c.b16 %v9402, %v9400
        %v9431 = vpack.c.b16 %v9405, %v9403
        %v9432 = vpack.c.b16 %v9406, %v9404
        %v9434 = vshrl.u32 %v9407, 16
        %v9436 = vrot.slane %v9434, 3
        %v9437 = vshll.u32 %v9407, 16
        %v9439 = vrot.slane %v9437, 4
        %v9440 = vor.u32 %v9436, %v9439
        %v9442 = vshrl.u32 %v9409, 16
        %v9444 = vrot.slane %v9442, 3
        %v9445 = vshll.u32 %v9409, 16
        %v9447 = vrot.slane %v9445, 4
        %v9448 = vor.u32 %v9444, %v9447
        %v9449 = vsel %vm4763, %v9440, %v9448
        %v9451 = vshrl.u32 %v9408, 16
        %v9453 = vrot.slane %v9451, 3
        %v9454 = vshll.u32 %v9408, 16
        %v9456 = vrot.slane %v9454, 4
        %v9457 = vor.u32 %v9453, %v9456
        %v9459 = vshrl.u32 %v9410, 16
        %v9461 = vrot.slane %v9459, 3
        %v9462 = vshll.u32 %v9410, 16
        %v9464 = vrot.slane %v9462, 4
        %v9465 = vor.u32 %v9461, %v9464
        %v9466 = vsel %vm4763, %v9457, %v9465
        %v9468 = vshrl.u32 %v9411, 16
        %v9470 = vrot.slane %v9468, 3
        %v9471 = vshll.u32 %v9411, 16
        %v9473 = vrot.slane %v9471, 4
        %v9474 = vor.u32 %v9470, %v9473
        %v9475 = vsel %vm4763, %v9448, %v9474
        %v9477 = vshrl.u32 %v9412, 16
        %v9479 = vrot.slane %v9477, 3
        %v9480 = vshll.u32 %v9412, 16
        %v9482 = vrot.slane %v9480, 4
        %v9483 = vor.u32 %v9479, %v9482
        %v9484 = vsel %vm4763, %v9465, %v9483
        %v9486 = vshrl.u32 %v9413, 16
        %v9488 = vrot.slane %v9486, 3
        %v9489 = vshll.u32 %v9413, 16
        %v9491 = vrot.slane %v9489, 4
        %v9492 = vor.u32 %v9488, %v9491
        %v9493 = vsel %vm4763, %v9474, %v9492
        %v9495 = vshrl.u32 %v9414, 16
        %v9497 = vrot.slane %v9495, 3
        %v9498 = vshll.u32 %v9414, 16
        %v9500 = vrot.slane %v9498, 4
        %v9501 = vor.u32 %v9497, %v9500
        %v9502 = vsel %vm4763, %v9483, %v9501
        %v9504 = vshrl.u32 %v9415, 16
        %v9506 = vrot.slane %v9504, 3
        %v9507 = vshll.u32 %v9415, 16
        %v9509 = vrot.slane %v9507, 4
        %v9510 = vor.u32 %v9506, %v9509
        %v9511 = vsel %vm4763, %v9492, %v9510
        %v9513 = vshrl.u32 %v9416, 16
        %v9515 = vrot.slane %v9513, 3
        %v9516 = vshll.u32 %v9416, 16
        %v9518 = vrot.slane %v9516, 4
        %v9519 = vor.u32 %v9515, %v9518
        %v9520 = vsel %vm4763, %v9501, %v9519
        %v9522 = vshrl.u32 %v9417, 16
        %v9524 = vrot.slane %v9522, 3
        %v9525 = vshll.u32 %v9417, 16
        %v9527 = vrot.slane %v9525, 4
        %v9528 = vor.u32 %v9524, %v9527
        %v9529 = vsel %vm4763, %v9510, %v9528
        %v9531 = vshrl.u32 %v9418, 16
        %v9533 = vrot.slane %v9531, 3
        %v9534 = vshll.u32 %v9418, 16
        %v9536 = vrot.slane %v9534, 4
        %v9537 = vor.u32 %v9533, %v9536
        %v9538 = vsel %vm4763, %v9519, %v9537
        %v9540 = vshrl.u32 %v9419, 16
        %v9542 = vrot.slane %v9540, 3
        %v9543 = vshll.u32 %v9419, 16
        %v9545 = vrot.slane %v9543, 4
        %v9546 = vor.u32 %v9542, %v9545
        %v9547 = vsel %vm4763, %v9528, %v9546
        %v9549 = vshrl.u32 %v9420, 16
        %v9551 = vrot.slane %v9549, 3
        %v9552 = vshll.u32 %v9420, 16
        %v9554 = vrot.slane %v9552, 4
        %v9555 = vor.u32 %v9551, %v9554
        %v9556 = vsel %vm4763, %v9537, %v9555
        %v9558 = vshrl.u32 %v9421, 16
        %v9560 = vrot.slane %v9558, 3
        %v9561 = vshll.u32 %v9421, 16
        %v9563 = vrot.slane %v9561, 4
        %v9564 = vor.u32 %v9560, %v9563
        %v9565 = vsel %vm4763, %v9546, %v9564
        %v9567 = vshrl.u32 %v9422, 16
        %v9569 = vrot.slane %v9567, 3
        %v9570 = vshll.u32 %v9422, 16
        %v9572 = vrot.slane %v9570, 4
        %v9573 = vor.u32 %v9569, %v9572
        %v9574 = vsel %vm4763, %v9555, %v9573
        %v9576 = vshrl.u32 %v9423, 16
        %v9578 = vrot.slane %v9576, 3
        %v9579 = vshll.u32 %v9423, 16
        %v9581 = vrot.slane %v9579, 4
        %v9582 = vor.u32 %v9578, %v9581
        %v9583 = vsel %vm4763, %v9564, %v9582
        %v9585 = vshrl.u32 %v9424, 16
        %v9587 = vrot.slane %v9585, 3
        %v9588 = vshll.u32 %v9424, 16
        %v9590 = vrot.slane %v9588, 4
        %v9591 = vor.u32 %v9587, %v9590
        %v9592 = vsel %vm4763, %v9573, %v9591
        %v9594 = vshrl.u32 %v9425, 16
        %v9596 = vrot.slane %v9594, 3
        %v9597 = vshll.u32 %v9425, 16
        %v9599 = vrot.slane %v9597, 4
        %v9600 = vor.u32 %v9596, %v9599
        %v9601 = vsel %vm4763, %v9582, %v9600
        %v9603 = vshrl.u32 %v9426, 16
        %v9605 = vrot.slane %v9603, 3
        %v9606 = vshll.u32 %v9426, 16
        %v9608 = vrot.slane %v9606, 4
        %v9609 = vor.u32 %v9605, %v9608
        %v9610 = vsel %vm4763, %v9591, %v9609
        %v9612 = vshrl.u32 %v9427, 16
        %v9614 = vrot.slane %v9612, 3
        %v9615 = vshll.u32 %v9427, 16
        %v9617 = vrot.slane %v9615, 4
        %v9618 = vor.u32 %v9614, %v9617
        %v9619 = vsel %vm4763, %v9600, %v9618
        %v9621 = vshrl.u32 %v9428, 16
        %v9623 = vrot.slane %v9621, 3
        %v9624 = vshll.u32 %v9428, 16
        %v9626 = vrot.slane %v9624, 4
        %v9627 = vor.u32 %v9623, %v9626
        %v9628 = vsel %vm4763, %v9609, %v9627
        %v9630 = vshrl.u32 %v9429, 16
        %v9632 = vrot.slane %v9630, 3
        %v9633 = vshll.u32 %v9429, 16
        %v9635 = vrot.slane %v9633, 4
        %v9636 = vor.u32 %v9632, %v9635
        %v9637 = vsel %vm4763, %v9618, %v9636
        %v9639 = vshrl.u32 %v9430, 16
        %v9641 = vrot.slane %v9639, 3
        %v9642 = vshll.u32 %v9430, 16
        %v9644 = vrot.slane %v9642, 4
        %v9645 = vor.u32 %v9641, %v9644
        %v9646 = vsel %vm4763, %v9627, %v9645
        %v9648 = vshrl.u32 %v9431, 16
        %v9650 = vrot.slane %v9648, 3
        %v9651 = vshll.u32 %v9431, 16
        %v9653 = vrot.slane %v9651, 4
        %v9654 = vor.u32 %v9650, %v9653
        %v9655 = vsel %vm4763, %v9636, %v9654
        %v9657 = vshrl.u32 %v9432, 16
        %v9659 = vrot.slane %v9657, 3
        %v9660 = vshll.u32 %v9432, 16
        %v9662 = vrot.slane %v9660, 4
        %v9663 = vor.u32 %v9659, %v9662
        %v9664 = vsel %vm4763, %v9645, %v9663
        %v9723 = vunpack.c.l.b16 %v9297
        %v9724 = vunpack.c.h.b16 %v9297
        %v9725 = vunpack.c.l.b16 %v9298
        %v9726 = vunpack.c.h.b16 %v9298
        %v9727 = vunpack.c.l.b16 %v9299
        %v9728 = vunpack.c.h.b16 %v9299
        %v9729 = vunpack.c.l.b16 %v9300
        %v9730 = vunpack.c.h.b16 %v9300
        %v9731 = vunpack.c.l.b16 %v9301
        %v9732 = vunpack.c.h.b16 %v9301
        %v9733 = vunpack.c.l.b16 %v9302
        %v9734 = vunpack.c.h.b16 %v9302
        %v9735 = vunpack.c.l.b16 %v9303
        %v9736 = vunpack.c.h.b16 %v9303
        %v9737 = vunpack.c.l.b16 %v9304
        %v9738 = vunpack.c.h.b16 %v9304
        %v9739 = vunpack.c.l.b16 %v9305
        %v9740 = vunpack.c.h.b16 %v9305
        %v9741 = vunpack.c.l.b16 %v9306
        %v9742 = vunpack.c.h.b16 %v9306
        %v9743 = vunpack.c.l.b16 %v9307
        %v9744 = vunpack.c.h.b16 %v9307
        %v9745 = vunpack.c.l.b16 %v9308
        %v9746 = vunpack.c.h.b16 %v9308
        %v9747 = vunpack.c.l.b16 %v9309
        %v9748 = vunpack.c.h.b16 %v9309
        %v9749 = vunpack.c.l.b16 %v9310
        %v9750 = vunpack.c.h.b16 %v9310
        %v9751 = vunpack.c.l.b16 %v9311
        %v9752 = vunpack.c.h.b16 %v9311
        %v9753 = vunpack.c.l.b16 %v9312
        %v9754 = vunpack.c.h.b16 %v9312
        %v9755 = vunpack.c.l.b16 %v9313
        %v9756 = vunpack.c.h.b16 %v9313
        %v9757 = vunpack.c.l.b16 %v9314
        %v9758 = vunpack.c.h.b16 %v9314
        %v9759 = vunpack.c.l.b16 %v9315
        %v9760 = vunpack.c.h.b16 %v9315
        %v9761 = vunpack.c.l.b16 %v9316
        %v9762 = vunpack.c.h.b16 %v9316
        %v9763 = vunpack.c.l.b16 %v9317
        %v9764 = vunpack.c.h.b16 %v9317
        %v9765 = vunpack.c.l.b16 %v9318
        %v9766 = vunpack.c.h.b16 %v9318
        %v9767 = vunpack.c.l.b16 %v9319
        %v9768 = vunpack.c.h.b16 %v9319
        %v9769 = vunpack.c.l.b16 %v9320
        %v9770 = vunpack.c.h.b16 %v9320
        %v9771 = vunpack.c.l.b16 %v9321
        %v9772 = vunpack.c.h.b16 %v9321
        %v9773 = vunpack.c.l.b16 %v9322
        %v9774 = vunpack.c.h.b16 %v9322
        %v9775 = vunpack.c.l.b16 %v9323
        %v9776 = vunpack.c.h.b16 %v9323
        %v9777 = vunpack.c.l.b16 %v9324
        %v9778 = vunpack.c.h.b16 %v9324
        %v9779 = vunpack.c.l.b16 %v9325
        %v9780 = vunpack.c.h.b16 %v9325
        %v9781 = vunpack.c.l.b16 %v9326
        %v9782 = vunpack.c.h.b16 %v9326
        %v9783 = vunpack.c.l.b16 %v9327
        %v9784 = vunpack.c.h.b16 %v9327
        %v9785 = vunpack.c.l.b16 %v9328
        %v9786 = vunpack.c.h.b16 %v9328
        %v9787 = vpack.c.b16 %v9725, %v9723
        %v9788 = vpack.c.b16 %v9726, %v9724
        %v9789 = vpack.c.b16 %v9729, %v9727
        %v9790 = vpack.c.b16 %v9730, %v9728
        %v9791 = vpack.c.b16 %v9733, %v9731
        %v9792 = vpack.c.b16 %v9734, %v9732
        %v9793 = vpack.c.b16 %v9737, %v9735
        %v9794 = vpack.c.b16 %v9738, %v9736
        %v9795 = vpack.c.b16 %v9741, %v9739
        %v9796 = vpack.c.b16 %v9742, %v9740
        %v9797 = vpack.c.b16 %v9745, %v9743
        %v9798 = vpack.c.b16 %v9746, %v9744
        %v9799 = vpack.c.b16 %v9749, %v9747
        %v9800 = vpack.c.b16 %v9750, %v9748
        %v9801 = vpack.c.b16 %v9753, %v9751
        %v9802 = vpack.c.b16 %v9754, %v9752
        %v9803 = vpack.c.b16 %v9757, %v9755
        %v9804 = vpack.c.b16 %v9758, %v9756
        %v9805 = vpack.c.b16 %v9761, %v9759
        %v9806 = vpack.c.b16 %v9762, %v9760
        %v9807 = vpack.c.b16 %v9765, %v9763
        %v9808 = vpack.c.b16 %v9766, %v9764
        %v9809 = vpack.c.b16 %v9769, %v9767
        %v9810 = vpack.c.b16 %v9770, %v9768
        %v9811 = vpack.c.b16 %v9773, %v9771
        %v9812 = vpack.c.b16 %v9774, %v9772
        %v9813 = vpack.c.b16 %v9777, %v9775
        %v9814 = vpack.c.b16 %v9778, %v9776
        %v9815 = vpack.c.b16 %v9781, %v9779
        %v9816 = vpack.c.b16 %v9782, %v9780
        %v9817 = vpack.c.b16 %v9785, %v9783
        %v9818 = vpack.c.b16 %v9786, %v9784
        %9851 = vmatpush.bf16.msra.mxu0 %v9801
        %9852 = vmatpush.bf16.msra.mxu0 %v9799
        %9853 = vmatpush.bf16.msra.mxu0 %v9797
        %9854 = vmatpush.bf16.msra.mxu0 %v9795
        %9855 = vmatpush.bf16.msra.mxu0 %v9793
        %9856 = vmatpush.bf16.msra.mxu0 %v9791
        %9857 = vmatpush.bf16.msra.mxu0 %v9789
        %9858 = vmatpush.bf16.msra.mxu0 %v9787
        %9859 = vmatmul.bf16.gmra.mxu0 %v9449
        %v9860 = vpop.f32.mrf.mxu0
        %v9861 = vadd.f32 0.0, %v9860
        %v9862 = vpop.f32.mrf.mxu0
        %v9863 = vadd.f32 0.0, %v9862
        %9864 = vmatmul.bf16.gmra.mxu0 %v9475
        %v9865 = vpop.f32.mrf.mxu0
        %v9866 = vadd.f32 0.0, %v9865
        %v9867 = vpop.f32.mrf.mxu0
        %v9868 = vadd.f32 0.0, %v9867
        %9869 = vmatmul.bf16.gmra.mxu0 %v9493
        %v9870 = vpop.f32.mrf.mxu0
        %v9871 = vadd.f32 0.0, %v9870
        %v9872 = vpop.f32.mrf.mxu0
        %v9873 = vadd.f32 0.0, %v9872
        %9874 = vmatmul.bf16.gmra.mxu0 %v9511
        %v9875 = vpop.f32.mrf.mxu0
        %v9876 = vadd.f32 0.0, %v9875
        %v9877 = vpop.f32.mrf.mxu0
        %v9878 = vadd.f32 0.0, %v9877
        %9879 = vmatmul.bf16.gmra.mxu0 %v9529
        %v9880 = vpop.f32.mrf.mxu0
        %v9881 = vadd.f32 0.0, %v9880
        %v9882 = vpop.f32.mrf.mxu0
        %v9883 = vadd.f32 0.0, %v9882
        %9884 = vmatmul.bf16.gmra.mxu0 %v9547
        %v9885 = vpop.f32.mrf.mxu0
        %v9886 = vadd.f32 0.0, %v9885
        %v9887 = vpop.f32.mrf.mxu0
        %v9888 = vadd.f32 0.0, %v9887
        %9889 = vmatmul.bf16.gmra.mxu0 %v9565
        %v9890 = vpop.f32.mrf.mxu0
        %v9891 = vadd.f32 0.0, %v9890
        %v9892 = vpop.f32.mrf.mxu0
        %v9893 = vadd.f32 0.0, %v9892
        %9894 = vmatmul.bf16.gmra.mxu0 %v9583
        %v9895 = vpop.f32.mrf.mxu0
        %v9896 = vadd.f32 0.0, %v9895
        %v9897 = vpop.f32.mrf.mxu0
        %v9898 = vadd.f32 0.0, %v9897
        %9899 = vmatmul.bf16.gmra.mxu0 %v9601
        %v9900 = vpop.f32.mrf.mxu0
        %v9901 = vadd.f32 0.0, %v9900
        %v9902 = vpop.f32.mrf.mxu0
        %v9903 = vadd.f32 0.0, %v9902
        %9904 = vmatmul.bf16.gmra.mxu0 %v9619
        %v9905 = vpop.f32.mrf.mxu0
        %v9906 = vadd.f32 0.0, %v9905
        %v9907 = vpop.f32.mrf.mxu0
        %v9908 = vadd.f32 0.0, %v9907
        %9909 = vmatmul.bf16.gmra.mxu0 %v9637
        %v9910 = vpop.f32.mrf.mxu0
        %v9911 = vadd.f32 0.0, %v9910
        %v9912 = vpop.f32.mrf.mxu0
        %v9913 = vadd.f32 0.0, %v9912
        %9914 = vmatmul.bf16.gmra.mxu0 %v9655
        %v9915 = vpop.f32.mrf.mxu0
        %v9916 = vadd.f32 0.0, %v9915
        %v9917 = vpop.f32.mrf.mxu0
        %v9918 = vadd.f32 0.0, %v9917
        %9919 = vmatmul.bf16.gmra.mxu0 %v9654
        %v9920 = vpop.f32.mrf.mxu0
        %v9921 = vadd.f32 0.0, %v9920
        %v9922 = vpop.f32.mrf.mxu0
        %9923 = vdwg.mxu0
        %9924 = vmatpush.bf16.msra.mxu0 %v9817
        %9925 = vmatpush.bf16.msra.mxu0 %v9815
        %9926 = vmatpush.bf16.msra.mxu0 %v9813
        %9927 = vmatpush.bf16.msra.mxu0 %v9811
        %9928 = vmatpush.bf16.msra.mxu0 %v9809
        %9929 = vmatpush.bf16.msra.mxu0 %v9807
        %9930 = vmatpush.bf16.msra.mxu0 %v9805
        %9931 = vmatpush.bf16.msra.mxu0 %v9803
        %9932 = vmatmul.bf16.gmra.mxu0 %v9466
        %v9933 = vpop.f32.mrf.mxu0
        %v9934 = vadd.f32 %v9861, %v9933
        %v9935 = vpop.f32.mrf.mxu0
        %v9936 = vadd.f32 %v9863, %v9935
        %9937 = vmatmul.bf16.gmra.mxu0 %v9484
        %v9938 = vpop.f32.mrf.mxu0
        %v9939 = vadd.f32 %v9866, %v9938
        %v9940 = vpop.f32.mrf.mxu0
        %v9941 = vadd.f32 %v9868, %v9940
        %9942 = vmatmul.bf16.gmra.mxu0 %v9502
        %v9943 = vpop.f32.mrf.mxu0
        %v9944 = vadd.f32 %v9871, %v9943
        %v9945 = vpop.f32.mrf.mxu0
        %v9946 = vadd.f32 %v9873, %v9945
        %9947 = vmatmul.bf16.gmra.mxu0 %v9520
        %v9948 = vpop.f32.mrf.mxu0
        %v9949 = vadd.f32 %v9876, %v9948
        %v9950 = vpop.f32.mrf.mxu0
        %v9951 = vadd.f32 %v9878, %v9950
        %9952 = vmatmul.bf16.gmra.mxu0 %v9538
        %v9953 = vpop.f32.mrf.mxu0
        %v9954 = vadd.f32 %v9881, %v9953
        %v9955 = vpop.f32.mrf.mxu0
        %v9956 = vadd.f32 %v9883, %v9955
        %9957 = vmatmul.bf16.gmra.mxu0 %v9556
        %v9958 = vpop.f32.mrf.mxu0
        %v9959 = vadd.f32 %v9886, %v9958
        %v9960 = vpop.f32.mrf.mxu0
        %v9961 = vadd.f32 %v9888, %v9960
        %9962 = vmatmul.bf16.gmra.mxu0 %v9574
        %v9963 = vpop.f32.mrf.mxu0
        %v9964 = vadd.f32 %v9891, %v9963
        %v9965 = vpop.f32.mrf.mxu0
        %v9966 = vadd.f32 %v9893, %v9965
        %9967 = vmatmul.bf16.gmra.mxu0 %v9592
        %v9968 = vpop.f32.mrf.mxu0
        %v9969 = vadd.f32 %v9896, %v9968
        %v9970 = vpop.f32.mrf.mxu0
        %v9971 = vadd.f32 %v9898, %v9970
        %9972 = vmatmul.bf16.gmra.mxu0 %v9610
        %v9973 = vpop.f32.mrf.mxu0
        %v9974 = vadd.f32 %v9901, %v9973
        %v9975 = vpop.f32.mrf.mxu0
        %v9976 = vadd.f32 %v9903, %v9975
        %9977 = vmatmul.bf16.gmra.mxu0 %v9628
        %v9978 = vpop.f32.mrf.mxu0
        %v9979 = vadd.f32 %v9906, %v9978
        %v9980 = vpop.f32.mrf.mxu0
        %v9981 = vadd.f32 %v9908, %v9980
        %9982 = vmatmul.bf16.gmra.mxu0 %v9646
        %v9983 = vpop.f32.mrf.mxu0
        %v9984 = vadd.f32 %v9911, %v9983
        %v9985 = vpop.f32.mrf.mxu0
        %v9986 = vadd.f32 %v9913, %v9985
        %9987 = vmatmul.bf16.gmra.mxu0 %v9664
        %v9988 = vpop.f32.mrf.mxu0
        %v9989 = vadd.f32 %v9916, %v9988
        %v9990 = vpop.f32.mrf.mxu0
        %v9991 = vadd.f32 %v9918, %v9990
        %9992 = vmatmul.bf16.gmra.mxu0 %v9663
        %v9993 = vpop.f32.mrf.mxu0
        %v9994 = vadd.f32 %v9921, %v9993
        %v9995 = vpop.f32.mrf.mxu0
        %9996 = vdwg.mxu0
        %9997 = vmatpush.bf16.msra.mxu0 %v9802
        %9998 = vmatpush.bf16.msra.mxu0 %v9800
        %9999 = vmatpush.bf16.msra.mxu0 %v9798
        %10000 = vmatpush.bf16.msra.mxu0 %v9796
        %10001 = vmatpush.bf16.msra.mxu0 %v9794
        %10002 = vmatpush.bf16.msra.mxu0 %v9792
        %10003 = vmatpush.bf16.msra.mxu0 %v9790
        %10004 = vmatpush.bf16.msra.mxu0 %v9788
        %10005 = vmatmul.bf16.gmra.mxu0 %v9449
        %v10006 = vpop.f32.mrf.mxu0
        %v10007 = vadd.f32 0.0, %v10006
        %v10008 = vpop.f32.mrf.mxu0
        %v10009 = vadd.f32 0.0, %v10008
        %10010 = vmatmul.bf16.gmra.mxu0 %v9475
        %v10011 = vpop.f32.mrf.mxu0
        %v10012 = vadd.f32 0.0, %v10011
        %v10013 = vpop.f32.mrf.mxu0
        %v10014 = vadd.f32 0.0, %v10013
        %10015 = vmatmul.bf16.gmra.mxu0 %v9493
        %v10016 = vpop.f32.mrf.mxu0
        %v10017 = vadd.f32 0.0, %v10016
        %v10018 = vpop.f32.mrf.mxu0
        %v10019 = vadd.f32 0.0, %v10018
        %10020 = vmatmul.bf16.gmra.mxu0 %v9511
        %v10021 = vpop.f32.mrf.mxu0
        %v10022 = vadd.f32 0.0, %v10021
        %v10023 = vpop.f32.mrf.mxu0
        %v10024 = vadd.f32 0.0, %v10023
        %10025 = vmatmul.bf16.gmra.mxu0 %v9529
        %v10026 = vpop.f32.mrf.mxu0
        %v10027 = vadd.f32 0.0, %v10026
        %v10028 = vpop.f32.mrf.mxu0
        %v10029 = vadd.f32 0.0, %v10028
        %10030 = vmatmul.bf16.gmra.mxu0 %v9547
        %v10031 = vpop.f32.mrf.mxu0
        %v10032 = vadd.f32 0.0, %v10031
        %v10033 = vpop.f32.mrf.mxu0
        %v10034 = vadd.f32 0.0, %v10033
        %10035 = vmatmul.bf16.gmra.mxu0 %v9565
        %v10036 = vpop.f32.mrf.mxu0
        %v10037 = vadd.f32 0.0, %v10036
        %v10038 = vpop.f32.mrf.mxu0
        %v10039 = vadd.f32 0.0, %v10038
        %10040 = vmatmul.bf16.gmra.mxu0 %v9583
        %v10041 = vpop.f32.mrf.mxu0
        %v10042 = vadd.f32 0.0, %v10041
        %v10043 = vpop.f32.mrf.mxu0
        %v10044 = vadd.f32 0.0, %v10043
        %10045 = vmatmul.bf16.gmra.mxu0 %v9601
        %v10046 = vpop.f32.mrf.mxu0
        %v10047 = vadd.f32 0.0, %v10046
        %v10048 = vpop.f32.mrf.mxu0
        %v10049 = vadd.f32 0.0, %v10048
        %10050 = vmatmul.bf16.gmra.mxu0 %v9619
        %v10051 = vpop.f32.mrf.mxu0
        %v10052 = vadd.f32 0.0, %v10051
        %v10053 = vpop.f32.mrf.mxu0
        %v10054 = vadd.f32 0.0, %v10053
        %10055 = vmatmul.bf16.gmra.mxu0 %v9637
        %v10056 = vpop.f32.mrf.mxu0
        %v10057 = vadd.f32 0.0, %v10056
        %v10058 = vpop.f32.mrf.mxu0
        %v10059 = vadd.f32 0.0, %v10058
        %10060 = vmatmul.bf16.gmra.mxu0 %v9655
        %v10061 = vpop.f32.mrf.mxu0
        %v10062 = vadd.f32 0.0, %v10061
        %v10063 = vpop.f32.mrf.mxu0
        %v10064 = vadd.f32 0.0, %v10063
        %10065 = vmatmul.bf16.gmra.mxu0 %v9654
        %v10066 = vpop.f32.mrf.mxu0
        %v10067 = vadd.f32 0.0, %v10066
        %v10068 = vpop.f32.mrf.mxu0
        %10069 = vdwg.mxu0
        %10070 = vmatpush.bf16.msra.mxu0 %v9818
        %10071 = vmatpush.bf16.msra.mxu0 %v9816
        %10072 = vmatpush.bf16.msra.mxu0 %v9814
        %10073 = vmatpush.bf16.msra.mxu0 %v9812
        %10074 = vmatpush.bf16.msra.mxu0 %v9810
        %10075 = vmatpush.bf16.msra.mxu0 %v9808
        %10076 = vmatpush.bf16.msra.mxu0 %v9806
        %10077 = vmatpush.bf16.msra.mxu0 %v9804
        %10078 = vmatmul.bf16.gmra.mxu0 %v9466
        %v10079 = vpop.f32.mrf.mxu0
        %v10080 = vadd.f32 %v10007, %v10079
        %v10081 = vpop.f32.mrf.mxu0
        %v10082 = vadd.f32 %v10009, %v10081
        %10083 = vmatmul.bf16.gmra.mxu0 %v9484
        %v10084 = vpop.f32.mrf.mxu0
        %v10085 = vadd.f32 %v10012, %v10084
        %v10086 = vpop.f32.mrf.mxu0
        %v10087 = vadd.f32 %v10014, %v10086
        %10088 = vmatmul.bf16.gmra.mxu0 %v9502
        %v10089 = vpop.f32.mrf.mxu0
        %v10090 = vadd.f32 %v10017, %v10089
        %v10091 = vpop.f32.mrf.mxu0
        %v10092 = vadd.f32 %v10019, %v10091
        %10093 = vmatmul.bf16.gmra.mxu0 %v9520
        %v10094 = vpop.f32.mrf.mxu0
        %v10095 = vadd.f32 %v10022, %v10094
        %v10096 = vpop.f32.mrf.mxu0
        %v10097 = vadd.f32 %v10024, %v10096
        %10098 = vmatmul.bf16.gmra.mxu0 %v9538
        %v10099 = vpop.f32.mrf.mxu0
        %v10100 = vadd.f32 %v10027, %v10099
        %v10101 = vpop.f32.mrf.mxu0
        %v10102 = vadd.f32 %v10029, %v10101
        %10103 = vmatmul.bf16.gmra.mxu0 %v9556
        %v10104 = vpop.f32.mrf.mxu0
        %v10105 = vadd.f32 %v10032, %v10104
        %v10106 = vpop.f32.mrf.mxu0
        %v10107 = vadd.f32 %v10034, %v10106
        %10108 = vmatmul.bf16.gmra.mxu0 %v9574
        %v10109 = vpop.f32.mrf.mxu0
        %v10110 = vadd.f32 %v10037, %v10109
        %v10111 = vpop.f32.mrf.mxu0
        %v10112 = vadd.f32 %v10039, %v10111
        %10113 = vmatmul.bf16.gmra.mxu0 %v9592
        %v10114 = vpop.f32.mrf.mxu0
        %v10115 = vadd.f32 %v10042, %v10114
        %v10116 = vpop.f32.mrf.mxu0
        %v10117 = vadd.f32 %v10044, %v10116
        %10118 = vmatmul.bf16.gmra.mxu0 %v9610
        %v10119 = vpop.f32.mrf.mxu0
        %v10120 = vadd.f32 %v10047, %v10119
        %v10121 = vpop.f32.mrf.mxu0
        %v10122 = vadd.f32 %v10049, %v10121
        %10123 = vmatmul.bf16.gmra.mxu0 %v9628
        %v10124 = vpop.f32.mrf.mxu0
        %v10125 = vadd.f32 %v10052, %v10124
        %v10126 = vpop.f32.mrf.mxu0
        %v10127 = vadd.f32 %v10054, %v10126
        %10128 = vmatmul.bf16.gmra.mxu0 %v9646
        %v10129 = vpop.f32.mrf.mxu0
        %v10130 = vadd.f32 %v10057, %v10129
        %v10131 = vpop.f32.mrf.mxu0
        %v10132 = vadd.f32 %v10059, %v10131
        %10133 = vmatmul.bf16.gmra.mxu0 %v9664
        %v10134 = vpop.f32.mrf.mxu0
        %v10135 = vadd.f32 %v10062, %v10134
        %v10136 = vpop.f32.mrf.mxu0
        %v10137 = vadd.f32 %v10064, %v10136
        %10138 = vmatmul.bf16.gmra.mxu0 %v9663
        %v10139 = vpop.f32.mrf.mxu0
        %v10140 = vadd.f32 %v10067, %v10139
        %v10141 = vpop.f32.mrf.mxu0
        %10142 = vdwg.mxu0
        %v10143 = vld [vmem:[#allocation3] sm:$0xff]
        %v10144 = vld [vmem:[#allocation3 + $0x8] sm:$0xff]
        %v10145 = vld [vmem:[#allocation3 + $0x10] sm:$0xff]
        %v10146 = vld [vmem:[#allocation3 + $0x18] sm:$0xff]
        %v10147 = vld [vmem:[#allocation3 + $0x20] sm:$0xff]
        %v10148 = vld [vmem:[#allocation3 + $0x28] sm:$0xff]
        %v10149 = vld [vmem:[#allocation3 + $0x30] sm:$0xff]
        %v10150 = vld [vmem:[#allocation3 + $0x38] sm:$0xff]
        %v10151 = vld [vmem:[#allocation3 + $0x40] sm:$0xff]
        %v10152 = vld [vmem:[#allocation3 + $0x48] sm:$0xff]
        %v10153 = vld [vmem:[#allocation3 + $0x50] sm:$0xff]
        %v10154 = vld [vmem:[#allocation3 + $0x58] sm:$0xff]
        %v10155 = vld [vmem:[#allocation3 + $0x60] sm:$0xff]
        %v10156 = vld [vmem:[#allocation3 + $0x68] sm:$0xff]
        %v10157 = vld [vmem:[#allocation3 + $0x70] sm:$0xff]
        %v10158 = vld [vmem:[#allocation3 + $0x78] sm:$0xff]
        %v10159 = vld [vmem:[#allocation3 + $0x80] sm:$0xff]
        %v10160 = vld [vmem:[#allocation3 + $0x88] sm:$0xff]
        %v10161 = vld [vmem:[#allocation3 + $0x90] sm:$0xff]
        %v10162 = vld [vmem:[#allocation3 + $0x98] sm:$0xff]
        %v10163 = vld [vmem:[#allocation3 + $0xa0] sm:$0xff]
        %v10164 = vld [vmem:[#allocation3 + $0xa8] sm:$0xff]
        %v10165 = vld [vmem:[#allocation3 + $0xb0] sm:$0xff]
        %v10166 = vld [vmem:[#allocation3 + $0xb8] sm:$0xff]
        %v10167 = vld [vmem:[#allocation3 + $0xc0] sm:$0xff]
        %v10168 = vld [vmem:[#allocation3 + $0xc8] sm:$0xff]
        %v10169 = vld [vmem:[#allocation3 + $0xd0] sm:$0xff]
        %v10170 = vld [vmem:[#allocation3 + $0xd8] sm:$0xff]
        %v10171 = vld [vmem:[#allocation3 + $0xe0] sm:$0xff]
        %v10172 = vld [vmem:[#allocation3 + $0xe8] sm:$0xff]
        %v10173 = vld [vmem:[#allocation3 + $0xf0] sm:$0xff]
        %v10174 = vld [vmem:[#allocation3 + $0xf8] sm:$0xff]
        %v10175 = vld [vmem:[#allocation3 + $0x100] sm:$0xff]
        %v10176 = vld [vmem:[#allocation3 + $0x108] sm:$0xff]
        %v10177 = vld [vmem:[#allocation3 + $0x110] sm:$0xff]
        %v10178 = vld [vmem:[#allocation3 + $0x118] sm:$0xff]
        %v10179 = vld [vmem:[#allocation3 + $0x120] sm:$0xff]
        %v10180 = vld [vmem:[#allocation3 + $0x128] sm:$0xff]
        %v10181 = vld [vmem:[#allocation3 + $0x130] sm:$0xff]
        %v10182 = vld [vmem:[#allocation3 + $0x138] sm:$0xff]
        %v10183 = vld [vmem:[#allocation3 + $0x140] sm:$0xff]
        %v10184 = vld [vmem:[#allocation3 + $0x148] sm:$0xff]
        %v10185 = vld [vmem:[#allocation3 + $0x150] sm:$0xff]
        %v10186 = vld [vmem:[#allocation3 + $0x158] sm:$0xff]
        %v10187 = vld [vmem:[#allocation3 + $0x160] sm:$0xff]
        %v10188 = vld [vmem:[#allocation3 + $0x168] sm:$0xff]
        %v10189 = vld [vmem:[#allocation3 + $0x170] sm:$0xff]
        %v10190 = vld [vmem:[#allocation3 + $0x178] sm:$0xff]
        %v10191 = vld [vmem:[#allocation3 + $0x180] sm:$0xf]
        %v10192 = vld [vmem:[#allocation3 + $0x188] sm:$0xf]
        %v10193 = vadd.f32 %v10143, %v9934
        %v10194 = vadd.f32 %v10144, %v10080
        %v10195 = vadd.f32 %v10145, %v9936
        %v10196 = vadd.f32 %v10146, %v10082
        %v10197 = vadd.f32 %v10147, %v9939
        %v10198 = vadd.f32 %v10148, %v10085
        %v10199 = vadd.f32 %v10149, %v9941
        %v10200 = vadd.f32 %v10150, %v10087
        %v10201 = vadd.f32 %v10151, %v9944
        %v10202 = vadd.f32 %v10152, %v10090
        %v10203 = vadd.f32 %v10153, %v9946
        %v10204 = vadd.f32 %v10154, %v10092
        %v10205 = vadd.f32 %v10155, %v9949
        %v10206 = vadd.f32 %v10156, %v10095
        %v10207 = vadd.f32 %v10157, %v9951
        %v10208 = vadd.f32 %v10158, %v10097
        %v10209 = vadd.f32 %v10159, %v9954
        %v10210 = vadd.f32 %v10160, %v10100
        %v10211 = vadd.f32 %v10161, %v9956
        %v10212 = vadd.f32 %v10162, %v10102
        %v10213 = vadd.f32 %v10163, %v9959
        %v10214 = vadd.f32 %v10164, %v10105
        %v10215 = vadd.f32 %v10165, %v9961
        %v10216 = vadd.f32 %v10166, %v10107
        %v10217 = vadd.f32 %v10167, %v9964
        %v10218 = vadd.f32 %v10168, %v10110
        %v10219 = vadd.f32 %v10169, %v9966
        %v10220 = vadd.f32 %v10170, %v10112
        %v10221 = vadd.f32 %v10171, %v9969
        %v10222 = vadd.f32 %v10172, %v10115
        %v10223 = vadd.f32 %v10173, %v9971
        %v10224 = vadd.f32 %v10174, %v10117
        %v10225 = vadd.f32 %v10175, %v9974
        %v10226 = vadd.f32 %v10176, %v10120
        %v10227 = vadd.f32 %v10177, %v9976
        %v10228 = vadd.f32 %v10178, %v10122
        %v10229 = vadd.f32 %v10179, %v9979
        %v10230 = vadd.f32 %v10180, %v10125
        %v10231 = vadd.f32 %v10181, %v9981
        %v10232 = vadd.f32 %v10182, %v10127
        %v10233 = vadd.f32 %v10183, %v9984
        %v10234 = vadd.f32 %v10184, %v10130
        %v10235 = vadd.f32 %v10185, %v9986
        %v10236 = vadd.f32 %v10186, %v10132
        %v10237 = vadd.f32 %v10187, %v9989
        %v10238 = vadd.f32 %v10188, %v10135
        %v10239 = vadd.f32 %v10189, %v9991
        %v10240 = vadd.f32 %v10190, %v10137
        %v10241 = vadd.f32 %v10191, %v9994
        %v10242 = vadd.f32 %v10192, %v10140
        %10243 = vst [vmem:[#allocation3] sm:$0xff] %v10193
        %10244 = vst [vmem:[#allocation3 + $0x8] sm:$0xff] %v10194
        %10245 = vst [vmem:[#allocation3 + $0x10] sm:$0xff] %v10195
        %10246 = vst [vmem:[#allocation3 + $0x18] sm:$0xff] %v10196
        %10247 = vst [vmem:[#allocation3 + $0x20] sm:$0xff] %v10197
        %10248 = vst [vmem:[#allocation3 + $0x28] sm:$0xff] %v10198
        %10249 = vst [vmem:[#allocation3 + $0x30] sm:$0xff] %v10199
        %10250 = vst [vmem:[#allocation3 + $0x38] sm:$0xff] %v10200
        %10251 = vst [vmem:[#allocation3 + $0x40] sm:$0xff] %v10201
        %10252 = vst [vmem:[#allocation3 + $0x48] sm:$0xff] %v10202
        %10253 = vst [vmem:[#allocation3 + $0x50] sm:$0xff] %v10203
        %10254 = vst [vmem:[#allocation3 + $0x58] sm:$0xff] %v10204
        %10255 = vst [vmem:[#allocation3 + $0x60] sm:$0xff] %v10205
        %10256 = vst [vmem:[#allocation3 + $0x68] sm:$0xff] %v10206
        %10257 = vst [vmem:[#allocation3 + $0x70] sm:$0xff] %v10207
        %10258 = vst [vmem:[#allocation3 + $0x78] sm:$0xff] %v10208
        %10259 = vst [vmem:[#allocation3 + $0x80] sm:$0xff] %v10209
        %10260 = vst [vmem:[#allocation3 + $0x88] sm:$0xff] %v10210
        %10261 = vst [vmem:[#allocation3 + $0x90] sm:$0xff] %v10211
        %10262 = vst [vmem:[#allocation3 + $0x98] sm:$0xff] %v10212
        %10263 = vst [vmem:[#allocation3 + $0xa0] sm:$0xff] %v10213
        %10264 = vst [vmem:[#allocation3 + $0xa8] sm:$0xff] %v10214
        %10265 = vst [vmem:[#allocation3 + $0xb0] sm:$0xff] %v10215
        %10266 = vst [vmem:[#allocation3 + $0xb8] sm:$0xff] %v10216
        %10267 = vst [vmem:[#allocation3 + $0xc0] sm:$0xff] %v10217
        %10268 = vst [vmem:[#allocation3 + $0xc8] sm:$0xff] %v10218
        %10269 = vst [vmem:[#allocation3 + $0xd0] sm:$0xff] %v10219
        %10270 = vst [vmem:[#allocation3 + $0xd8] sm:$0xff] %v10220
        %10271 = vst [vmem:[#allocation3 + $0xe0] sm:$0xff] %v10221
        %10272 = vst [vmem:[#allocation3 + $0xe8] sm:$0xff] %v10222
        %10273 = vst [vmem:[#allocation3 + $0xf0] sm:$0xff] %v10223
        %10274 = vst [vmem:[#allocation3 + $0xf8] sm:$0xff] %v10224
        %10275 = vst [vmem:[#allocation3 + $0x100] sm:$0xff] %v10225
        %10276 = vst [vmem:[#allocation3 + $0x108] sm:$0xff] %v10226
        %10277 = vst [vmem:[#allocation3 + $0x110] sm:$0xff] %v10227
        %10278 = vst [vmem:[#allocation3 + $0x118] sm:$0xff] %v10228
        %10279 = vst [vmem:[#allocation3 + $0x120] sm:$0xff] %v10229
        %10280 = vst [vmem:[#allocation3 + $0x128] sm:$0xff] %v10230
        %10281 = vst [vmem:[#allocation3 + $0x130] sm:$0xff] %v10231
        %10282 = vst [vmem:[#allocation3 + $0x138] sm:$0xff] %v10232
        %10283 = vst [vmem:[#allocation3 + $0x140] sm:$0xff] %v10233
        %10284 = vst [vmem:[#allocation3 + $0x148] sm:$0xff] %v10234
        %10285 = vst [vmem:[#allocation3 + $0x150] sm:$0xff] %v10235
        %10286 = vst [vmem:[#allocation3 + $0x158] sm:$0xff] %v10236
        %10287 = vst [vmem:[#allocation3 + $0x160] sm:$0xff] %v10237
        %10288 = vst [vmem:[#allocation3 + $0x168] sm:$0xff] %v10238
        %10289 = vst [vmem:[#allocation3 + $0x170] sm:$0xff] %v10239
        %10290 = vst [vmem:[#allocation3 + $0x178] sm:$0xff] %v10240
        %10291 = vst [vmem:[#allocation3 + $0x180] sm:$0xf] %v10241
        %10292 = vst [vmem:[#allocation3 + $0x188] sm:$0xf] %v10242
        %v10293 = vld [vmem:[#allocation3] sm:$0xff]
        %v10294 = vld [vmem:[#allocation3 + $0x8] sm:$0xff]
        %v10295 = vld [vmem:[#allocation3 + $0x10] sm:$0xff]
        %v10296 = vld [vmem:[#allocation3 + $0x18] sm:$0xff]
        %v10297 = vld [vmem:[#allocation3 + $0x20] sm:$0xff]
        %v10298 = vld [vmem:[#allocation3 + $0x28] sm:$0xff]
        %v10299 = vld [vmem:[#allocation3 + $0x30] sm:$0xff]
        %v10300 = vld [vmem:[#allocation3 + $0x38] sm:$0xff]
        %v10301 = vld [vmem:[#allocation3 + $0x40] sm:$0xff]
        %v10302 = vld [vmem:[#allocation3 + $0x48] sm:$0xff]
        %v10303 = vld [vmem:[#allocation3 + $0x50] sm:$0xff]
        %v10304 = vld [vmem:[#allocation3 + $0x58] sm:$0xff]
        %v10305 = vld [vmem:[#allocation3 + $0x60] sm:$0xff]
        %v10306 = vld [vmem:[#allocation3 + $0x68] sm:$0xff]
        %v10307 = vld [vmem:[#allocation3 + $0x70] sm:$0xff]
        %v10308 = vld [vmem:[#allocation3 + $0x78] sm:$0xff]
        %v10309 = vld [vmem:[#allocation3 + $0x80] sm:$0xff]
        %v10310 = vld [vmem:[#allocation3 + $0x88] sm:$0xff]
        %v10311 = vld [vmem:[#allocation3 + $0x90] sm:$0xff]
        %v10312 = vld [vmem:[#allocation3 + $0x98] sm:$0xff]
        %v10313 = vld [vmem:[#allocation3 + $0xa0] sm:$0xff]
        %v10314 = vld [vmem:[#allocation3 + $0xa8] sm:$0xff]
        %v10315 = vld [vmem:[#allocation3 + $0xb0] sm:$0xff]
        %v10316 = vld [vmem:[#allocation3 + $0xb8] sm:$0xff]
        %v10317 = vld [vmem:[#allocation3 + $0xc0] sm:$0xff]
        %v10318 = vld [vmem:[#allocation3 + $0xc8] sm:$0xff]
        %v10319 = vld [vmem:[#allocation3 + $0xd0] sm:$0xff]
        %v10320 = vld [vmem:[#allocation3 + $0xd8] sm:$0xff]
        %v10321 = vld [vmem:[#allocation3 + $0xe0] sm:$0xff]
        %v10322 = vld [vmem:[#allocation3 + $0xe8] sm:$0xff]
        %v10323 = vld [vmem:[#allocation3 + $0xf0] sm:$0xff]
        %v10324 = vld [vmem:[#allocation3 + $0xf8] sm:$0xff]
        %v10325 = vld [vmem:[#allocation3 + $0x100] sm:$0xff]
        %v10326 = vld [vmem:[#allocation3 + $0x108] sm:$0xff]
        %v10327 = vld [vmem:[#allocation3 + $0x110] sm:$0xff]
        %v10328 = vld [vmem:[#allocation3 + $0x118] sm:$0xff]
        %v10329 = vld [vmem:[#allocation3 + $0x120] sm:$0xff]
        %v10330 = vld [vmem:[#allocation3 + $0x128] sm:$0xff]
        %v10331 = vld [vmem:[#allocation3 + $0x130] sm:$0xff]
        %v10332 = vld [vmem:[#allocation3 + $0x138] sm:$0xff]
        %v10333 = vld [vmem:[#allocation3 + $0x140] sm:$0xff]
        %v10334 = vld [vmem:[#allocation3 + $0x148] sm:$0xff]
        %v10335 = vld [vmem:[#allocation3 + $0x150] sm:$0xff]
        %v10336 = vld [vmem:[#allocation3 + $0x158] sm:$0xff]
        %v10337 = vld [vmem:[#allocation3 + $0x160] sm:$0xff]
        %v10338 = vld [vmem:[#allocation3 + $0x168] sm:$0xff]
        %v10339 = vld [vmem:[#allocation3 + $0x170] sm:$0xff]
        %v10340 = vld [vmem:[#allocation3 + $0x178] sm:$0xff]
        %v10341 = vld [vmem:[#allocation3 + $0x180] sm:$0xf]
        %v10342 = vld [vmem:[#allocation3 + $0x188] sm:$0xf]
        %v10343 = vld [vmem:[#allocation11] sm:$0x3]
        %v10345 = vperm.slane %v10343, 0
        %v10346 = vperm.slane %v10343, 1
        %v10349 = vadd.f32 %v10293, %v10345
        %v10350 = vadd.f32 %v10294, %v10346
        %v10351 = vadd.f32 %v10295, %v10345
        %v10352 = vadd.f32 %v10296, %v10346
        %v10353 = vadd.f32 %v10297, %v10345
        %v10354 = vadd.f32 %v10298, %v10346
        %v10355 = vadd.f32 %v10299, %v10345
        %v10356 = vadd.f32 %v10300, %v10346
        %v10357 = vadd.f32 %v10301, %v10345
        %v10358 = vadd.f32 %v10302, %v10346
        %v10359 = vadd.f32 %v10303, %v10345
        %v10360 = vadd.f32 %v10304, %v10346
        %v10361 = vadd.f32 %v10305, %v10345
        %v10362 = vadd.f32 %v10306, %v10346
        %v10363 = vadd.f32 %v10307, %v10345
        %v10364 = vadd.f32 %v10308, %v10346
        %v10365 = vadd.f32 %v10309, %v10345
        %v10366 = vadd.f32 %v10310, %v10346
        %v10367 = vadd.f32 %v10311, %v10345
        %v10368 = vadd.f32 %v10312, %v10346
        %v10369 = vadd.f32 %v10313, %v10345
        %v10370 = vadd.f32 %v10314, %v10346
        %v10371 = vadd.f32 %v10315, %v10345
        %v10372 = vadd.f32 %v10316, %v10346
        %v10373 = vadd.f32 %v10317, %v10345
        %v10374 = vadd.f32 %v10318, %v10346
        %v10375 = vadd.f32 %v10319, %v10345
        %v10376 = vadd.f32 %v10320, %v10346
        %v10377 = vadd.f32 %v10321, %v10345
        %v10378 = vadd.f32 %v10322, %v10346
        %v10379 = vadd.f32 %v10323, %v10345
        %v10380 = vadd.f32 %v10324, %v10346
        %v10381 = vadd.f32 %v10325, %v10345
        %v10382 = vadd.f32 %v10326, %v10346
        %v10383 = vadd.f32 %v10327, %v10345
        %v10384 = vadd.f32 %v10328, %v10346
        %v10385 = vadd.f32 %v10329, %v10345
        %v10386 = vadd.f32 %v10330, %v10346
        %v10387 = vadd.f32 %v10331, %v10345
        %v10388 = vadd.f32 %v10332, %v10346
        %v10389 = vadd.f32 %v10333, %v10345
        %v10390 = vadd.f32 %v10334, %v10346
        %v10391 = vadd.f32 %v10335, %v10345
        %v10392 = vadd.f32 %v10336, %v10346
        %v10393 = vadd.f32 %v10337, %v10345
        %v10394 = vadd.f32 %v10338, %v10346
        %v10395 = vadd.f32 %v10339, %v10345
        %v10396 = vadd.f32 %v10340, %v10346
        %v10397 = vadd.f32 %v10341, %v10345
        %v10398 = vadd.f32 %v10342, %v10346
        %v10399 = vmax.f32 %v10349, 0.0
        %v10400 = vmax.f32 %v10350, 0.0
        %v10401 = vmax.f32 %v10351, 0.0
        %v10402 = vmax.f32 %v10352, 0.0
        %v10403 = vmax.f32 %v10353, 0.0
        %v10404 = vmax.f32 %v10354, 0.0
        %v10405 = vmax.f32 %v10355, 0.0
        %v10406 = vmax.f32 %v10356, 0.0
        %v10407 = vmax.f32 %v10357, 0.0
        %v10408 = vmax.f32 %v10358, 0.0
        %v10409 = vmax.f32 %v10359, 0.0
        %v10410 = vmax.f32 %v10360, 0.0
        %v10411 = vmax.f32 %v10361, 0.0
        %v10412 = vmax.f32 %v10362, 0.0
        %v10413 = vmax.f32 %v10363, 0.0
        %v10414 = vmax.f32 %v10364, 0.0
        %v10415 = vmax.f32 %v10365, 0.0
        %v10416 = vmax.f32 %v10366, 0.0
        %v10417 = vmax.f32 %v10367, 0.0
        %v10418 = vmax.f32 %v10368, 0.0
        %v10419 = vmax.f32 %v10369, 0.0
        %v10420 = vmax.f32 %v10370, 0.0
        %v10421 = vmax.f32 %v10371, 0.0
        %v10422 = vmax.f32 %v10372, 0.0
        %v10423 = vmax.f32 %v10373, 0.0
        %v10424 = vmax.f32 %v10374, 0.0
        %v10425 = vmax.f32 %v10375, 0.0
        %v10426 = vmax.f32 %v10376, 0.0
        %v10427 = vmax.f32 %v10377, 0.0
        %v10428 = vmax.f32 %v10378, 0.0
        %v10429 = vmax.f32 %v10379, 0.0
        %v10430 = vmax.f32 %v10380, 0.0
        %v10431 = vmax.f32 %v10381, 0.0
        %v10432 = vmax.f32 %v10382, 0.0
        %v10433 = vmax.f32 %v10383, 0.0
        %v10434 = vmax.f32 %v10384, 0.0
        %v10435 = vmax.f32 %v10385, 0.0
        %v10436 = vmax.f32 %v10386, 0.0
        %v10437 = vmax.f32 %v10387, 0.0
        %v10438 = vmax.f32 %v10388, 0.0
        %v10439 = vmax.f32 %v10389, 0.0
        %v10440 = vmax.f32 %v10390, 0.0
        %v10441 = vmax.f32 %v10391, 0.0
        %v10442 = vmax.f32 %v10392, 0.0
        %v10443 = vmax.f32 %v10393, 0.0
        %v10444 = vmax.f32 %v10394, 0.0
        %v10445 = vmax.f32 %v10395, 0.0
        %v10446 = vmax.f32 %v10396, 0.0
        %v10447 = vmax.f32 %v10397, 0.0
        %v10448 = vmax.f32 %v10398, 0.0
        %v10449 = vld [vmem:[#allocation12] sm:$0x3]
        %v10451 = vperm.slane %v10449, 0
        %v10452 = vperm.slane %v10449, 1
        %v10455 = vmul.f32 %v10399, %v10451
        %v10456 = vmul.f32 %v10400, %v10452
        %v10457 = vmul.f32 %v10401, %v10451
        %v10458 = vmul.f32 %v10402, %v10452
        %v10459 = vmul.f32 %v10403, %v10451
        %v10460 = vmul.f32 %v10404, %v10452
        %v10461 = vmul.f32 %v10405, %v10451
        %v10462 = vmul.f32 %v10406, %v10452
        %v10463 = vmul.f32 %v10407, %v10451
        %v10464 = vmul.f32 %v10408, %v10452
        %v10465 = vmul.f32 %v10409, %v10451
        %v10466 = vmul.f32 %v10410, %v10452
        %v10467 = vmul.f32 %v10411, %v10451
        %v10468 = vmul.f32 %v10412, %v10452
        %v10469 = vmul.f32 %v10413, %v10451
        %v10470 = vmul.f32 %v10414, %v10452
        %v10471 = vmul.f32 %v10415, %v10451
        %v10472 = vmul.f32 %v10416, %v10452
        %v10473 = vmul.f32 %v10417, %v10451
        %v10474 = vmul.f32 %v10418, %v10452
        %v10475 = vmul.f32 %v10419, %v10451
        %v10476 = vmul.f32 %v10420, %v10452
        %v10477 = vmul.f32 %v10421, %v10451
        %v10478 = vmul.f32 %v10422, %v10452
        %v10479 = vmul.f32 %v10423, %v10451
        %v10480 = vmul.f32 %v10424, %v10452
        %v10481 = vmul.f32 %v10425, %v10451
        %v10482 = vmul.f32 %v10426, %v10452
        %v10483 = vmul.f32 %v10427, %v10451
        %v10484 = vmul.f32 %v10428, %v10452
        %v10485 = vmul.f32 %v10429, %v10451
        %v10486 = vmul.f32 %v10430, %v10452
        %v10487 = vmul.f32 %v10431, %v10451
        %v10488 = vmul.f32 %v10432, %v10452
        %v10489 = vmul.f32 %v10433, %v10451
        %v10490 = vmul.f32 %v10434, %v10452
        %v10491 = vmul.f32 %v10435, %v10451
        %v10492 = vmul.f32 %v10436, %v10452
        %v10493 = vmul.f32 %v10437, %v10451
        %v10494 = vmul.f32 %v10438, %v10452
        %v10495 = vmul.f32 %v10439, %v10451
        %v10496 = vmul.f32 %v10440, %v10452
        %v10497 = vmul.f32 %v10441, %v10451
        %v10498 = vmul.f32 %v10442, %v10452
        %v10499 = vmul.f32 %v10443, %v10451
        %v10500 = vmul.f32 %v10444, %v10452
        %v10501 = vmul.f32 %v10445, %v10451
        %v10502 = vmul.f32 %v10446, %v10452
        %v10503 = vmul.f32 %v10447, %v10451
        %v10504 = vmul.f32 %v10448, %v10452
        %v10505 = vld [vmem:[#allocation14] sm:$0x3]
        %v10507 = vperm.slane %v10505, 0
        %v10508 = vperm.slane %v10505, 1
        %v10511 = vadd.f32 %v10455, %v10507
        %v10512 = vadd.f32 %v10456, %v10508
        %v10513 = vadd.f32 %v10457, %v10507
        %v10514 = vadd.f32 %v10458, %v10508
        %v10515 = vadd.f32 %v10459, %v10507
        %v10516 = vadd.f32 %v10460, %v10508
        %v10517 = vadd.f32 %v10461, %v10507
        %v10518 = vadd.f32 %v10462, %v10508
        %v10519 = vadd.f32 %v10463, %v10507
        %v10520 = vadd.f32 %v10464, %v10508
        %v10521 = vadd.f32 %v10465, %v10507
        %v10522 = vadd.f32 %v10466, %v10508
        %v10523 = vadd.f32 %v10467, %v10507
        %v10524 = vadd.f32 %v10468, %v10508
        %v10525 = vadd.f32 %v10469, %v10507
        %v10526 = vadd.f32 %v10470, %v10508
        %v10527 = vadd.f32 %v10471, %v10507
        %v10528 = vadd.f32 %v10472, %v10508
        %v10529 = vadd.f32 %v10473, %v10507
        %v10530 = vadd.f32 %v10474, %v10508
        %v10531 = vadd.f32 %v10475, %v10507
        %v10532 = vadd.f32 %v10476, %v10508
        %v10533 = vadd.f32 %v10477, %v10507
        %v10534 = vadd.f32 %v10478, %v10508
        %v10535 = vadd.f32 %v10479, %v10507
        %v10536 = vadd.f32 %v10480, %v10508
        %v10537 = vadd.f32 %v10481, %v10507
        %v10538 = vadd.f32 %v10482, %v10508
        %v10539 = vadd.f32 %v10483, %v10507
        %v10540 = vadd.f32 %v10484, %v10508
        %v10541 = vadd.f32 %v10485, %v10507
        %v10542 = vadd.f32 %v10486, %v10508
        %v10543 = vadd.f32 %v10487, %v10507
        %v10544 = vadd.f32 %v10488, %v10508
        %v10545 = vadd.f32 %v10489, %v10507
        %v10546 = vadd.f32 %v10490, %v10508
        %v10547 = vadd.f32 %v10491, %v10507
        %v10548 = vadd.f32 %v10492, %v10508
        %v10549 = vadd.f32 %v10493, %v10507
        %v10550 = vadd.f32 %v10494, %v10508
        %v10551 = vadd.f32 %v10495, %v10507
        %v10552 = vadd.f32 %v10496, %v10508
        %v10553 = vadd.f32 %v10497, %v10507
        %v10554 = vadd.f32 %v10498, %v10508
        %v10555 = vadd.f32 %v10499, %v10507
        %v10556 = vadd.f32 %v10500, %v10508
        %v10557 = vadd.f32 %v10501, %v10507
        %v10558 = vadd.f32 %v10502, %v10508
        %v10559 = vadd.f32 %v10503, %v10507
        %v10560 = vadd.f32 %v10504, %v10508
        %v10561 = vld [vmem:[%s1485 + $0x10] sm:$0xff]
        %v10562 = vld [vmem:[%s1485 + $0x18] sm:$0xff]
        %v10563 = vld [vmem:[%s1485 + $0x20] sm:$0xff]
        %v10564 = vld [vmem:[%s1485 + $0x28] sm:$0xff]
        %v10565 = vld [vmem:[%s1485 + $0x30] sm:$0xff]
        %v10566 = vld [vmem:[%s1485 + $0x38] sm:$0xff]
        %v10567 = vld [vmem:[%s1485 + $0x40] sm:$0xff]
        %v10568 = vld [vmem:[%s1485 + $0x48] sm:$0xff]
        %v10569 = vld [vmem:[%s1485 + $0x50] sm:$0xff]
        %v10570 = vld [vmem:[%s1485 + $0x58] sm:$0xff]
        %v10571 = vld [vmem:[%s1485 + $0x60] sm:$0xff]
        %v10572 = vld [vmem:[%s1485 + $0x68] sm:$0xff]
        %v10573 = vld [vmem:[%s1485 + $0x70] sm:$0xff]
        %v10574 = vld [vmem:[%s1485 + $0x78] sm:$0xff]
        %v10575 = vld [vmem:[%s1485 + $0x80] sm:$0xff]
        %v10576 = vld [vmem:[%s1485 + $0x88] sm:$0xff]
        %v10577 = vld [vmem:[%s1485 + $0x90] sm:$0xff]
        %v10578 = vld [vmem:[%s1485 + $0x98] sm:$0xff]
        %v10579 = vld [vmem:[%s1485 + $0xa0] sm:$0xff]
        %v10580 = vld [vmem:[%s1485 + $0xa8] sm:$0xff]
        %v10581 = vld [vmem:[%s1485 + $0xb0] sm:$0xff]
        %v10582 = vld [vmem:[%s1485 + $0xb8] sm:$0xff]
        %v10583 = vld [vmem:[%s1485 + $0xc0] sm:$0xff]
        %v10584 = vld [vmem:[%s1485 + $0xc8] sm:$0xff]
        %v10585 = vld [vmem:[%s1485 + $0xd0] sm:$0x33]
        %v10586 = vunpack.c.l.bf16 %v10561
        %v10587 = vunpack.c.h.bf16 %v10561
        %v10588 = vunpack.c.l.bf16 %v10562
        %v10589 = vunpack.c.h.bf16 %v10562
        %v10590 = vunpack.c.l.bf16 %v10563
        %v10591 = vunpack.c.h.bf16 %v10563
        %v10592 = vunpack.c.l.bf16 %v10564
        %v10593 = vunpack.c.h.bf16 %v10564
        %v10594 = vunpack.c.l.bf16 %v10565
        %v10595 = vunpack.c.h.bf16 %v10565
        %v10596 = vunpack.c.l.bf16 %v10566
        %v10597 = vunpack.c.h.bf16 %v10566
        %v10598 = vunpack.c.l.bf16 %v10567
        %v10599 = vunpack.c.h.bf16 %v10567
        %v10600 = vunpack.c.l.bf16 %v10568
        %v10601 = vunpack.c.h.bf16 %v10568
        %v10602 = vunpack.c.l.bf16 %v10569
        %v10603 = vunpack.c.h.bf16 %v10569
        %v10604 = vunpack.c.l.bf16 %v10570
        %v10605 = vunpack.c.h.bf16 %v10570
        %v10606 = vunpack.c.l.bf16 %v10571
        %v10607 = vunpack.c.h.bf16 %v10571
        %v10608 = vunpack.c.l.bf16 %v10572
        %v10609 = vunpack.c.h.bf16 %v10572
        %v10610 = vunpack.c.l.bf16 %v10573
        %v10611 = vunpack.c.h.bf16 %v10573
        %v10612 = vunpack.c.l.bf16 %v10574
        %v10613 = vunpack.c.h.bf16 %v10574
        %v10614 = vunpack.c.l.bf16 %v10575
        %v10615 = vunpack.c.h.bf16 %v10575
        %v10616 = vunpack.c.l.bf16 %v10576
        %v10617 = vunpack.c.h.bf16 %v10576
        %v10618 = vunpack.c.l.bf16 %v10577
        %v10619 = vunpack.c.h.bf16 %v10577
        %v10620 = vunpack.c.l.bf16 %v10578
        %v10621 = vunpack.c.h.bf16 %v10578
        %v10622 = vunpack.c.l.bf16 %v10579
        %v10623 = vunpack.c.h.bf16 %v10579
        %v10624 = vunpack.c.l.bf16 %v10580
        %v10625 = vunpack.c.h.bf16 %v10580
        %v10626 = vunpack.c.l.bf16 %v10581
        %v10627 = vunpack.c.h.bf16 %v10581
        %v10628 = vunpack.c.l.bf16 %v10582
        %v10629 = vunpack.c.h.bf16 %v10582
        %v10630 = vunpack.c.l.bf16 %v10583
        %v10631 = vunpack.c.h.bf16 %v10583
        %v10632 = vunpack.c.l.bf16 %v10584
        %v10633 = vunpack.c.h.bf16 %v10584
        %v10634 = vunpack.c.l.bf16 %v10585
        %v10635 = vunpack.c.h.bf16 %v10585
        %v10636 = vadd.f32 %v10586, %v10511
        %v10637 = vadd.f32 %v10587, %v10512
        %v10638 = vadd.f32 %v10588, %v10513
        %v10639 = vadd.f32 %v10589, %v10514
        %v10640 = vadd.f32 %v10590, %v10515
        %v10641 = vadd.f32 %v10591, %v10516
        %v10642 = vadd.f32 %v10592, %v10517
        %v10643 = vadd.f32 %v10593, %v10518
        %v10644 = vadd.f32 %v10594, %v10519
        %v10645 = vadd.f32 %v10595, %v10520
        %v10646 = vadd.f32 %v10596, %v10521
        %v10647 = vadd.f32 %v10597, %v10522
        %v10648 = vadd.f32 %v10598, %v10523
        %v10649 = vadd.f32 %v10599, %v10524
        %v10650 = vadd.f32 %v10600, %v10525
        %v10651 = vadd.f32 %v10601, %v10526
        %v10652 = vadd.f32 %v10602, %v10527
        %v10653 = vadd.f32 %v10603, %v10528
        %v10654 = vadd.f32 %v10604, %v10529
        %v10655 = vadd.f32 %v10605, %v10530
        %v10656 = vadd.f32 %v10606, %v10531
        %v10657 = vadd.f32 %v10607, %v10532
        %v10658 = vadd.f32 %v10608, %v10533
        %v10659 = vadd.f32 %v10609, %v10534
        %v10660 = vadd.f32 %v10610, %v10535
        %v10661 = vadd.f32 %v10611, %v10536
        %v10662 = vadd.f32 %v10612, %v10537
        %v10663 = vadd.f32 %v10613, %v10538
        %v10664 = vadd.f32 %v10614, %v10539
        %v10665 = vadd.f32 %v10615, %v10540
        %v10666 = vadd.f32 %v10616, %v10541
        %v10667 = vadd.f32 %v10617, %v10542
        %v10668 = vadd.f32 %v10618, %v10543
        %v10669 = vadd.f32 %v10619, %v10544
        %v10670 = vadd.f32 %v10620, %v10545
        %v10671 = vadd.f32 %v10621, %v10546
        %v10672 = vadd.f32 %v10622, %v10547
        %v10673 = vadd.f32 %v10623, %v10548
        %v10674 = vadd.f32 %v10624, %v10549
        %v10675 = vadd.f32 %v10625, %v10550
        %v10676 = vadd.f32 %v10626, %v10551
        %v10677 = vadd.f32 %v10627, %v10552
        %v10678 = vadd.f32 %v10628, %v10553
        %v10679 = vadd.f32 %v10629, %v10554
        %v10680 = vadd.f32 %v10630, %v10555
        %v10681 = vadd.f32 %v10631, %v10556
        %v10682 = vadd.f32 %v10632, %v10557
        %v10683 = vadd.f32 %v10633, %v10558
        %v10684 = vadd.f32 %v10634, %v10559
        %v10685 = vadd.f32 %v10635, %v10560
        %10686 = vst [vmem:[%s522] sm:$0xff] %v10636
        %10687 = vst [vmem:[%s522 + $0x8] sm:$0xff] %v10637
        %10688 = vst [vmem:[%s522 + $0x10] sm:$0xff] %v10638
        %10689 = vst [vmem:[%s522 + $0x18] sm:$0xff] %v10639
        %10690 = vst [vmem:[%s522 + $0x20] sm:$0xff] %v10640
        %10691 = vst [vmem:[%s522 + $0x28] sm:$0xff] %v10641
        %10692 = vst [vmem:[%s522 + $0x30] sm:$0xff] %v10642
        %10693 = vst [vmem:[%s522 + $0x38] sm:$0xff] %v10643
        %10694 = vst [vmem:[%s522 + $0x40] sm:$0xff] %v10644
        %10695 = vst [vmem:[%s522 + $0x48] sm:$0xff] %v10645
        %10696 = vst [vmem:[%s522 + $0x50] sm:$0xff] %v10646
        %10697 = vst [vmem:[%s522 + $0x58] sm:$0xff] %v10647
        %10698 = vst [vmem:[%s522 + $0x60] sm:$0xff] %v10648
        %10699 = vst [vmem:[%s522 + $0x68] sm:$0xff] %v10649
        %10700 = vst [vmem:[%s522 + $0x70] sm:$0xff] %v10650
        %10701 = vst [vmem:[%s522 + $0x78] sm:$0xff] %v10651
        %10702 = vst [vmem:[%s522 + $0x80] sm:$0xff] %v10652
        %10703 = vst [vmem:[%s522 + $0x88] sm:$0xff] %v10653
        %10704 = vst [vmem:[%s522 + $0x90] sm:$0xff] %v10654
        %10705 = vst [vmem:[%s522 + $0x98] sm:$0xff] %v10655
        %10706 = vst [vmem:[%s522 + $0xa0] sm:$0xff] %v10656
        %10707 = vst [vmem:[%s522 + $0xa8] sm:$0xff] %v10657
        %10708 = vst [vmem:[%s522 + $0xb0] sm:$0xff] %v10658
        %10709 = vst [vmem:[%s522 + $0xb8] sm:$0xff] %v10659
        %10710 = vst [vmem:[%s522 + $0xc0] sm:$0xff] %v10660
        %10711 = vst [vmem:[%s522 + $0xc8] sm:$0xff] %v10661
        %10712 = vst [vmem:[%s522 + $0xd0] sm:$0xff] %v10662
        %10713 = vst [vmem:[%s522 + $0xd8] sm:$0xff] %v10663
        %10714 = vst [vmem:[%s522 + $0xe0] sm:$0xff] %v10664
        %10715 = vst [vmem:[%s522 + $0xe8] sm:$0xff] %v10665
        %10716 = vst [vmem:[%s522 + $0xf0] sm:$0xff] %v10666
        %10717 = vst [vmem:[%s522 + $0xf8] sm:$0xff] %v10667
        %10718 = vst [vmem:[%s522 + $0x100] sm:$0xff] %v10668
        %10719 = vst [vmem:[%s522 + $0x108] sm:$0xff] %v10669
        %10720 = vst [vmem:[%s522 + $0x110] sm:$0xff] %v10670
        %10721 = vst [vmem:[%s522 + $0x118] sm:$0xff] %v10671
        %10722 = vst [vmem:[%s522 + $0x120] sm:$0xff] %v10672
        %10723 = vst [vmem:[%s522 + $0x128] sm:$0xff] %v10673
        %10724 = vst [vmem:[%s522 + $0x130] sm:$0xff] %v10674
        %10725 = vst [vmem:[%s522 + $0x138] sm:$0xff] %v10675
        %10726 = vst [vmem:[%s522 + $0x140] sm:$0xff] %v10676
        %10727 = vst [vmem:[%s522 + $0x148] sm:$0xff] %v10677
        %10728 = vst [vmem:[%s522 + $0x150] sm:$0xff] %v10678
        %10729 = vst [vmem:[%s522 + $0x158] sm:$0xff] %v10679
        %10730 = vst [vmem:[%s522 + $0x160] sm:$0xff] %v10680
        %10731 = vst [vmem:[%s522 + $0x168] sm:$0xff] %v10681
        %10732 = vst [vmem:[%s522 + $0x170] sm:$0xff] %v10682
        %10733 = vst [vmem:[%s522 + $0x178] sm:$0xff] %v10683
        %10734 = vst [vmem:[%s522 + $0x180] sm:$0xf] %v10684
        %10735 = vst [vmem:[%s522 + $0x188] sm:$0xf] %v10685
        %p10736 = scmp.lt.s32.totalorder %s28, 1
        %s10737 = scalar_select %p10736, %s28, 1
        %s10738 = smul.addr %s10737, 50
        %s10739 = smul.addr %s10738, 8
        %s10740 = scalar_lea.vmem %s10, %s10739
        // Predicated region
        $region97: #{tpu_custom_call.1} parent=59 // pred_check
          %p10741 = pneg %p266
        $region98: #{tpu_custom_call.1} parent=59 // pred_check_branch
          %10743 = sbr.rel (%p10741) target = $region100
        $region99: #{tpu_custom_call.1} parent=59 // pred_region
          _
        $region100: #{tpu_custom_call.1} parent=59 // pred_fallthru
          _
      $region60: #{tpu_custom_call.1} parent=5 // pred_fallthru
        _
      %p10744 = scmp.le.s32.totalorder 2, %s23
      // Predicated region
      $region101: #{tpu_custom_call.1} parent=5 // pred_check
        %p10745 = pneg %p10744
      $region102: #{tpu_custom_call.1} parent=5 // pred_check_branch
        %10747 = sbr.rel (%p10745) target = $region104
      $region103: #{tpu_custom_call.1} parent=5 // pred_region
        %s10748 = ssub.s32 %s23, 2
        // Predicated region
        $region105: #{tpu_custom_call.1} parent=103 // pred_check
          %p10749 = pneg %p272
        $region106: #{tpu_custom_call.1} parent=103 // pred_check_branch
          %10751 = sbr.rel (%p10749) target = $region108
        $region107: #{tpu_custom_call.1} parent=103 // pred_region
          %p10752 = scmp.lt.s32.totalorder %s29, 1
          %s10753 = scalar_select %p10752, %s29, 1
          %s10754 = smul.addr %s10753, 50
          %s10755 = smul.addr %s10754, 8
          %s10756 = scalar_lea.vmem %s10, %s10755
        $region108: #{tpu_custom_call.1} parent=103 // pred_fallthru
          _
      $region104: #{tpu_custom_call.1} parent=5 // pred_fallthru
        _
    $region6: #{tpu_custom_call.1} parent=1 // loop_footer
      %s27 = sadd.s32 1, %s23
    $region7: #{tpu_custom_call.1} parent=1 // loop_footer_branch
      %22 = sbr.rel target = $region3
    $region8: #{tpu_custom_call.1} parent=1 // loop_exit
      _
    %10757 = vsyncpa [#allocation5], 1
    %s10758 = scalar_lea.sflag [#allocation5], 1
    %10759 = vsyncpa %s10758, 1
    %10760 = vsyncpa [#allocation7], 1
    %10761 = vsyncpa [#allocation10], 1
    %10762 = vsyncpa [#allocation13], 1
    %10763 = vsyncpa [#allocation16], 1

</llo_original>
